<compile_context>
chip_gen: v7x
topology: tpu7x:2x2x1
jax: 0.10.0
libtpu: 0.0.40
codegen_flags: <defaults>
</compile_context>

<pallas_src>
import functools

import jax
import jax.numpy as jnp
import numpy as np
from jax.experimental import pallas as pl
from jax.experimental.pallas import tpu as pltpu

NEG_INF = float("-inf")


# ----------------------------------------------------------------------------
# In-kernel helpers
# ----------------------------------------------------------------------------
def _pointwise(h, w):
    """1x1 conv: contract channel dim of `h` (..., Cin) with w (Cin, Cout).

    For tiny channel counts the MXU is ~97% idle and we would pay full
    systolic-array latency per call, so use Cin VPU FMAs instead.  Larger
    channel counts fall back to a single MXU matmul.
    """
    cin, cout = w.shape
    if cin <= 16:
        out = h[..., 0:1] * w[0:1, :].reshape((1,) * (h.ndim - 1) + (cout,))
        for c in range(1, cin):
            out = out + h[..., c:c + 1] * w[c:c + 1, :].reshape(
                (1,) * (h.ndim - 1) + (cout,))
        return out
    lead = h.shape[:-1]
    m = 1
    for d in lead:
        m *= d
    # TODO(synk): cast operands to bf16 at large C for v6e/v7x MXU peak.
    y = jnp.dot(h.reshape(m, cin), w, preferred_element_type=jnp.float32)
    return y.reshape(lead + (cout,))


# ----------------------------------------------------------------------------
# Fused Block kernel: one grid step == one batch element
# ----------------------------------------------------------------------------
def _block_kernel(x_ref, dw1_ref, pw1_ref, b1_ref, dw2_ref, pw2_ref, b2_ref,
                  sw_ref, sb_ref, o_ref, pad_ci, pad_co, *, H, W):
    Ho, Wo = H // 2, W // 2
    Cin = x_ref.shape[-1]
    Cout = o_ref.shape[-1]

    def relu_pad_sepconv(pad_ref, xin, dw, pw, bias):
        # Zero-pad via VMEM scratch (relu(0)==0, so padding before the ReLU
        # is exact), ReLU, depthwise 3x3 stride-1 on the VPU, then pointwise
        # 1x1 + bias.  BN scale is pre-folded into `pw`; `bias` is the folded
        # BN shift.
        pad_ref[...] = jnp.zeros(pad_ref.shape, jnp.float32)
        pad_ref[1:H + 1, 1:W + 1, :] = xin
        xp = jnp.maximum(pad_ref[...], 0.0)
        acc = xp[0:H, 0:W, :] * dw[0:1, 0:1, :]
        for kh in range(3):
            for kw in range(3):
                if kh == 0 and kw == 0:
                    continue
                acc = acc + (xp[kh:kh + H, kw:kw + W, :]
                             * dw[kh:kh + 1, kw:kw + 1, :])
        cout = pw.shape[-1]
        return _pointwise(acc, pw) + bias.reshape(1, 1, cout)

    x = x_ref[0]                                          # (H, W, Cin)

    # stage 1: ReLU -> SepConv(Cin -> Cout) -> BN          (grow_first)
    y = relu_pad_sepconv(pad_ci, x, dw1_ref[...], pw1_ref[...], b1_ref[...])
    # stage 2: ReLU -> SepConv(Cout -> Cout) -> BN          (reps - 1)
    y = relu_pad_sepconv(pad_co, y, dw2_ref[...], pw2_ref[...], b2_ref[...])

    # MaxPool2d(3, stride=2, pad=1): -inf padded scratch (reusing pad_co),
    # separable max evaluated only at the stride-2 output positions.
    pad_co[...] = jnp.full(pad_co.shape, NEG_INF, jnp.float32)
    pad_co[1:H + 1, 1:W + 1, :] = y
    mp = pad_co[...]                                      # (H+2, W+2, Cout)
    lft = mp[:, 0:W, :].reshape(H + 2, Wo, 2, Cout)       # cols 2j, 2j+1
    rgt = mp[:, 2:W + 2, :].reshape(H + 2, Wo, 2, Cout)   # cols 2j+2
    colmax = jnp.maximum(jnp.maximum(lft[:, :, 0, :], lft[:, :, 1, :]),
                         rgt[:, :, 0, :])                 # (H+2, Wo, Cout)
    top = colmax[0:H, :, :].reshape(Ho, 2, Wo, Cout)      # rows 2i, 2i+1
    bot = colmax[2:H + 2, :, :].reshape(Ho, 2, Wo, Cout)  # rows 2i+2
    pooled = jnp.maximum(jnp.maximum(top[:, 0], top[:, 1]), bot[:, 0])

    # skip branch: 1x1 conv stride 2 (+ BN, scale folded into sw_ref) + add
    xs = x.reshape(Ho, 2, W, Cin)[:, 0]                   # even rows
    xs = xs.reshape(Ho, Wo, 2, Cin)[:, :, 0, :]           # even cols
    sk = _pointwise(xs, sw_ref[...]) + sb_ref[...].reshape(1, 1, Cout)

    o_ref[0] = pooled + sk


# ----------------------------------------------------------------------------
# Wrapper: one pallas_call for the whole Block
# ----------------------------------------------------------------------------
def block_forward_fused(x, stage_params, skip_w, skip_scale, skip_bias):
    # Specialized for Block(in, out, reps=2, strides=2, start_with_relu=True,
    # grow_first=True) in inference mode.
    (dw1, pw1, s1, b1), (dw2, pw2, s2, b2) = stage_params
    N, H, W, Cin = x.shape
    Cout = pw1.shape[1]
    assert H % 2 == 0 and W % 2 == 0, "stride-2 pooling expects even H, W"
    # TODO(synk): odd spatial sizes need explicit tail handling to match
    # PyTorch MaxPool2d(3, 2, 1) output sizes.
    Ho, Wo = H // 2, W // 2

    # Fold BN scale into the 1x1 weights (bias carries the BN shift).
    pw1f = pw1 * s1.reshape(1, Cout)
    pw2f = pw2 * s2.reshape(1, Cout)
    swf = skip_w * skip_scale.reshape(1, Cout)

    kernel = functools.partial(_block_kernel, H=H, W=W)
    return pl.pallas_call(
        kernel,
        out_shape=jax.ShapeDtypeStruct((N, Ho, Wo, Cout), jnp.float32),
        grid_spec=pltpu.PrefetchScalarGridSpec(
            num_scalar_prefetch=0,
            grid=(N,),
            in_specs=[
                pl.BlockSpec((1, H, W, Cin), lambda n: (n, 0, 0, 0)),
                pl.BlockSpec((3, 3, Cin), lambda n: (0, 0, 0)),
                pl.BlockSpec((Cin, Cout), lambda n: (0, 0)),
                pl.BlockSpec((1, Cout), lambda n: (0, 0)),
                pl.BlockSpec((3, 3, Cout), lambda n: (0, 0, 0)),
                pl.BlockSpec((Cout, Cout), lambda n: (0, 0)),
                pl.BlockSpec((1, Cout), lambda n: (0, 0)),
                pl.BlockSpec((Cin, Cout), lambda n: (0, 0)),
                pl.BlockSpec((1, Cout), lambda n: (0, 0)),
            ],
            out_specs=pl.BlockSpec((1, Ho, Wo, Cout), lambda n: (n, 0, 0, 0)),
            scratch_shapes=[
                pltpu.VMEM((H + 2, W + 2, Cin), jnp.float32),   # conv pad
                pltpu.VMEM((H + 2, W + 2, Cout), jnp.float32),  # conv/pool pad
            ],
        ),
        compiler_params=pltpu.CompilerParams(
            dimension_semantics=("parallel",)),   # v7x: split batch over TCs
    )(x, dw1, pw1f, b1, dw2, pw2f, b2, swf, skip_bias)


block_forward = jax.jit(block_forward_fused)


# ----------------------------------------------------------------------------
# Pure-JAX reference (same NHWC math) for correctness checking
# ----------------------------------------------------------------------------
def block_reference(x, stage_params, skip_w, skip_scale, skip_bias):
    y = x
    for (dw_w, pw_w, scale, bias) in stage_params:
        y = jnp.maximum(y, 0.0)
        cin = y.shape[-1]
        y = jax.lax.conv_general_dilated(
            y, dw_w[:, :, None, :], window_strides=(1, 1),
            padding=((1, 1), (1, 1)),
            dimension_numbers=("NHWC", "HWIO", "NHWC"),
            feature_group_count=cin)
        y = jnp.einsum("nhwc,co->nhwo", y, pw_w)
        y = y * scale[0] + bias[0]
    y = jax.lax.reduce_window(
        y, -jnp.inf, jax.lax.max,
        (1, 3, 3, 1), (1, 2, 2, 1), ((0, 0), (1, 1), (1, 1), (0, 0)))
    sk = jnp.einsum("nhwc,co->nhwo", x[:, ::2, ::2, :], skip_w)
    sk = sk * skip_scale[0] + skip_bias[0]
    return y + sk


if __name__ == "__main__":
    # Block(in_filters=4, out_filters=8, reps=2, strides=2)
    N, Cin, H, W = 2, 4, 16, 16
    Cout = 8

    key = jax.random.PRNGKey(0)
    keys = jax.random.split(key, 10)

    # input in PyTorch NCHW, converted to NHWC for the kernel
    x_nchw = jax.random.normal(keys[0], (N, Cin, H, W), jnp.float32)
    x = jnp.transpose(x_nchw, (0, 2, 3, 1))

    def bn_params(k, c):
        k1, k2, k3, k4 = jax.random.split(k, 4)
        gamma = jax.random.uniform(k1, (c,), minval=0.5, maxval=1.5)
        beta = 0.1 * jax.random.normal(k2, (c,))
        mean = 0.1 * jax.random.normal(k3, (c,))
        var = jax.random.uniform(k4, (c,), minval=0.5, maxval=1.5)
        scale = gamma / jnp.sqrt(var + 1e-5)
        bias = beta - mean * scale
        return (scale.reshape(1, c).astype(jnp.float32),
                bias.reshape(1, c).astype(jnp.float32))

    # stage 1: SepConv(4 -> 8) + BN   (grow_first)
    dw1 = 0.1 * jax.random.normal(keys[1], (3, 3, Cin), jnp.float32)
    pw1 = 0.1 * jax.random.normal(keys[2], (Cin, Cout), jnp.float32)
    s1, b1 = bn_params(keys[3], Cout)
    # stage 2: SepConv(8 -> 8) + BN   (reps - 1 repetitions)
    dw2 = 0.1 * jax.random.normal(keys[4], (3, 3, Cout), jnp.float32)
    pw2 = 0.1 * jax.random.normal(keys[5], (Cout, Cout), jnp.float32)
    s2, b2 = bn_params(keys[6], Cout)
    # skip: Conv1x1(4 -> 8, stride=2) + BN
    sw = 0.1 * jax.random.normal(keys[7], (Cin, Cout), jnp.float32)
    ss, sb = bn_params(keys[8], Cout)

    stage_params = ((dw1, pw1, s1, b1), (dw2, pw2, s2, b2))

    out = block_forward(x, stage_params, sw, ss, sb)
    out = jax.block_until_ready(out)

    ref = block_reference(x, stage_params, sw, ss, sb)
    np.testing.assert_allclose(np.asarray(out), np.asarray(ref),
                               atol=1e-3, rtol=1e-3)
    assert out.shape == (N, H // 2, W // 2, Cout)
    print("KERNEL_OK")
</pallas_src>

<mosaic_0001>
module attributes {stable_mosaic.version = 11 : i64} {
  func.func @_block_kernel(%arg0: i32, %arg1: memref<1x16x16x4xf32, #tpu.memory_space<vmem>>, %arg2: memref<3x3x4xf32, #tpu.memory_space<vmem>>, %arg3: memref<4x8xf32, #tpu.memory_space<vmem>>, %arg4: memref<1x8xf32, #tpu.memory_space<vmem>>, %arg5: memref<3x3x8xf32, #tpu.memory_space<vmem>>, %arg6: memref<8x8xf32, #tpu.memory_space<vmem>>, %arg7: memref<1x8xf32, #tpu.memory_space<vmem>>, %arg8: memref<4x8xf32, #tpu.memory_space<vmem>>, %arg9: memref<1x8xf32, #tpu.memory_space<vmem>>, %arg10: memref<1x8x8x8xf32, #tpu.memory_space<vmem>>, %arg11: memref<18x18x4xf32, #tpu.memory_space<vmem>>, %arg12: memref<18x18x8xf32, #tpu.memory_space<vmem>>) attributes {dimension_semantics = [#tpu.dimension_semantics<parallel>], iteration_bounds = array<i64: 2>, scalar_prefetch = 0 : i64, scratch_operands = 2 : i64, tpu.core_type = #tpu.core_type<tc>, window_params = [{transform_indices = @transform_0, window_bounds = array<i64: 1, 16, 16, 4>}, {pipeline_mode = #tpu.pipeline_mode<synchronous>, transform_indices = @transform_1, window_bounds = array<i64: 3, 3, 4>}, {pipeline_mode = #tpu.pipeline_mode<synchronous>, transform_indices = @transform_2, window_bounds = array<i64: 4, 8>}, {pipeline_mode = #tpu.pipeline_mode<synchronous>, transform_indices = @transform_3, window_bounds = array<i64: 1, 8>}, {pipeline_mode = #tpu.pipeline_mode<synchronous>, transform_indices = @transform_4, window_bounds = array<i64: 3, 3, 8>}, {pipeline_mode = #tpu.pipeline_mode<synchronous>, transform_indices = @transform_5, window_bounds = array<i64: 8, 8>}, {pipeline_mode = #tpu.pipeline_mode<synchronous>, transform_indices = @transform_6, window_bounds = array<i64: 1, 8>}, {pipeline_mode = #tpu.pipeline_mode<synchronous>, transform_indices = @transform_7, window_bounds = array<i64: 4, 8>}, {pipeline_mode = #tpu.pipeline_mode<synchronous>, transform_indices = @transform_8, window_bounds = array<i64: 1, 8>}, {transform_indices = @transform_9, window_bounds = array<i64: 1, 8, 8, 8>}]} {
    %c0 = arith.constant 0 : index
    %c0_0 = arith.constant 0 : index
    %c0_1 = arith.constant 0 : index
    %c0_2 = arith.constant 0 : index
    %0 = vector.load %arg1[%c0, %c0_0, %c0_1, %c0_2] : memref<1x16x16x4xf32, #tpu.memory_space<vmem>>, vector<1x16x16x4xf32>
    %1 = vector.shape_cast %0 : vector<1x16x16x4xf32> to vector<16x16x4xf32>
    %c0_3 = arith.constant 0 : index
    %c0_4 = arith.constant 0 : index
    %c0_5 = arith.constant 0 : index
    %2 = vector.load %arg2[%c0_3, %c0_4, %c0_5] : memref<3x3x4xf32, #tpu.memory_space<vmem>>, vector<3x3x4xf32>
    %c0_6 = arith.constant 0 : index
    %c0_7 = arith.constant 0 : index
    %3 = vector.load %arg3[%c0_6, %c0_7] : memref<4x8xf32, #tpu.memory_space<vmem>>, vector<4x8xf32>
    %c0_8 = arith.constant 0 : index
    %c0_9 = arith.constant 0 : index
    %4 = vector.load %arg4[%c0_8, %c0_9] : memref<1x8xf32, #tpu.memory_space<vmem>>, vector<1x8xf32>
    %cst = arith.constant 0.000000e+00 : f32
    %5 = vector.broadcast %cst : f32 to vector<18x18x4xf32>
    %c0_10 = arith.constant 0 : index
    %c0_11 = arith.constant 0 : index
    %c0_12 = arith.constant 0 : index
    %6 = vector.load %arg11[%c0_10, %c0_11, %c0_12] : memref<18x18x4xf32, #tpu.memory_space<vmem>>, vector<18x18x4xf32>
    tpu.vector_store %arg11[%c0_10, %c0_11, %c0_12], %5 {strides = array<i32>} : memref<18x18x4xf32, #tpu.memory_space<vmem>>, vector<18x18x4xf32>,
    %c1 = arith.constant 1 : index
    %c1_13 = arith.constant 1 : index
    %c0_14 = arith.constant 0 : index
    %7 = vector.load %arg11[%c1, %c1_13, %c0_14] : memref<18x18x4xf32, #tpu.memory_space<vmem>>, vector<16x16x4xf32>
    tpu.vector_store %arg11[%c1, %c1_13, %c0_14], %1 {strides = array<i32>} : memref<18x18x4xf32, #tpu.memory_space<vmem>>, vector<16x16x4xf32>,
    %c0_15 = arith.constant 0 : index
    %c0_16 = arith.constant 0 : index
    %c0_17 = arith.constant 0 : index
    %8 = vector.load %arg11[%c0_15, %c0_16, %c0_17] : memref<18x18x4xf32, #tpu.memory_space<vmem>>, vector<18x18x4xf32>
    %cst_18 = arith.constant 0.000000e+00 : f32
    %9 = vector.broadcast %cst_18 : f32 to vector<18x18x4xf32>
    %10 = arith.maximumf %8, %9 : vector<18x18x4xf32>
    %11 = vector.extract_strided_slice %10 {offsets = [0, 0, 0], sizes = [16, 16, 4], strides = [1, 1, 1]} : vector<18x18x4xf32> to vector<16x16x4xf32>
    %12 = vector.extract_strided_slice %2 {offsets = [0, 0, 0], sizes = [1, 1, 4], strides = [1, 1, 1]} : vector<3x3x4xf32> to vector<1x1x4xf32>
    %13 = vector.broadcast %12 : vector<1x1x4xf32> to vector<16x16x4xf32>
    %14 = arith.mulf %11, %13 : vector<16x16x4xf32>
    %15 = vector.extract_strided_slice %10 {offsets = [0, 1, 0], sizes = [16, 16, 4], strides = [1, 1, 1]} : vector<18x18x4xf32> to vector<16x16x4xf32>
    %16 = vector.extract_strided_slice %2 {offsets = [0, 1, 0], sizes = [1, 1, 4], strides = [1, 1, 1]} : vector<3x3x4xf32> to vector<1x1x4xf32>
    %17 = vector.broadcast %16 : vector<1x1x4xf32> to vector<16x16x4xf32>
    %18 = arith.mulf %15, %17 : vector<16x16x4xf32>
    %19 = arith.addf %14, %18 : vector<16x16x4xf32>
    %20 = vector.extract_strided_slice %10 {offsets = [0, 2, 0], sizes = [16, 16, 4], strides = [1, 1, 1]} : vector<18x18x4xf32> to vector<16x16x4xf32>
    %21 = vector.extract_strided_slice %2 {offsets = [0, 2, 0], sizes = [1, 1, 4], strides = [1, 1, 1]} : vector<3x3x4xf32> to vector<1x1x4xf32>
    %22 = vector.broadcast %21 : vector<1x1x4xf32> to vector<16x16x4xf32>
    %23 = arith.mulf %20, %22 : vector<16x16x4xf32>
    %24 = arith.addf %19, %23 : vector<16x16x4xf32>
    %25 = vector.extract_strided_slice %10 {offsets = [1, 0, 0], sizes = [16, 16, 4], strides = [1, 1, 1]} : vector<18x18x4xf32> to vector<16x16x4xf32>
    %26 = vector.extract_strided_slice %2 {offsets = [1, 0, 0], sizes = [1, 1, 4], strides = [1, 1, 1]} : vector<3x3x4xf32> to vector<1x1x4xf32>
    %27 = vector.broadcast %26 : vector<1x1x4xf32> to vector<16x16x4xf32>
    %28 = arith.mulf %25, %27 : vector<16x16x4xf32>
    %29 = arith.addf %24, %28 : vector<16x16x4xf32>
    %30 = vector.extract_strided_slice %10 {offsets = [1, 1, 0], sizes = [16, 16, 4], strides = [1, 1, 1]} : vector<18x18x4xf32> to vector<16x16x4xf32>
    %31 = vector.extract_strided_slice %2 {offsets = [1, 1, 0], sizes = [1, 1, 4], strides = [1, 1, 1]} : vector<3x3x4xf32> to vector<1x1x4xf32>
    %32 = vector.broadcast %31 : vector<1x1x4xf32> to vector<16x16x4xf32>
    %33 = arith.mulf %30, %32 : vector<16x16x4xf32>
    %34 = arith.addf %29, %33 : vector<16x16x4xf32>
    %35 = vector.extract_strided_slice %10 {offsets = [1, 2, 0], sizes = [16, 16, 4], strides = [1, 1, 1]} : vector<18x18x4xf32> to vector<16x16x4xf32>
    %36 = vector.extract_strided_slice %2 {offsets = [1, 2, 0], sizes = [1, 1, 4], strides = [1, 1, 1]} : vector<3x3x4xf32> to vector<1x1x4xf32>
    %37 = vector.broadcast %36 : vector<1x1x4xf32> to vector<16x16x4xf32>
    %38 = arith.mulf %35, %37 : vector<16x16x4xf32>
    %39 = arith.addf %34, %38 : vector<16x16x4xf32>
    %40 = vector.extract_strided_slice %10 {offsets = [2, 0, 0], sizes = [16, 16, 4], strides = [1, 1, 1]} : vector<18x18x4xf32> to vector<16x16x4xf32>
    %41 = vector.extract_strided_slice %2 {offsets = [2, 0, 0], sizes = [1, 1, 4], strides = [1, 1, 1]} : vector<3x3x4xf32> to vector<1x1x4xf32>
    %42 = vector.broadcast %41 : vector<1x1x4xf32> to vector<16x16x4xf32>
    %43 = arith.mulf %40, %42 : vector<16x16x4xf32>
    %44 = arith.addf %39, %43 : vector<16x16x4xf32>
    %45 = vector.extract_strided_slice %10 {offsets = [2, 1, 0], sizes = [16, 16, 4], strides = [1, 1, 1]} : vector<18x18x4xf32> to vector<16x16x4xf32>
    %46 = vector.extract_strided_slice %2 {offsets = [2, 1, 0], sizes = [1, 1, 4], strides = [1, 1, 1]} : vector<3x3x4xf32> to vector<1x1x4xf32>
    %47 = vector.broadcast %46 : vector<1x1x4xf32> to vector<16x16x4xf32>
    %48 = arith.mulf %45, %47 : vector<16x16x4xf32>
    %49 = arith.addf %44, %48 : vector<16x16x4xf32>
    %50 = vector.extract_strided_slice %10 {offsets = [2, 2, 0], sizes = [16, 16, 4], strides = [1, 1, 1]} : vector<18x18x4xf32> to vector<16x16x4xf32>
    %51 = vector.extract_strided_slice %2 {offsets = [2, 2, 0], sizes = [1, 1, 4], strides = [1, 1, 1]} : vector<3x3x4xf32> to vector<1x1x4xf32>
    %52 = vector.broadcast %51 : vector<1x1x4xf32> to vector<16x16x4xf32>
    %53 = arith.mulf %50, %52 : vector<16x16x4xf32>
    %54 = arith.addf %49, %53 : vector<16x16x4xf32>
    %55 = vector.extract_strided_slice %54 {offsets = [0, 0, 0], sizes = [16, 16, 1], strides = [1, 1, 1]} : vector<16x16x4xf32> to vector<16x16x1xf32>
    %56 = vector.extract_strided_slice %3 {offsets = [0, 0], sizes = [1, 8], strides = [1, 1]} : vector<4x8xf32> to vector<1x8xf32>
    %57 = vector.shape_cast %56 : vector<1x8xf32> to vector<1x1x8xf32>
    %58 = vector.broadcast %55 : vector<16x16x1xf32> to vector<16x16x8xf32>
    %59 = vector.broadcast %57 : vector<1x1x8xf32> to vector<16x16x8xf32>
    %60 = arith.mulf %58, %59 : vector<16x16x8xf32>
    %61 = vector.extract_strided_slice %54 {offsets = [0, 0, 1], sizes = [16, 16, 1], strides = [1, 1, 1]} : vector<16x16x4xf32> to vector<16x16x1xf32>
    %62 = vector.extract_strided_slice %3 {offsets = [1, 0], sizes = [1, 8], strides = [1, 1]} : vector<4x8xf32> to vector<1x8xf32>
    %63 = vector.shape_cast %62 : vector<1x8xf32> to vector<1x1x8xf32>
    %64 = vector.broadcast %61 : vector<16x16x1xf32> to vector<16x16x8xf32>
    %65 = vector.broadcast %63 : vector<1x1x8xf32> to vector<16x16x8xf32>
    %66 = arith.mulf %64, %65 : vector<16x16x8xf32>
    %67 = arith.addf %60, %66 : vector<16x16x8xf32>
    %68 = vector.extract_strided_slice %54 {offsets = [0, 0, 2], sizes = [16, 16, 1], strides = [1, 1, 1]} : vector<16x16x4xf32> to vector<16x16x1xf32>
    %69 = vector.extract_strided_slice %3 {offsets = [2, 0], sizes = [1, 8], strides = [1, 1]} : vector<4x8xf32> to vector<1x8xf32>
    %70 = vector.shape_cast %69 : vector<1x8xf32> to vector<1x1x8xf32>
    %71 = vector.broadcast %68 : vector<16x16x1xf32> to vector<16x16x8xf32>
    %72 = vector.broadcast %70 : vector<1x1x8xf32> to vector<16x16x8xf32>
    %73 = arith.mulf %71, %72 : vector<16x16x8xf32>
    %74 = arith.addf %67, %73 : vector<16x16x8xf32>
    %75 = vector.extract_strided_slice %54 {offsets = [0, 0, 3], sizes = [16, 16, 1], strides = [1, 1, 1]} : vector<16x16x4xf32> to vector<16x16x1xf32>
    %76 = vector.extract_strided_slice %3 {offsets = [3, 0], sizes = [1, 8], strides = [1, 1]} : vector<4x8xf32> to vector<1x8xf32>
    %77 = vector.shape_cast %76 : vector<1x8xf32> to vector<1x1x8xf32>
    %78 = vector.broadcast %75 : vector<16x16x1xf32> to vector<16x16x8xf32>
    %79 = vector.broadcast %77 : vector<1x1x8xf32> to vector<16x16x8xf32>
    %80 = arith.mulf %78, %79 : vector<16x16x8xf32>
    %81 = arith.addf %74, %80 : vector<16x16x8xf32>
    %82 = vector.shape_cast %4 : vector<1x8xf32> to vector<1x1x8xf32>
    %83 = vector.broadcast %82 : vector<1x1x8xf32> to vector<16x16x8xf32>
    %84 = arith.addf %81, %83 : vector<16x16x8xf32>
    %c0_19 = arith.constant 0 : index
    %c0_20 = arith.constant 0 : index
    %c0_21 = arith.constant 0 : index
    %85 = vector.load %arg5[%c0_19, %c0_20, %c0_21] : memref<3x3x8xf32, #tpu.memory_space<vmem>>, vector<3x3x8xf32>
    %c0_22 = arith.constant 0 : index
    %c0_23 = arith.constant 0 : index
    %86 = vector.load %arg6[%c0_22, %c0_23] : memref<8x8xf32, #tpu.memory_space<vmem>>, vector<8x8xf32>
    %c0_24 = arith.constant 0 : index
    %c0_25 = arith.constant 0 : index
    %87 = vector.load %arg7[%c0_24, %c0_25] : memref<1x8xf32, #tpu.memory_space<vmem>>, vector<1x8xf32>
    %cst_26 = arith.constant 0.000000e+00 : f32
    %88 = vector.broadcast %cst_26 : f32 to vector<18x18x8xf32>
    %c0_27 = arith.constant 0 : index
    %c0_28 = arith.constant 0 : index
    %c0_29 = arith.constant 0 : index
    %89 = vector.load %arg12[%c0_27, %c0_28, %c0_29] : memref<18x18x8xf32, #tpu.memory_space<vmem>>, vector<18x18x8xf32>
    tpu.vector_store %arg12[%c0_27, %c0_28, %c0_29], %88 {strides = array<i32>} : memref<18x18x8xf32, #tpu.memory_space<vmem>>, vector<18x18x8xf32>,
    %c1_30 = arith.constant 1 : index
    %c1_31 = arith.constant 1 : index
    %c0_32 = arith.constant 0 : index
    %90 = vector.load %arg12[%c1_30, %c1_31, %c0_32] : memref<18x18x8xf32, #tpu.memory_space<vmem>>, vector<16x16x8xf32>
    tpu.vector_store %arg12[%c1_30, %c1_31, %c0_32], %84 {strides = array<i32>} : memref<18x18x8xf32, #tpu.memory_space<vmem>>, vector<16x16x8xf32>,
    %c0_33 = arith.constant 0 : index
    %c0_34 = arith.constant 0 : index
    %c0_35 = arith.constant 0 : index
    %91 = vector.load %arg12[%c0_33, %c0_34, %c0_35] : memref<18x18x8xf32, #tpu.memory_space<vmem>>, vector<18x18x8xf32>
    %cst_36 = arith.constant 0.000000e+00 : f32
    %92 = vector.broadcast %cst_36 : f32 to vector<18x18x8xf32>
    %93 = arith.maximumf %91, %92 : vector<18x18x8xf32>
    %94 = vector.extract_strided_slice %93 {offsets = [0, 0, 0], sizes = [16, 16, 8], strides = [1, 1, 1]} : vector<18x18x8xf32> to vector<16x16x8xf32>
    %95 = vector.extract_strided_slice %85 {offsets = [0, 0, 0], sizes = [1, 1, 8], strides = [1, 1, 1]} : vector<3x3x8xf32> to vector<1x1x8xf32>
    %96 = vector.broadcast %95 : vector<1x1x8xf32> to vector<16x16x8xf32>
    %97 = arith.mulf %94, %96 : vector<16x16x8xf32>
    %98 = vector.extract_strided_slice %93 {offsets = [0, 1, 0], sizes = [16, 16, 8], strides = [1, 1, 1]} : vector<18x18x8xf32> to vector<16x16x8xf32>
    %99 = vector.extract_strided_slice %85 {offsets = [0, 1, 0], sizes = [1, 1, 8], strides = [1, 1, 1]} : vector<3x3x8xf32> to vector<1x1x8xf32>
    %100 = vector.broadcast %99 : vector<1x1x8xf32> to vector<16x16x8xf32>
    %101 = arith.mulf %98, %100 : vector<16x16x8xf32>
    %102 = arith.addf %97, %101 : vector<16x16x8xf32>
    %103 = vector.extract_strided_slice %93 {offsets = [0, 2, 0], sizes = [16, 16, 8], strides = [1, 1, 1]} : vector<18x18x8xf32> to vector<16x16x8xf32>
    %104 = vector.extract_strided_slice %85 {offsets = [0, 2, 0], sizes = [1, 1, 8], strides = [1, 1, 1]} : vector<3x3x8xf32> to vector<1x1x8xf32>
    %105 = vector.broadcast %104 : vector<1x1x8xf32> to vector<16x16x8xf32>
    %106 = arith.mulf %103, %105 : vector<16x16x8xf32>
    %107 = arith.addf %102, %106 : vector<16x16x8xf32>
    %108 = vector.extract_strided_slice %93 {offsets = [1, 0, 0], sizes = [16, 16, 8], strides = [1, 1, 1]} : vector<18x18x8xf32> to vector<16x16x8xf32>
    %109 = vector.extract_strided_slice %85 {offsets = [1, 0, 0], sizes = [1, 1, 8], strides = [1, 1, 1]} : vector<3x3x8xf32> to vector<1x1x8xf32>
    %110 = vector.broadcast %109 : vector<1x1x8xf32> to vector<16x16x8xf32>
    %111 = arith.mulf %108, %110 : vector<16x16x8xf32>
    %112 = arith.addf %107, %111 : vector<16x16x8xf32>
    %113 = vector.extract_strided_slice %93 {offsets = [1, 1, 0], sizes = [16, 16, 8], strides = [1, 1, 1]} : vector<18x18x8xf32> to vector<16x16x8xf32>
    %114 = vector.extract_strided_slice %85 {offsets = [1, 1, 0], sizes = [1, 1, 8], strides = [1, 1, 1]} : vector<3x3x8xf32> to vector<1x1x8xf32>
    %115 = vector.broadcast %114 : vector<1x1x8xf32> to vector<16x16x8xf32>
    %116 = arith.mulf %113, %115 : vector<16x16x8xf32>
    %117 = arith.addf %112, %116 : vector<16x16x8xf32>
    %118 = vector.extract_strided_slice %93 {offsets = [1, 2, 0], sizes = [16, 16, 8], strides = [1, 1, 1]} : vector<18x18x8xf32> to vector<16x16x8xf32>
    %119 = vector.extract_strided_slice %85 {offsets = [1, 2, 0], sizes = [1, 1, 8], strides = [1, 1, 1]} : vector<3x3x8xf32> to vector<1x1x8xf32>
    %120 = vector.broadcast %119 : vector<1x1x8xf32> to vector<16x16x8xf32>
    %121 = arith.mulf %118, %120 : vector<16x16x8xf32>
    %122 = arith.addf %117, %121 : vector<16x16x8xf32>
    %123 = vector.extract_strided_slice %93 {offsets = [2, 0, 0], sizes = [16, 16, 8], strides = [1, 1, 1]} : vector<18x18x8xf32> to vector<16x16x8xf32>
    %124 = vector.extract_strided_slice %85 {offsets = [2, 0, 0], sizes = [1, 1, 8], strides = [1, 1, 1]} : vector<3x3x8xf32> to vector<1x1x8xf32>
    %125 = vector.broadcast %124 : vector<1x1x8xf32> to vector<16x16x8xf32>
    %126 = arith.mulf %123, %125 : vector<16x16x8xf32>
    %127 = arith.addf %122, %126 : vector<16x16x8xf32>
    %128 = vector.extract_strided_slice %93 {offsets = [2, 1, 0], sizes = [16, 16, 8], strides = [1, 1, 1]} : vector<18x18x8xf32> to vector<16x16x8xf32>
    %129 = vector.extract_strided_slice %85 {offsets = [2, 1, 0], sizes = [1, 1, 8], strides = [1, 1, 1]} : vector<3x3x8xf32> to vector<1x1x8xf32>
    %130 = vector.broadcast %129 : vector<1x1x8xf32> to vector<16x16x8xf32>
    %131 = arith.mulf %128, %130 : vector<16x16x8xf32>
    %132 = arith.addf %127, %131 : vector<16x16x8xf32>
    %133 = vector.extract_strided_slice %93 {offsets = [2, 2, 0], sizes = [16, 16, 8], strides = [1, 1, 1]} : vector<18x18x8xf32> to vector<16x16x8xf32>
    %134 = vector.extract_strided_slice %85 {offsets = [2, 2, 0], sizes = [1, 1, 8], strides = [1, 1, 1]} : vector<3x3x8xf32> to vector<1x1x8xf32>
    %135 = vector.broadcast %134 : vector<1x1x8xf32> to vector<16x16x8xf32>
    %136 = arith.mulf %133, %135 : vector<16x16x8xf32>
    %137 = arith.addf %132, %136 : vector<16x16x8xf32>
    %138 = vector.extract_strided_slice %137 {offsets = [0, 0, 0], sizes = [16, 16, 1], strides = [1, 1, 1]} : vector<16x16x8xf32> to vector<16x16x1xf32>
    %139 = vector.extract_strided_slice %86 {offsets = [0, 0], sizes = [1, 8], strides = [1, 1]} : vector<8x8xf32> to vector<1x8xf32>
    %140 = vector.shape_cast %139 : vector<1x8xf32> to vector<1x1x8xf32>
    %141 = vector.broadcast %138 : vector<16x16x1xf32> to vector<16x16x8xf32>
    %142 = vector.broadcast %140 : vector<1x1x8xf32> to vector<16x16x8xf32>
    %143 = arith.mulf %141, %142 : vector<16x16x8xf32>
    %144 = vector.extract_strided_slice %137 {offsets = [0, 0, 1], sizes = [16, 16, 1], strides = [1, 1, 1]} : vector<16x16x8xf32> to vector<16x16x1xf32>
    %145 = vector.extract_strided_slice %86 {offsets = [1, 0], sizes = [1, 8], strides = [1, 1]} : vector<8x8xf32> to vector<1x8xf32>
    %146 = vector.shape_cast %145 : vector<1x8xf32> to vector<1x1x8xf32>
    %147 = vector.broadcast %144 : vector<16x16x1xf32> to vector<16x16x8xf32>
    %148 = vector.broadcast %146 : vector<1x1x8xf32> to vector<16x16x8xf32>
    %149 = arith.mulf %147, %148 : vector<16x16x8xf32>
    %150 = arith.addf %143, %149 : vector<16x16x8xf32>
    %151 = vector.extract_strided_slice %137 {offsets = [0, 0, 2], sizes = [16, 16, 1], strides = [1, 1, 1]} : vector<16x16x8xf32> to vector<16x16x1xf32>
    %152 = vector.extract_strided_slice %86 {offsets = [2, 0], sizes = [1, 8], strides = [1, 1]} : vector<8x8xf32> to vector<1x8xf32>
    %153 = vector.shape_cast %152 : vector<1x8xf32> to vector<1x1x8xf32>
    %154 = vector.broadcast %151 : vector<16x16x1xf32> to vector<16x16x8xf32>
    %155 = vector.broadcast %153 : vector<1x1x8xf32> to vector<16x16x8xf32>
    %156 = arith.mulf %154, %155 : vector<16x16x8xf32>
    %157 = arith.addf %150, %156 : vector<16x16x8xf32>
    %158 = vector.extract_strided_slice %137 {offsets = [0, 0, 3], sizes = [16, 16, 1], strides = [1, 1, 1]} : vector<16x16x8xf32> to vector<16x16x1xf32>
    %159 = vector.extract_strided_slice %86 {offsets = [3, 0], sizes = [1, 8], strides = [1, 1]} : vector<8x8xf32> to vector<1x8xf32>
    %160 = vector.shape_cast %159 : vector<1x8xf32> to vector<1x1x8xf32>
    %161 = vector.broadcast %158 : vector<16x16x1xf32> to vector<16x16x8xf32>
    %162 = vector.broadcast %160 : vector<1x1x8xf32> to vector<16x16x8xf32>
    %163 = arith.mulf %161, %162 : vector<16x16x8xf32>
    %164 = arith.addf %157, %163 : vector<16x16x8xf32>
    %165 = vector.extract_strided_slice %137 {offsets = [0, 0, 4], sizes = [16, 16, 1], strides = [1, 1, 1]} : vector<16x16x8xf32> to vector<16x16x1xf32>
    %166 = vector.extract_strided_slice %86 {offsets = [4, 0], sizes = [1, 8], strides = [1, 1]} : vector<8x8xf32> to vector<1x8xf32>
    %167 = vector.shape_cast %166 : vector<1x8xf32> to vector<1x1x8xf32>
    %168 = vector.broadcast %165 : vector<16x16x1xf32> to vector<16x16x8xf32>
    %169 = vector.broadcast %167 : vector<1x1x8xf32> to vector<16x16x8xf32>
    %170 = arith.mulf %168, %169 : vector<16x16x8xf32>
    %171 = arith.addf %164, %170 : vector<16x16x8xf32>
    %172 = vector.extract_strided_slice %137 {offsets = [0, 0, 5], sizes = [16, 16, 1], strides = [1, 1, 1]} : vector<16x16x8xf32> to vector<16x16x1xf32>
    %173 = vector.extract_strided_slice %86 {offsets = [5, 0], sizes = [1, 8], strides = [1, 1]} : vector<8x8xf32> to vector<1x8xf32>
    %174 = vector.shape_cast %173 : vector<1x8xf32> to vector<1x1x8xf32>
    %175 = vector.broadcast %172 : vector<16x16x1xf32> to vector<16x16x8xf32>
    %176 = vector.broadcast %174 : vector<1x1x8xf32> to vector<16x16x8xf32>
    %177 = arith.mulf %175, %176 : vector<16x16x8xf32>
    %178 = arith.addf %171, %177 : vector<16x16x8xf32>
    %179 = vector.extract_strided_slice %137 {offsets = [0, 0, 6], sizes = [16, 16, 1], strides = [1, 1, 1]} : vector<16x16x8xf32> to vector<16x16x1xf32>
    %180 = vector.extract_strided_slice %86 {offsets = [6, 0], sizes = [1, 8], strides = [1, 1]} : vector<8x8xf32> to vector<1x8xf32>
    %181 = vector.shape_cast %180 : vector<1x8xf32> to vector<1x1x8xf32>
    %182 = vector.broadcast %179 : vector<16x16x1xf32> to vector<16x16x8xf32>
    %183 = vector.broadcast %181 : vector<1x1x8xf32> to vector<16x16x8xf32>
    %184 = arith.mulf %182, %183 : vector<16x16x8xf32>
    %185 = arith.addf %178, %184 : vector<16x16x8xf32>
    %186 = vector.extract_strided_slice %137 {offsets = [0, 0, 7], sizes = [16, 16, 1], strides = [1, 1, 1]} : vector<16x16x8xf32> to vector<16x16x1xf32>
    %187 = vector.extract_strided_slice %86 {offsets = [7, 0], sizes = [1, 8], strides = [1, 1]} : vector<8x8xf32> to vector<1x8xf32>
    %188 = vector.shape_cast %187 : vector<1x8xf32> to vector<1x1x8xf32>
    %189 = vector.broadcast %186 : vector<16x16x1xf32> to vector<16x16x8xf32>
    %190 = vector.broadcast %188 : vector<1x1x8xf32> to vector<16x16x8xf32>
    %191 = arith.mulf %189, %190 : vector<16x16x8xf32>
    %192 = arith.addf %185, %191 : vector<16x16x8xf32>
    %193 = vector.shape_cast %87 : vector<1x8xf32> to vector<1x1x8xf32>
    %194 = vector.broadcast %193 : vector<1x1x8xf32> to vector<16x16x8xf32>
    %195 = arith.addf %192, %194 : vector<16x16x8xf32>
    %cst_37 = arith.constant 0xFF800000 : f32
    %196 = vector.broadcast %cst_37 : f32 to vector<18x18x8xf32>
    %c0_38 = arith.constant 0 : index
    %c0_39 = arith.constant 0 : index
    %c0_40 = arith.constant 0 : index
    %197 = vector.load %arg12[%c0_38, %c0_39, %c0_40] : memref<18x18x8xf32, #tpu.memory_space<vmem>>, vector<18x18x8xf32>
    tpu.vector_store %arg12[%c0_38, %c0_39, %c0_40], %196 {strides = array<i32>} : memref<18x18x8xf32, #tpu.memory_space<vmem>>, vector<18x18x8xf32>,
    %c1_41 = arith.constant 1 : index
    %c1_42 = arith.constant 1 : index
    %c0_43 = arith.constant 0 : index
    %198 = vector.load %arg12[%c1_41, %c1_42, %c0_43] : memref<18x18x8xf32, #tpu.memory_space<vmem>>, vector<16x16x8xf32>
    tpu.vector_store %arg12[%c1_41, %c1_42, %c0_43], %195 {strides = array<i32>} : memref<18x18x8xf32, #tpu.memory_space<vmem>>, vector<16x16x8xf32>,
    %c0_44 = arith.constant 0 : index
    %c0_45 = arith.constant 0 : index
    %c0_46 = arith.constant 0 : index
    %199 = vector.load %arg12[%c0_44, %c0_45, %c0_46] : memref<18x18x8xf32, #tpu.memory_space<vmem>>, vector<18x18x8xf32>
    %200 = vector.extract_strided_slice %199 {offsets = [0, 0, 0], sizes = [18, 16, 8], strides = [1, 1, 1]} : vector<18x18x8xf32> to vector<18x16x8xf32>
    %201 = vector.shape_cast %200 : vector<18x16x8xf32> to vector<18x8x2x8xf32>
    %202 = vector.extract_strided_slice %199 {offsets = [0, 2, 0], sizes = [18, 16, 8], strides = [1, 1, 1]} : vector<18x18x8xf32> to vector<18x16x8xf32>
    %203 = vector.shape_cast %202 : vector<18x16x8xf32> to vector<18x8x2x8xf32>
    %204 = vector.extract_strided_slice %201 {offsets = [0, 0, 0, 0], sizes = [18, 8, 1, 8], strides = [1, 1, 1, 1]} : vector<18x8x2x8xf32> to vector<18x8x1x8xf32>
    %205 = vector.shape_cast %204 : vector<18x8x1x8xf32> to vector<18x8x8xf32>
    %206 = vector.extract_strided_slice %201 {offsets = [0, 0, 1, 0], sizes = [18, 8, 1, 8], strides = [1, 1, 1, 1]} : vector<18x8x2x8xf32> to vector<18x8x1x8xf32>
    %207 = vector.shape_cast %206 : vector<18x8x1x8xf32> to vector<18x8x8xf32>
    %208 = arith.maximumf %205, %207 : vector<18x8x8xf32>
    %209 = vector.extract_strided_slice %203 {offsets = [0, 0, 0, 0], sizes = [18, 8, 1, 8], strides = [1, 1, 1, 1]} : vector<18x8x2x8xf32> to vector<18x8x1x8xf32>
    %210 = vector.shape_cast %209 : vector<18x8x1x8xf32> to vector<18x8x8xf32>
    %211 = arith.maximumf %208, %210 : vector<18x8x8xf32>
    %212 = vector.extract_strided_slice %211 {offsets = [0, 0, 0], sizes = [16, 8, 8], strides = [1, 1, 1]} : vector<18x8x8xf32> to vector<16x8x8xf32>
    %213 = vector.shape_cast %212 : vector<16x8x8xf32> to vector<8x2x8x8xf32>
    %214 = vector.extract_strided_slice %211 {offsets = [2, 0, 0], sizes = [16, 8, 8], strides = [1, 1, 1]} : vector<18x8x8xf32> to vector<16x8x8xf32>
    %215 = vector.shape_cast %214 : vector<16x8x8xf32> to vector<8x2x8x8xf32>
    %216 = vector.extract_strided_slice %213 {offsets = [0, 0, 0, 0], sizes = [8, 1, 8, 8], strides = [1, 1, 1, 1]} : vector<8x2x8x8xf32> to vector<8x1x8x8xf32>
    %217 = vector.shape_cast %216 : vector<8x1x8x8xf32> to vector<8x8x8xf32>
    %218 = vector.extract_strided_slice %213 {offsets = [0, 1, 0, 0], sizes = [8, 1, 8, 8], strides = [1, 1, 1, 1]} : vector<8x2x8x8xf32> to vector<8x1x8x8xf32>
    %219 = vector.shape_cast %218 : vector<8x1x8x8xf32> to vector<8x8x8xf32>
    %220 = arith.maximumf %217, %219 : vector<8x8x8xf32>
    %221 = vector.extract_strided_slice %215 {offsets = [0, 0, 0, 0], sizes = [8, 1, 8, 8], strides = [1, 1, 1, 1]} : vector<8x2x8x8xf32> to vector<8x1x8x8xf32>
    %222 = vector.shape_cast %221 : vector<8x1x8x8xf32> to vector<8x8x8xf32>
    %223 = arith.maximumf %220, %222 : vector<8x8x8xf32>
    %224 = vector.shape_cast %1 : vector<16x16x4xf32> to vector<8x2x16x4xf32>
    %225 = vector.extract_strided_slice %224 {offsets = [0, 0, 0, 0], sizes = [8, 1, 16, 4], strides = [1, 1, 1, 1]} : vector<8x2x16x4xf32> to vector<8x1x16x4xf32>
    %226 = vector.shape_cast %225 : vector<8x1x16x4xf32> to vector<8x16x4xf32>
    %227 = vector.shape_cast %226 : vector<8x16x4xf32> to vector<8x8x2x4xf32>
    %228 = vector.extract_strided_slice %227 {offsets = [0, 0, 0, 0], sizes = [8, 8, 1, 4], strides = [1, 1, 1, 1]} : vector<8x8x2x4xf32> to vector<8x8x1x4xf32>
    %229 = vector.shape_cast %228 : vector<8x8x1x4xf32> to vector<8x8x4xf32>
    %c0_47 = arith.constant 0 : index
    %c0_48 = arith.constant 0 : index
    %230 = vector.load %arg8[%c0_47, %c0_48] : memref<4x8xf32, #tpu.memory_space<vmem>>, vector<4x8xf32>
    %231 = vector.extract_strided_slice %229 {offsets = [0, 0, 0], sizes = [8, 8, 1], strides = [1, 1, 1]} : vector<8x8x4xf32> to vector<8x8x1xf32>
    %232 = vector.extract_strided_slice %230 {offsets = [0, 0], sizes = [1, 8], strides = [1, 1]} : vector<4x8xf32> to vector<1x8xf32>
    %233 = vector.shape_cast %232 : vector<1x8xf32> to vector<1x1x8xf32>
    %234 = vector.broadcast %231 : vector<8x8x1xf32> to vector<8x8x8xf32>
    %235 = vector.broadcast %233 : vector<1x1x8xf32> to vector<8x8x8xf32>
    %236 = arith.mulf %234, %235 : vector<8x8x8xf32>
    %237 = vector.extract_strided_slice %229 {offsets = [0, 0, 1], sizes = [8, 8, 1], strides = [1, 1, 1]} : vector<8x8x4xf32> to vector<8x8x1xf32>
    %238 = vector.extract_strided_slice %230 {offsets = [1, 0], sizes = [1, 8], strides = [1, 1]} : vector<4x8xf32> to vector<1x8xf32>
    %239 = vector.shape_cast %238 : vector<1x8xf32> to vector<1x1x8xf32>
    %240 = vector.broadcast %237 : vector<8x8x1xf32> to vector<8x8x8xf32>
    %241 = vector.broadcast %239 : vector<1x1x8xf32> to vector<8x8x8xf32>
    %242 = arith.mulf %240, %241 : vector<8x8x8xf32>
    %243 = arith.addf %236, %242 : vector<8x8x8xf32>
    %244 = vector.extract_strided_slice %229 {offsets = [0, 0, 2], sizes = [8, 8, 1], strides = [1, 1, 1]} : vector<8x8x4xf32> to vector<8x8x1xf32>
    %245 = vector.extract_strided_slice %230 {offsets = [2, 0], sizes = [1, 8], strides = [1, 1]} : vector<4x8xf32> to vector<1x8xf32>
    %246 = vector.shape_cast %245 : vector<1x8xf32> to vector<1x1x8xf32>
    %247 = vector.broadcast %244 : vector<8x8x1xf32> to vector<8x8x8xf32>
    %248 = vector.broadcast %246 : vector<1x1x8xf32> to vector<8x8x8xf32>
    %249 = arith.mulf %247, %248 : vector<8x8x8xf32>
    %250 = arith.addf %243, %249 : vector<8x8x8xf32>
    %251 = vector.extract_strided_slice %229 {offsets = [0, 0, 3], sizes = [8, 8, 1], strides = [1, 1, 1]} : vector<8x8x4xf32> to vector<8x8x1xf32>
    %252 = vector.extract_strided_slice %230 {offsets = [3, 0], sizes = [1, 8], strides = [1, 1]} : vector<4x8xf32> to vector<1x8xf32>
    %253 = vector.shape_cast %252 : vector<1x8xf32> to vector<1x1x8xf32>
    %254 = vector.broadcast %251 : vector<8x8x1xf32> to vector<8x8x8xf32>
    %255 = vector.broadcast %253 : vector<1x1x8xf32> to vector<8x8x8xf32>
    %256 = arith.mulf %254, %255 : vector<8x8x8xf32>
    %257 = arith.addf %250, %256 : vector<8x8x8xf32>
    %c0_49 = arith.constant 0 : index
    %c0_50 = arith.constant 0 : index
    %258 = vector.load %arg9[%c0_49, %c0_50] : memref<1x8xf32, #tpu.memory_space<vmem>>, vector<1x8xf32>
    %259 = vector.shape_cast %258 : vector<1x8xf32> to vector<1x1x8xf32>
    %260 = vector.broadcast %259 : vector<1x1x8xf32> to vector<8x8x8xf32>
    %261 = arith.addf %257, %260 : vector<8x8x8xf32>
    %262 = arith.addf %223, %261 : vector<8x8x8xf32>
    %c0_51 = arith.constant 0 : index
    %c0_52 = arith.constant 0 : index
    %c0_53 = arith.constant 0 : index
    %c0_54 = arith.constant 0 : index
    %263 = vector.load %arg10[%c0_51, %c0_52, %c0_53, %c0_54] : memref<1x8x8x8xf32, #tpu.memory_space<vmem>>, vector<1x8x8x8xf32>
    %264 = vector.shape_cast %263 : vector<1x8x8x8xf32> to vector<8x8x8xf32>
    %265 = vector.shape_cast %262 : vector<8x8x8xf32> to vector<1x8x8x8xf32>
    tpu.vector_store %arg10[%c0_51, %c0_52, %c0_53, %c0_54], %265 {strides = array<i32>} : memref<1x8x8x8xf32, #tpu.memory_space<vmem>>, vector<1x8x8x8xf32>,
    return
  }
  func.func @transform_0(%arg0: i32) -> (i32, i32, i32, i32) {
    %c0_i32 = arith.constant 0 : i32
    %c0_i32_0 = arith.constant 0 : i32
    %c0_i32_1 = arith.constant 0 : i32
    %c0_i32_2 = arith.constant 0 : i32
    return %arg0, %c0_i32, %c0_i32_0, %c0_i32_1 : i32, i32, i32, i32
  }
  func.func @transform_1(%arg0: i32) -> (i32, i32, i32) {
    %c0_i32 = arith.constant 0 : i32
    %c0_i32_0 = arith.constant 0 : i32
    %c0_i32_1 = arith.constant 0 : i32
    %c0_i32_2 = arith.constant 0 : i32
    return %c0_i32, %c0_i32_0, %c0_i32_1 : i32, i32, i32
  }
  func.func @transform_2(%arg0: i32) -> (i32, i32) {
    %c0_i32 = arith.constant 0 : i32
    %c0_i32_0 = arith.constant 0 : i32
    %c0_i32_1 = arith.constant 0 : i32
    return %c0_i32, %c0_i32_0 : i32, i32
  }
  func.func @transform_3(%arg0: i32) -> (i32, i32) {
    %c0_i32 = arith.constant 0 : i32
    %c0_i32_0 = arith.constant 0 : i32
    %c0_i32_1 = arith.constant 0 : i32
    return %c0_i32, %c0_i32_0 : i32, i32
  }
  func.func @transform_4(%arg0: i32) -> (i32, i32, i32) {
    %c0_i32 = arith.constant 0 : i32
    %c0_i32_0 = arith.constant 0 : i32
    %c0_i32_1 = arith.constant 0 : i32
    %c0_i32_2 = arith.constant 0 : i32
    return %c0_i32, %c0_i32_0, %c0_i32_1 : i32, i32, i32
  }
  func.func @transform_5(%arg0: i32) -> (i32, i32) {
    %c0_i32 = arith.constant 0 : i32
    %c0_i32_0 = arith.constant 0 : i32
    %c0_i32_1 = arith.constant 0 : i32
    return %c0_i32, %c0_i32_0 : i32, i32
  }
  func.func @transform_6(%arg0: i32) -> (i32, i32) {
    %c0_i32 = arith.constant 0 : i32
    %c0_i32_0 = arith.constant 0 : i32
    %c0_i32_1 = arith.constant 0 : i32
    return %c0_i32, %c0_i32_0 : i32, i32
  }
  func.func @transform_7(%arg0: i32) -> (i32, i32) {
    %c0_i32 = arith.constant 0 : i32
    %c0_i32_0 = arith.constant 0 : i32
    %c0_i32_1 = arith.constant 0 : i32
    return %c0_i32, %c0_i32_0 : i32, i32
  }
  func.func @transform_8(%arg0: i32) -> (i32, i32) {
    %c0_i32 = arith.constant 0 : i32
    %c0_i32_0 = arith.constant 0 : i32
    %c0_i32_1 = arith.constant 0 : i32
    return %c0_i32, %c0_i32_0 : i32, i32
  }
  func.func @transform_9(%arg0: i32) -> (i32, i32, i32, i32) {
    %c0_i32 = arith.constant 0 : i32
    %c0_i32_0 = arith.constant 0 : i32
    %c0_i32_1 = arith.constant 0 : i32
    %c0_i32_2 = arith.constant 0 : i32
    return %arg0, %c0_i32, %c0_i32_0, %c0_i32_1 : i32, i32, i32, i32
  }
}

</mosaic_0001>

<llo_original>
// kernel: block_forward_fused.1
$region0: #{block_forward_fused.1}
  #allocation0 [shape = 'u32[]', space=smem, size = 0x4, offset = 0x4, fixed_abs, tag = 'smem constant byte address 0x4 - core index']
  #allocation1 [shape = 'u32[144,128]{1,0:T(1,128)}', space=vmem, size = 0x12000, scoped, tag = 'internal scratch']
  #allocation2 [shape = 'f32[18,18,4]{2,1,0:T(8,128)}', space=vmem, size = 0x36000, scoped, tag = 'scratch operand']
  #allocation3 [shape = 'f32[18,18,8]{2,1,0:T(8,128)}', space=vmem, size = 0x36000, scoped, tag = 'scratch operand']
  %s0 = inlined_call_operand.vmem [shape: f32[2,16,16,4], index: 0, kind: input, shape index: {}]
  %s1 = inlined_call_operand.vmem [shape: f32[3,3,4], index: 1, kind: input, shape index: {}]
  %s2 = inlined_call_operand.vmem [shape: f32[4,8], index: 2, kind: input, shape index: {}]
  %s3 = inlined_call_operand.vmem [shape: f32[1,8], index: 3, kind: input, shape index: {}]
  %s4 = inlined_call_operand.vmem [shape: f32[3,3,8], index: 4, kind: input, shape index: {}]
  %s5 = inlined_call_operand.vmem [shape: f32[8,8], index: 5, kind: input, shape index: {}]
  %s6 = inlined_call_operand.vmem [shape: f32[1,8], index: 6, kind: input, shape index: {}]
  %s7 = inlined_call_operand.vmem [shape: f32[4,8], index: 7, kind: input, shape index: {}]
  %s8 = inlined_call_operand.vmem [shape: f32[1,8], index: 8, kind: input, shape index: {}]
  %s9 = inlined_call_operand.hbm [shape: f32[2,8,8,8], index: 9, kind: output, shape index: {}]
  %s10 = sld [smem:[#allocation0]]
  $region69: #{block_forward_fused.1} parent=0
    _
  %s12 = ssub.s32 1, %s10
  %s13 = scalar_select 0, %s12, %s10
  $region1: #{block_forward_fused.1} parent=0
    #allocation4 [shape = 'u8[65536]{0}', space=vmem, size = 0x10000, scoped, tag = 'output window, operand 0']
    #allocation5 [shape = 's32[2]{0}', space=sflag, size = 0x8, scoped, tag = 'scoped memory for block_forward_fused.1']
    %14 = vsyncpa [#allocation5], 0
    %s15 = scalar_lea.sflag [#allocation5], 1
    %16 = vsyncpa %s15, 0
    loop: start=0, step=1, limit=4
    $region2: #{block_forward_fused.1} parent=1 // loop_pre_header
      _
    $region3: #{block_forward_fused.1} parent=1 // loop_header
      %s18 = sphi 0, %s22
      %p19 = scmp.ge.s32.totalorder %s18, 4
      %s28 = sphi 0, %s30
      %s31 = sphi 0, %s28
      %s32 = sphi 0, %s31
      %s48 = sphi 0, %s32
      %s52 = sphi 0, %s52
      %s54 = sphi 0, %s52
      %s55 = sphi 0, %s54
      %s69 = sphi 0, %s55
      %s73 = sphi 0, %s73
      %s75 = sphi 0, %s73
      %s76 = sphi 0, %s75
      %s90 = sphi 0, %s76
      %s94 = sphi 0, %s94
      %s96 = sphi 0, %s94
      %s97 = sphi 0, %s96
      %s111 = sphi 0, %s97
      %s115 = sphi 0, %s115
      %s117 = sphi 0, %s115
      %s118 = sphi 0, %s117
      %s132 = sphi 0, %s118
      %s136 = sphi 0, %s136
      %s138 = sphi 0, %s136
      %s139 = sphi 0, %s138
      %s153 = sphi 0, %s139
      %s157 = sphi 0, %s157
      %s159 = sphi 0, %s157
      %s160 = sphi 0, %s159
      %s174 = sphi 0, %s160
      %s178 = sphi 0, %s178
      %s180 = sphi 0, %s178
      %s181 = sphi 0, %s180
      %s195 = sphi 0, %s181
      %s199 = sphi 0, %s199
      %s201 = sphi 0, %s199
      %s202 = sphi 0, %s201
      %s216 = sphi 0, %s202
      %s222 = sphi 0, %s224
      %s225 = sphi 0, %s222
      %s226 = sphi 0, %s225
      %s242 = sphi 0, %s226
    $region4: #{block_forward_fused.1} parent=1 // loop_header_branch
      %21 = sbr.rel (%p19) target = $region8
    $region5: #{block_forward_fused.1} parent=1 // loop_body
      %s23 = ssub.s32 %s18, 1
      %s24 = ssub.s32 %s18, 2
      %s25 = sadd.s32 %s18, 1
      %s26 = ssub.s32 %s18, %s25
      %p27 = scmp.eq.s32.totalorder %s26, 0
      %s29 = sadd.s32 %s28, 1
      %s30 = scalar_select %p27, %s28, %s29
      %p33 = pneg %p27
      %p34 = scmp.eq.s32.totalorder %s18, 1
      %p35 = por %p33, %p34
      %p36 = scmp.ne.s32.totalorder %s28, %s31
      %p37 = scmp.eq.s32.totalorder %s18, 0
      %p38 = por %p36, %p37
      %p39 = scmp.ne.s32.totalorder %s28, %s31
      %p40 = scmp.eq.s32.totalorder %s23, 1
      %p41 = por %p39, %p40
      %p42 = scmp.ne.s32.totalorder %s31, %s32
      %p43 = scmp.eq.s32.totalorder %s23, 0
      %p44 = por %p42, %p43
      %p45 = scmp.ne.s32.totalorder %s31, %s32
      %p46 = scmp.eq.s32.totalorder %s24, 1
      %p47 = por %p45, %p46
      %p49 = scmp.ne.s32.totalorder %s32, %s48
      %p50 = scmp.eq.s32.totalorder %s24, 0
      %p51 = por %p49, %p50
      %s53 = sadd.s32 %s52, 1
      %p56 = scmp.eq.s32.totalorder %s18, 1
      %p57 = scmp.ne.s32.totalorder %s52, %s54
      %p58 = scmp.eq.s32.totalorder %s18, 0
      %p59 = por %p57, %p58
      %p60 = scmp.ne.s32.totalorder %s52, %s54
      %p61 = scmp.eq.s32.totalorder %s23, 1
      %p62 = por %p60, %p61
      %p63 = scmp.ne.s32.totalorder %s54, %s55
      %p64 = scmp.eq.s32.totalorder %s23, 0
      %p65 = por %p63, %p64
      %p66 = scmp.ne.s32.totalorder %s54, %s55
      %p67 = scmp.eq.s32.totalorder %s24, 1
      %p68 = por %p66, %p67
      %p70 = scmp.ne.s32.totalorder %s55, %s69
      %p71 = scmp.eq.s32.totalorder %s24, 0
      %p72 = por %p70, %p71
      %s74 = sadd.s32 %s73, 1
      %p77 = scmp.eq.s32.totalorder %s18, 1
      %p78 = scmp.ne.s32.totalorder %s73, %s75
      %p79 = scmp.eq.s32.totalorder %s18, 0
      %p80 = por %p78, %p79
      %p81 = scmp.ne.s32.totalorder %s73, %s75
      %p82 = scmp.eq.s32.totalorder %s23, 1
      %p83 = por %p81, %p82
      %p84 = scmp.ne.s32.totalorder %s75, %s76
      %p85 = scmp.eq.s32.totalorder %s23, 0
      %p86 = por %p84, %p85
      %p87 = scmp.ne.s32.totalorder %s75, %s76
      %p88 = scmp.eq.s32.totalorder %s24, 1
      %p89 = por %p87, %p88
      %p91 = scmp.ne.s32.totalorder %s76, %s90
      %p92 = scmp.eq.s32.totalorder %s24, 0
      %p93 = por %p91, %p92
      %s95 = sadd.s32 %s94, 1
      %p98 = scmp.eq.s32.totalorder %s18, 1
      %p99 = scmp.ne.s32.totalorder %s94, %s96
      %p100 = scmp.eq.s32.totalorder %s18, 0
      %p101 = por %p99, %p100
      %p102 = scmp.ne.s32.totalorder %s94, %s96
      %p103 = scmp.eq.s32.totalorder %s23, 1
      %p104 = por %p102, %p103
      %p105 = scmp.ne.s32.totalorder %s96, %s97
      %p106 = scmp.eq.s32.totalorder %s23, 0
      %p107 = por %p105, %p106
      %p108 = scmp.ne.s32.totalorder %s96, %s97
      %p109 = scmp.eq.s32.totalorder %s24, 1
      %p110 = por %p108, %p109
      %p112 = scmp.ne.s32.totalorder %s97, %s111
      %p113 = scmp.eq.s32.totalorder %s24, 0
      %p114 = por %p112, %p113
      %s116 = sadd.s32 %s115, 1
      %p119 = scmp.eq.s32.totalorder %s18, 1
      %p120 = scmp.ne.s32.totalorder %s115, %s117
      %p121 = scmp.eq.s32.totalorder %s18, 0
      %p122 = por %p120, %p121
      %p123 = scmp.ne.s32.totalorder %s115, %s117
      %p124 = scmp.eq.s32.totalorder %s23, 1
      %p125 = por %p123, %p124
      %p126 = scmp.ne.s32.totalorder %s117, %s118
      %p127 = scmp.eq.s32.totalorder %s23, 0
      %p128 = por %p126, %p127
      %p129 = scmp.ne.s32.totalorder %s117, %s118
      %p130 = scmp.eq.s32.totalorder %s24, 1
      %p131 = por %p129, %p130
      %p133 = scmp.ne.s32.totalorder %s118, %s132
      %p134 = scmp.eq.s32.totalorder %s24, 0
      %p135 = por %p133, %p134
      %s137 = sadd.s32 %s136, 1
      %p140 = scmp.eq.s32.totalorder %s18, 1
      %p141 = scmp.ne.s32.totalorder %s136, %s138
      %p142 = scmp.eq.s32.totalorder %s18, 0
      %p143 = por %p141, %p142
      %p144 = scmp.ne.s32.totalorder %s136, %s138
      %p145 = scmp.eq.s32.totalorder %s23, 1
      %p146 = por %p144, %p145
      %p147 = scmp.ne.s32.totalorder %s138, %s139
      %p148 = scmp.eq.s32.totalorder %s23, 0
      %p149 = por %p147, %p148
      %p150 = scmp.ne.s32.totalorder %s138, %s139
      %p151 = scmp.eq.s32.totalorder %s24, 1
      %p152 = por %p150, %p151
      %p154 = scmp.ne.s32.totalorder %s139, %s153
      %p155 = scmp.eq.s32.totalorder %s24, 0
      %p156 = por %p154, %p155
      %s158 = sadd.s32 %s157, 1
      %p161 = scmp.eq.s32.totalorder %s18, 1
      %p162 = scmp.ne.s32.totalorder %s157, %s159
      %p163 = scmp.eq.s32.totalorder %s18, 0
      %p164 = por %p162, %p163
      %p165 = scmp.ne.s32.totalorder %s157, %s159
      %p166 = scmp.eq.s32.totalorder %s23, 1
      %p167 = por %p165, %p166
      %p168 = scmp.ne.s32.totalorder %s159, %s160
      %p169 = scmp.eq.s32.totalorder %s23, 0
      %p170 = por %p168, %p169
      %p171 = scmp.ne.s32.totalorder %s159, %s160
      %p172 = scmp.eq.s32.totalorder %s24, 1
      %p173 = por %p171, %p172
      %p175 = scmp.ne.s32.totalorder %s160, %s174
      %p176 = scmp.eq.s32.totalorder %s24, 0
      %p177 = por %p175, %p176
      %s179 = sadd.s32 %s178, 1
      %p182 = scmp.eq.s32.totalorder %s18, 1
      %p183 = scmp.ne.s32.totalorder %s178, %s180
      %p184 = scmp.eq.s32.totalorder %s18, 0
      %p185 = por %p183, %p184
      %p186 = scmp.ne.s32.totalorder %s178, %s180
      %p187 = scmp.eq.s32.totalorder %s23, 1
      %p188 = por %p186, %p187
      %p189 = scmp.ne.s32.totalorder %s180, %s181
      %p190 = scmp.eq.s32.totalorder %s23, 0
      %p191 = por %p189, %p190
      %p192 = scmp.ne.s32.totalorder %s180, %s181
      %p193 = scmp.eq.s32.totalorder %s24, 1
      %p194 = por %p192, %p193
      %p196 = scmp.ne.s32.totalorder %s181, %s195
      %p197 = scmp.eq.s32.totalorder %s24, 0
      %p198 = por %p196, %p197
      %s200 = sadd.s32 %s199, 1
      %p203 = scmp.eq.s32.totalorder %s18, 1
      %p204 = scmp.ne.s32.totalorder %s199, %s201
      %p205 = scmp.eq.s32.totalorder %s18, 0
      %p206 = por %p204, %p205
      %p207 = scmp.ne.s32.totalorder %s199, %s201
      %p208 = scmp.eq.s32.totalorder %s23, 1
      %p209 = por %p207, %p208
      %p210 = scmp.ne.s32.totalorder %s201, %s202
      %p211 = scmp.eq.s32.totalorder %s23, 0
      %p212 = por %p210, %p211
      %p213 = scmp.ne.s32.totalorder %s201, %s202
      %p214 = scmp.eq.s32.totalorder %s24, 1
      %p215 = por %p213, %p214
      %p217 = scmp.ne.s32.totalorder %s202, %s216
      %p218 = scmp.eq.s32.totalorder %s24, 0
      %p219 = por %p217, %p218
      %s220 = ssub.s32 %s18, %s25
      %p221 = scmp.eq.s32.totalorder %s220, 0
      %s223 = sadd.s32 %s222, 1
      %s224 = scalar_select %p221, %s222, %s223
      %p227 = pneg %p221
      %p228 = scmp.eq.s32.totalorder %s18, 1
      %p229 = por %p227, %p228
      %p230 = scmp.ne.s32.totalorder %s222, %s225
      %p231 = scmp.eq.s32.totalorder %s18, 0
      %p232 = por %p230, %p231
      %p233 = scmp.ne.s32.totalorder %s222, %s225
      %p234 = scmp.eq.s32.totalorder %s23, 1
      %p235 = por %p233, %p234
      %p236 = scmp.ne.s32.totalorder %s225, %s226
      %p237 = scmp.eq.s32.totalorder %s23, 0
      %p238 = por %p236, %p237
      %p239 = scmp.ne.s32.totalorder %s225, %s226
      %p240 = scmp.eq.s32.totalorder %s24, 1
      %p241 = por %p239, %p240
      %p243 = scmp.ne.s32.totalorder %s226, %s242
      %p244 = scmp.eq.s32.totalorder %s24, 0
      %p245 = por %p243, %p244
      %p246 = scmp.le.s32.totalorder 1, %s18
      %p247 = scmp.lt.s32.totalorder %s18, 3
      %p248 = pnand %p246, %p247
      %p249 = pneg %p248
      // Predicated region
      $region9: #{block_forward_fused.1} parent=5 // pred_check
        _
      $region10: #{block_forward_fused.1} parent=5 // pred_check_branch
        %251 = sbr.rel (%p248) target = $region12
      $region11: #{block_forward_fused.1} parent=5 // pred_region
        %s252 = ssub.s32 %s18, 1
        // Predicated region
        $region13: #{block_forward_fused.1} parent=11 // pred_check
          %p253 = pneg %p65
        $region14: #{block_forward_fused.1} parent=11 // pred_check_branch
          %255 = sbr.rel (%p253) target = $region16
        $region15: #{block_forward_fused.1} parent=11 // pred_region
          _
        $region16: #{block_forward_fused.1} parent=11 // pred_fallthru
          _
        // Predicated region
        $region17: #{block_forward_fused.1} parent=11 // pred_check
          %p256 = pneg %p86
        $region18: #{block_forward_fused.1} parent=11 // pred_check_branch
          %258 = sbr.rel (%p256) target = $region20
        $region19: #{block_forward_fused.1} parent=11 // pred_region
          _
        $region20: #{block_forward_fused.1} parent=11 // pred_fallthru
          _
        // Predicated region
        $region21: #{block_forward_fused.1} parent=11 // pred_check
          %p259 = pneg %p107
        $region22: #{block_forward_fused.1} parent=11 // pred_check_branch
          %261 = sbr.rel (%p259) target = $region24
        $region23: #{block_forward_fused.1} parent=11 // pred_region
          _
        $region24: #{block_forward_fused.1} parent=11 // pred_fallthru
          _
        // Predicated region
        $region25: #{block_forward_fused.1} parent=11 // pred_check
          %p262 = pneg %p128
        $region26: #{block_forward_fused.1} parent=11 // pred_check_branch
          %264 = sbr.rel (%p262) target = $region28
        $region27: #{block_forward_fused.1} parent=11 // pred_region
          _
        $region28: #{block_forward_fused.1} parent=11 // pred_fallthru
          _
        // Predicated region
        $region29: #{block_forward_fused.1} parent=11 // pred_check
          %p265 = pneg %p149
        $region30: #{block_forward_fused.1} parent=11 // pred_check_branch
          %267 = sbr.rel (%p265) target = $region32
        $region31: #{block_forward_fused.1} parent=11 // pred_region
          _
        $region32: #{block_forward_fused.1} parent=11 // pred_fallthru
          _
        // Predicated region
        $region33: #{block_forward_fused.1} parent=11 // pred_check
          %p268 = pneg %p170
        $region34: #{block_forward_fused.1} parent=11 // pred_check_branch
          %270 = sbr.rel (%p268) target = $region36
        $region35: #{block_forward_fused.1} parent=11 // pred_region
          _
        $region36: #{block_forward_fused.1} parent=11 // pred_fallthru
          _
        // Predicated region
        $region37: #{block_forward_fused.1} parent=11 // pred_check
          %p271 = pneg %p191
        $region38: #{block_forward_fused.1} parent=11 // pred_check_branch
          %273 = sbr.rel (%p271) target = $region40
        $region39: #{block_forward_fused.1} parent=11 // pred_region
          _
        $region40: #{block_forward_fused.1} parent=11 // pred_fallthru
          _
        // Predicated region
        $region41: #{block_forward_fused.1} parent=11 // pred_check
          %p274 = pneg %p212
        $region42: #{block_forward_fused.1} parent=11 // pred_check_branch
          %276 = sbr.rel (%p274) target = $region44
        $region43: #{block_forward_fused.1} parent=11 // pred_region
          _
        $region44: #{block_forward_fused.1} parent=11 // pred_fallthru
          _
      $region12: #{block_forward_fused.1} parent=5 // pred_fallthru
        _
      %p277 = scmp.lt.s32.totalorder %s18, 2
      // Predicated region
      $region45: #{block_forward_fused.1} parent=5 // pred_check
        %p278 = pneg %p277
      $region46: #{block_forward_fused.1} parent=5 // pred_check_branch
        %280 = sbr.rel (%p278) target = $region48
      $region47: #{block_forward_fused.1} parent=5 // pred_region
        // Predicated region
        $region49: #{block_forward_fused.1} parent=47 // pred_check
          %p281 = pneg %p38
        $region50: #{block_forward_fused.1} parent=47 // pred_check_branch
          %283 = sbr.rel (%p281) target = $region52
        $region51: #{block_forward_fused.1} parent=47 // pred_region
          %p284 = scmp.lt.s32.totalorder %s18, 1
          %s285 = scalar_select %p284, %s18, 1
          %s286 = smul.addr %s285, 32
          %s287 = smul.addr %s286, 8
          %s288 = scalar_lea.vmem %s0, %s287
        $region52: #{block_forward_fused.1} parent=47 // pred_fallthru
          _
      $region48: #{block_forward_fused.1} parent=5 // pred_fallthru
        _
      %p289 = scmp.le.s32.totalorder 1, %s18
      %p290 = scmp.lt.s32.totalorder %s18, 3
      %p291 = pnand %p289, %p290
      %p292 = pneg %p291
      // Predicated region
      $region53: #{block_forward_fused.1} parent=5 // pred_check
        _
      $region54: #{block_forward_fused.1} parent=5 // pred_check_branch
        %294 = sbr.rel (%p291) target = $region56
      $region55: #{block_forward_fused.1} parent=5 // pred_region
        %s295 = ssub.s32 %s18, 1
        %p296 = scmp.lt.s32.totalorder %s23, 1
        %s297 = scalar_select %p296, %s23, 1
        %s298 = smul.addr %s297, 32
        %s299 = smul.addr %s298, 8
        %s300 = scalar_lea.vmem %s0, %s299
        %p301 = pneg %p44
        %p302 = pneg %p41
        %p303 = pneg %p65
        %p304 = pneg %p62
        %p305 = pneg %p86
        %p306 = pneg %p83
        %p307 = pneg %p107
        %p308 = pneg %p104
        %p309 = pneg %p128
        %p310 = pneg %p125
        %p311 = pneg %p149
        %p312 = pneg %p146
        %p313 = pneg %p170
        %p314 = pneg %p167
        %p315 = pneg %p191
        %p316 = pneg %p188
        %p317 = pneg %p212
        %p318 = pneg %p209
        %p319 = pneg %p238
        %p320 = pneg %p235
        %s321 = sand.u32 %s225, 1
        %s322 = scalar_lea.sflag [#allocation5], %s321
        %s323 = sand.u32 %s225, 1
        %s324 = smul.addr %s323, 64
        %s325 = scalar_lea.vmem [#allocation4], %s324
        %p326 = scmp.lt.s32.totalorder %s23, 1
        %s327 = scalar_select %p326, %s23, 1
        %s328 = smul.addr %s327, 32
        %s329 = smul.addr %s328, 8
        %s330 = scalar_lea.vmem %s0, %s329
        %v331 = vld [vmem:[%s330] sm:$0xff]
        %v332 = vld [vmem:[%s330 + $0x8] sm:$0xff]
        %v333 = vld [vmem:[%s330 + $0x10] sm:$0xff]
        %v334 = vld [vmem:[%s330 + $0x18] sm:$0xff]
        %v335 = vld [vmem:[%s330 + $0x20] sm:$0xff]
        %v336 = vld [vmem:[%s330 + $0x28] sm:$0xff]
        %v337 = vld [vmem:[%s330 + $0x30] sm:$0xff]
        %v338 = vld [vmem:[%s330 + $0x38] sm:$0xff]
        %v339 = vld [vmem:[%s330 + $0x40] sm:$0xff]
        %v340 = vld [vmem:[%s330 + $0x48] sm:$0xff]
        %v341 = vld [vmem:[%s330 + $0x50] sm:$0xff]
        %v342 = vld [vmem:[%s330 + $0x58] sm:$0xff]
        %v343 = vld [vmem:[%s330 + $0x60] sm:$0xff]
        %v344 = vld [vmem:[%s330 + $0x68] sm:$0xff]
        %v345 = vld [vmem:[%s330 + $0x70] sm:$0xff]
        %v346 = vld [vmem:[%s330 + $0x78] sm:$0xff]
        %v347 = vld [vmem:[%s330 + $0x80] sm:$0xff]
        %v348 = vld [vmem:[%s330 + $0x88] sm:$0xff]
        %v349 = vld [vmem:[%s330 + $0x90] sm:$0xff]
        %v350 = vld [vmem:[%s330 + $0x98] sm:$0xff]
        %v351 = vld [vmem:[%s330 + $0xa0] sm:$0xff]
        %v352 = vld [vmem:[%s330 + $0xa8] sm:$0xff]
        %v353 = vld [vmem:[%s330 + $0xb0] sm:$0xff]
        %v354 = vld [vmem:[%s330 + $0xb8] sm:$0xff]
        %v355 = vld [vmem:[%s330 + $0xc0] sm:$0xff]
        %v356 = vld [vmem:[%s330 + $0xc8] sm:$0xff]
        %v357 = vld [vmem:[%s330 + $0xd0] sm:$0xff]
        %v358 = vld [vmem:[%s330 + $0xd8] sm:$0xff]
        %v359 = vld [vmem:[%s330 + $0xe0] sm:$0xff]
        %v360 = vld [vmem:[%s330 + $0xe8] sm:$0xff]
        %v361 = vld [vmem:[%s330 + $0xf0] sm:$0xff]
        %v362 = vld [vmem:[%s330 + $0xf8] sm:$0xff]
        %v363 = vld [vmem:[%s1] sm:$0x7]
        %v364 = vld [vmem:[%s1 + $0x4] sm:$0x7]
        %v365 = vld [vmem:[%s1 + $0x8] sm:$0x7]
        %v366 = vld [vmem:[%s2] sm:$0xf]
        %v367 = vld [vmem:[%s3] sm:$0x1]
        %vm368 = vcmask 31744
        %369 = vst.msk [vmem:[#allocation2] sm:$0xff] %vm368, 0.0
        %370 = vst.msk [vmem:[#allocation2 + $0x8] sm:$0xff] %vm368, 0.0
        %vm371 = vcmask 25600
        %372 = vst.msk [vmem:[#allocation2 + $0x10] sm:$0x3] %vm371, 0.0
        %373 = vst.msk [vmem:[#allocation2 + $0x18] sm:$0xff] %vm368, 0.0
        %374 = vst.msk [vmem:[#allocation2 + $0x20] sm:$0xff] %vm368, 0.0
        %375 = vst.msk [vmem:[#allocation2 + $0x28] sm:$0x3] %vm371, 0.0
        %376 = vst.msk [vmem:[#allocation2 + $0x30] sm:$0xff] %vm368, 0.0
        %377 = vst.msk [vmem:[#allocation2 + $0x38] sm:$0xff] %vm368, 0.0
        %378 = vst.msk [vmem:[#allocation2 + $0x40] sm:$0x3] %vm371, 0.0
        %379 = vst.msk [vmem:[#allocation2 + $0x48] sm:$0xff] %vm368, 0.0
        %380 = vst.msk [vmem:[#allocation2 + $0x50] sm:$0xff] %vm368, 0.0
        %381 = vst.msk [vmem:[#allocation2 + $0x58] sm:$0x3] %vm371, 0.0
        %382 = vst.msk [vmem:[#allocation2 + $0x60] sm:$0xff] %vm368, 0.0
        %383 = vst.msk [vmem:[#allocation2 + $0x68] sm:$0xff] %vm368, 0.0
        %384 = vst.msk [vmem:[#allocation2 + $0x70] sm:$0x3] %vm371, 0.0
        %385 = vst.msk [vmem:[#allocation2 + $0x78] sm:$0xff] %vm368, 0.0
        %386 = vst.msk [vmem:[#allocation2 + $0x80] sm:$0xff] %vm368, 0.0
        %387 = vst.msk [vmem:[#allocation2 + $0x88] sm:$0x3] %vm371, 0.0
        %388 = vst.msk [vmem:[#allocation2 + $0x90] sm:$0xff] %vm368, 0.0
        %389 = vst.msk [vmem:[#allocation2 + $0x98] sm:$0xff] %vm368, 0.0
        %390 = vst.msk [vmem:[#allocation2 + $0xa0] sm:$0x3] %vm371, 0.0
        %391 = vst.msk [vmem:[#allocation2 + $0xa8] sm:$0xff] %vm368, 0.0
        %392 = vst.msk [vmem:[#allocation2 + $0xb0] sm:$0xff] %vm368, 0.0
        %393 = vst.msk [vmem:[#allocation2 + $0xb8] sm:$0x3] %vm371, 0.0
        %394 = vst.msk [vmem:[#allocation2 + $0xc0] sm:$0xff] %vm368, 0.0
        %395 = vst.msk [vmem:[#allocation2 + $0xc8] sm:$0xff] %vm368, 0.0
        %396 = vst.msk [vmem:[#allocation2 + $0xd0] sm:$0x3] %vm371, 0.0
        %397 = vst.msk [vmem:[#allocation2 + $0xd8] sm:$0xff] %vm368, 0.0
        %398 = vst.msk [vmem:[#allocation2 + $0xe0] sm:$0xff] %vm368, 0.0
        %399 = vst.msk [vmem:[#allocation2 + $0xe8] sm:$0x3] %vm371, 0.0
        %400 = vst.msk [vmem:[#allocation2 + $0xf0] sm:$0xff] %vm368, 0.0
        %401 = vst.msk [vmem:[#allocation2 + $0xf8] sm:$0xff] %vm368, 0.0
        %402 = vst.msk [vmem:[#allocation2 + $0x100] sm:$0x3] %vm371, 0.0
        %403 = vst.msk [vmem:[#allocation2 + $0x108] sm:$0xff] %vm368, 0.0
        %404 = vst.msk [vmem:[#allocation2 + $0x110] sm:$0xff] %vm368, 0.0
        %405 = vst.msk [vmem:[#allocation2 + $0x118] sm:$0x3] %vm371, 0.0
        %406 = vst.msk [vmem:[#allocation2 + $0x120] sm:$0xff] %vm368, 0.0
        %407 = vst.msk [vmem:[#allocation2 + $0x128] sm:$0xff] %vm368, 0.0
        %408 = vst.msk [vmem:[#allocation2 + $0x130] sm:$0x3] %vm371, 0.0
        %409 = vst.msk [vmem:[#allocation2 + $0x138] sm:$0xff] %vm368, 0.0
        %410 = vst.msk [vmem:[#allocation2 + $0x140] sm:$0xff] %vm368, 0.0
        %411 = vst.msk [vmem:[#allocation2 + $0x148] sm:$0x3] %vm371, 0.0
        %412 = vst.msk [vmem:[#allocation2 + $0x150] sm:$0xff] %vm368, 0.0
        %413 = vst.msk [vmem:[#allocation2 + $0x158] sm:$0xff] %vm368, 0.0
        %414 = vst.msk [vmem:[#allocation2 + $0x160] sm:$0x3] %vm371, 0.0
        %415 = vst.msk [vmem:[#allocation2 + $0x168] sm:$0xff] %vm368, 0.0
        %416 = vst.msk [vmem:[#allocation2 + $0x170] sm:$0xff] %vm368, 0.0
        %417 = vst.msk [vmem:[#allocation2 + $0x178] sm:$0x3] %vm371, 0.0
        %418 = vst.msk [vmem:[#allocation2 + $0x180] sm:$0xff] %vm368, 0.0
        %419 = vst.msk [vmem:[#allocation2 + $0x188] sm:$0xff] %vm368, 0.0
        %420 = vst.msk [vmem:[#allocation2 + $0x190] sm:$0x3] %vm371, 0.0
        %421 = vst.msk [vmem:[#allocation2 + $0x198] sm:$0xff] %vm368, 0.0
        %422 = vst.msk [vmem:[#allocation2 + $0x1a0] sm:$0xff] %vm368, 0.0
        %423 = vst.msk [vmem:[#allocation2 + $0x1a8] sm:$0x3] %vm371, 0.0
        %s424 = scalar_lea.vmem [#allocation2], 24
        %425 = vst.msk [vmem:[%s424 + $0x1] sm:$0xff] %vm368, %v331
        %426 = vst.msk [vmem:[%s424 + $0x9] sm:$0xff] %vm368, %v332
        %427 = vst.msk [vmem:[%s424 + $0x19] sm:$0xff] %vm368, %v333
        %428 = vst.msk [vmem:[%s424 + $0x21] sm:$0xff] %vm368, %v334
        %429 = vst.msk [vmem:[%s424 + $0x31] sm:$0xff] %vm368, %v335
        %430 = vst.msk [vmem:[%s424 + $0x39] sm:$0xff] %vm368, %v336
        %431 = vst.msk [vmem:[%s424 + $0x49] sm:$0xff] %vm368, %v337
        %432 = vst.msk [vmem:[%s424 + $0x51] sm:$0xff] %vm368, %v338
        %433 = vst.msk [vmem:[%s424 + $0x61] sm:$0xff] %vm368, %v339
        %434 = vst.msk [vmem:[%s424 + $0x69] sm:$0xff] %vm368, %v340
        %435 = vst.msk [vmem:[%s424 + $0x79] sm:$0xff] %vm368, %v341
        %436 = vst.msk [vmem:[%s424 + $0x81] sm:$0xff] %vm368, %v342
        %437 = vst.msk [vmem:[%s424 + $0x91] sm:$0xff] %vm368, %v343
        %438 = vst.msk [vmem:[%s424 + $0x99] sm:$0xff] %vm368, %v344
        %439 = vst.msk [vmem:[%s424 + $0xa9] sm:$0xff] %vm368, %v345
        %440 = vst.msk [vmem:[%s424 + $0xb1] sm:$0xff] %vm368, %v346
        %441 = vst.msk [vmem:[%s424 + $0xc1] sm:$0xff] %vm368, %v347
        %442 = vst.msk [vmem:[%s424 + $0xc9] sm:$0xff] %vm368, %v348
        %443 = vst.msk [vmem:[%s424 + $0xd9] sm:$0xff] %vm368, %v349
        %444 = vst.msk [vmem:[%s424 + $0xe1] sm:$0xff] %vm368, %v350
        %445 = vst.msk [vmem:[%s424 + $0xf1] sm:$0xff] %vm368, %v351
        %446 = vst.msk [vmem:[%s424 + $0xf9] sm:$0xff] %vm368, %v352
        %447 = vst.msk [vmem:[%s424 + $0x109] sm:$0xff] %vm368, %v353
        %448 = vst.msk [vmem:[%s424 + $0x111] sm:$0xff] %vm368, %v354
        %449 = vst.msk [vmem:[%s424 + $0x121] sm:$0xff] %vm368, %v355
        %450 = vst.msk [vmem:[%s424 + $0x129] sm:$0xff] %vm368, %v356
        %451 = vst.msk [vmem:[%s424 + $0x139] sm:$0xff] %vm368, %v357
        %452 = vst.msk [vmem:[%s424 + $0x141] sm:$0xff] %vm368, %v358
        %453 = vst.msk [vmem:[%s424 + $0x151] sm:$0xff] %vm368, %v359
        %454 = vst.msk [vmem:[%s424 + $0x159] sm:$0xff] %vm368, %v360
        %455 = vst.msk [vmem:[%s424 + $0x169] sm:$0xff] %vm368, %v361
        %456 = vst.msk [vmem:[%s424 + $0x171] sm:$0xff] %vm368, %v362
        %v457 = vld [vmem:[#allocation2] sm:$0xff]
        %v458 = vld [vmem:[#allocation2 + $0x8] sm:$0xff]
        %v459 = vld [vmem:[#allocation2 + $0x10] sm:$0x3]
        %v460 = vld [vmem:[#allocation2 + $0x18] sm:$0xff]
        %v461 = vld [vmem:[#allocation2 + $0x20] sm:$0xff]
        %v462 = vld [vmem:[#allocation2 + $0x28] sm:$0x3]
        %v463 = vld [vmem:[#allocation2 + $0x30] sm:$0xff]
        %v464 = vld [vmem:[#allocation2 + $0x38] sm:$0xff]
        %v465 = vld [vmem:[#allocation2 + $0x40] sm:$0x3]
        %v466 = vld [vmem:[#allocation2 + $0x48] sm:$0xff]
        %v467 = vld [vmem:[#allocation2 + $0x50] sm:$0xff]
        %v468 = vld [vmem:[#allocation2 + $0x58] sm:$0x3]
        %v469 = vld [vmem:[#allocation2 + $0x60] sm:$0xff]
        %v470 = vld [vmem:[#allocation2 + $0x68] sm:$0xff]
        %v471 = vld [vmem:[#allocation2 + $0x70] sm:$0x3]
        %v472 = vld [vmem:[#allocation2 + $0x78] sm:$0xff]
        %v473 = vld [vmem:[#allocation2 + $0x80] sm:$0xff]
        %v474 = vld [vmem:[#allocation2 + $0x88] sm:$0x3]
        %v475 = vld [vmem:[#allocation2 + $0x90] sm:$0xff]
        %v476 = vld [vmem:[#allocation2 + $0x98] sm:$0xff]
        %v477 = vld [vmem:[#allocation2 + $0xa0] sm:$0x3]
        %v478 = vld [vmem:[#allocation2 + $0xa8] sm:$0xff]
        %v479 = vld [vmem:[#allocation2 + $0xb0] sm:$0xff]
        %v480 = vld [vmem:[#allocation2 + $0xb8] sm:$0x3]
        %v481 = vld [vmem:[#allocation2 + $0xc0] sm:$0xff]
        %v482 = vld [vmem:[#allocation2 + $0xc8] sm:$0xff]
        %v483 = vld [vmem:[#allocation2 + $0xd0] sm:$0x3]
        %v484 = vld [vmem:[#allocation2 + $0xd8] sm:$0xff]
        %v485 = vld [vmem:[#allocation2 + $0xe0] sm:$0xff]
        %v486 = vld [vmem:[#allocation2 + $0xe8] sm:$0x3]
        %v487 = vld [vmem:[#allocation2 + $0xf0] sm:$0xff]
        %v488 = vld [vmem:[#allocation2 + $0xf8] sm:$0xff]
        %v489 = vld [vmem:[#allocation2 + $0x100] sm:$0x3]
        %v490 = vld [vmem:[#allocation2 + $0x108] sm:$0xff]
        %v491 = vld [vmem:[#allocation2 + $0x110] sm:$0xff]
        %v492 = vld [vmem:[#allocation2 + $0x118] sm:$0x3]
        %v493 = vld [vmem:[#allocation2 + $0x120] sm:$0xff]
        %v494 = vld [vmem:[#allocation2 + $0x128] sm:$0xff]
        %v495 = vld [vmem:[#allocation2 + $0x130] sm:$0x3]
        %v496 = vld [vmem:[#allocation2 + $0x138] sm:$0xff]
        %v497 = vld [vmem:[#allocation2 + $0x140] sm:$0xff]
        %v498 = vld [vmem:[#allocation2 + $0x148] sm:$0x3]
        %v499 = vld [vmem:[#allocation2 + $0x150] sm:$0xff]
        %v500 = vld [vmem:[#allocation2 + $0x158] sm:$0xff]
        %v501 = vld [vmem:[#allocation2 + $0x160] sm:$0x3]
        %v502 = vld [vmem:[#allocation2 + $0x168] sm:$0xff]
        %v503 = vld [vmem:[#allocation2 + $0x170] sm:$0xff]
        %v504 = vld [vmem:[#allocation2 + $0x178] sm:$0x3]
        %v505 = vld [vmem:[#allocation2 + $0x180] sm:$0xff]
        %v506 = vld [vmem:[#allocation2 + $0x188] sm:$0xff]
        %v507 = vld [vmem:[#allocation2 + $0x190] sm:$0x3]
        %v508 = vld [vmem:[#allocation2 + $0x198] sm:$0xff]
        %v509 = vld [vmem:[#allocation2 + $0x1a0] sm:$0xff]
        %v510 = vld [vmem:[#allocation2 + $0x1a8] sm:$0x3]
        %v511 = vmax.f32 %v457, 0.0
        %v512 = vmax.f32 %v458, 0.0
        %v513 = vmax.f32 %v459, 0.0
        %v514 = vmax.f32 %v460, 0.0
        %v515 = vmax.f32 %v461, 0.0
        %v516 = vmax.f32 %v462, 0.0
        %v517 = vmax.f32 %v463, 0.0
        %v518 = vmax.f32 %v464, 0.0
        %v519 = vmax.f32 %v465, 0.0
        %v520 = vmax.f32 %v466, 0.0
        %v521 = vmax.f32 %v467, 0.0
        %v522 = vmax.f32 %v468, 0.0
        %v523 = vmax.f32 %v469, 0.0
        %v524 = vmax.f32 %v470, 0.0
        %v525 = vmax.f32 %v471, 0.0
        %v526 = vmax.f32 %v472, 0.0
        %v527 = vmax.f32 %v473, 0.0
        %v528 = vmax.f32 %v474, 0.0
        %v529 = vmax.f32 %v475, 0.0
        %v530 = vmax.f32 %v476, 0.0
        %v531 = vmax.f32 %v477, 0.0
        %v532 = vmax.f32 %v478, 0.0
        %v533 = vmax.f32 %v479, 0.0
        %v534 = vmax.f32 %v480, 0.0
        %v535 = vmax.f32 %v481, 0.0
        %v536 = vmax.f32 %v482, 0.0
        %v537 = vmax.f32 %v483, 0.0
        %v538 = vmax.f32 %v484, 0.0
        %v539 = vmax.f32 %v485, 0.0
        %v540 = vmax.f32 %v486, 0.0
        %v541 = vmax.f32 %v487, 0.0
        %v542 = vmax.f32 %v488, 0.0
        %v543 = vmax.f32 %v489, 0.0
        %v544 = vmax.f32 %v490, 0.0
        %v545 = vmax.f32 %v491, 0.0
        %v546 = vmax.f32 %v492, 0.0
        %v547 = vmax.f32 %v493, 0.0
        %v548 = vmax.f32 %v494, 0.0
        %v549 = vmax.f32 %v495, 0.0
        %v550 = vmax.f32 %v496, 0.0
        %v551 = vmax.f32 %v497, 0.0
        %v552 = vmax.f32 %v498, 0.0
        %v553 = vmax.f32 %v499, 0.0
        %v554 = vmax.f32 %v500, 0.0
        %v555 = vmax.f32 %v501, 0.0
        %v556 = vmax.f32 %v502, 0.0
        %v557 = vmax.f32 %v503, 0.0
        %v558 = vmax.f32 %v504, 0.0
        %v559 = vmax.f32 %v505, 0.0
        %v560 = vmax.f32 %v506, 0.0
        %v561 = vmax.f32 %v507, 0.0
        %v562 = vmax.f32 %v508, 0.0
        %v563 = vmax.f32 %v509, 0.0
        %v564 = vmax.f32 %v510, 0.0
        %v565 = vlaneseq
        %v566 = vshrl.u32 %v565, 7
        %v567 = vsub.s32 0, %v566
        %v568 = vrot.slane %v363, %v567
        %v569 = vmul.f32 %v511, %v568
        %v570 = vmul.f32 %v512, %v568
        %v571 = vmul.f32 %v514, %v568
        %v572 = vmul.f32 %v515, %v568
        %v573 = vmul.f32 %v517, %v568
        %v574 = vmul.f32 %v518, %v568
        %v575 = vmul.f32 %v520, %v568
        %v576 = vmul.f32 %v521, %v568
        %v577 = vmul.f32 %v523, %v568
        %v578 = vmul.f32 %v524, %v568
        %v579 = vmul.f32 %v526, %v568
        %v580 = vmul.f32 %v527, %v568
        %v581 = vmul.f32 %v529, %v568
        %v582 = vmul.f32 %v530, %v568
        %v583 = vmul.f32 %v532, %v568
        %v584 = vmul.f32 %v533, %v568
        %v585 = vmul.f32 %v535, %v568
        %v586 = vmul.f32 %v536, %v568
        %v587 = vmul.f32 %v538, %v568
        %v588 = vmul.f32 %v539, %v568
        %v589 = vmul.f32 %v541, %v568
        %v590 = vmul.f32 %v542, %v568
        %v591 = vmul.f32 %v544, %v568
        %v592 = vmul.f32 %v545, %v568
        %v593 = vmul.f32 %v547, %v568
        %v594 = vmul.f32 %v548, %v568
        %v595 = vmul.f32 %v550, %v568
        %v596 = vmul.f32 %v551, %v568
        %v597 = vmul.f32 %v553, %v568
        %v598 = vmul.f32 %v554, %v568
        %v599 = vmul.f32 %v556, %v568
        %v600 = vmul.f32 %v557, %v568
        %v601 = vlaneseq
        %v602 = vshrl.u32 %v601, 7
        %v603 = vsub.s32 1, %v602
        %v604 = vrot.slane %v363, %v603
        %v605 = vmul.f32 %v511, %v604
        %v606 = vmul.f32 %v512, %v604
        %v607 = vmul.f32 %v513, %v604
        %v608 = vmul.f32 %v514, %v604
        %v609 = vmul.f32 %v515, %v604
        %v610 = vmul.f32 %v516, %v604
        %v611 = vmul.f32 %v517, %v604
        %v612 = vmul.f32 %v518, %v604
        %v613 = vmul.f32 %v519, %v604
        %v614 = vmul.f32 %v520, %v604
        %v615 = vmul.f32 %v521, %v604
        %v616 = vmul.f32 %v522, %v604
        %v617 = vmul.f32 %v523, %v604
        %v618 = vmul.f32 %v524, %v604
        %v619 = vmul.f32 %v525, %v604
        %v620 = vmul.f32 %v526, %v604
        %v621 = vmul.f32 %v527, %v604
        %v622 = vmul.f32 %v528, %v604
        %v623 = vmul.f32 %v529, %v604
        %v624 = vmul.f32 %v530, %v604
        %v625 = vmul.f32 %v531, %v604
        %v626 = vmul.f32 %v532, %v604
        %v627 = vmul.f32 %v533, %v604
        %v628 = vmul.f32 %v534, %v604
        %v629 = vmul.f32 %v535, %v604
        %v630 = vmul.f32 %v536, %v604
        %v631 = vmul.f32 %v537, %v604
        %v632 = vmul.f32 %v538, %v604
        %v633 = vmul.f32 %v539, %v604
        %v634 = vmul.f32 %v540, %v604
        %v635 = vmul.f32 %v541, %v604
        %v636 = vmul.f32 %v542, %v604
        %v637 = vmul.f32 %v543, %v604
        %v638 = vmul.f32 %v544, %v604
        %v639 = vmul.f32 %v545, %v604
        %v640 = vmul.f32 %v546, %v604
        %v641 = vmul.f32 %v547, %v604
        %v642 = vmul.f32 %v548, %v604
        %v643 = vmul.f32 %v549, %v604
        %v644 = vmul.f32 %v550, %v604
        %v645 = vmul.f32 %v551, %v604
        %v646 = vmul.f32 %v552, %v604
        %v647 = vmul.f32 %v553, %v604
        %v648 = vmul.f32 %v554, %v604
        %v649 = vmul.f32 %v555, %v604
        %v650 = vmul.f32 %v556, %v604
        %v651 = vmul.f32 %v557, %v604
        %v652 = vmul.f32 %v558, %v604
        %vm701 = vcmask 1046528
        %v702 = vrot.slane %v605, 1
        %v703 = vrot.slane %v606, 1
        %v704 = vsel %vm701, %v702, %v703
        %v705 = vrot.slane %v607, 1
        %v706 = vsel %vm701, %v703, %v705
        %v707 = vrot.slane %v608, 1
        %v708 = vrot.slane %v609, 1
        %v709 = vsel %vm701, %v707, %v708
        %v710 = vrot.slane %v610, 1
        %v711 = vsel %vm701, %v708, %v710
        %v712 = vrot.slane %v611, 1
        %v713 = vrot.slane %v612, 1
        %v714 = vsel %vm701, %v712, %v713
        %v715 = vrot.slane %v613, 1
        %v716 = vsel %vm701, %v713, %v715
        %v717 = vrot.slane %v614, 1
        %v718 = vrot.slane %v615, 1
        %v719 = vsel %vm701, %v717, %v718
        %v720 = vrot.slane %v616, 1
        %v721 = vsel %vm701, %v718, %v720
        %v722 = vrot.slane %v617, 1
        %v723 = vrot.slane %v618, 1
        %v724 = vsel %vm701, %v722, %v723
        %v725 = vrot.slane %v619, 1
        %v726 = vsel %vm701, %v723, %v725
        %v727 = vrot.slane %v620, 1
        %v728 = vrot.slane %v621, 1
        %v729 = vsel %vm701, %v727, %v728
        %v730 = vrot.slane %v622, 1
        %v731 = vsel %vm701, %v728, %v730
        %v732 = vrot.slane %v623, 1
        %v733 = vrot.slane %v624, 1
        %v734 = vsel %vm701, %v732, %v733
        %v735 = vrot.slane %v625, 1
        %v736 = vsel %vm701, %v733, %v735
        %v737 = vrot.slane %v626, 1
        %v738 = vrot.slane %v627, 1
        %v739 = vsel %vm701, %v737, %v738
        %v740 = vrot.slane %v628, 1
        %v741 = vsel %vm701, %v738, %v740
        %v742 = vrot.slane %v629, 1
        %v743 = vrot.slane %v630, 1
        %v744 = vsel %vm701, %v742, %v743
        %v745 = vrot.slane %v631, 1
        %v746 = vsel %vm701, %v743, %v745
        %v747 = vrot.slane %v632, 1
        %v748 = vrot.slane %v633, 1
        %v749 = vsel %vm701, %v747, %v748
        %v750 = vrot.slane %v634, 1
        %v751 = vsel %vm701, %v748, %v750
        %v752 = vrot.slane %v635, 1
        %v753 = vrot.slane %v636, 1
        %v754 = vsel %vm701, %v752, %v753
        %v755 = vrot.slane %v637, 1
        %v756 = vsel %vm701, %v753, %v755
        %v757 = vrot.slane %v638, 1
        %v758 = vrot.slane %v639, 1
        %v759 = vsel %vm701, %v757, %v758
        %v760 = vrot.slane %v640, 1
        %v761 = vsel %vm701, %v758, %v760
        %v762 = vrot.slane %v641, 1
        %v763 = vrot.slane %v642, 1
        %v764 = vsel %vm701, %v762, %v763
        %v765 = vrot.slane %v643, 1
        %v766 = vsel %vm701, %v763, %v765
        %v767 = vrot.slane %v644, 1
        %v768 = vrot.slane %v645, 1
        %v769 = vsel %vm701, %v767, %v768
        %v770 = vrot.slane %v646, 1
        %v771 = vsel %vm701, %v768, %v770
        %v772 = vrot.slane %v647, 1
        %v773 = vrot.slane %v648, 1
        %v774 = vsel %vm701, %v772, %v773
        %v775 = vrot.slane %v649, 1
        %v776 = vsel %vm701, %v773, %v775
        %v777 = vrot.slane %v650, 1
        %v778 = vrot.slane %v651, 1
        %v779 = vsel %vm701, %v777, %v778
        %v780 = vrot.slane %v652, 1
        %v781 = vsel %vm701, %v778, %v780
        %v814 = vadd.f32 %v569, %v704
        %v815 = vadd.f32 %v570, %v706
        %v816 = vadd.f32 %v571, %v709
        %v817 = vadd.f32 %v572, %v711
        %v818 = vadd.f32 %v573, %v714
        %v819 = vadd.f32 %v574, %v716
        %v820 = vadd.f32 %v575, %v719
        %v821 = vadd.f32 %v576, %v721
        %v822 = vadd.f32 %v577, %v724
        %v823 = vadd.f32 %v578, %v726
        %v824 = vadd.f32 %v579, %v729
        %v825 = vadd.f32 %v580, %v731
        %v826 = vadd.f32 %v581, %v734
        %v827 = vadd.f32 %v582, %v736
        %v828 = vadd.f32 %v583, %v739
        %v829 = vadd.f32 %v584, %v741
        %v830 = vadd.f32 %v585, %v744
        %v831 = vadd.f32 %v586, %v746
        %v832 = vadd.f32 %v587, %v749
        %v833 = vadd.f32 %v588, %v751
        %v834 = vadd.f32 %v589, %v754
        %v835 = vadd.f32 %v590, %v756
        %v836 = vadd.f32 %v591, %v759
        %v837 = vadd.f32 %v592, %v761
        %v838 = vadd.f32 %v593, %v764
        %v839 = vadd.f32 %v594, %v766
        %v840 = vadd.f32 %v595, %v769
        %v841 = vadd.f32 %v596, %v771
        %v842 = vadd.f32 %v597, %v774
        %v843 = vadd.f32 %v598, %v776
        %v844 = vadd.f32 %v599, %v779
        %v845 = vadd.f32 %v600, %v781
        %v846 = vlaneseq
        %v847 = vshrl.u32 %v846, 7
        %v848 = vsub.s32 2, %v847
        %v849 = vrot.slane %v363, %v848
        %v850 = vmul.f32 %v511, %v849
        %v851 = vmul.f32 %v512, %v849
        %v852 = vmul.f32 %v513, %v849
        %v853 = vmul.f32 %v514, %v849
        %v854 = vmul.f32 %v515, %v849
        %v855 = vmul.f32 %v516, %v849
        %v856 = vmul.f32 %v517, %v849
        %v857 = vmul.f32 %v518, %v849
        %v858 = vmul.f32 %v519, %v849
        %v859 = vmul.f32 %v520, %v849
        %v860 = vmul.f32 %v521, %v849
        %v861 = vmul.f32 %v522, %v849
        %v862 = vmul.f32 %v523, %v849
        %v863 = vmul.f32 %v524, %v849
        %v864 = vmul.f32 %v525, %v849
        %v865 = vmul.f32 %v526, %v849
        %v866 = vmul.f32 %v527, %v849
        %v867 = vmul.f32 %v528, %v849
        %v868 = vmul.f32 %v529, %v849
        %v869 = vmul.f32 %v530, %v849
        %v870 = vmul.f32 %v531, %v849
        %v871 = vmul.f32 %v532, %v849
        %v872 = vmul.f32 %v533, %v849
        %v873 = vmul.f32 %v534, %v849
        %v874 = vmul.f32 %v535, %v849
        %v875 = vmul.f32 %v536, %v849
        %v876 = vmul.f32 %v537, %v849
        %v877 = vmul.f32 %v538, %v849
        %v878 = vmul.f32 %v539, %v849
        %v879 = vmul.f32 %v540, %v849
        %v880 = vmul.f32 %v541, %v849
        %v881 = vmul.f32 %v542, %v849
        %v882 = vmul.f32 %v543, %v849
        %v883 = vmul.f32 %v544, %v849
        %v884 = vmul.f32 %v545, %v849
        %v885 = vmul.f32 %v546, %v849
        %v886 = vmul.f32 %v547, %v849
        %v887 = vmul.f32 %v548, %v849
        %v888 = vmul.f32 %v549, %v849
        %v889 = vmul.f32 %v550, %v849
        %v890 = vmul.f32 %v551, %v849
        %v891 = vmul.f32 %v552, %v849
        %v892 = vmul.f32 %v553, %v849
        %v893 = vmul.f32 %v554, %v849
        %v894 = vmul.f32 %v555, %v849
        %v895 = vmul.f32 %v556, %v849
        %v896 = vmul.f32 %v557, %v849
        %v897 = vmul.f32 %v558, %v849
        %vm946 = vcmask 1045504
        %v947 = vrot.slane %v850, 2
        %v948 = vrot.slane %v851, 2
        %v949 = vsel %vm946, %v947, %v948
        %v950 = vrot.slane %v852, 2
        %v951 = vsel %vm946, %v948, %v950
        %v952 = vrot.slane %v853, 2
        %v953 = vrot.slane %v854, 2
        %v954 = vsel %vm946, %v952, %v953
        %v955 = vrot.slane %v855, 2
        %v956 = vsel %vm946, %v953, %v955
        %v957 = vrot.slane %v856, 2
        %v958 = vrot.slane %v857, 2
        %v959 = vsel %vm946, %v957, %v958
        %v960 = vrot.slane %v858, 2
        %v961 = vsel %vm946, %v958, %v960
        %v962 = vrot.slane %v859, 2
        %v963 = vrot.slane %v860, 2
        %v964 = vsel %vm946, %v962, %v963
        %v965 = vrot.slane %v861, 2
        %v966 = vsel %vm946, %v963, %v965
        %v967 = vrot.slane %v862, 2
        %v968 = vrot.slane %v863, 2
        %v969 = vsel %vm946, %v967, %v968
        %v970 = vrot.slane %v864, 2
        %v971 = vsel %vm946, %v968, %v970
        %v972 = vrot.slane %v865, 2
        %v973 = vrot.slane %v866, 2
        %v974 = vsel %vm946, %v972, %v973
        %v975 = vrot.slane %v867, 2
        %v976 = vsel %vm946, %v973, %v975
        %v977 = vrot.slane %v868, 2
        %v978 = vrot.slane %v869, 2
        %v979 = vsel %vm946, %v977, %v978
        %v980 = vrot.slane %v870, 2
        %v981 = vsel %vm946, %v978, %v980
        %v982 = vrot.slane %v871, 2
        %v983 = vrot.slane %v872, 2
        %v984 = vsel %vm946, %v982, %v983
        %v985 = vrot.slane %v873, 2
        %v986 = vsel %vm946, %v983, %v985
        %v987 = vrot.slane %v874, 2
        %v988 = vrot.slane %v875, 2
        %v989 = vsel %vm946, %v987, %v988
        %v990 = vrot.slane %v876, 2
        %v991 = vsel %vm946, %v988, %v990
        %v992 = vrot.slane %v877, 2
        %v993 = vrot.slane %v878, 2
        %v994 = vsel %vm946, %v992, %v993
        %v995 = vrot.slane %v879, 2
        %v996 = vsel %vm946, %v993, %v995
        %v997 = vrot.slane %v880, 2
        %v998 = vrot.slane %v881, 2
        %v999 = vsel %vm946, %v997, %v998
        %v1000 = vrot.slane %v882, 2
        %v1001 = vsel %vm946, %v998, %v1000
        %v1002 = vrot.slane %v883, 2
        %v1003 = vrot.slane %v884, 2
        %v1004 = vsel %vm946, %v1002, %v1003
        %v1005 = vrot.slane %v885, 2
        %v1006 = vsel %vm946, %v1003, %v1005
        %v1007 = vrot.slane %v886, 2
        %v1008 = vrot.slane %v887, 2
        %v1009 = vsel %vm946, %v1007, %v1008
        %v1010 = vrot.slane %v888, 2
        %v1011 = vsel %vm946, %v1008, %v1010
        %v1012 = vrot.slane %v889, 2
        %v1013 = vrot.slane %v890, 2
        %v1014 = vsel %vm946, %v1012, %v1013
        %v1015 = vrot.slane %v891, 2
        %v1016 = vsel %vm946, %v1013, %v1015
        %v1017 = vrot.slane %v892, 2
        %v1018 = vrot.slane %v893, 2
        %v1019 = vsel %vm946, %v1017, %v1018
        %v1020 = vrot.slane %v894, 2
        %v1021 = vsel %vm946, %v1018, %v1020
        %v1022 = vrot.slane %v895, 2
        %v1023 = vrot.slane %v896, 2
        %v1024 = vsel %vm946, %v1022, %v1023
        %v1025 = vrot.slane %v897, 2
        %v1026 = vsel %vm946, %v1023, %v1025
        %v1059 = vadd.f32 %v814, %v949
        %v1060 = vadd.f32 %v815, %v951
        %v1061 = vadd.f32 %v816, %v954
        %v1062 = vadd.f32 %v817, %v956
        %v1063 = vadd.f32 %v818, %v959
        %v1064 = vadd.f32 %v819, %v961
        %v1065 = vadd.f32 %v820, %v964
        %v1066 = vadd.f32 %v821, %v966
        %v1067 = vadd.f32 %v822, %v969
        %v1068 = vadd.f32 %v823, %v971
        %v1069 = vadd.f32 %v824, %v974
        %v1070 = vadd.f32 %v825, %v976
        %v1071 = vadd.f32 %v826, %v979
        %v1072 = vadd.f32 %v827, %v981
        %v1073 = vadd.f32 %v828, %v984
        %v1074 = vadd.f32 %v829, %v986
        %v1075 = vadd.f32 %v830, %v989
        %v1076 = vadd.f32 %v831, %v991
        %v1077 = vadd.f32 %v832, %v994
        %v1078 = vadd.f32 %v833, %v996
        %v1079 = vadd.f32 %v834, %v999
        %v1080 = vadd.f32 %v835, %v1001
        %v1081 = vadd.f32 %v836, %v1004
        %v1082 = vadd.f32 %v837, %v1006
        %v1083 = vadd.f32 %v838, %v1009
        %v1084 = vadd.f32 %v839, %v1011
        %v1085 = vadd.f32 %v840, %v1014
        %v1086 = vadd.f32 %v841, %v1016
        %v1087 = vadd.f32 %v842, %v1019
        %v1088 = vadd.f32 %v843, %v1021
        %v1089 = vadd.f32 %v844, %v1024
        %v1090 = vadd.f32 %v845, %v1026
        %v1091 = vlaneseq
        %v1092 = vshrl.u32 %v1091, 7
        %v1093 = vsub.s32 0, %v1092
        %v1094 = vrot.slane %v364, %v1093
        %v1095 = vmul.f32 %v514, %v1094
        %v1096 = vmul.f32 %v515, %v1094
        %v1097 = vmul.f32 %v517, %v1094
        %v1098 = vmul.f32 %v518, %v1094
        %v1099 = vmul.f32 %v520, %v1094
        %v1100 = vmul.f32 %v521, %v1094
        %v1101 = vmul.f32 %v523, %v1094
        %v1102 = vmul.f32 %v524, %v1094
        %v1103 = vmul.f32 %v526, %v1094
        %v1104 = vmul.f32 %v527, %v1094
        %v1105 = vmul.f32 %v529, %v1094
        %v1106 = vmul.f32 %v530, %v1094
        %v1107 = vmul.f32 %v532, %v1094
        %v1108 = vmul.f32 %v533, %v1094
        %v1109 = vmul.f32 %v535, %v1094
        %v1110 = vmul.f32 %v536, %v1094
        %v1111 = vmul.f32 %v538, %v1094
        %v1112 = vmul.f32 %v539, %v1094
        %v1113 = vmul.f32 %v541, %v1094
        %v1114 = vmul.f32 %v542, %v1094
        %v1115 = vmul.f32 %v544, %v1094
        %v1116 = vmul.f32 %v545, %v1094
        %v1117 = vmul.f32 %v547, %v1094
        %v1118 = vmul.f32 %v548, %v1094
        %v1119 = vmul.f32 %v550, %v1094
        %v1120 = vmul.f32 %v551, %v1094
        %v1121 = vmul.f32 %v553, %v1094
        %v1122 = vmul.f32 %v554, %v1094
        %v1123 = vmul.f32 %v556, %v1094
        %v1124 = vmul.f32 %v557, %v1094
        %v1125 = vmul.f32 %v559, %v1094
        %v1126 = vmul.f32 %v560, %v1094
        %v1127 = vadd.f32 %v1059, %v1095
        %v1128 = vadd.f32 %v1060, %v1096
        %v1129 = vadd.f32 %v1061, %v1097
        %v1130 = vadd.f32 %v1062, %v1098
        %v1131 = vadd.f32 %v1063, %v1099
        %v1132 = vadd.f32 %v1064, %v1100
        %v1133 = vadd.f32 %v1065, %v1101
        %v1134 = vadd.f32 %v1066, %v1102
        %v1135 = vadd.f32 %v1067, %v1103
        %v1136 = vadd.f32 %v1068, %v1104
        %v1137 = vadd.f32 %v1069, %v1105
        %v1138 = vadd.f32 %v1070, %v1106
        %v1139 = vadd.f32 %v1071, %v1107
        %v1140 = vadd.f32 %v1072, %v1108
        %v1141 = vadd.f32 %v1073, %v1109
        %v1142 = vadd.f32 %v1074, %v1110
        %v1143 = vadd.f32 %v1075, %v1111
        %v1144 = vadd.f32 %v1076, %v1112
        %v1145 = vadd.f32 %v1077, %v1113
        %v1146 = vadd.f32 %v1078, %v1114
        %v1147 = vadd.f32 %v1079, %v1115
        %v1148 = vadd.f32 %v1080, %v1116
        %v1149 = vadd.f32 %v1081, %v1117
        %v1150 = vadd.f32 %v1082, %v1118
        %v1151 = vadd.f32 %v1083, %v1119
        %v1152 = vadd.f32 %v1084, %v1120
        %v1153 = vadd.f32 %v1085, %v1121
        %v1154 = vadd.f32 %v1086, %v1122
        %v1155 = vadd.f32 %v1087, %v1123
        %v1156 = vadd.f32 %v1088, %v1124
        %v1157 = vadd.f32 %v1089, %v1125
        %v1158 = vadd.f32 %v1090, %v1126
        %v1159 = vlaneseq
        %v1160 = vshrl.u32 %v1159, 7
        %v1161 = vsub.s32 1, %v1160
        %v1162 = vrot.slane %v364, %v1161
        %v1163 = vmul.f32 %v514, %v1162
        %v1164 = vmul.f32 %v515, %v1162
        %v1165 = vmul.f32 %v516, %v1162
        %v1166 = vmul.f32 %v517, %v1162
        %v1167 = vmul.f32 %v518, %v1162
        %v1168 = vmul.f32 %v519, %v1162
        %v1169 = vmul.f32 %v520, %v1162
        %v1170 = vmul.f32 %v521, %v1162
        %v1171 = vmul.f32 %v522, %v1162
        %v1172 = vmul.f32 %v523, %v1162
        %v1173 = vmul.f32 %v524, %v1162
        %v1174 = vmul.f32 %v525, %v1162
        %v1175 = vmul.f32 %v526, %v1162
        %v1176 = vmul.f32 %v527, %v1162
        %v1177 = vmul.f32 %v528, %v1162
        %v1178 = vmul.f32 %v529, %v1162
        %v1179 = vmul.f32 %v530, %v1162
        %v1180 = vmul.f32 %v531, %v1162
        %v1181 = vmul.f32 %v532, %v1162
        %v1182 = vmul.f32 %v533, %v1162
        %v1183 = vmul.f32 %v534, %v1162
        %v1184 = vmul.f32 %v535, %v1162
        %v1185 = vmul.f32 %v536, %v1162
        %v1186 = vmul.f32 %v537, %v1162
        %v1187 = vmul.f32 %v538, %v1162
        %v1188 = vmul.f32 %v539, %v1162
        %v1189 = vmul.f32 %v540, %v1162
        %v1190 = vmul.f32 %v541, %v1162
        %v1191 = vmul.f32 %v542, %v1162
        %v1192 = vmul.f32 %v543, %v1162
        %v1193 = vmul.f32 %v544, %v1162
        %v1194 = vmul.f32 %v545, %v1162
        %v1195 = vmul.f32 %v546, %v1162
        %v1196 = vmul.f32 %v547, %v1162
        %v1197 = vmul.f32 %v548, %v1162
        %v1198 = vmul.f32 %v549, %v1162
        %v1199 = vmul.f32 %v550, %v1162
        %v1200 = vmul.f32 %v551, %v1162
        %v1201 = vmul.f32 %v552, %v1162
        %v1202 = vmul.f32 %v553, %v1162
        %v1203 = vmul.f32 %v554, %v1162
        %v1204 = vmul.f32 %v555, %v1162
        %v1205 = vmul.f32 %v556, %v1162
        %v1206 = vmul.f32 %v557, %v1162
        %v1207 = vmul.f32 %v558, %v1162
        %v1208 = vmul.f32 %v559, %v1162
        %v1209 = vmul.f32 %v560, %v1162
        %v1210 = vmul.f32 %v561, %v1162
        %v1259 = vrot.slane %v1163, 1
        %v1260 = vrot.slane %v1164, 1
        %v1261 = vsel %vm701, %v1259, %v1260
        %v1262 = vrot.slane %v1165, 1
        %v1263 = vsel %vm701, %v1260, %v1262
        %v1264 = vrot.slane %v1166, 1
        %v1265 = vrot.slane %v1167, 1
        %v1266 = vsel %vm701, %v1264, %v1265
        %v1267 = vrot.slane %v1168, 1
        %v1268 = vsel %vm701, %v1265, %v1267
        %v1269 = vrot.slane %v1169, 1
        %v1270 = vrot.slane %v1170, 1
        %v1271 = vsel %vm701, %v1269, %v1270
        %v1272 = vrot.slane %v1171, 1
        %v1273 = vsel %vm701, %v1270, %v1272
        %v1274 = vrot.slane %v1172, 1
        %v1275 = vrot.slane %v1173, 1
        %v1276 = vsel %vm701, %v1274, %v1275
        %v1277 = vrot.slane %v1174, 1
        %v1278 = vsel %vm701, %v1275, %v1277
        %v1279 = vrot.slane %v1175, 1
        %v1280 = vrot.slane %v1176, 1
        %v1281 = vsel %vm701, %v1279, %v1280
        %v1282 = vrot.slane %v1177, 1
        %v1283 = vsel %vm701, %v1280, %v1282
        %v1284 = vrot.slane %v1178, 1
        %v1285 = vrot.slane %v1179, 1
        %v1286 = vsel %vm701, %v1284, %v1285
        %v1287 = vrot.slane %v1180, 1
        %v1288 = vsel %vm701, %v1285, %v1287
        %v1289 = vrot.slane %v1181, 1
        %v1290 = vrot.slane %v1182, 1
        %v1291 = vsel %vm701, %v1289, %v1290
        %v1292 = vrot.slane %v1183, 1
        %v1293 = vsel %vm701, %v1290, %v1292
        %v1294 = vrot.slane %v1184, 1
        %v1295 = vrot.slane %v1185, 1
        %v1296 = vsel %vm701, %v1294, %v1295
        %v1297 = vrot.slane %v1186, 1
        %v1298 = vsel %vm701, %v1295, %v1297
        %v1299 = vrot.slane %v1187, 1
        %v1300 = vrot.slane %v1188, 1
        %v1301 = vsel %vm701, %v1299, %v1300
        %v1302 = vrot.slane %v1189, 1
        %v1303 = vsel %vm701, %v1300, %v1302
        %v1304 = vrot.slane %v1190, 1
        %v1305 = vrot.slane %v1191, 1
        %v1306 = vsel %vm701, %v1304, %v1305
        %v1307 = vrot.slane %v1192, 1
        %v1308 = vsel %vm701, %v1305, %v1307
        %v1309 = vrot.slane %v1193, 1
        %v1310 = vrot.slane %v1194, 1
        %v1311 = vsel %vm701, %v1309, %v1310
        %v1312 = vrot.slane %v1195, 1
        %v1313 = vsel %vm701, %v1310, %v1312
        %v1314 = vrot.slane %v1196, 1
        %v1315 = vrot.slane %v1197, 1
        %v1316 = vsel %vm701, %v1314, %v1315
        %v1317 = vrot.slane %v1198, 1
        %v1318 = vsel %vm701, %v1315, %v1317
        %v1319 = vrot.slane %v1199, 1
        %v1320 = vrot.slane %v1200, 1
        %v1321 = vsel %vm701, %v1319, %v1320
        %v1322 = vrot.slane %v1201, 1
        %v1323 = vsel %vm701, %v1320, %v1322
        %v1324 = vrot.slane %v1202, 1
        %v1325 = vrot.slane %v1203, 1
        %v1326 = vsel %vm701, %v1324, %v1325
        %v1327 = vrot.slane %v1204, 1
        %v1328 = vsel %vm701, %v1325, %v1327
        %v1329 = vrot.slane %v1205, 1
        %v1330 = vrot.slane %v1206, 1
        %v1331 = vsel %vm701, %v1329, %v1330
        %v1332 = vrot.slane %v1207, 1
        %v1333 = vsel %vm701, %v1330, %v1332
        %v1334 = vrot.slane %v1208, 1
        %v1335 = vrot.slane %v1209, 1
        %v1336 = vsel %vm701, %v1334, %v1335
        %v1337 = vrot.slane %v1210, 1
        %v1338 = vsel %vm701, %v1335, %v1337
        %v1371 = vadd.f32 %v1127, %v1261
        %v1372 = vadd.f32 %v1128, %v1263
        %v1373 = vadd.f32 %v1129, %v1266
        %v1374 = vadd.f32 %v1130, %v1268
        %v1375 = vadd.f32 %v1131, %v1271
        %v1376 = vadd.f32 %v1132, %v1273
        %v1377 = vadd.f32 %v1133, %v1276
        %v1378 = vadd.f32 %v1134, %v1278
        %v1379 = vadd.f32 %v1135, %v1281
        %v1380 = vadd.f32 %v1136, %v1283
        %v1381 = vadd.f32 %v1137, %v1286
        %v1382 = vadd.f32 %v1138, %v1288
        %v1383 = vadd.f32 %v1139, %v1291
        %v1384 = vadd.f32 %v1140, %v1293
        %v1385 = vadd.f32 %v1141, %v1296
        %v1386 = vadd.f32 %v1142, %v1298
        %v1387 = vadd.f32 %v1143, %v1301
        %v1388 = vadd.f32 %v1144, %v1303
        %v1389 = vadd.f32 %v1145, %v1306
        %v1390 = vadd.f32 %v1146, %v1308
        %v1391 = vadd.f32 %v1147, %v1311
        %v1392 = vadd.f32 %v1148, %v1313
        %v1393 = vadd.f32 %v1149, %v1316
        %v1394 = vadd.f32 %v1150, %v1318
        %v1395 = vadd.f32 %v1151, %v1321
        %v1396 = vadd.f32 %v1152, %v1323
        %v1397 = vadd.f32 %v1153, %v1326
        %v1398 = vadd.f32 %v1154, %v1328
        %v1399 = vadd.f32 %v1155, %v1331
        %v1400 = vadd.f32 %v1156, %v1333
        %v1401 = vadd.f32 %v1157, %v1336
        %v1402 = vadd.f32 %v1158, %v1338
        %v1403 = vlaneseq
        %v1404 = vshrl.u32 %v1403, 7
        %v1405 = vsub.s32 2, %v1404
        %v1406 = vrot.slane %v364, %v1405
        %v1407 = vmul.f32 %v514, %v1406
        %v1408 = vmul.f32 %v515, %v1406
        %v1409 = vmul.f32 %v516, %v1406
        %v1410 = vmul.f32 %v517, %v1406
        %v1411 = vmul.f32 %v518, %v1406
        %v1412 = vmul.f32 %v519, %v1406
        %v1413 = vmul.f32 %v520, %v1406
        %v1414 = vmul.f32 %v521, %v1406
        %v1415 = vmul.f32 %v522, %v1406
        %v1416 = vmul.f32 %v523, %v1406
        %v1417 = vmul.f32 %v524, %v1406
        %v1418 = vmul.f32 %v525, %v1406
        %v1419 = vmul.f32 %v526, %v1406
        %v1420 = vmul.f32 %v527, %v1406
        %v1421 = vmul.f32 %v528, %v1406
        %v1422 = vmul.f32 %v529, %v1406
        %v1423 = vmul.f32 %v530, %v1406
        %v1424 = vmul.f32 %v531, %v1406
        %v1425 = vmul.f32 %v532, %v1406
        %v1426 = vmul.f32 %v533, %v1406
        %v1427 = vmul.f32 %v534, %v1406
        %v1428 = vmul.f32 %v535, %v1406
        %v1429 = vmul.f32 %v536, %v1406
        %v1430 = vmul.f32 %v537, %v1406
        %v1431 = vmul.f32 %v538, %v1406
        %v1432 = vmul.f32 %v539, %v1406
        %v1433 = vmul.f32 %v540, %v1406
        %v1434 = vmul.f32 %v541, %v1406
        %v1435 = vmul.f32 %v542, %v1406
        %v1436 = vmul.f32 %v543, %v1406
        %v1437 = vmul.f32 %v544, %v1406
        %v1438 = vmul.f32 %v545, %v1406
        %v1439 = vmul.f32 %v546, %v1406
        %v1440 = vmul.f32 %v547, %v1406
        %v1441 = vmul.f32 %v548, %v1406
        %v1442 = vmul.f32 %v549, %v1406
        %v1443 = vmul.f32 %v550, %v1406
        %v1444 = vmul.f32 %v551, %v1406
        %v1445 = vmul.f32 %v552, %v1406
        %v1446 = vmul.f32 %v553, %v1406
        %v1447 = vmul.f32 %v554, %v1406
        %v1448 = vmul.f32 %v555, %v1406
        %v1449 = vmul.f32 %v556, %v1406
        %v1450 = vmul.f32 %v557, %v1406
        %v1451 = vmul.f32 %v558, %v1406
        %v1452 = vmul.f32 %v559, %v1406
        %v1453 = vmul.f32 %v560, %v1406
        %v1454 = vmul.f32 %v561, %v1406
        %v1503 = vrot.slane %v1407, 2
        %v1504 = vrot.slane %v1408, 2
        %v1505 = vsel %vm946, %v1503, %v1504
        %v1506 = vrot.slane %v1409, 2
        %v1507 = vsel %vm946, %v1504, %v1506
        %v1508 = vrot.slane %v1410, 2
        %v1509 = vrot.slane %v1411, 2
        %v1510 = vsel %vm946, %v1508, %v1509
        %v1511 = vrot.slane %v1412, 2
        %v1512 = vsel %vm946, %v1509, %v1511
        %v1513 = vrot.slane %v1413, 2
        %v1514 = vrot.slane %v1414, 2
        %v1515 = vsel %vm946, %v1513, %v1514
        %v1516 = vrot.slane %v1415, 2
        %v1517 = vsel %vm946, %v1514, %v1516
        %v1518 = vrot.slane %v1416, 2
        %v1519 = vrot.slane %v1417, 2
        %v1520 = vsel %vm946, %v1518, %v1519
        %v1521 = vrot.slane %v1418, 2
        %v1522 = vsel %vm946, %v1519, %v1521
        %v1523 = vrot.slane %v1419, 2
        %v1524 = vrot.slane %v1420, 2
        %v1525 = vsel %vm946, %v1523, %v1524
        %v1526 = vrot.slane %v1421, 2
        %v1527 = vsel %vm946, %v1524, %v1526
        %v1528 = vrot.slane %v1422, 2
        %v1529 = vrot.slane %v1423, 2
        %v1530 = vsel %vm946, %v1528, %v1529
        %v1531 = vrot.slane %v1424, 2
        %v1532 = vsel %vm946, %v1529, %v1531
        %v1533 = vrot.slane %v1425, 2
        %v1534 = vrot.slane %v1426, 2
        %v1535 = vsel %vm946, %v1533, %v1534
        %v1536 = vrot.slane %v1427, 2
        %v1537 = vsel %vm946, %v1534, %v1536
        %v1538 = vrot.slane %v1428, 2
        %v1539 = vrot.slane %v1429, 2
        %v1540 = vsel %vm946, %v1538, %v1539
        %v1541 = vrot.slane %v1430, 2
        %v1542 = vsel %vm946, %v1539, %v1541
        %v1543 = vrot.slane %v1431, 2
        %v1544 = vrot.slane %v1432, 2
        %v1545 = vsel %vm946, %v1543, %v1544
        %v1546 = vrot.slane %v1433, 2
        %v1547 = vsel %vm946, %v1544, %v1546
        %v1548 = vrot.slane %v1434, 2
        %v1549 = vrot.slane %v1435, 2
        %v1550 = vsel %vm946, %v1548, %v1549
        %v1551 = vrot.slane %v1436, 2
        %v1552 = vsel %vm946, %v1549, %v1551
        %v1553 = vrot.slane %v1437, 2
        %v1554 = vrot.slane %v1438, 2
        %v1555 = vsel %vm946, %v1553, %v1554
        %v1556 = vrot.slane %v1439, 2
        %v1557 = vsel %vm946, %v1554, %v1556
        %v1558 = vrot.slane %v1440, 2
        %v1559 = vrot.slane %v1441, 2
        %v1560 = vsel %vm946, %v1558, %v1559
        %v1561 = vrot.slane %v1442, 2
        %v1562 = vsel %vm946, %v1559, %v1561
        %v1563 = vrot.slane %v1443, 2
        %v1564 = vrot.slane %v1444, 2
        %v1565 = vsel %vm946, %v1563, %v1564
        %v1566 = vrot.slane %v1445, 2
        %v1567 = vsel %vm946, %v1564, %v1566
        %v1568 = vrot.slane %v1446, 2
        %v1569 = vrot.slane %v1447, 2
        %v1570 = vsel %vm946, %v1568, %v1569
        %v1571 = vrot.slane %v1448, 2
        %v1572 = vsel %vm946, %v1569, %v1571
        %v1573 = vrot.slane %v1449, 2
        %v1574 = vrot.slane %v1450, 2
        %v1575 = vsel %vm946, %v1573, %v1574
        %v1576 = vrot.slane %v1451, 2
        %v1577 = vsel %vm946, %v1574, %v1576
        %v1578 = vrot.slane %v1452, 2
        %v1579 = vrot.slane %v1453, 2
        %v1580 = vsel %vm946, %v1578, %v1579
        %v1581 = vrot.slane %v1454, 2
        %v1582 = vsel %vm946, %v1579, %v1581
        %v1615 = vadd.f32 %v1371, %v1505
        %v1616 = vadd.f32 %v1372, %v1507
        %v1617 = vadd.f32 %v1373, %v1510
        %v1618 = vadd.f32 %v1374, %v1512
        %v1619 = vadd.f32 %v1375, %v1515
        %v1620 = vadd.f32 %v1376, %v1517
        %v1621 = vadd.f32 %v1377, %v1520
        %v1622 = vadd.f32 %v1378, %v1522
        %v1623 = vadd.f32 %v1379, %v1525
        %v1624 = vadd.f32 %v1380, %v1527
        %v1625 = vadd.f32 %v1381, %v1530
        %v1626 = vadd.f32 %v1382, %v1532
        %v1627 = vadd.f32 %v1383, %v1535
        %v1628 = vadd.f32 %v1384, %v1537
        %v1629 = vadd.f32 %v1385, %v1540
        %v1630 = vadd.f32 %v1386, %v1542
        %v1631 = vadd.f32 %v1387, %v1545
        %v1632 = vadd.f32 %v1388, %v1547
        %v1633 = vadd.f32 %v1389, %v1550
        %v1634 = vadd.f32 %v1390, %v1552
        %v1635 = vadd.f32 %v1391, %v1555
        %v1636 = vadd.f32 %v1392, %v1557
        %v1637 = vadd.f32 %v1393, %v1560
        %v1638 = vadd.f32 %v1394, %v1562
        %v1639 = vadd.f32 %v1395, %v1565
        %v1640 = vadd.f32 %v1396, %v1567
        %v1641 = vadd.f32 %v1397, %v1570
        %v1642 = vadd.f32 %v1398, %v1572
        %v1643 = vadd.f32 %v1399, %v1575
        %v1644 = vadd.f32 %v1400, %v1577
        %v1645 = vadd.f32 %v1401, %v1580
        %v1646 = vadd.f32 %v1402, %v1582
        %v1647 = vlaneseq
        %v1648 = vshrl.u32 %v1647, 7
        %v1649 = vsub.s32 0, %v1648
        %v1650 = vrot.slane %v365, %v1649
        %v1651 = vmul.f32 %v517, %v1650
        %v1652 = vmul.f32 %v518, %v1650
        %v1653 = vmul.f32 %v520, %v1650
        %v1654 = vmul.f32 %v521, %v1650
        %v1655 = vmul.f32 %v523, %v1650
        %v1656 = vmul.f32 %v524, %v1650
        %v1657 = vmul.f32 %v526, %v1650
        %v1658 = vmul.f32 %v527, %v1650
        %v1659 = vmul.f32 %v529, %v1650
        %v1660 = vmul.f32 %v530, %v1650
        %v1661 = vmul.f32 %v532, %v1650
        %v1662 = vmul.f32 %v533, %v1650
        %v1663 = vmul.f32 %v535, %v1650
        %v1664 = vmul.f32 %v536, %v1650
        %v1665 = vmul.f32 %v538, %v1650
        %v1666 = vmul.f32 %v539, %v1650
        %v1667 = vmul.f32 %v541, %v1650
        %v1668 = vmul.f32 %v542, %v1650
        %v1669 = vmul.f32 %v544, %v1650
        %v1670 = vmul.f32 %v545, %v1650
        %v1671 = vmul.f32 %v547, %v1650
        %v1672 = vmul.f32 %v548, %v1650
        %v1673 = vmul.f32 %v550, %v1650
        %v1674 = vmul.f32 %v551, %v1650
        %v1675 = vmul.f32 %v553, %v1650
        %v1676 = vmul.f32 %v554, %v1650
        %v1677 = vmul.f32 %v556, %v1650
        %v1678 = vmul.f32 %v557, %v1650
        %v1679 = vmul.f32 %v559, %v1650
        %v1680 = vmul.f32 %v560, %v1650
        %v1681 = vmul.f32 %v562, %v1650
        %v1682 = vmul.f32 %v563, %v1650
        %v1683 = vadd.f32 %v1615, %v1651
        %v1684 = vadd.f32 %v1616, %v1652
        %v1685 = vadd.f32 %v1617, %v1653
        %v1686 = vadd.f32 %v1618, %v1654
        %v1687 = vadd.f32 %v1619, %v1655
        %v1688 = vadd.f32 %v1620, %v1656
        %v1689 = vadd.f32 %v1621, %v1657
        %v1690 = vadd.f32 %v1622, %v1658
        %v1691 = vadd.f32 %v1623, %v1659
        %v1692 = vadd.f32 %v1624, %v1660
        %v1693 = vadd.f32 %v1625, %v1661
        %v1694 = vadd.f32 %v1626, %v1662
        %v1695 = vadd.f32 %v1627, %v1663
        %v1696 = vadd.f32 %v1628, %v1664
        %v1697 = vadd.f32 %v1629, %v1665
        %v1698 = vadd.f32 %v1630, %v1666
        %v1699 = vadd.f32 %v1631, %v1667
        %v1700 = vadd.f32 %v1632, %v1668
        %v1701 = vadd.f32 %v1633, %v1669
        %v1702 = vadd.f32 %v1634, %v1670
        %v1703 = vadd.f32 %v1635, %v1671
        %v1704 = vadd.f32 %v1636, %v1672
        %v1705 = vadd.f32 %v1637, %v1673
        %v1706 = vadd.f32 %v1638, %v1674
        %v1707 = vadd.f32 %v1639, %v1675
        %v1708 = vadd.f32 %v1640, %v1676
        %v1709 = vadd.f32 %v1641, %v1677
        %v1710 = vadd.f32 %v1642, %v1678
        %v1711 = vadd.f32 %v1643, %v1679
        %v1712 = vadd.f32 %v1644, %v1680
        %v1713 = vadd.f32 %v1645, %v1681
        %v1714 = vadd.f32 %v1646, %v1682
        %v1715 = vlaneseq
        %v1716 = vshrl.u32 %v1715, 7
        %v1717 = vsub.s32 1, %v1716
        %v1718 = vrot.slane %v365, %v1717
        %v1719 = vmul.f32 %v517, %v1718
        %v1720 = vmul.f32 %v518, %v1718
        %v1721 = vmul.f32 %v519, %v1718
        %v1722 = vmul.f32 %v520, %v1718
        %v1723 = vmul.f32 %v521, %v1718
        %v1724 = vmul.f32 %v522, %v1718
        %v1725 = vmul.f32 %v523, %v1718
        %v1726 = vmul.f32 %v524, %v1718
        %v1727 = vmul.f32 %v525, %v1718
        %v1728 = vmul.f32 %v526, %v1718
        %v1729 = vmul.f32 %v527, %v1718
        %v1730 = vmul.f32 %v528, %v1718
        %v1731 = vmul.f32 %v529, %v1718
        %v1732 = vmul.f32 %v530, %v1718
        %v1733 = vmul.f32 %v531, %v1718
        %v1734 = vmul.f32 %v532, %v1718
        %v1735 = vmul.f32 %v533, %v1718
        %v1736 = vmul.f32 %v534, %v1718
        %v1737 = vmul.f32 %v535, %v1718
        %v1738 = vmul.f32 %v536, %v1718
        %v1739 = vmul.f32 %v537, %v1718
        %v1740 = vmul.f32 %v538, %v1718
        %v1741 = vmul.f32 %v539, %v1718
        %v1742 = vmul.f32 %v540, %v1718
        %v1743 = vmul.f32 %v541, %v1718
        %v1744 = vmul.f32 %v542, %v1718
        %v1745 = vmul.f32 %v543, %v1718
        %v1746 = vmul.f32 %v544, %v1718
        %v1747 = vmul.f32 %v545, %v1718
        %v1748 = vmul.f32 %v546, %v1718
        %v1749 = vmul.f32 %v547, %v1718
        %v1750 = vmul.f32 %v548, %v1718
        %v1751 = vmul.f32 %v549, %v1718
        %v1752 = vmul.f32 %v550, %v1718
        %v1753 = vmul.f32 %v551, %v1718
        %v1754 = vmul.f32 %v552, %v1718
        %v1755 = vmul.f32 %v553, %v1718
        %v1756 = vmul.f32 %v554, %v1718
        %v1757 = vmul.f32 %v555, %v1718
        %v1758 = vmul.f32 %v556, %v1718
        %v1759 = vmul.f32 %v557, %v1718
        %v1760 = vmul.f32 %v558, %v1718
        %v1761 = vmul.f32 %v559, %v1718
        %v1762 = vmul.f32 %v560, %v1718
        %v1763 = vmul.f32 %v561, %v1718
        %v1764 = vmul.f32 %v562, %v1718
        %v1765 = vmul.f32 %v563, %v1718
        %v1766 = vmul.f32 %v564, %v1718
        %v1815 = vrot.slane %v1719, 1
        %v1816 = vrot.slane %v1720, 1
        %v1817 = vsel %vm701, %v1815, %v1816
        %v1818 = vrot.slane %v1721, 1
        %v1819 = vsel %vm701, %v1816, %v1818
        %v1820 = vrot.slane %v1722, 1
        %v1821 = vrot.slane %v1723, 1
        %v1822 = vsel %vm701, %v1820, %v1821
        %v1823 = vrot.slane %v1724, 1
        %v1824 = vsel %vm701, %v1821, %v1823
        %v1825 = vrot.slane %v1725, 1
        %v1826 = vrot.slane %v1726, 1
        %v1827 = vsel %vm701, %v1825, %v1826
        %v1828 = vrot.slane %v1727, 1
        %v1829 = vsel %vm701, %v1826, %v1828
        %v1830 = vrot.slane %v1728, 1
        %v1831 = vrot.slane %v1729, 1
        %v1832 = vsel %vm701, %v1830, %v1831
        %v1833 = vrot.slane %v1730, 1
        %v1834 = vsel %vm701, %v1831, %v1833
        %v1835 = vrot.slane %v1731, 1
        %v1836 = vrot.slane %v1732, 1
        %v1837 = vsel %vm701, %v1835, %v1836
        %v1838 = vrot.slane %v1733, 1
        %v1839 = vsel %vm701, %v1836, %v1838
        %v1840 = vrot.slane %v1734, 1
        %v1841 = vrot.slane %v1735, 1
        %v1842 = vsel %vm701, %v1840, %v1841
        %v1843 = vrot.slane %v1736, 1
        %v1844 = vsel %vm701, %v1841, %v1843
        %v1845 = vrot.slane %v1737, 1
        %v1846 = vrot.slane %v1738, 1
        %v1847 = vsel %vm701, %v1845, %v1846
        %v1848 = vrot.slane %v1739, 1
        %v1849 = vsel %vm701, %v1846, %v1848
        %v1850 = vrot.slane %v1740, 1
        %v1851 = vrot.slane %v1741, 1
        %v1852 = vsel %vm701, %v1850, %v1851
        %v1853 = vrot.slane %v1742, 1
        %v1854 = vsel %vm701, %v1851, %v1853
        %v1855 = vrot.slane %v1743, 1
        %v1856 = vrot.slane %v1744, 1
        %v1857 = vsel %vm701, %v1855, %v1856
        %v1858 = vrot.slane %v1745, 1
        %v1859 = vsel %vm701, %v1856, %v1858
        %v1860 = vrot.slane %v1746, 1
        %v1861 = vrot.slane %v1747, 1
        %v1862 = vsel %vm701, %v1860, %v1861
        %v1863 = vrot.slane %v1748, 1
        %v1864 = vsel %vm701, %v1861, %v1863
        %v1865 = vrot.slane %v1749, 1
        %v1866 = vrot.slane %v1750, 1
        %v1867 = vsel %vm701, %v1865, %v1866
        %v1868 = vrot.slane %v1751, 1
        %v1869 = vsel %vm701, %v1866, %v1868
        %v1870 = vrot.slane %v1752, 1
        %v1871 = vrot.slane %v1753, 1
        %v1872 = vsel %vm701, %v1870, %v1871
        %v1873 = vrot.slane %v1754, 1
        %v1874 = vsel %vm701, %v1871, %v1873
        %v1875 = vrot.slane %v1755, 1
        %v1876 = vrot.slane %v1756, 1
        %v1877 = vsel %vm701, %v1875, %v1876
        %v1878 = vrot.slane %v1757, 1
        %v1879 = vsel %vm701, %v1876, %v1878
        %v1880 = vrot.slane %v1758, 1
        %v1881 = vrot.slane %v1759, 1
        %v1882 = vsel %vm701, %v1880, %v1881
        %v1883 = vrot.slane %v1760, 1
        %v1884 = vsel %vm701, %v1881, %v1883
        %v1885 = vrot.slane %v1761, 1
        %v1886 = vrot.slane %v1762, 1
        %v1887 = vsel %vm701, %v1885, %v1886
        %v1888 = vrot.slane %v1763, 1
        %v1889 = vsel %vm701, %v1886, %v1888
        %v1890 = vrot.slane %v1764, 1
        %v1891 = vrot.slane %v1765, 1
        %v1892 = vsel %vm701, %v1890, %v1891
        %v1893 = vrot.slane %v1766, 1
        %v1894 = vsel %vm701, %v1891, %v1893
        %v1927 = vadd.f32 %v1683, %v1817
        %v1928 = vadd.f32 %v1684, %v1819
        %v1929 = vadd.f32 %v1685, %v1822
        %v1930 = vadd.f32 %v1686, %v1824
        %v1931 = vadd.f32 %v1687, %v1827
        %v1932 = vadd.f32 %v1688, %v1829
        %v1933 = vadd.f32 %v1689, %v1832
        %v1934 = vadd.f32 %v1690, %v1834
        %v1935 = vadd.f32 %v1691, %v1837
        %v1936 = vadd.f32 %v1692, %v1839
        %v1937 = vadd.f32 %v1693, %v1842
        %v1938 = vadd.f32 %v1694, %v1844
        %v1939 = vadd.f32 %v1695, %v1847
        %v1940 = vadd.f32 %v1696, %v1849
        %v1941 = vadd.f32 %v1697, %v1852
        %v1942 = vadd.f32 %v1698, %v1854
        %v1943 = vadd.f32 %v1699, %v1857
        %v1944 = vadd.f32 %v1700, %v1859
        %v1945 = vadd.f32 %v1701, %v1862
        %v1946 = vadd.f32 %v1702, %v1864
        %v1947 = vadd.f32 %v1703, %v1867
        %v1948 = vadd.f32 %v1704, %v1869
        %v1949 = vadd.f32 %v1705, %v1872
        %v1950 = vadd.f32 %v1706, %v1874
        %v1951 = vadd.f32 %v1707, %v1877
        %v1952 = vadd.f32 %v1708, %v1879
        %v1953 = vadd.f32 %v1709, %v1882
        %v1954 = vadd.f32 %v1710, %v1884
        %v1955 = vadd.f32 %v1711, %v1887
        %v1956 = vadd.f32 %v1712, %v1889
        %v1957 = vadd.f32 %v1713, %v1892
        %v1958 = vadd.f32 %v1714, %v1894
        %v1959 = vlaneseq
        %v1960 = vshrl.u32 %v1959, 7
        %v1961 = vsub.s32 2, %v1960
        %v1962 = vrot.slane %v365, %v1961
        %v1963 = vmul.f32 %v517, %v1962
        %v1964 = vmul.f32 %v518, %v1962
        %v1965 = vmul.f32 %v519, %v1962
        %v1966 = vmul.f32 %v520, %v1962
        %v1967 = vmul.f32 %v521, %v1962
        %v1968 = vmul.f32 %v522, %v1962
        %v1969 = vmul.f32 %v523, %v1962
        %v1970 = vmul.f32 %v524, %v1962
        %v1971 = vmul.f32 %v525, %v1962
        %v1972 = vmul.f32 %v526, %v1962
        %v1973 = vmul.f32 %v527, %v1962
        %v1974 = vmul.f32 %v528, %v1962
        %v1975 = vmul.f32 %v529, %v1962
        %v1976 = vmul.f32 %v530, %v1962
        %v1977 = vmul.f32 %v531, %v1962
        %v1978 = vmul.f32 %v532, %v1962
        %v1979 = vmul.f32 %v533, %v1962
        %v1980 = vmul.f32 %v534, %v1962
        %v1981 = vmul.f32 %v535, %v1962
        %v1982 = vmul.f32 %v536, %v1962
        %v1983 = vmul.f32 %v537, %v1962
        %v1984 = vmul.f32 %v538, %v1962
        %v1985 = vmul.f32 %v539, %v1962
        %v1986 = vmul.f32 %v540, %v1962
        %v1987 = vmul.f32 %v541, %v1962
        %v1988 = vmul.f32 %v542, %v1962
        %v1989 = vmul.f32 %v543, %v1962
        %v1990 = vmul.f32 %v544, %v1962
        %v1991 = vmul.f32 %v545, %v1962
        %v1992 = vmul.f32 %v546, %v1962
        %v1993 = vmul.f32 %v547, %v1962
        %v1994 = vmul.f32 %v548, %v1962
        %v1995 = vmul.f32 %v549, %v1962
        %v1996 = vmul.f32 %v550, %v1962
        %v1997 = vmul.f32 %v551, %v1962
        %v1998 = vmul.f32 %v552, %v1962
        %v1999 = vmul.f32 %v553, %v1962
        %v2000 = vmul.f32 %v554, %v1962
        %v2001 = vmul.f32 %v555, %v1962
        %v2002 = vmul.f32 %v556, %v1962
        %v2003 = vmul.f32 %v557, %v1962
        %v2004 = vmul.f32 %v558, %v1962
        %v2005 = vmul.f32 %v559, %v1962
        %v2006 = vmul.f32 %v560, %v1962
        %v2007 = vmul.f32 %v561, %v1962
        %v2008 = vmul.f32 %v562, %v1962
        %v2009 = vmul.f32 %v563, %v1962
        %v2010 = vmul.f32 %v564, %v1962
        %v2059 = vrot.slane %v1963, 2
        %v2060 = vrot.slane %v1964, 2
        %v2061 = vsel %vm946, %v2059, %v2060
        %v2062 = vrot.slane %v1965, 2
        %v2063 = vsel %vm946, %v2060, %v2062
        %v2064 = vrot.slane %v1966, 2
        %v2065 = vrot.slane %v1967, 2
        %v2066 = vsel %vm946, %v2064, %v2065
        %v2067 = vrot.slane %v1968, 2
        %v2068 = vsel %vm946, %v2065, %v2067
        %v2069 = vrot.slane %v1969, 2
        %v2070 = vrot.slane %v1970, 2
        %v2071 = vsel %vm946, %v2069, %v2070
        %v2072 = vrot.slane %v1971, 2
        %v2073 = vsel %vm946, %v2070, %v2072
        %v2074 = vrot.slane %v1972, 2
        %v2075 = vrot.slane %v1973, 2
        %v2076 = vsel %vm946, %v2074, %v2075
        %v2077 = vrot.slane %v1974, 2
        %v2078 = vsel %vm946, %v2075, %v2077
        %v2079 = vrot.slane %v1975, 2
        %v2080 = vrot.slane %v1976, 2
        %v2081 = vsel %vm946, %v2079, %v2080
        %v2082 = vrot.slane %v1977, 2
        %v2083 = vsel %vm946, %v2080, %v2082
        %v2084 = vrot.slane %v1978, 2
        %v2085 = vrot.slane %v1979, 2
        %v2086 = vsel %vm946, %v2084, %v2085
        %v2087 = vrot.slane %v1980, 2
        %v2088 = vsel %vm946, %v2085, %v2087
        %v2089 = vrot.slane %v1981, 2
        %v2090 = vrot.slane %v1982, 2
        %v2091 = vsel %vm946, %v2089, %v2090
        %v2092 = vrot.slane %v1983, 2
        %v2093 = vsel %vm946, %v2090, %v2092
        %v2094 = vrot.slane %v1984, 2
        %v2095 = vrot.slane %v1985, 2
        %v2096 = vsel %vm946, %v2094, %v2095
        %v2097 = vrot.slane %v1986, 2
        %v2098 = vsel %vm946, %v2095, %v2097
        %v2099 = vrot.slane %v1987, 2
        %v2100 = vrot.slane %v1988, 2
        %v2101 = vsel %vm946, %v2099, %v2100
        %v2102 = vrot.slane %v1989, 2
        %v2103 = vsel %vm946, %v2100, %v2102
        %v2104 = vrot.slane %v1990, 2
        %v2105 = vrot.slane %v1991, 2
        %v2106 = vsel %vm946, %v2104, %v2105
        %v2107 = vrot.slane %v1992, 2
        %v2108 = vsel %vm946, %v2105, %v2107
        %v2109 = vrot.slane %v1993, 2
        %v2110 = vrot.slane %v1994, 2
        %v2111 = vsel %vm946, %v2109, %v2110
        %v2112 = vrot.slane %v1995, 2
        %v2113 = vsel %vm946, %v2110, %v2112
        %v2114 = vrot.slane %v1996, 2
        %v2115 = vrot.slane %v1997, 2
        %v2116 = vsel %vm946, %v2114, %v2115
        %v2117 = vrot.slane %v1998, 2
        %v2118 = vsel %vm946, %v2115, %v2117
        %v2119 = vrot.slane %v1999, 2
        %v2120 = vrot.slane %v2000, 2
        %v2121 = vsel %vm946, %v2119, %v2120
        %v2122 = vrot.slane %v2001, 2
        %v2123 = vsel %vm946, %v2120, %v2122
        %v2124 = vrot.slane %v2002, 2
        %v2125 = vrot.slane %v2003, 2
        %v2126 = vsel %vm946, %v2124, %v2125
        %v2127 = vrot.slane %v2004, 2
        %v2128 = vsel %vm946, %v2125, %v2127
        %v2129 = vrot.slane %v2005, 2
        %v2130 = vrot.slane %v2006, 2
        %v2131 = vsel %vm946, %v2129, %v2130
        %v2132 = vrot.slane %v2007, 2
        %v2133 = vsel %vm946, %v2130, %v2132
        %v2134 = vrot.slane %v2008, 2
        %v2135 = vrot.slane %v2009, 2
        %v2136 = vsel %vm946, %v2134, %v2135
        %v2137 = vrot.slane %v2010, 2
        %v2138 = vsel %vm946, %v2135, %v2137
        %v2171 = vadd.f32 %v1927, %v2061
        %v2172 = vadd.f32 %v1928, %v2063
        %v2173 = vadd.f32 %v1929, %v2066
        %v2174 = vadd.f32 %v1930, %v2068
        %v2175 = vadd.f32 %v1931, %v2071
        %v2176 = vadd.f32 %v1932, %v2073
        %v2177 = vadd.f32 %v1933, %v2076
        %v2178 = vadd.f32 %v1934, %v2078
        %v2179 = vadd.f32 %v1935, %v2081
        %v2180 = vadd.f32 %v1936, %v2083
        %v2181 = vadd.f32 %v1937, %v2086
        %v2182 = vadd.f32 %v1938, %v2088
        %v2183 = vadd.f32 %v1939, %v2091
        %v2184 = vadd.f32 %v1940, %v2093
        %v2185 = vadd.f32 %v1941, %v2096
        %v2186 = vadd.f32 %v1942, %v2098
        %v2187 = vadd.f32 %v1943, %v2101
        %v2188 = vadd.f32 %v1944, %v2103
        %v2189 = vadd.f32 %v1945, %v2106
        %v2190 = vadd.f32 %v1946, %v2108
        %v2191 = vadd.f32 %v1947, %v2111
        %v2192 = vadd.f32 %v1948, %v2113
        %v2193 = vadd.f32 %v1949, %v2116
        %v2194 = vadd.f32 %v1950, %v2118
        %v2195 = vadd.f32 %v1951, %v2121
        %v2196 = vadd.f32 %v1952, %v2123
        %v2197 = vadd.f32 %v1953, %v2126
        %v2198 = vadd.f32 %v1954, %v2128
        %v2199 = vadd.f32 %v1955, %v2131
        %v2200 = vadd.f32 %v1956, %v2133
        %v2201 = vadd.f32 %v1957, %v2136
        %v2202 = vadd.f32 %v1958, %v2138
        %2204 = vset.pattern.permute.xlu0 0
        %2205 = vperm.xlu0 %2204, %v2171
        %v2206 = vpop.permute.xlu0 %2205
        %2209 = vset.pattern.permute.xlu0 0
        %2210 = vperm.xlu0 %2209, %v2172
        %v2211 = vpop.permute.xlu0 %2210
        %2214 = vset.pattern.permute.xlu0 0
        %2215 = vperm.xlu0 %2214, %v2173
        %v2216 = vpop.permute.xlu0 %2215
        %2219 = vset.pattern.permute.xlu0 0
        %2220 = vperm.xlu0 %2219, %v2174
        %v2221 = vpop.permute.xlu0 %2220
        %2224 = vset.pattern.permute.xlu0 0
        %2225 = vperm.xlu0 %2224, %v2175
        %v2226 = vpop.permute.xlu0 %2225
        %2229 = vset.pattern.permute.xlu0 0
        %2230 = vperm.xlu0 %2229, %v2176
        %v2231 = vpop.permute.xlu0 %2230
        %2234 = vset.pattern.permute.xlu0 0
        %2235 = vperm.xlu0 %2234, %v2177
        %v2236 = vpop.permute.xlu0 %2235
        %2239 = vset.pattern.permute.xlu0 0
        %2240 = vperm.xlu0 %2239, %v2178
        %v2241 = vpop.permute.xlu0 %2240
        %2244 = vset.pattern.permute.xlu0 0
        %2245 = vperm.xlu0 %2244, %v2179
        %v2246 = vpop.permute.xlu0 %2245
        %2249 = vset.pattern.permute.xlu0 0
        %2250 = vperm.xlu0 %2249, %v2180
        %v2251 = vpop.permute.xlu0 %2250
        %2254 = vset.pattern.permute.xlu0 0
        %2255 = vperm.xlu0 %2254, %v2181
        %v2256 = vpop.permute.xlu0 %2255
        %2259 = vset.pattern.permute.xlu0 0
        %2260 = vperm.xlu0 %2259, %v2182
        %v2261 = vpop.permute.xlu0 %2260
        %2264 = vset.pattern.permute.xlu0 0
        %2265 = vperm.xlu0 %2264, %v2183
        %v2266 = vpop.permute.xlu0 %2265
        %2269 = vset.pattern.permute.xlu0 0
        %2270 = vperm.xlu0 %2269, %v2184
        %v2271 = vpop.permute.xlu0 %2270
        %2274 = vset.pattern.permute.xlu0 0
        %2275 = vperm.xlu0 %2274, %v2185
        %v2276 = vpop.permute.xlu0 %2275
        %2279 = vset.pattern.permute.xlu0 0
        %2280 = vperm.xlu0 %2279, %v2186
        %v2281 = vpop.permute.xlu0 %2280
        %2284 = vset.pattern.permute.xlu0 0
        %2285 = vperm.xlu0 %2284, %v2187
        %v2286 = vpop.permute.xlu0 %2285
        %2289 = vset.pattern.permute.xlu0 0
        %2290 = vperm.xlu0 %2289, %v2188
        %v2291 = vpop.permute.xlu0 %2290
        %2294 = vset.pattern.permute.xlu0 0
        %2295 = vperm.xlu0 %2294, %v2189
        %v2296 = vpop.permute.xlu0 %2295
        %2299 = vset.pattern.permute.xlu0 0
        %2300 = vperm.xlu0 %2299, %v2190
        %v2301 = vpop.permute.xlu0 %2300
        %2304 = vset.pattern.permute.xlu0 0
        %2305 = vperm.xlu0 %2304, %v2191
        %v2306 = vpop.permute.xlu0 %2305
        %2309 = vset.pattern.permute.xlu0 0
        %2310 = vperm.xlu0 %2309, %v2192
        %v2311 = vpop.permute.xlu0 %2310
        %2314 = vset.pattern.permute.xlu0 0
        %2315 = vperm.xlu0 %2314, %v2193
        %v2316 = vpop.permute.xlu0 %2315
        %2319 = vset.pattern.permute.xlu0 0
        %2320 = vperm.xlu0 %2319, %v2194
        %v2321 = vpop.permute.xlu0 %2320
        %2324 = vset.pattern.permute.xlu0 0
        %2325 = vperm.xlu0 %2324, %v2195
        %v2326 = vpop.permute.xlu0 %2325
        %2329 = vset.pattern.permute.xlu0 0
        %2330 = vperm.xlu0 %2329, %v2196
        %v2331 = vpop.permute.xlu0 %2330
        %2334 = vset.pattern.permute.xlu0 0
        %2335 = vperm.xlu0 %2334, %v2197
        %v2336 = vpop.permute.xlu0 %2335
        %2339 = vset.pattern.permute.xlu0 0
        %2340 = vperm.xlu0 %2339, %v2198
        %v2341 = vpop.permute.xlu0 %2340
        %2344 = vset.pattern.permute.xlu0 0
        %2345 = vperm.xlu0 %2344, %v2199
        %v2346 = vpop.permute.xlu0 %2345
        %2349 = vset.pattern.permute.xlu0 0
        %2350 = vperm.xlu0 %2349, %v2200
        %v2351 = vpop.permute.xlu0 %2350
        %2354 = vset.pattern.permute.xlu0 0
        %2355 = vperm.xlu0 %2354, %v2201
        %v2356 = vpop.permute.xlu0 %2355
        %2359 = vset.pattern.permute.xlu0 0
        %2360 = vperm.xlu0 %2359, %v2202
        %v2361 = vpop.permute.xlu0 %2360
        %v2363 = vlaneseq
        %v2364 = vshrl.u32 %v2363, 7
        %v2365 = vsub.s32 0, %v2364
        %v2366 = vrot.slane %v366, %v2365
        %v2367 = vmul.f32 %v2206, %v2366
        %v2368 = vmul.f32 %v2211, %v2366
        %v2369 = vmul.f32 %v2216, %v2366
        %v2370 = vmul.f32 %v2221, %v2366
        %v2371 = vmul.f32 %v2226, %v2366
        %v2372 = vmul.f32 %v2231, %v2366
        %v2373 = vmul.f32 %v2236, %v2366
        %v2374 = vmul.f32 %v2241, %v2366
        %v2375 = vmul.f32 %v2246, %v2366
        %v2376 = vmul.f32 %v2251, %v2366
        %v2377 = vmul.f32 %v2256, %v2366
        %v2378 = vmul.f32 %v2261, %v2366
        %v2379 = vmul.f32 %v2266, %v2366
        %v2380 = vmul.f32 %v2271, %v2366
        %v2381 = vmul.f32 %v2276, %v2366
        %v2382 = vmul.f32 %v2281, %v2366
        %v2383 = vmul.f32 %v2286, %v2366
        %v2384 = vmul.f32 %v2291, %v2366
        %v2385 = vmul.f32 %v2296, %v2366
        %v2386 = vmul.f32 %v2301, %v2366
        %v2387 = vmul.f32 %v2306, %v2366
        %v2388 = vmul.f32 %v2311, %v2366
        %v2389 = vmul.f32 %v2316, %v2366
        %v2390 = vmul.f32 %v2321, %v2366
        %v2391 = vmul.f32 %v2326, %v2366
        %v2392 = vmul.f32 %v2331, %v2366
        %v2393 = vmul.f32 %v2336, %v2366
        %v2394 = vmul.f32 %v2341, %v2366
        %v2395 = vmul.f32 %v2346, %v2366
        %v2396 = vmul.f32 %v2351, %v2366
        %v2397 = vmul.f32 %v2356, %v2366
        %v2398 = vmul.f32 %v2361, %v2366
        %2399 = vset.pattern.permute.xlu0 1
        %2400 = vperm.xlu0 %2399, %v2171
        %v2401 = vpop.permute.xlu0 %2400
        %2403 = vset.pattern.permute.xlu0 1
        %2404 = vperm.xlu0 %2403, %v2172
        %v2405 = vpop.permute.xlu0 %2404
        %2407 = vset.pattern.permute.xlu0 1
        %2408 = vperm.xlu0 %2407, %v2173
        %v2409 = vpop.permute.xlu0 %2408
        %2411 = vset.pattern.permute.xlu0 1
        %2412 = vperm.xlu0 %2411, %v2174
        %v2413 = vpop.permute.xlu0 %2412
        %2415 = vset.pattern.permute.xlu0 1
        %2416 = vperm.xlu0 %2415, %v2175
        %v2417 = vpop.permute.xlu0 %2416
        %2419 = vset.pattern.permute.xlu0 1
        %2420 = vperm.xlu0 %2419, %v2176
        %v2421 = vpop.permute.xlu0 %2420
        %2423 = vset.pattern.permute.xlu0 1
        %2424 = vperm.xlu0 %2423, %v2177
        %v2425 = vpop.permute.xlu0 %2424
        %2427 = vset.pattern.permute.xlu0 1
        %2428 = vperm.xlu0 %2427, %v2178
        %v2429 = vpop.permute.xlu0 %2428
        %2431 = vset.pattern.permute.xlu0 1
        %2432 = vperm.xlu0 %2431, %v2179
        %v2433 = vpop.permute.xlu0 %2432
        %2435 = vset.pattern.permute.xlu0 1
        %2436 = vperm.xlu0 %2435, %v2180
        %v2437 = vpop.permute.xlu0 %2436
        %2439 = vset.pattern.permute.xlu0 1
        %2440 = vperm.xlu0 %2439, %v2181
        %v2441 = vpop.permute.xlu0 %2440
        %2443 = vset.pattern.permute.xlu0 1
        %2444 = vperm.xlu0 %2443, %v2182
        %v2445 = vpop.permute.xlu0 %2444
        %2447 = vset.pattern.permute.xlu0 1
        %2448 = vperm.xlu0 %2447, %v2183
        %v2449 = vpop.permute.xlu0 %2448
        %2451 = vset.pattern.permute.xlu0 1
        %2452 = vperm.xlu0 %2451, %v2184
        %v2453 = vpop.permute.xlu0 %2452
        %2455 = vset.pattern.permute.xlu0 1
        %2456 = vperm.xlu0 %2455, %v2185
        %v2457 = vpop.permute.xlu0 %2456
        %2459 = vset.pattern.permute.xlu0 1
        %2460 = vperm.xlu0 %2459, %v2186
        %v2461 = vpop.permute.xlu0 %2460
        %2463 = vset.pattern.permute.xlu0 1
        %2464 = vperm.xlu0 %2463, %v2187
        %v2465 = vpop.permute.xlu0 %2464
        %2467 = vset.pattern.permute.xlu0 1
        %2468 = vperm.xlu0 %2467, %v2188
        %v2469 = vpop.permute.xlu0 %2468
        %2471 = vset.pattern.permute.xlu0 1
        %2472 = vperm.xlu0 %2471, %v2189
        %v2473 = vpop.permute.xlu0 %2472
        %2475 = vset.pattern.permute.xlu0 1
        %2476 = vperm.xlu0 %2475, %v2190
        %v2477 = vpop.permute.xlu0 %2476
        %2479 = vset.pattern.permute.xlu0 1
        %2480 = vperm.xlu0 %2479, %v2191
        %v2481 = vpop.permute.xlu0 %2480
        %2483 = vset.pattern.permute.xlu0 1
        %2484 = vperm.xlu0 %2483, %v2192
        %v2485 = vpop.permute.xlu0 %2484
        %2487 = vset.pattern.permute.xlu0 1
        %2488 = vperm.xlu0 %2487, %v2193
        %v2489 = vpop.permute.xlu0 %2488
        %2491 = vset.pattern.permute.xlu0 1
        %2492 = vperm.xlu0 %2491, %v2194
        %v2493 = vpop.permute.xlu0 %2492
        %2495 = vset.pattern.permute.xlu0 1
        %2496 = vperm.xlu0 %2495, %v2195
        %v2497 = vpop.permute.xlu0 %2496
        %2499 = vset.pattern.permute.xlu0 1
        %2500 = vperm.xlu0 %2499, %v2196
        %v2501 = vpop.permute.xlu0 %2500
        %2503 = vset.pattern.permute.xlu0 1
        %2504 = vperm.xlu0 %2503, %v2197
        %v2505 = vpop.permute.xlu0 %2504
        %2507 = vset.pattern.permute.xlu0 1
        %2508 = vperm.xlu0 %2507, %v2198
        %v2509 = vpop.permute.xlu0 %2508
        %2511 = vset.pattern.permute.xlu0 1
        %2512 = vperm.xlu0 %2511, %v2199
        %v2513 = vpop.permute.xlu0 %2512
        %2515 = vset.pattern.permute.xlu0 1
        %2516 = vperm.xlu0 %2515, %v2200
        %v2517 = vpop.permute.xlu0 %2516
        %2519 = vset.pattern.permute.xlu0 1
        %2520 = vperm.xlu0 %2519, %v2201
        %v2521 = vpop.permute.xlu0 %2520
        %2523 = vset.pattern.permute.xlu0 1
        %2524 = vperm.xlu0 %2523, %v2202
        %v2525 = vpop.permute.xlu0 %2524
        %v2527 = vlaneseq
        %v2528 = vshrl.u32 %v2527, 7
        %v2529 = vsub.s32 1, %v2528
        %v2530 = vrot.slane %v366, %v2529
        %v2531 = vmul.f32 %v2401, %v2530
        %v2532 = vmul.f32 %v2405, %v2530
        %v2533 = vmul.f32 %v2409, %v2530
        %v2534 = vmul.f32 %v2413, %v2530
        %v2535 = vmul.f32 %v2417, %v2530
        %v2536 = vmul.f32 %v2421, %v2530
        %v2537 = vmul.f32 %v2425, %v2530
        %v2538 = vmul.f32 %v2429, %v2530
        %v2539 = vmul.f32 %v2433, %v2530
        %v2540 = vmul.f32 %v2437, %v2530
        %v2541 = vmul.f32 %v2441, %v2530
        %v2542 = vmul.f32 %v2445, %v2530
        %v2543 = vmul.f32 %v2449, %v2530
        %v2544 = vmul.f32 %v2453, %v2530
        %v2545 = vmul.f32 %v2457, %v2530
        %v2546 = vmul.f32 %v2461, %v2530
        %v2547 = vmul.f32 %v2465, %v2530
        %v2548 = vmul.f32 %v2469, %v2530
        %v2549 = vmul.f32 %v2473, %v2530
        %v2550 = vmul.f32 %v2477, %v2530
        %v2551 = vmul.f32 %v2481, %v2530
        %v2552 = vmul.f32 %v2485, %v2530
        %v2553 = vmul.f32 %v2489, %v2530
        %v2554 = vmul.f32 %v2493, %v2530
        %v2555 = vmul.f32 %v2497, %v2530
        %v2556 = vmul.f32 %v2501, %v2530
        %v2557 = vmul.f32 %v2505, %v2530
        %v2558 = vmul.f32 %v2509, %v2530
        %v2559 = vmul.f32 %v2513, %v2530
        %v2560 = vmul.f32 %v2517, %v2530
        %v2561 = vmul.f32 %v2521, %v2530
        %v2562 = vmul.f32 %v2525, %v2530
        %v2563 = vadd.f32 %v2367, %v2531
        %v2564 = vadd.f32 %v2368, %v2532
        %v2565 = vadd.f32 %v2369, %v2533
        %v2566 = vadd.f32 %v2370, %v2534
        %v2567 = vadd.f32 %v2371, %v2535
        %v2568 = vadd.f32 %v2372, %v2536
        %v2569 = vadd.f32 %v2373, %v2537
        %v2570 = vadd.f32 %v2374, %v2538
        %v2571 = vadd.f32 %v2375, %v2539
        %v2572 = vadd.f32 %v2376, %v2540
        %v2573 = vadd.f32 %v2377, %v2541
        %v2574 = vadd.f32 %v2378, %v2542
        %v2575 = vadd.f32 %v2379, %v2543
        %v2576 = vadd.f32 %v2380, %v2544
        %v2577 = vadd.f32 %v2381, %v2545
        %v2578 = vadd.f32 %v2382, %v2546
        %v2579 = vadd.f32 %v2383, %v2547
        %v2580 = vadd.f32 %v2384, %v2548
        %v2581 = vadd.f32 %v2385, %v2549
        %v2582 = vadd.f32 %v2386, %v2550
        %v2583 = vadd.f32 %v2387, %v2551
        %v2584 = vadd.f32 %v2388, %v2552
        %v2585 = vadd.f32 %v2389, %v2553
        %v2586 = vadd.f32 %v2390, %v2554
        %v2587 = vadd.f32 %v2391, %v2555
        %v2588 = vadd.f32 %v2392, %v2556
        %v2589 = vadd.f32 %v2393, %v2557
        %v2590 = vadd.f32 %v2394, %v2558
        %v2591 = vadd.f32 %v2395, %v2559
        %v2592 = vadd.f32 %v2396, %v2560
        %v2593 = vadd.f32 %v2397, %v2561
        %v2594 = vadd.f32 %v2398, %v2562
        %2595 = vset.pattern.permute.xlu0 2
        %2596 = vperm.xlu0 %2595, %v2171
        %v2597 = vpop.permute.xlu0 %2596
        %2599 = vset.pattern.permute.xlu0 2
        %2600 = vperm.xlu0 %2599, %v2172
        %v2601 = vpop.permute.xlu0 %2600
        %2603 = vset.pattern.permute.xlu0 2
        %2604 = vperm.xlu0 %2603, %v2173
        %v2605 = vpop.permute.xlu0 %2604
        %2607 = vset.pattern.permute.xlu0 2
        %2608 = vperm.xlu0 %2607, %v2174
        %v2609 = vpop.permute.xlu0 %2608
        %2611 = vset.pattern.permute.xlu0 2
        %2612 = vperm.xlu0 %2611, %v2175
        %v2613 = vpop.permute.xlu0 %2612
        %2615 = vset.pattern.permute.xlu0 2
        %2616 = vperm.xlu0 %2615, %v2176
        %v2617 = vpop.permute.xlu0 %2616
        %2619 = vset.pattern.permute.xlu0 2
        %2620 = vperm.xlu0 %2619, %v2177
        %v2621 = vpop.permute.xlu0 %2620
        %2623 = vset.pattern.permute.xlu0 2
        %2624 = vperm.xlu0 %2623, %v2178
        %v2625 = vpop.permute.xlu0 %2624
        %2627 = vset.pattern.permute.xlu0 2
        %2628 = vperm.xlu0 %2627, %v2179
        %v2629 = vpop.permute.xlu0 %2628
        %2631 = vset.pattern.permute.xlu0 2
        %2632 = vperm.xlu0 %2631, %v2180
        %v2633 = vpop.permute.xlu0 %2632
        %2635 = vset.pattern.permute.xlu0 2
        %2636 = vperm.xlu0 %2635, %v2181
        %v2637 = vpop.permute.xlu0 %2636
        %2639 = vset.pattern.permute.xlu0 2
        %2640 = vperm.xlu0 %2639, %v2182
        %v2641 = vpop.permute.xlu0 %2640
        %2643 = vset.pattern.permute.xlu0 2
        %2644 = vperm.xlu0 %2643, %v2183
        %v2645 = vpop.permute.xlu0 %2644
        %2647 = vset.pattern.permute.xlu0 2
        %2648 = vperm.xlu0 %2647, %v2184
        %v2649 = vpop.permute.xlu0 %2648
        %2651 = vset.pattern.permute.xlu0 2
        %2652 = vperm.xlu0 %2651, %v2185
        %v2653 = vpop.permute.xlu0 %2652
        %2655 = vset.pattern.permute.xlu0 2
        %2656 = vperm.xlu0 %2655, %v2186
        %v2657 = vpop.permute.xlu0 %2656
        %2659 = vset.pattern.permute.xlu0 2
        %2660 = vperm.xlu0 %2659, %v2187
        %v2661 = vpop.permute.xlu0 %2660
        %2663 = vset.pattern.permute.xlu0 2
        %2664 = vperm.xlu0 %2663, %v2188
        %v2665 = vpop.permute.xlu0 %2664
        %2667 = vset.pattern.permute.xlu0 2
        %2668 = vperm.xlu0 %2667, %v2189
        %v2669 = vpop.permute.xlu0 %2668
        %2671 = vset.pattern.permute.xlu0 2
        %2672 = vperm.xlu0 %2671, %v2190
        %v2673 = vpop.permute.xlu0 %2672
        %2675 = vset.pattern.permute.xlu0 2
        %2676 = vperm.xlu0 %2675, %v2191
        %v2677 = vpop.permute.xlu0 %2676
        %2679 = vset.pattern.permute.xlu0 2
        %2680 = vperm.xlu0 %2679, %v2192
        %v2681 = vpop.permute.xlu0 %2680
        %2683 = vset.pattern.permute.xlu0 2
        %2684 = vperm.xlu0 %2683, %v2193
        %v2685 = vpop.permute.xlu0 %2684
        %2687 = vset.pattern.permute.xlu0 2
        %2688 = vperm.xlu0 %2687, %v2194
        %v2689 = vpop.permute.xlu0 %2688
        %2691 = vset.pattern.permute.xlu0 2
        %2692 = vperm.xlu0 %2691, %v2195
        %v2693 = vpop.permute.xlu0 %2692
        %2695 = vset.pattern.permute.xlu0 2
        %2696 = vperm.xlu0 %2695, %v2196
        %v2697 = vpop.permute.xlu0 %2696
        %2699 = vset.pattern.permute.xlu0 2
        %2700 = vperm.xlu0 %2699, %v2197
        %v2701 = vpop.permute.xlu0 %2700
        %2703 = vset.pattern.permute.xlu0 2
        %2704 = vperm.xlu0 %2703, %v2198
        %v2705 = vpop.permute.xlu0 %2704
        %2707 = vset.pattern.permute.xlu0 2
        %2708 = vperm.xlu0 %2707, %v2199
        %v2709 = vpop.permute.xlu0 %2708
        %2711 = vset.pattern.permute.xlu0 2
        %2712 = vperm.xlu0 %2711, %v2200
        %v2713 = vpop.permute.xlu0 %2712
        %2715 = vset.pattern.permute.xlu0 2
        %2716 = vperm.xlu0 %2715, %v2201
        %v2717 = vpop.permute.xlu0 %2716
        %2719 = vset.pattern.permute.xlu0 2
        %2720 = vperm.xlu0 %2719, %v2202
        %v2721 = vpop.permute.xlu0 %2720
        %v2723 = vlaneseq
        %v2724 = vshrl.u32 %v2723, 7
        %v2725 = vsub.s32 2, %v2724
        %v2726 = vrot.slane %v366, %v2725
        %v2727 = vmul.f32 %v2597, %v2726
        %v2728 = vmul.f32 %v2601, %v2726
        %v2729 = vmul.f32 %v2605, %v2726
        %v2730 = vmul.f32 %v2609, %v2726
        %v2731 = vmul.f32 %v2613, %v2726
        %v2732 = vmul.f32 %v2617, %v2726
        %v2733 = vmul.f32 %v2621, %v2726
        %v2734 = vmul.f32 %v2625, %v2726
        %v2735 = vmul.f32 %v2629, %v2726
        %v2736 = vmul.f32 %v2633, %v2726
        %v2737 = vmul.f32 %v2637, %v2726
        %v2738 = vmul.f32 %v2641, %v2726
        %v2739 = vmul.f32 %v2645, %v2726
        %v2740 = vmul.f32 %v2649, %v2726
        %v2741 = vmul.f32 %v2653, %v2726
        %v2742 = vmul.f32 %v2657, %v2726
        %v2743 = vmul.f32 %v2661, %v2726
        %v2744 = vmul.f32 %v2665, %v2726
        %v2745 = vmul.f32 %v2669, %v2726
        %v2746 = vmul.f32 %v2673, %v2726
        %v2747 = vmul.f32 %v2677, %v2726
        %v2748 = vmul.f32 %v2681, %v2726
        %v2749 = vmul.f32 %v2685, %v2726
        %v2750 = vmul.f32 %v2689, %v2726
        %v2751 = vmul.f32 %v2693, %v2726
        %v2752 = vmul.f32 %v2697, %v2726
        %v2753 = vmul.f32 %v2701, %v2726
        %v2754 = vmul.f32 %v2705, %v2726
        %v2755 = vmul.f32 %v2709, %v2726
        %v2756 = vmul.f32 %v2713, %v2726
        %v2757 = vmul.f32 %v2717, %v2726
        %v2758 = vmul.f32 %v2721, %v2726
        %v2759 = vadd.f32 %v2563, %v2727
        %v2760 = vadd.f32 %v2564, %v2728
        %v2761 = vadd.f32 %v2565, %v2729
        %v2762 = vadd.f32 %v2566, %v2730
        %v2763 = vadd.f32 %v2567, %v2731
        %v2764 = vadd.f32 %v2568, %v2732
        %v2765 = vadd.f32 %v2569, %v2733
        %v2766 = vadd.f32 %v2570, %v2734
        %v2767 = vadd.f32 %v2571, %v2735
        %v2768 = vadd.f32 %v2572, %v2736
        %v2769 = vadd.f32 %v2573, %v2737
        %v2770 = vadd.f32 %v2574, %v2738
        %v2771 = vadd.f32 %v2575, %v2739
        %v2772 = vadd.f32 %v2576, %v2740
        %v2773 = vadd.f32 %v2577, %v2741
        %v2774 = vadd.f32 %v2578, %v2742
        %v2775 = vadd.f32 %v2579, %v2743
        %v2776 = vadd.f32 %v2580, %v2744
        %v2777 = vadd.f32 %v2581, %v2745
        %v2778 = vadd.f32 %v2582, %v2746
        %v2779 = vadd.f32 %v2583, %v2747
        %v2780 = vadd.f32 %v2584, %v2748
        %v2781 = vadd.f32 %v2585, %v2749
        %v2782 = vadd.f32 %v2586, %v2750
        %v2783 = vadd.f32 %v2587, %v2751
        %v2784 = vadd.f32 %v2588, %v2752
        %v2785 = vadd.f32 %v2589, %v2753
        %v2786 = vadd.f32 %v2590, %v2754
        %v2787 = vadd.f32 %v2591, %v2755
        %v2788 = vadd.f32 %v2592, %v2756
        %v2789 = vadd.f32 %v2593, %v2757
        %v2790 = vadd.f32 %v2594, %v2758
        %2791 = vset.pattern.permute.xlu0 3
        %2792 = vperm.xlu0 %2791, %v2171
        %v2793 = vpop.permute.xlu0 %2792
        %2795 = vset.pattern.permute.xlu0 3
        %2796 = vperm.xlu0 %2795, %v2172
        %v2797 = vpop.permute.xlu0 %2796
        %2799 = vset.pattern.permute.xlu0 3
        %2800 = vperm.xlu0 %2799, %v2173
        %v2801 = vpop.permute.xlu0 %2800
        %2803 = vset.pattern.permute.xlu0 3
        %2804 = vperm.xlu0 %2803, %v2174
        %v2805 = vpop.permute.xlu0 %2804
        %2807 = vset.pattern.permute.xlu0 3
        %2808 = vperm.xlu0 %2807, %v2175
        %v2809 = vpop.permute.xlu0 %2808
        %2811 = vset.pattern.permute.xlu0 3
        %2812 = vperm.xlu0 %2811, %v2176
        %v2813 = vpop.permute.xlu0 %2812
        %2815 = vset.pattern.permute.xlu0 3
        %2816 = vperm.xlu0 %2815, %v2177
        %v2817 = vpop.permute.xlu0 %2816
        %2819 = vset.pattern.permute.xlu0 3
        %2820 = vperm.xlu0 %2819, %v2178
        %v2821 = vpop.permute.xlu0 %2820
        %2823 = vset.pattern.permute.xlu0 3
        %2824 = vperm.xlu0 %2823, %v2179
        %v2825 = vpop.permute.xlu0 %2824
        %2827 = vset.pattern.permute.xlu0 3
        %2828 = vperm.xlu0 %2827, %v2180
        %v2829 = vpop.permute.xlu0 %2828
        %2831 = vset.pattern.permute.xlu0 3
        %2832 = vperm.xlu0 %2831, %v2181
        %v2833 = vpop.permute.xlu0 %2832
        %2835 = vset.pattern.permute.xlu0 3
        %2836 = vperm.xlu0 %2835, %v2182
        %v2837 = vpop.permute.xlu0 %2836
        %2839 = vset.pattern.permute.xlu0 3
        %2840 = vperm.xlu0 %2839, %v2183
        %v2841 = vpop.permute.xlu0 %2840
        %2843 = vset.pattern.permute.xlu0 3
        %2844 = vperm.xlu0 %2843, %v2184
        %v2845 = vpop.permute.xlu0 %2844
        %2847 = vset.pattern.permute.xlu0 3
        %2848 = vperm.xlu0 %2847, %v2185
        %v2849 = vpop.permute.xlu0 %2848
        %2851 = vset.pattern.permute.xlu0 3
        %2852 = vperm.xlu0 %2851, %v2186
        %v2853 = vpop.permute.xlu0 %2852
        %2855 = vset.pattern.permute.xlu0 3
        %2856 = vperm.xlu0 %2855, %v2187
        %v2857 = vpop.permute.xlu0 %2856
        %2859 = vset.pattern.permute.xlu0 3
        %2860 = vperm.xlu0 %2859, %v2188
        %v2861 = vpop.permute.xlu0 %2860
        %2863 = vset.pattern.permute.xlu0 3
        %2864 = vperm.xlu0 %2863, %v2189
        %v2865 = vpop.permute.xlu0 %2864
        %2867 = vset.pattern.permute.xlu0 3
        %2868 = vperm.xlu0 %2867, %v2190
        %v2869 = vpop.permute.xlu0 %2868
        %2871 = vset.pattern.permute.xlu0 3
        %2872 = vperm.xlu0 %2871, %v2191
        %v2873 = vpop.permute.xlu0 %2872
        %2875 = vset.pattern.permute.xlu0 3
        %2876 = vperm.xlu0 %2875, %v2192
        %v2877 = vpop.permute.xlu0 %2876
        %2879 = vset.pattern.permute.xlu0 3
        %2880 = vperm.xlu0 %2879, %v2193
        %v2881 = vpop.permute.xlu0 %2880
        %2883 = vset.pattern.permute.xlu0 3
        %2884 = vperm.xlu0 %2883, %v2194
        %v2885 = vpop.permute.xlu0 %2884
        %2887 = vset.pattern.permute.xlu0 3
        %2888 = vperm.xlu0 %2887, %v2195
        %v2889 = vpop.permute.xlu0 %2888
        %2891 = vset.pattern.permute.xlu0 3
        %2892 = vperm.xlu0 %2891, %v2196
        %v2893 = vpop.permute.xlu0 %2892
        %2895 = vset.pattern.permute.xlu0 3
        %2896 = vperm.xlu0 %2895, %v2197
        %v2897 = vpop.permute.xlu0 %2896
        %2899 = vset.pattern.permute.xlu0 3
        %2900 = vperm.xlu0 %2899, %v2198
        %v2901 = vpop.permute.xlu0 %2900
        %2903 = vset.pattern.permute.xlu0 3
        %2904 = vperm.xlu0 %2903, %v2199
        %v2905 = vpop.permute.xlu0 %2904
        %2907 = vset.pattern.permute.xlu0 3
        %2908 = vperm.xlu0 %2907, %v2200
        %v2909 = vpop.permute.xlu0 %2908
        %2911 = vset.pattern.permute.xlu0 3
        %2912 = vperm.xlu0 %2911, %v2201
        %v2913 = vpop.permute.xlu0 %2912
        %2915 = vset.pattern.permute.xlu0 3
        %2916 = vperm.xlu0 %2915, %v2202
        %v2917 = vpop.permute.xlu0 %2916
        %v2919 = vlaneseq
        %v2920 = vshrl.u32 %v2919, 7
        %v2921 = vsub.s32 3, %v2920
        %v2922 = vrot.slane %v366, %v2921
        %v2923 = vmul.f32 %v2793, %v2922
        %v2924 = vmul.f32 %v2797, %v2922
        %v2925 = vmul.f32 %v2801, %v2922
        %v2926 = vmul.f32 %v2805, %v2922
        %v2927 = vmul.f32 %v2809, %v2922
        %v2928 = vmul.f32 %v2813, %v2922
        %v2929 = vmul.f32 %v2817, %v2922
        %v2930 = vmul.f32 %v2821, %v2922
        %v2931 = vmul.f32 %v2825, %v2922
        %v2932 = vmul.f32 %v2829, %v2922
        %v2933 = vmul.f32 %v2833, %v2922
        %v2934 = vmul.f32 %v2837, %v2922
        %v2935 = vmul.f32 %v2841, %v2922
        %v2936 = vmul.f32 %v2845, %v2922
        %v2937 = vmul.f32 %v2849, %v2922
        %v2938 = vmul.f32 %v2853, %v2922
        %v2939 = vmul.f32 %v2857, %v2922
        %v2940 = vmul.f32 %v2861, %v2922
        %v2941 = vmul.f32 %v2865, %v2922
        %v2942 = vmul.f32 %v2869, %v2922
        %v2943 = vmul.f32 %v2873, %v2922
        %v2944 = vmul.f32 %v2877, %v2922
        %v2945 = vmul.f32 %v2881, %v2922
        %v2946 = vmul.f32 %v2885, %v2922
        %v2947 = vmul.f32 %v2889, %v2922
        %v2948 = vmul.f32 %v2893, %v2922
        %v2949 = vmul.f32 %v2897, %v2922
        %v2950 = vmul.f32 %v2901, %v2922
        %v2951 = vmul.f32 %v2905, %v2922
        %v2952 = vmul.f32 %v2909, %v2922
        %v2953 = vmul.f32 %v2913, %v2922
        %v2954 = vmul.f32 %v2917, %v2922
        %v2955 = vadd.f32 %v2759, %v2923
        %v2956 = vadd.f32 %v2760, %v2924
        %v2957 = vadd.f32 %v2761, %v2925
        %v2958 = vadd.f32 %v2762, %v2926
        %v2959 = vadd.f32 %v2763, %v2927
        %v2960 = vadd.f32 %v2764, %v2928
        %v2961 = vadd.f32 %v2765, %v2929
        %v2962 = vadd.f32 %v2766, %v2930
        %v2963 = vadd.f32 %v2767, %v2931
        %v2964 = vadd.f32 %v2768, %v2932
        %v2965 = vadd.f32 %v2769, %v2933
        %v2966 = vadd.f32 %v2770, %v2934
        %v2967 = vadd.f32 %v2771, %v2935
        %v2968 = vadd.f32 %v2772, %v2936
        %v2969 = vadd.f32 %v2773, %v2937
        %v2970 = vadd.f32 %v2774, %v2938
        %v2971 = vadd.f32 %v2775, %v2939
        %v2972 = vadd.f32 %v2776, %v2940
        %v2973 = vadd.f32 %v2777, %v2941
        %v2974 = vadd.f32 %v2778, %v2942
        %v2975 = vadd.f32 %v2779, %v2943
        %v2976 = vadd.f32 %v2780, %v2944
        %v2977 = vadd.f32 %v2781, %v2945
        %v2978 = vadd.f32 %v2782, %v2946
        %v2979 = vadd.f32 %v2783, %v2947
        %v2980 = vadd.f32 %v2784, %v2948
        %v2981 = vadd.f32 %v2785, %v2949
        %v2982 = vadd.f32 %v2786, %v2950
        %v2983 = vadd.f32 %v2787, %v2951
        %v2984 = vadd.f32 %v2788, %v2952
        %v2985 = vadd.f32 %v2789, %v2953
        %v2986 = vadd.f32 %v2790, %v2954
        %v2988 = vlaneseq
        %v2989 = vshrl.u32 %v2988, 7
        %v2990 = vsub.s32 0, %v2989
        %v2991 = vrot.slane %v367, %v2990
        %v2993 = vadd.f32 %v2955, %v2991
        %v2994 = vadd.f32 %v2956, %v2991
        %v2995 = vadd.f32 %v2957, %v2991
        %v2996 = vadd.f32 %v2958, %v2991
        %v2997 = vadd.f32 %v2959, %v2991
        %v2998 = vadd.f32 %v2960, %v2991
        %v2999 = vadd.f32 %v2961, %v2991
        %v3000 = vadd.f32 %v2962, %v2991
        %v3001 = vadd.f32 %v2963, %v2991
        %v3002 = vadd.f32 %v2964, %v2991
        %v3003 = vadd.f32 %v2965, %v2991
        %v3004 = vadd.f32 %v2966, %v2991
        %v3005 = vadd.f32 %v2967, %v2991
        %v3006 = vadd.f32 %v2968, %v2991
        %v3007 = vadd.f32 %v2969, %v2991
        %v3008 = vadd.f32 %v2970, %v2991
        %v3009 = vadd.f32 %v2971, %v2991
        %v3010 = vadd.f32 %v2972, %v2991
        %v3011 = vadd.f32 %v2973, %v2991
        %v3012 = vadd.f32 %v2974, %v2991
        %v3013 = vadd.f32 %v2975, %v2991
        %v3014 = vadd.f32 %v2976, %v2991
        %v3015 = vadd.f32 %v2977, %v2991
        %v3016 = vadd.f32 %v2978, %v2991
        %v3017 = vadd.f32 %v2979, %v2991
        %v3018 = vadd.f32 %v2980, %v2991
        %v3019 = vadd.f32 %v2981, %v2991
        %v3020 = vadd.f32 %v2982, %v2991
        %v3021 = vadd.f32 %v2983, %v2991
        %v3022 = vadd.f32 %v2984, %v2991
        %v3023 = vadd.f32 %v2985, %v2991
        %v3024 = vadd.f32 %v2986, %v2991
        %v3025 = vld [vmem:[%s4] sm:$0x7]
        %v3026 = vld [vmem:[%s4 + $0x4] sm:$0x7]
        %v3027 = vld [vmem:[%s4 + $0x8] sm:$0x7]
        %v3028 = vld [vmem:[%s5] sm:$0xff]
        %v3029 = vld [vmem:[%s6] sm:$0x1]
        %vm3030 = vcmask 64512
        %3031 = vst.msk [vmem:[#allocation3] sm:$0xff] %vm3030, 0.0
        %3032 = vst.msk [vmem:[#allocation3 + $0x8] sm:$0xff] %vm3030, 0.0
        %vm3033 = vcmask 58368
        %3034 = vst.msk [vmem:[#allocation3 + $0x10] sm:$0x3] %vm3033, 0.0
        %3035 = vst.msk [vmem:[#allocation3 + $0x18] sm:$0xff] %vm3030, 0.0
        %3036 = vst.msk [vmem:[#allocation3 + $0x20] sm:$0xff] %vm3030, 0.0
        %3037 = vst.msk [vmem:[#allocation3 + $0x28] sm:$0x3] %vm3033, 0.0
        %3038 = vst.msk [vmem:[#allocation3 + $0x30] sm:$0xff] %vm3030, 0.0
        %3039 = vst.msk [vmem:[#allocation3 + $0x38] sm:$0xff] %vm3030, 0.0
        %3040 = vst.msk [vmem:[#allocation3 + $0x40] sm:$0x3] %vm3033, 0.0
        %3041 = vst.msk [vmem:[#allocation3 + $0x48] sm:$0xff] %vm3030, 0.0
        %3042 = vst.msk [vmem:[#allocation3 + $0x50] sm:$0xff] %vm3030, 0.0
        %3043 = vst.msk [vmem:[#allocation3 + $0x58] sm:$0x3] %vm3033, 0.0
        %3044 = vst.msk [vmem:[#allocation3 + $0x60] sm:$0xff] %vm3030, 0.0
        %3045 = vst.msk [vmem:[#allocation3 + $0x68] sm:$0xff] %vm3030, 0.0
        %3046 = vst.msk [vmem:[#allocation3 + $0x70] sm:$0x3] %vm3033, 0.0
        %3047 = vst.msk [vmem:[#allocation3 + $0x78] sm:$0xff] %vm3030, 0.0
        %3048 = vst.msk [vmem:[#allocation3 + $0x80] sm:$0xff] %vm3030, 0.0
        %3049 = vst.msk [vmem:[#allocation3 + $0x88] sm:$0x3] %vm3033, 0.0
        %3050 = vst.msk [vmem:[#allocation3 + $0x90] sm:$0xff] %vm3030, 0.0
        %3051 = vst.msk [vmem:[#allocation3 + $0x98] sm:$0xff] %vm3030, 0.0
        %3052 = vst.msk [vmem:[#allocation3 + $0xa0] sm:$0x3] %vm3033, 0.0
        %3053 = vst.msk [vmem:[#allocation3 + $0xa8] sm:$0xff] %vm3030, 0.0
        %3054 = vst.msk [vmem:[#allocation3 + $0xb0] sm:$0xff] %vm3030, 0.0
        %3055 = vst.msk [vmem:[#allocation3 + $0xb8] sm:$0x3] %vm3033, 0.0
        %3056 = vst.msk [vmem:[#allocation3 + $0xc0] sm:$0xff] %vm3030, 0.0
        %3057 = vst.msk [vmem:[#allocation3 + $0xc8] sm:$0xff] %vm3030, 0.0
        %3058 = vst.msk [vmem:[#allocation3 + $0xd0] sm:$0x3] %vm3033, 0.0
        %3059 = vst.msk [vmem:[#allocation3 + $0xd8] sm:$0xff] %vm3030, 0.0
        %3060 = vst.msk [vmem:[#allocation3 + $0xe0] sm:$0xff] %vm3030, 0.0
        %3061 = vst.msk [vmem:[#allocation3 + $0xe8] sm:$0x3] %vm3033, 0.0
        %3062 = vst.msk [vmem:[#allocation3 + $0xf0] sm:$0xff] %vm3030, 0.0
        %3063 = vst.msk [vmem:[#allocation3 + $0xf8] sm:$0xff] %vm3030, 0.0
        %3064 = vst.msk [vmem:[#allocation3 + $0x100] sm:$0x3] %vm3033, 0.0
        %3065 = vst.msk [vmem:[#allocation3 + $0x108] sm:$0xff] %vm3030, 0.0
        %3066 = vst.msk [vmem:[#allocation3 + $0x110] sm:$0xff] %vm3030, 0.0
        %3067 = vst.msk [vmem:[#allocation3 + $0x118] sm:$0x3] %vm3033, 0.0
        %3068 = vst.msk [vmem:[#allocation3 + $0x120] sm:$0xff] %vm3030, 0.0
        %3069 = vst.msk [vmem:[#allocation3 + $0x128] sm:$0xff] %vm3030, 0.0
        %3070 = vst.msk [vmem:[#allocation3 + $0x130] sm:$0x3] %vm3033, 0.0
        %3071 = vst.msk [vmem:[#allocation3 + $0x138] sm:$0xff] %vm3030, 0.0
        %3072 = vst.msk [vmem:[#allocation3 + $0x140] sm:$0xff] %vm3030, 0.0
        %3073 = vst.msk [vmem:[#allocation3 + $0x148] sm:$0x3] %vm3033, 0.0
        %3074 = vst.msk [vmem:[#allocation3 + $0x150] sm:$0xff] %vm3030, 0.0
        %3075 = vst.msk [vmem:[#allocation3 + $0x158] sm:$0xff] %vm3030, 0.0
        %3076 = vst.msk [vmem:[#allocation3 + $0x160] sm:$0x3] %vm3033, 0.0
        %3077 = vst.msk [vmem:[#allocation3 + $0x168] sm:$0xff] %vm3030, 0.0
        %3078 = vst.msk [vmem:[#allocation3 + $0x170] sm:$0xff] %vm3030, 0.0
        %3079 = vst.msk [vmem:[#allocation3 + $0x178] sm:$0x3] %vm3033, 0.0
        %3080 = vst.msk [vmem:[#allocation3 + $0x180] sm:$0xff] %vm3030, 0.0
        %3081 = vst.msk [vmem:[#allocation3 + $0x188] sm:$0xff] %vm3030, 0.0
        %3082 = vst.msk [vmem:[#allocation3 + $0x190] sm:$0x3] %vm3033, 0.0
        %3083 = vst.msk [vmem:[#allocation3 + $0x198] sm:$0xff] %vm3030, 0.0
        %3084 = vst.msk [vmem:[#allocation3 + $0x1a0] sm:$0xff] %vm3030, 0.0
        %3085 = vst.msk [vmem:[#allocation3 + $0x1a8] sm:$0x3] %vm3033, 0.0
        %s3086 = scalar_lea.vmem [#allocation3], 24
        %3087 = vst.msk [vmem:[%s3086 + $0x1] sm:$0xff] %vm3030, %v2993
        %3088 = vst.msk [vmem:[%s3086 + $0x9] sm:$0xff] %vm3030, %v2994
        %3089 = vst.msk [vmem:[%s3086 + $0x19] sm:$0xff] %vm3030, %v2995
        %3090 = vst.msk [vmem:[%s3086 + $0x21] sm:$0xff] %vm3030, %v2996
        %3091 = vst.msk [vmem:[%s3086 + $0x31] sm:$0xff] %vm3030, %v2997
        %3092 = vst.msk [vmem:[%s3086 + $0x39] sm:$0xff] %vm3030, %v2998
        %3093 = vst.msk [vmem:[%s3086 + $0x49] sm:$0xff] %vm3030, %v2999
        %3094 = vst.msk [vmem:[%s3086 + $0x51] sm:$0xff] %vm3030, %v3000
        %3095 = vst.msk [vmem:[%s3086 + $0x61] sm:$0xff] %vm3030, %v3001
        %3096 = vst.msk [vmem:[%s3086 + $0x69] sm:$0xff] %vm3030, %v3002
        %3097 = vst.msk [vmem:[%s3086 + $0x79] sm:$0xff] %vm3030, %v3003
        %3098 = vst.msk [vmem:[%s3086 + $0x81] sm:$0xff] %vm3030, %v3004
        %3099 = vst.msk [vmem:[%s3086 + $0x91] sm:$0xff] %vm3030, %v3005
        %3100 = vst.msk [vmem:[%s3086 + $0x99] sm:$0xff] %vm3030, %v3006
        %3101 = vst.msk [vmem:[%s3086 + $0xa9] sm:$0xff] %vm3030, %v3007
        %3102 = vst.msk [vmem:[%s3086 + $0xb1] sm:$0xff] %vm3030, %v3008
        %3103 = vst.msk [vmem:[%s3086 + $0xc1] sm:$0xff] %vm3030, %v3009
        %3104 = vst.msk [vmem:[%s3086 + $0xc9] sm:$0xff] %vm3030, %v3010
        %3105 = vst.msk [vmem:[%s3086 + $0xd9] sm:$0xff] %vm3030, %v3011
        %3106 = vst.msk [vmem:[%s3086 + $0xe1] sm:$0xff] %vm3030, %v3012
        %3107 = vst.msk [vmem:[%s3086 + $0xf1] sm:$0xff] %vm3030, %v3013
        %3108 = vst.msk [vmem:[%s3086 + $0xf9] sm:$0xff] %vm3030, %v3014
        %3109 = vst.msk [vmem:[%s3086 + $0x109] sm:$0xff] %vm3030, %v3015
        %3110 = vst.msk [vmem:[%s3086 + $0x111] sm:$0xff] %vm3030, %v3016
        %3111 = vst.msk [vmem:[%s3086 + $0x121] sm:$0xff] %vm3030, %v3017
        %3112 = vst.msk [vmem:[%s3086 + $0x129] sm:$0xff] %vm3030, %v3018
        %3113 = vst.msk [vmem:[%s3086 + $0x139] sm:$0xff] %vm3030, %v3019
        %3114 = vst.msk [vmem:[%s3086 + $0x141] sm:$0xff] %vm3030, %v3020
        %3115 = vst.msk [vmem:[%s3086 + $0x151] sm:$0xff] %vm3030, %v3021
        %3116 = vst.msk [vmem:[%s3086 + $0x159] sm:$0xff] %vm3030, %v3022
        %3117 = vst.msk [vmem:[%s3086 + $0x169] sm:$0xff] %vm3030, %v3023
        %3118 = vst.msk [vmem:[%s3086 + $0x171] sm:$0xff] %vm3030, %v3024
        %v3119 = vld [vmem:[#allocation3] sm:$0xff]
        %v3120 = vld [vmem:[#allocation3 + $0x8] sm:$0xff]
        %v3121 = vld [vmem:[#allocation3 + $0x10] sm:$0x3]
        %v3122 = vld [vmem:[#allocation3 + $0x18] sm:$0xff]
        %v3123 = vld [vmem:[#allocation3 + $0x20] sm:$0xff]
        %v3124 = vld [vmem:[#allocation3 + $0x28] sm:$0x3]
        %v3125 = vld [vmem:[#allocation3 + $0x30] sm:$0xff]
        %v3126 = vld [vmem:[#allocation3 + $0x38] sm:$0xff]
        %v3127 = vld [vmem:[#allocation3 + $0x40] sm:$0x3]
        %v3128 = vld [vmem:[#allocation3 + $0x48] sm:$0xff]
        %v3129 = vld [vmem:[#allocation3 + $0x50] sm:$0xff]
        %v3130 = vld [vmem:[#allocation3 + $0x58] sm:$0x3]
        %v3131 = vld [vmem:[#allocation3 + $0x60] sm:$0xff]
        %v3132 = vld [vmem:[#allocation3 + $0x68] sm:$0xff]
        %v3133 = vld [vmem:[#allocation3 + $0x70] sm:$0x3]
        %v3134 = vld [vmem:[#allocation3 + $0x78] sm:$0xff]
        %v3135 = vld [vmem:[#allocation3 + $0x80] sm:$0xff]
        %v3136 = vld [vmem:[#allocation3 + $0x88] sm:$0x3]
        %v3137 = vld [vmem:[#allocation3 + $0x90] sm:$0xff]
        %v3138 = vld [vmem:[#allocation3 + $0x98] sm:$0xff]
        %v3139 = vld [vmem:[#allocation3 + $0xa0] sm:$0x3]
        %v3140 = vld [vmem:[#allocation3 + $0xa8] sm:$0xff]
        %v3141 = vld [vmem:[#allocation3 + $0xb0] sm:$0xff]
        %v3142 = vld [vmem:[#allocation3 + $0xb8] sm:$0x3]
        %v3143 = vld [vmem:[#allocation3 + $0xc0] sm:$0xff]
        %v3144 = vld [vmem:[#allocation3 + $0xc8] sm:$0xff]
        %v3145 = vld [vmem:[#allocation3 + $0xd0] sm:$0x3]
        %v3146 = vld [vmem:[#allocation3 + $0xd8] sm:$0xff]
        %v3147 = vld [vmem:[#allocation3 + $0xe0] sm:$0xff]
        %v3148 = vld [vmem:[#allocation3 + $0xe8] sm:$0x3]
        %v3149 = vld [vmem:[#allocation3 + $0xf0] sm:$0xff]
        %v3150 = vld [vmem:[#allocation3 + $0xf8] sm:$0xff]
        %v3151 = vld [vmem:[#allocation3 + $0x100] sm:$0x3]
        %v3152 = vld [vmem:[#allocation3 + $0x108] sm:$0xff]
        %v3153 = vld [vmem:[#allocation3 + $0x110] sm:$0xff]
        %v3154 = vld [vmem:[#allocation3 + $0x118] sm:$0x3]
        %v3155 = vld [vmem:[#allocation3 + $0x120] sm:$0xff]
        %v3156 = vld [vmem:[#allocation3 + $0x128] sm:$0xff]
        %v3157 = vld [vmem:[#allocation3 + $0x130] sm:$0x3]
        %v3158 = vld [vmem:[#allocation3 + $0x138] sm:$0xff]
        %v3159 = vld [vmem:[#allocation3 + $0x140] sm:$0xff]
        %v3160 = vld [vmem:[#allocation3 + $0x148] sm:$0x3]
        %v3161 = vld [vmem:[#allocation3 + $0x150] sm:$0xff]
        %v3162 = vld [vmem:[#allocation3 + $0x158] sm:$0xff]
        %v3163 = vld [vmem:[#allocation3 + $0x160] sm:$0x3]
        %v3164 = vld [vmem:[#allocation3 + $0x168] sm:$0xff]
        %v3165 = vld [vmem:[#allocation3 + $0x170] sm:$0xff]
        %v3166 = vld [vmem:[#allocation3 + $0x178] sm:$0x3]
        %v3167 = vld [vmem:[#allocation3 + $0x180] sm:$0xff]
        %v3168 = vld [vmem:[#allocation3 + $0x188] sm:$0xff]
        %v3169 = vld [vmem:[#allocation3 + $0x190] sm:$0x3]
        %v3170 = vld [vmem:[#allocation3 + $0x198] sm:$0xff]
        %v3171 = vld [vmem:[#allocation3 + $0x1a0] sm:$0xff]
        %v3172 = vld [vmem:[#allocation3 + $0x1a8] sm:$0x3]
        %v3173 = vmax.f32 %v3119, 0.0
        %v3174 = vmax.f32 %v3120, 0.0
        %v3175 = vmax.f32 %v3121, 0.0
        %v3176 = vmax.f32 %v3122, 0.0
        %v3177 = vmax.f32 %v3123, 0.0
        %v3178 = vmax.f32 %v3124, 0.0
        %v3179 = vmax.f32 %v3125, 0.0
        %v3180 = vmax.f32 %v3126, 0.0
        %v3181 = vmax.f32 %v3127, 0.0
        %v3182 = vmax.f32 %v3128, 0.0
        %v3183 = vmax.f32 %v3129, 0.0
        %v3184 = vmax.f32 %v3130, 0.0
        %v3185 = vmax.f32 %v3131, 0.0
        %v3186 = vmax.f32 %v3132, 0.0
        %v3187 = vmax.f32 %v3133, 0.0
        %v3188 = vmax.f32 %v3134, 0.0
        %v3189 = vmax.f32 %v3135, 0.0
        %v3190 = vmax.f32 %v3136, 0.0
        %v3191 = vmax.f32 %v3137, 0.0
        %v3192 = vmax.f32 %v3138, 0.0
        %v3193 = vmax.f32 %v3139, 0.0
        %v3194 = vmax.f32 %v3140, 0.0
        %v3195 = vmax.f32 %v3141, 0.0
        %v3196 = vmax.f32 %v3142, 0.0
        %v3197 = vmax.f32 %v3143, 0.0
        %v3198 = vmax.f32 %v3144, 0.0
        %v3199 = vmax.f32 %v3145, 0.0
        %v3200 = vmax.f32 %v3146, 0.0
        %v3201 = vmax.f32 %v3147, 0.0
        %v3202 = vmax.f32 %v3148, 0.0
        %v3203 = vmax.f32 %v3149, 0.0
        %v3204 = vmax.f32 %v3150, 0.0
        %v3205 = vmax.f32 %v3151, 0.0
        %v3206 = vmax.f32 %v3152, 0.0
        %v3207 = vmax.f32 %v3153, 0.0
        %v3208 = vmax.f32 %v3154, 0.0
        %v3209 = vmax.f32 %v3155, 0.0
        %v3210 = vmax.f32 %v3156, 0.0
        %v3211 = vmax.f32 %v3157, 0.0
        %v3212 = vmax.f32 %v3158, 0.0
        %v3213 = vmax.f32 %v3159, 0.0
        %v3214 = vmax.f32 %v3160, 0.0
        %v3215 = vmax.f32 %v3161, 0.0
        %v3216 = vmax.f32 %v3162, 0.0
        %v3217 = vmax.f32 %v3163, 0.0
        %v3218 = vmax.f32 %v3164, 0.0
        %v3219 = vmax.f32 %v3165, 0.0
        %v3220 = vmax.f32 %v3166, 0.0
        %v3221 = vmax.f32 %v3167, 0.0
        %v3222 = vmax.f32 %v3168, 0.0
        %v3223 = vmax.f32 %v3169, 0.0
        %v3224 = vmax.f32 %v3170, 0.0
        %v3225 = vmax.f32 %v3171, 0.0
        %v3226 = vmax.f32 %v3172, 0.0
        %v3227 = vlaneseq
        %v3228 = vshrl.u32 %v3227, 7
        %v3229 = vsub.s32 0, %v3228
        %v3230 = vrot.slane %v3025, %v3229
        %v3231 = vmul.f32 %v3173, %v3230
        %v3232 = vmul.f32 %v3174, %v3230
        %v3233 = vmul.f32 %v3176, %v3230
        %v3234 = vmul.f32 %v3177, %v3230
        %v3235 = vmul.f32 %v3179, %v3230
        %v3236 = vmul.f32 %v3180, %v3230
        %v3237 = vmul.f32 %v3182, %v3230
        %v3238 = vmul.f32 %v3183, %v3230
        %v3239 = vmul.f32 %v3185, %v3230
        %v3240 = vmul.f32 %v3186, %v3230
        %v3241 = vmul.f32 %v3188, %v3230
        %v3242 = vmul.f32 %v3189, %v3230
        %v3243 = vmul.f32 %v3191, %v3230
        %v3244 = vmul.f32 %v3192, %v3230
        %v3245 = vmul.f32 %v3194, %v3230
        %v3246 = vmul.f32 %v3195, %v3230
        %v3247 = vmul.f32 %v3197, %v3230
        %v3248 = vmul.f32 %v3198, %v3230
        %v3249 = vmul.f32 %v3200, %v3230
        %v3250 = vmul.f32 %v3201, %v3230
        %v3251 = vmul.f32 %v3203, %v3230
        %v3252 = vmul.f32 %v3204, %v3230
        %v3253 = vmul.f32 %v3206, %v3230
        %v3254 = vmul.f32 %v3207, %v3230
        %v3255 = vmul.f32 %v3209, %v3230
        %v3256 = vmul.f32 %v3210, %v3230
        %v3257 = vmul.f32 %v3212, %v3230
        %v3258 = vmul.f32 %v3213, %v3230
        %v3259 = vmul.f32 %v3215, %v3230
        %v3260 = vmul.f32 %v3216, %v3230
        %v3261 = vmul.f32 %v3218, %v3230
        %v3262 = vmul.f32 %v3219, %v3230
        %v3263 = vlaneseq
        %v3264 = vshrl.u32 %v3263, 7
        %v3265 = vsub.s32 1, %v3264
        %v3266 = vrot.slane %v3025, %v3265
        %v3267 = vmul.f32 %v3173, %v3266
        %v3268 = vmul.f32 %v3174, %v3266
        %v3269 = vmul.f32 %v3175, %v3266
        %v3270 = vmul.f32 %v3176, %v3266
        %v3271 = vmul.f32 %v3177, %v3266
        %v3272 = vmul.f32 %v3178, %v3266
        %v3273 = vmul.f32 %v3179, %v3266
        %v3274 = vmul.f32 %v3180, %v3266
        %v3275 = vmul.f32 %v3181, %v3266
        %v3276 = vmul.f32 %v3182, %v3266
        %v3277 = vmul.f32 %v3183, %v3266
        %v3278 = vmul.f32 %v3184, %v3266
        %v3279 = vmul.f32 %v3185, %v3266
        %v3280 = vmul.f32 %v3186, %v3266
        %v3281 = vmul.f32 %v3187, %v3266
        %v3282 = vmul.f32 %v3188, %v3266
        %v3283 = vmul.f32 %v3189, %v3266
        %v3284 = vmul.f32 %v3190, %v3266
        %v3285 = vmul.f32 %v3191, %v3266
        %v3286 = vmul.f32 %v3192, %v3266
        %v3287 = vmul.f32 %v3193, %v3266
        %v3288 = vmul.f32 %v3194, %v3266
        %v3289 = vmul.f32 %v3195, %v3266
        %v3290 = vmul.f32 %v3196, %v3266
        %v3291 = vmul.f32 %v3197, %v3266
        %v3292 = vmul.f32 %v3198, %v3266
        %v3293 = vmul.f32 %v3199, %v3266
        %v3294 = vmul.f32 %v3200, %v3266
        %v3295 = vmul.f32 %v3201, %v3266
        %v3296 = vmul.f32 %v3202, %v3266
        %v3297 = vmul.f32 %v3203, %v3266
        %v3298 = vmul.f32 %v3204, %v3266
        %v3299 = vmul.f32 %v3205, %v3266
        %v3300 = vmul.f32 %v3206, %v3266
        %v3301 = vmul.f32 %v3207, %v3266
        %v3302 = vmul.f32 %v3208, %v3266
        %v3303 = vmul.f32 %v3209, %v3266
        %v3304 = vmul.f32 %v3210, %v3266
        %v3305 = vmul.f32 %v3211, %v3266
        %v3306 = vmul.f32 %v3212, %v3266
        %v3307 = vmul.f32 %v3213, %v3266
        %v3308 = vmul.f32 %v3214, %v3266
        %v3309 = vmul.f32 %v3215, %v3266
        %v3310 = vmul.f32 %v3216, %v3266
        %v3311 = vmul.f32 %v3217, %v3266
        %v3312 = vmul.f32 %v3218, %v3266
        %v3313 = vmul.f32 %v3219, %v3266
        %v3314 = vmul.f32 %v3220, %v3266
        %v3363 = vrot.slane %v3267, 1
        %v3364 = vrot.slane %v3268, 1
        %v3365 = vsel %vm701, %v3363, %v3364
        %v3366 = vrot.slane %v3269, 1
        %v3367 = vsel %vm701, %v3364, %v3366
        %v3368 = vrot.slane %v3270, 1
        %v3369 = vrot.slane %v3271, 1
        %v3370 = vsel %vm701, %v3368, %v3369
        %v3371 = vrot.slane %v3272, 1
        %v3372 = vsel %vm701, %v3369, %v3371
        %v3373 = vrot.slane %v3273, 1
        %v3374 = vrot.slane %v3274, 1
        %v3375 = vsel %vm701, %v3373, %v3374
        %v3376 = vrot.slane %v3275, 1
        %v3377 = vsel %vm701, %v3374, %v3376
        %v3378 = vrot.slane %v3276, 1
        %v3379 = vrot.slane %v3277, 1
        %v3380 = vsel %vm701, %v3378, %v3379
        %v3381 = vrot.slane %v3278, 1
        %v3382 = vsel %vm701, %v3379, %v3381
        %v3383 = vrot.slane %v3279, 1
        %v3384 = vrot.slane %v3280, 1
        %v3385 = vsel %vm701, %v3383, %v3384
        %v3386 = vrot.slane %v3281, 1
        %v3387 = vsel %vm701, %v3384, %v3386
        %v3388 = vrot.slane %v3282, 1
        %v3389 = vrot.slane %v3283, 1
        %v3390 = vsel %vm701, %v3388, %v3389
        %v3391 = vrot.slane %v3284, 1
        %v3392 = vsel %vm701, %v3389, %v3391
        %v3393 = vrot.slane %v3285, 1
        %v3394 = vrot.slane %v3286, 1
        %v3395 = vsel %vm701, %v3393, %v3394
        %v3396 = vrot.slane %v3287, 1
        %v3397 = vsel %vm701, %v3394, %v3396
        %v3398 = vrot.slane %v3288, 1
        %v3399 = vrot.slane %v3289, 1
        %v3400 = vsel %vm701, %v3398, %v3399
        %v3401 = vrot.slane %v3290, 1
        %v3402 = vsel %vm701, %v3399, %v3401
        %v3403 = vrot.slane %v3291, 1
        %v3404 = vrot.slane %v3292, 1
        %v3405 = vsel %vm701, %v3403, %v3404
        %v3406 = vrot.slane %v3293, 1
        %v3407 = vsel %vm701, %v3404, %v3406
        %v3408 = vrot.slane %v3294, 1
        %v3409 = vrot.slane %v3295, 1
        %v3410 = vsel %vm701, %v3408, %v3409
        %v3411 = vrot.slane %v3296, 1
        %v3412 = vsel %vm701, %v3409, %v3411
        %v3413 = vrot.slane %v3297, 1
        %v3414 = vrot.slane %v3298, 1
        %v3415 = vsel %vm701, %v3413, %v3414
        %v3416 = vrot.slane %v3299, 1
        %v3417 = vsel %vm701, %v3414, %v3416
        %v3418 = vrot.slane %v3300, 1
        %v3419 = vrot.slane %v3301, 1
        %v3420 = vsel %vm701, %v3418, %v3419
        %v3421 = vrot.slane %v3302, 1
        %v3422 = vsel %vm701, %v3419, %v3421
        %v3423 = vrot.slane %v3303, 1
        %v3424 = vrot.slane %v3304, 1
        %v3425 = vsel %vm701, %v3423, %v3424
        %v3426 = vrot.slane %v3305, 1
        %v3427 = vsel %vm701, %v3424, %v3426
        %v3428 = vrot.slane %v3306, 1
        %v3429 = vrot.slane %v3307, 1
        %v3430 = vsel %vm701, %v3428, %v3429
        %v3431 = vrot.slane %v3308, 1
        %v3432 = vsel %vm701, %v3429, %v3431
        %v3433 = vrot.slane %v3309, 1
        %v3434 = vrot.slane %v3310, 1
        %v3435 = vsel %vm701, %v3433, %v3434
        %v3436 = vrot.slane %v3311, 1
        %v3437 = vsel %vm701, %v3434, %v3436
        %v3438 = vrot.slane %v3312, 1
        %v3439 = vrot.slane %v3313, 1
        %v3440 = vsel %vm701, %v3438, %v3439
        %v3441 = vrot.slane %v3314, 1
        %v3442 = vsel %vm701, %v3439, %v3441
        %v3475 = vadd.f32 %v3231, %v3365
        %v3476 = vadd.f32 %v3232, %v3367
        %v3477 = vadd.f32 %v3233, %v3370
        %v3478 = vadd.f32 %v3234, %v3372
        %v3479 = vadd.f32 %v3235, %v3375
        %v3480 = vadd.f32 %v3236, %v3377
        %v3481 = vadd.f32 %v3237, %v3380
        %v3482 = vadd.f32 %v3238, %v3382
        %v3483 = vadd.f32 %v3239, %v3385
        %v3484 = vadd.f32 %v3240, %v3387
        %v3485 = vadd.f32 %v3241, %v3390
        %v3486 = vadd.f32 %v3242, %v3392
        %v3487 = vadd.f32 %v3243, %v3395
        %v3488 = vadd.f32 %v3244, %v3397
        %v3489 = vadd.f32 %v3245, %v3400
        %v3490 = vadd.f32 %v3246, %v3402
        %v3491 = vadd.f32 %v3247, %v3405
        %v3492 = vadd.f32 %v3248, %v3407
        %v3493 = vadd.f32 %v3249, %v3410
        %v3494 = vadd.f32 %v3250, %v3412
        %v3495 = vadd.f32 %v3251, %v3415
        %v3496 = vadd.f32 %v3252, %v3417
        %v3497 = vadd.f32 %v3253, %v3420
        %v3498 = vadd.f32 %v3254, %v3422
        %v3499 = vadd.f32 %v3255, %v3425
        %v3500 = vadd.f32 %v3256, %v3427
        %v3501 = vadd.f32 %v3257, %v3430
        %v3502 = vadd.f32 %v3258, %v3432
        %v3503 = vadd.f32 %v3259, %v3435
        %v3504 = vadd.f32 %v3260, %v3437
        %v3505 = vadd.f32 %v3261, %v3440
        %v3506 = vadd.f32 %v3262, %v3442
        %v3507 = vlaneseq
        %v3508 = vshrl.u32 %v3507, 7
        %v3509 = vsub.s32 2, %v3508
        %v3510 = vrot.slane %v3025, %v3509
        %v3511 = vmul.f32 %v3173, %v3510
        %v3512 = vmul.f32 %v3174, %v3510
        %v3513 = vmul.f32 %v3175, %v3510
        %v3514 = vmul.f32 %v3176, %v3510
        %v3515 = vmul.f32 %v3177, %v3510
        %v3516 = vmul.f32 %v3178, %v3510
        %v3517 = vmul.f32 %v3179, %v3510
        %v3518 = vmul.f32 %v3180, %v3510
        %v3519 = vmul.f32 %v3181, %v3510
        %v3520 = vmul.f32 %v3182, %v3510
        %v3521 = vmul.f32 %v3183, %v3510
        %v3522 = vmul.f32 %v3184, %v3510
        %v3523 = vmul.f32 %v3185, %v3510
        %v3524 = vmul.f32 %v3186, %v3510
        %v3525 = vmul.f32 %v3187, %v3510
        %v3526 = vmul.f32 %v3188, %v3510
        %v3527 = vmul.f32 %v3189, %v3510
        %v3528 = vmul.f32 %v3190, %v3510
        %v3529 = vmul.f32 %v3191, %v3510
        %v3530 = vmul.f32 %v3192, %v3510
        %v3531 = vmul.f32 %v3193, %v3510
        %v3532 = vmul.f32 %v3194, %v3510
        %v3533 = vmul.f32 %v3195, %v3510
        %v3534 = vmul.f32 %v3196, %v3510
        %v3535 = vmul.f32 %v3197, %v3510
        %v3536 = vmul.f32 %v3198, %v3510
        %v3537 = vmul.f32 %v3199, %v3510
        %v3538 = vmul.f32 %v3200, %v3510
        %v3539 = vmul.f32 %v3201, %v3510
        %v3540 = vmul.f32 %v3202, %v3510
        %v3541 = vmul.f32 %v3203, %v3510
        %v3542 = vmul.f32 %v3204, %v3510
        %v3543 = vmul.f32 %v3205, %v3510
        %v3544 = vmul.f32 %v3206, %v3510
        %v3545 = vmul.f32 %v3207, %v3510
        %v3546 = vmul.f32 %v3208, %v3510
        %v3547 = vmul.f32 %v3209, %v3510
        %v3548 = vmul.f32 %v3210, %v3510
        %v3549 = vmul.f32 %v3211, %v3510
        %v3550 = vmul.f32 %v3212, %v3510
        %v3551 = vmul.f32 %v3213, %v3510
        %v3552 = vmul.f32 %v3214, %v3510
        %v3553 = vmul.f32 %v3215, %v3510
        %v3554 = vmul.f32 %v3216, %v3510
        %v3555 = vmul.f32 %v3217, %v3510
        %v3556 = vmul.f32 %v3218, %v3510
        %v3557 = vmul.f32 %v3219, %v3510
        %v3558 = vmul.f32 %v3220, %v3510
        %v3607 = vrot.slane %v3511, 2
        %v3608 = vrot.slane %v3512, 2
        %v3609 = vsel %vm946, %v3607, %v3608
        %v3610 = vrot.slane %v3513, 2
        %v3611 = vsel %vm946, %v3608, %v3610
        %v3612 = vrot.slane %v3514, 2
        %v3613 = vrot.slane %v3515, 2
        %v3614 = vsel %vm946, %v3612, %v3613
        %v3615 = vrot.slane %v3516, 2
        %v3616 = vsel %vm946, %v3613, %v3615
        %v3617 = vrot.slane %v3517, 2
        %v3618 = vrot.slane %v3518, 2
        %v3619 = vsel %vm946, %v3617, %v3618
        %v3620 = vrot.slane %v3519, 2
        %v3621 = vsel %vm946, %v3618, %v3620
        %v3622 = vrot.slane %v3520, 2
        %v3623 = vrot.slane %v3521, 2
        %v3624 = vsel %vm946, %v3622, %v3623
        %v3625 = vrot.slane %v3522, 2
        %v3626 = vsel %vm946, %v3623, %v3625
        %v3627 = vrot.slane %v3523, 2
        %v3628 = vrot.slane %v3524, 2
        %v3629 = vsel %vm946, %v3627, %v3628
        %v3630 = vrot.slane %v3525, 2
        %v3631 = vsel %vm946, %v3628, %v3630
        %v3632 = vrot.slane %v3526, 2
        %v3633 = vrot.slane %v3527, 2
        %v3634 = vsel %vm946, %v3632, %v3633
        %v3635 = vrot.slane %v3528, 2
        %v3636 = vsel %vm946, %v3633, %v3635
        %v3637 = vrot.slane %v3529, 2
        %v3638 = vrot.slane %v3530, 2
        %v3639 = vsel %vm946, %v3637, %v3638
        %v3640 = vrot.slane %v3531, 2
        %v3641 = vsel %vm946, %v3638, %v3640
        %v3642 = vrot.slane %v3532, 2
        %v3643 = vrot.slane %v3533, 2
        %v3644 = vsel %vm946, %v3642, %v3643
        %v3645 = vrot.slane %v3534, 2
        %v3646 = vsel %vm946, %v3643, %v3645
        %v3647 = vrot.slane %v3535, 2
        %v3648 = vrot.slane %v3536, 2
        %v3649 = vsel %vm946, %v3647, %v3648
        %v3650 = vrot.slane %v3537, 2
        %v3651 = vsel %vm946, %v3648, %v3650
        %v3652 = vrot.slane %v3538, 2
        %v3653 = vrot.slane %v3539, 2
        %v3654 = vsel %vm946, %v3652, %v3653
        %v3655 = vrot.slane %v3540, 2
        %v3656 = vsel %vm946, %v3653, %v3655
        %v3657 = vrot.slane %v3541, 2
        %v3658 = vrot.slane %v3542, 2
        %v3659 = vsel %vm946, %v3657, %v3658
        %v3660 = vrot.slane %v3543, 2
        %v3661 = vsel %vm946, %v3658, %v3660
        %v3662 = vrot.slane %v3544, 2
        %v3663 = vrot.slane %v3545, 2
        %v3664 = vsel %vm946, %v3662, %v3663
        %v3665 = vrot.slane %v3546, 2
        %v3666 = vsel %vm946, %v3663, %v3665
        %v3667 = vrot.slane %v3547, 2
        %v3668 = vrot.slane %v3548, 2
        %v3669 = vsel %vm946, %v3667, %v3668
        %v3670 = vrot.slane %v3549, 2
        %v3671 = vsel %vm946, %v3668, %v3670
        %v3672 = vrot.slane %v3550, 2
        %v3673 = vrot.slane %v3551, 2
        %v3674 = vsel %vm946, %v3672, %v3673
        %v3675 = vrot.slane %v3552, 2
        %v3676 = vsel %vm946, %v3673, %v3675
        %v3677 = vrot.slane %v3553, 2
        %v3678 = vrot.slane %v3554, 2
        %v3679 = vsel %vm946, %v3677, %v3678
        %v3680 = vrot.slane %v3555, 2
        %v3681 = vsel %vm946, %v3678, %v3680
        %v3682 = vrot.slane %v3556, 2
        %v3683 = vrot.slane %v3557, 2
        %v3684 = vsel %vm946, %v3682, %v3683
        %v3685 = vrot.slane %v3558, 2
        %v3686 = vsel %vm946, %v3683, %v3685
        %v3719 = vadd.f32 %v3475, %v3609
        %v3720 = vadd.f32 %v3476, %v3611
        %v3721 = vadd.f32 %v3477, %v3614
        %v3722 = vadd.f32 %v3478, %v3616
        %v3723 = vadd.f32 %v3479, %v3619
        %v3724 = vadd.f32 %v3480, %v3621
        %v3725 = vadd.f32 %v3481, %v3624
        %v3726 = vadd.f32 %v3482, %v3626
        %v3727 = vadd.f32 %v3483, %v3629
        %v3728 = vadd.f32 %v3484, %v3631
        %v3729 = vadd.f32 %v3485, %v3634
        %v3730 = vadd.f32 %v3486, %v3636
        %v3731 = vadd.f32 %v3487, %v3639
        %v3732 = vadd.f32 %v3488, %v3641
        %v3733 = vadd.f32 %v3489, %v3644
        %v3734 = vadd.f32 %v3490, %v3646
        %v3735 = vadd.f32 %v3491, %v3649
        %v3736 = vadd.f32 %v3492, %v3651
        %v3737 = vadd.f32 %v3493, %v3654
        %v3738 = vadd.f32 %v3494, %v3656
        %v3739 = vadd.f32 %v3495, %v3659
        %v3740 = vadd.f32 %v3496, %v3661
        %v3741 = vadd.f32 %v3497, %v3664
        %v3742 = vadd.f32 %v3498, %v3666
        %v3743 = vadd.f32 %v3499, %v3669
        %v3744 = vadd.f32 %v3500, %v3671
        %v3745 = vadd.f32 %v3501, %v3674
        %v3746 = vadd.f32 %v3502, %v3676
        %v3747 = vadd.f32 %v3503, %v3679
        %v3748 = vadd.f32 %v3504, %v3681
        %v3749 = vadd.f32 %v3505, %v3684
        %v3750 = vadd.f32 %v3506, %v3686
        %v3751 = vlaneseq
        %v3752 = vshrl.u32 %v3751, 7
        %v3753 = vsub.s32 0, %v3752
        %v3754 = vrot.slane %v3026, %v3753
        %v3755 = vmul.f32 %v3176, %v3754
        %v3756 = vmul.f32 %v3177, %v3754
        %v3757 = vmul.f32 %v3179, %v3754
        %v3758 = vmul.f32 %v3180, %v3754
        %v3759 = vmul.f32 %v3182, %v3754
        %v3760 = vmul.f32 %v3183, %v3754
        %v3761 = vmul.f32 %v3185, %v3754
        %v3762 = vmul.f32 %v3186, %v3754
        %v3763 = vmul.f32 %v3188, %v3754
        %v3764 = vmul.f32 %v3189, %v3754
        %v3765 = vmul.f32 %v3191, %v3754
        %v3766 = vmul.f32 %v3192, %v3754
        %v3767 = vmul.f32 %v3194, %v3754
        %v3768 = vmul.f32 %v3195, %v3754
        %v3769 = vmul.f32 %v3197, %v3754
        %v3770 = vmul.f32 %v3198, %v3754
        %v3771 = vmul.f32 %v3200, %v3754
        %v3772 = vmul.f32 %v3201, %v3754
        %v3773 = vmul.f32 %v3203, %v3754
        %v3774 = vmul.f32 %v3204, %v3754
        %v3775 = vmul.f32 %v3206, %v3754
        %v3776 = vmul.f32 %v3207, %v3754
        %v3777 = vmul.f32 %v3209, %v3754
        %v3778 = vmul.f32 %v3210, %v3754
        %v3779 = vmul.f32 %v3212, %v3754
        %v3780 = vmul.f32 %v3213, %v3754
        %v3781 = vmul.f32 %v3215, %v3754
        %v3782 = vmul.f32 %v3216, %v3754
        %v3783 = vmul.f32 %v3218, %v3754
        %v3784 = vmul.f32 %v3219, %v3754
        %v3785 = vmul.f32 %v3221, %v3754
        %v3786 = vmul.f32 %v3222, %v3754
        %v3787 = vadd.f32 %v3719, %v3755
        %v3788 = vadd.f32 %v3720, %v3756
        %v3789 = vadd.f32 %v3721, %v3757
        %v3790 = vadd.f32 %v3722, %v3758
        %v3791 = vadd.f32 %v3723, %v3759
        %v3792 = vadd.f32 %v3724, %v3760
        %v3793 = vadd.f32 %v3725, %v3761
        %v3794 = vadd.f32 %v3726, %v3762
        %v3795 = vadd.f32 %v3727, %v3763
        %v3796 = vadd.f32 %v3728, %v3764
        %v3797 = vadd.f32 %v3729, %v3765
        %v3798 = vadd.f32 %v3730, %v3766
        %v3799 = vadd.f32 %v3731, %v3767
        %v3800 = vadd.f32 %v3732, %v3768
        %v3801 = vadd.f32 %v3733, %v3769
        %v3802 = vadd.f32 %v3734, %v3770
        %v3803 = vadd.f32 %v3735, %v3771
        %v3804 = vadd.f32 %v3736, %v3772
        %v3805 = vadd.f32 %v3737, %v3773
        %v3806 = vadd.f32 %v3738, %v3774
        %v3807 = vadd.f32 %v3739, %v3775
        %v3808 = vadd.f32 %v3740, %v3776
        %v3809 = vadd.f32 %v3741, %v3777
        %v3810 = vadd.f32 %v3742, %v3778
        %v3811 = vadd.f32 %v3743, %v3779
        %v3812 = vadd.f32 %v3744, %v3780
        %v3813 = vadd.f32 %v3745, %v3781
        %v3814 = vadd.f32 %v3746, %v3782
        %v3815 = vadd.f32 %v3747, %v3783
        %v3816 = vadd.f32 %v3748, %v3784
        %v3817 = vadd.f32 %v3749, %v3785
        %v3818 = vadd.f32 %v3750, %v3786
        %v3819 = vlaneseq
        %v3820 = vshrl.u32 %v3819, 7
        %v3821 = vsub.s32 1, %v3820
        %v3822 = vrot.slane %v3026, %v3821
        %v3823 = vmul.f32 %v3176, %v3822
        %v3824 = vmul.f32 %v3177, %v3822
        %v3825 = vmul.f32 %v3178, %v3822
        %v3826 = vmul.f32 %v3179, %v3822
        %v3827 = vmul.f32 %v3180, %v3822
        %v3828 = vmul.f32 %v3181, %v3822
        %v3829 = vmul.f32 %v3182, %v3822
        %v3830 = vmul.f32 %v3183, %v3822
        %v3831 = vmul.f32 %v3184, %v3822
        %v3832 = vmul.f32 %v3185, %v3822
        %v3833 = vmul.f32 %v3186, %v3822
        %v3834 = vmul.f32 %v3187, %v3822
        %v3835 = vmul.f32 %v3188, %v3822
        %v3836 = vmul.f32 %v3189, %v3822
        %v3837 = vmul.f32 %v3190, %v3822
        %v3838 = vmul.f32 %v3191, %v3822
        %v3839 = vmul.f32 %v3192, %v3822
        %v3840 = vmul.f32 %v3193, %v3822
        %v3841 = vmul.f32 %v3194, %v3822
        %v3842 = vmul.f32 %v3195, %v3822
        %v3843 = vmul.f32 %v3196, %v3822
        %v3844 = vmul.f32 %v3197, %v3822
        %v3845 = vmul.f32 %v3198, %v3822
        %v3846 = vmul.f32 %v3199, %v3822
        %v3847 = vmul.f32 %v3200, %v3822
        %v3848 = vmul.f32 %v3201, %v3822
        %v3849 = vmul.f32 %v3202, %v3822
        %v3850 = vmul.f32 %v3203, %v3822
        %v3851 = vmul.f32 %v3204, %v3822
        %v3852 = vmul.f32 %v3205, %v3822
        %v3853 = vmul.f32 %v3206, %v3822
        %v3854 = vmul.f32 %v3207, %v3822
        %v3855 = vmul.f32 %v3208, %v3822
        %v3856 = vmul.f32 %v3209, %v3822
        %v3857 = vmul.f32 %v3210, %v3822
        %v3858 = vmul.f32 %v3211, %v3822
        %v3859 = vmul.f32 %v3212, %v3822
        %v3860 = vmul.f32 %v3213, %v3822
        %v3861 = vmul.f32 %v3214, %v3822
        %v3862 = vmul.f32 %v3215, %v3822
        %v3863 = vmul.f32 %v3216, %v3822
        %v3864 = vmul.f32 %v3217, %v3822
        %v3865 = vmul.f32 %v3218, %v3822
        %v3866 = vmul.f32 %v3219, %v3822
        %v3867 = vmul.f32 %v3220, %v3822
        %v3868 = vmul.f32 %v3221, %v3822
        %v3869 = vmul.f32 %v3222, %v3822
        %v3870 = vmul.f32 %v3223, %v3822
        %v3919 = vrot.slane %v3823, 1
        %v3920 = vrot.slane %v3824, 1
        %v3921 = vsel %vm701, %v3919, %v3920
        %v3922 = vrot.slane %v3825, 1
        %v3923 = vsel %vm701, %v3920, %v3922
        %v3924 = vrot.slane %v3826, 1
        %v3925 = vrot.slane %v3827, 1
        %v3926 = vsel %vm701, %v3924, %v3925
        %v3927 = vrot.slane %v3828, 1
        %v3928 = vsel %vm701, %v3925, %v3927
        %v3929 = vrot.slane %v3829, 1
        %v3930 = vrot.slane %v3830, 1
        %v3931 = vsel %vm701, %v3929, %v3930
        %v3932 = vrot.slane %v3831, 1
        %v3933 = vsel %vm701, %v3930, %v3932
        %v3934 = vrot.slane %v3832, 1
        %v3935 = vrot.slane %v3833, 1
        %v3936 = vsel %vm701, %v3934, %v3935
        %v3937 = vrot.slane %v3834, 1
        %v3938 = vsel %vm701, %v3935, %v3937
        %v3939 = vrot.slane %v3835, 1
        %v3940 = vrot.slane %v3836, 1
        %v3941 = vsel %vm701, %v3939, %v3940
        %v3942 = vrot.slane %v3837, 1
        %v3943 = vsel %vm701, %v3940, %v3942
        %v3944 = vrot.slane %v3838, 1
        %v3945 = vrot.slane %v3839, 1
        %v3946 = vsel %vm701, %v3944, %v3945
        %v3947 = vrot.slane %v3840, 1
        %v3948 = vsel %vm701, %v3945, %v3947
        %v3949 = vrot.slane %v3841, 1
        %v3950 = vrot.slane %v3842, 1
        %v3951 = vsel %vm701, %v3949, %v3950
        %v3952 = vrot.slane %v3843, 1
        %v3953 = vsel %vm701, %v3950, %v3952
        %v3954 = vrot.slane %v3844, 1
        %v3955 = vrot.slane %v3845, 1
        %v3956 = vsel %vm701, %v3954, %v3955
        %v3957 = vrot.slane %v3846, 1
        %v3958 = vsel %vm701, %v3955, %v3957
        %v3959 = vrot.slane %v3847, 1
        %v3960 = vrot.slane %v3848, 1
        %v3961 = vsel %vm701, %v3959, %v3960
        %v3962 = vrot.slane %v3849, 1
        %v3963 = vsel %vm701, %v3960, %v3962
        %v3964 = vrot.slane %v3850, 1
        %v3965 = vrot.slane %v3851, 1
        %v3966 = vsel %vm701, %v3964, %v3965
        %v3967 = vrot.slane %v3852, 1
        %v3968 = vsel %vm701, %v3965, %v3967
        %v3969 = vrot.slane %v3853, 1
        %v3970 = vrot.slane %v3854, 1
        %v3971 = vsel %vm701, %v3969, %v3970
        %v3972 = vrot.slane %v3855, 1
        %v3973 = vsel %vm701, %v3970, %v3972
        %v3974 = vrot.slane %v3856, 1
        %v3975 = vrot.slane %v3857, 1
        %v3976 = vsel %vm701, %v3974, %v3975
        %v3977 = vrot.slane %v3858, 1
        %v3978 = vsel %vm701, %v3975, %v3977
        %v3979 = vrot.slane %v3859, 1
        %v3980 = vrot.slane %v3860, 1
        %v3981 = vsel %vm701, %v3979, %v3980
        %v3982 = vrot.slane %v3861, 1
        %v3983 = vsel %vm701, %v3980, %v3982
        %v3984 = vrot.slane %v3862, 1
        %v3985 = vrot.slane %v3863, 1
        %v3986 = vsel %vm701, %v3984, %v3985
        %v3987 = vrot.slane %v3864, 1
        %v3988 = vsel %vm701, %v3985, %v3987
        %v3989 = vrot.slane %v3865, 1
        %v3990 = vrot.slane %v3866, 1
        %v3991 = vsel %vm701, %v3989, %v3990
        %v3992 = vrot.slane %v3867, 1
        %v3993 = vsel %vm701, %v3990, %v3992
        %v3994 = vrot.slane %v3868, 1
        %v3995 = vrot.slane %v3869, 1
        %v3996 = vsel %vm701, %v3994, %v3995
        %v3997 = vrot.slane %v3870, 1
        %v3998 = vsel %vm701, %v3995, %v3997
        %v4031 = vadd.f32 %v3787, %v3921
        %v4032 = vadd.f32 %v3788, %v3923
        %v4033 = vadd.f32 %v3789, %v3926
        %v4034 = vadd.f32 %v3790, %v3928
        %v4035 = vadd.f32 %v3791, %v3931
        %v4036 = vadd.f32 %v3792, %v3933
        %v4037 = vadd.f32 %v3793, %v3936
        %v4038 = vadd.f32 %v3794, %v3938
        %v4039 = vadd.f32 %v3795, %v3941
        %v4040 = vadd.f32 %v3796, %v3943
        %v4041 = vadd.f32 %v3797, %v3946
        %v4042 = vadd.f32 %v3798, %v3948
        %v4043 = vadd.f32 %v3799, %v3951
        %v4044 = vadd.f32 %v3800, %v3953
        %v4045 = vadd.f32 %v3801, %v3956
        %v4046 = vadd.f32 %v3802, %v3958
        %v4047 = vadd.f32 %v3803, %v3961
        %v4048 = vadd.f32 %v3804, %v3963
        %v4049 = vadd.f32 %v3805, %v3966
        %v4050 = vadd.f32 %v3806, %v3968
        %v4051 = vadd.f32 %v3807, %v3971
        %v4052 = vadd.f32 %v3808, %v3973
        %v4053 = vadd.f32 %v3809, %v3976
        %v4054 = vadd.f32 %v3810, %v3978
        %v4055 = vadd.f32 %v3811, %v3981
        %v4056 = vadd.f32 %v3812, %v3983
        %v4057 = vadd.f32 %v3813, %v3986
        %v4058 = vadd.f32 %v3814, %v3988
        %v4059 = vadd.f32 %v3815, %v3991
        %v4060 = vadd.f32 %v3816, %v3993
        %v4061 = vadd.f32 %v3817, %v3996
        %v4062 = vadd.f32 %v3818, %v3998
        %v4063 = vlaneseq
        %v4064 = vshrl.u32 %v4063, 7
        %v4065 = vsub.s32 2, %v4064
        %v4066 = vrot.slane %v3026, %v4065
        %v4067 = vmul.f32 %v3176, %v4066
        %v4068 = vmul.f32 %v3177, %v4066
        %v4069 = vmul.f32 %v3178, %v4066
        %v4070 = vmul.f32 %v3179, %v4066
        %v4071 = vmul.f32 %v3180, %v4066
        %v4072 = vmul.f32 %v3181, %v4066
        %v4073 = vmul.f32 %v3182, %v4066
        %v4074 = vmul.f32 %v3183, %v4066
        %v4075 = vmul.f32 %v3184, %v4066
        %v4076 = vmul.f32 %v3185, %v4066
        %v4077 = vmul.f32 %v3186, %v4066
        %v4078 = vmul.f32 %v3187, %v4066
        %v4079 = vmul.f32 %v3188, %v4066
        %v4080 = vmul.f32 %v3189, %v4066
        %v4081 = vmul.f32 %v3190, %v4066
        %v4082 = vmul.f32 %v3191, %v4066
        %v4083 = vmul.f32 %v3192, %v4066
        %v4084 = vmul.f32 %v3193, %v4066
        %v4085 = vmul.f32 %v3194, %v4066
        %v4086 = vmul.f32 %v3195, %v4066
        %v4087 = vmul.f32 %v3196, %v4066
        %v4088 = vmul.f32 %v3197, %v4066
        %v4089 = vmul.f32 %v3198, %v4066
        %v4090 = vmul.f32 %v3199, %v4066
        %v4091 = vmul.f32 %v3200, %v4066
        %v4092 = vmul.f32 %v3201, %v4066
        %v4093 = vmul.f32 %v3202, %v4066
        %v4094 = vmul.f32 %v3203, %v4066
        %v4095 = vmul.f32 %v3204, %v4066
        %v4096 = vmul.f32 %v3205, %v4066
        %v4097 = vmul.f32 %v3206, %v4066
        %v4098 = vmul.f32 %v3207, %v4066
        %v4099 = vmul.f32 %v3208, %v4066
        %v4100 = vmul.f32 %v3209, %v4066
        %v4101 = vmul.f32 %v3210, %v4066
        %v4102 = vmul.f32 %v3211, %v4066
        %v4103 = vmul.f32 %v3212, %v4066
        %v4104 = vmul.f32 %v3213, %v4066
        %v4105 = vmul.f32 %v3214, %v4066
        %v4106 = vmul.f32 %v3215, %v4066
        %v4107 = vmul.f32 %v3216, %v4066
        %v4108 = vmul.f32 %v3217, %v4066
        %v4109 = vmul.f32 %v3218, %v4066
        %v4110 = vmul.f32 %v3219, %v4066
        %v4111 = vmul.f32 %v3220, %v4066
        %v4112 = vmul.f32 %v3221, %v4066
        %v4113 = vmul.f32 %v3222, %v4066
        %v4114 = vmul.f32 %v3223, %v4066
        %v4163 = vrot.slane %v4067, 2
        %v4164 = vrot.slane %v4068, 2
        %v4165 = vsel %vm946, %v4163, %v4164
        %v4166 = vrot.slane %v4069, 2
        %v4167 = vsel %vm946, %v4164, %v4166
        %v4168 = vrot.slane %v4070, 2
        %v4169 = vrot.slane %v4071, 2
        %v4170 = vsel %vm946, %v4168, %v4169
        %v4171 = vrot.slane %v4072, 2
        %v4172 = vsel %vm946, %v4169, %v4171
        %v4173 = vrot.slane %v4073, 2
        %v4174 = vrot.slane %v4074, 2
        %v4175 = vsel %vm946, %v4173, %v4174
        %v4176 = vrot.slane %v4075, 2
        %v4177 = vsel %vm946, %v4174, %v4176
        %v4178 = vrot.slane %v4076, 2
        %v4179 = vrot.slane %v4077, 2
        %v4180 = vsel %vm946, %v4178, %v4179
        %v4181 = vrot.slane %v4078, 2
        %v4182 = vsel %vm946, %v4179, %v4181
        %v4183 = vrot.slane %v4079, 2
        %v4184 = vrot.slane %v4080, 2
        %v4185 = vsel %vm946, %v4183, %v4184
        %v4186 = vrot.slane %v4081, 2
        %v4187 = vsel %vm946, %v4184, %v4186
        %v4188 = vrot.slane %v4082, 2
        %v4189 = vrot.slane %v4083, 2
        %v4190 = vsel %vm946, %v4188, %v4189
        %v4191 = vrot.slane %v4084, 2
        %v4192 = vsel %vm946, %v4189, %v4191
        %v4193 = vrot.slane %v4085, 2
        %v4194 = vrot.slane %v4086, 2
        %v4195 = vsel %vm946, %v4193, %v4194
        %v4196 = vrot.slane %v4087, 2
        %v4197 = vsel %vm946, %v4194, %v4196
        %v4198 = vrot.slane %v4088, 2
        %v4199 = vrot.slane %v4089, 2
        %v4200 = vsel %vm946, %v4198, %v4199
        %v4201 = vrot.slane %v4090, 2
        %v4202 = vsel %vm946, %v4199, %v4201
        %v4203 = vrot.slane %v4091, 2
        %v4204 = vrot.slane %v4092, 2
        %v4205 = vsel %vm946, %v4203, %v4204
        %v4206 = vrot.slane %v4093, 2
        %v4207 = vsel %vm946, %v4204, %v4206
        %v4208 = vrot.slane %v4094, 2
        %v4209 = vrot.slane %v4095, 2
        %v4210 = vsel %vm946, %v4208, %v4209
        %v4211 = vrot.slane %v4096, 2
        %v4212 = vsel %vm946, %v4209, %v4211
        %v4213 = vrot.slane %v4097, 2
        %v4214 = vrot.slane %v4098, 2
        %v4215 = vsel %vm946, %v4213, %v4214
        %v4216 = vrot.slane %v4099, 2
        %v4217 = vsel %vm946, %v4214, %v4216
        %v4218 = vrot.slane %v4100, 2
        %v4219 = vrot.slane %v4101, 2
        %v4220 = vsel %vm946, %v4218, %v4219
        %v4221 = vrot.slane %v4102, 2
        %v4222 = vsel %vm946, %v4219, %v4221
        %v4223 = vrot.slane %v4103, 2
        %v4224 = vrot.slane %v4104, 2
        %v4225 = vsel %vm946, %v4223, %v4224
        %v4226 = vrot.slane %v4105, 2
        %v4227 = vsel %vm946, %v4224, %v4226
        %v4228 = vrot.slane %v4106, 2
        %v4229 = vrot.slane %v4107, 2
        %v4230 = vsel %vm946, %v4228, %v4229
        %v4231 = vrot.slane %v4108, 2
        %v4232 = vsel %vm946, %v4229, %v4231
        %v4233 = vrot.slane %v4109, 2
        %v4234 = vrot.slane %v4110, 2
        %v4235 = vsel %vm946, %v4233, %v4234
        %v4236 = vrot.slane %v4111, 2
        %v4237 = vsel %vm946, %v4234, %v4236
        %v4238 = vrot.slane %v4112, 2
        %v4239 = vrot.slane %v4113, 2
        %v4240 = vsel %vm946, %v4238, %v4239
        %v4241 = vrot.slane %v4114, 2
        %v4242 = vsel %vm946, %v4239, %v4241
        %v4275 = vadd.f32 %v4031, %v4165
        %v4276 = vadd.f32 %v4032, %v4167
        %v4277 = vadd.f32 %v4033, %v4170
        %v4278 = vadd.f32 %v4034, %v4172
        %v4279 = vadd.f32 %v4035, %v4175
        %v4280 = vadd.f32 %v4036, %v4177
        %v4281 = vadd.f32 %v4037, %v4180
        %v4282 = vadd.f32 %v4038, %v4182
        %v4283 = vadd.f32 %v4039, %v4185
        %v4284 = vadd.f32 %v4040, %v4187
        %v4285 = vadd.f32 %v4041, %v4190
        %v4286 = vadd.f32 %v4042, %v4192
        %v4287 = vadd.f32 %v4043, %v4195
        %v4288 = vadd.f32 %v4044, %v4197
        %v4289 = vadd.f32 %v4045, %v4200
        %v4290 = vadd.f32 %v4046, %v4202
        %v4291 = vadd.f32 %v4047, %v4205
        %v4292 = vadd.f32 %v4048, %v4207
        %v4293 = vadd.f32 %v4049, %v4210
        %v4294 = vadd.f32 %v4050, %v4212
        %v4295 = vadd.f32 %v4051, %v4215
        %v4296 = vadd.f32 %v4052, %v4217
        %v4297 = vadd.f32 %v4053, %v4220
        %v4298 = vadd.f32 %v4054, %v4222
        %v4299 = vadd.f32 %v4055, %v4225
        %v4300 = vadd.f32 %v4056, %v4227
        %v4301 = vadd.f32 %v4057, %v4230
        %v4302 = vadd.f32 %v4058, %v4232
        %v4303 = vadd.f32 %v4059, %v4235
        %v4304 = vadd.f32 %v4060, %v4237
        %v4305 = vadd.f32 %v4061, %v4240
        %v4306 = vadd.f32 %v4062, %v4242
        %v4307 = vlaneseq
        %v4308 = vshrl.u32 %v4307, 7
        %v4309 = vsub.s32 0, %v4308
        %v4310 = vrot.slane %v3027, %v4309
        %v4311 = vmul.f32 %v3179, %v4310
        %v4312 = vmul.f32 %v3180, %v4310
        %v4313 = vmul.f32 %v3182, %v4310
        %v4314 = vmul.f32 %v3183, %v4310
        %v4315 = vmul.f32 %v3185, %v4310
        %v4316 = vmul.f32 %v3186, %v4310
        %v4317 = vmul.f32 %v3188, %v4310
        %v4318 = vmul.f32 %v3189, %v4310
        %v4319 = vmul.f32 %v3191, %v4310
        %v4320 = vmul.f32 %v3192, %v4310
        %v4321 = vmul.f32 %v3194, %v4310
        %v4322 = vmul.f32 %v3195, %v4310
        %v4323 = vmul.f32 %v3197, %v4310
        %v4324 = vmul.f32 %v3198, %v4310
        %v4325 = vmul.f32 %v3200, %v4310
        %v4326 = vmul.f32 %v3201, %v4310
        %v4327 = vmul.f32 %v3203, %v4310
        %v4328 = vmul.f32 %v3204, %v4310
        %v4329 = vmul.f32 %v3206, %v4310
        %v4330 = vmul.f32 %v3207, %v4310
        %v4331 = vmul.f32 %v3209, %v4310
        %v4332 = vmul.f32 %v3210, %v4310
        %v4333 = vmul.f32 %v3212, %v4310
        %v4334 = vmul.f32 %v3213, %v4310
        %v4335 = vmul.f32 %v3215, %v4310
        %v4336 = vmul.f32 %v3216, %v4310
        %v4337 = vmul.f32 %v3218, %v4310
        %v4338 = vmul.f32 %v3219, %v4310
        %v4339 = vmul.f32 %v3221, %v4310
        %v4340 = vmul.f32 %v3222, %v4310
        %v4341 = vmul.f32 %v3224, %v4310
        %v4342 = vmul.f32 %v3225, %v4310
        %v4343 = vadd.f32 %v4275, %v4311
        %v4344 = vadd.f32 %v4276, %v4312
        %v4345 = vadd.f32 %v4277, %v4313
        %v4346 = vadd.f32 %v4278, %v4314
        %v4347 = vadd.f32 %v4279, %v4315
        %v4348 = vadd.f32 %v4280, %v4316
        %v4349 = vadd.f32 %v4281, %v4317
        %v4350 = vadd.f32 %v4282, %v4318
        %v4351 = vadd.f32 %v4283, %v4319
        %v4352 = vadd.f32 %v4284, %v4320
        %v4353 = vadd.f32 %v4285, %v4321
        %v4354 = vadd.f32 %v4286, %v4322
        %v4355 = vadd.f32 %v4287, %v4323
        %v4356 = vadd.f32 %v4288, %v4324
        %v4357 = vadd.f32 %v4289, %v4325
        %v4358 = vadd.f32 %v4290, %v4326
        %v4359 = vadd.f32 %v4291, %v4327
        %v4360 = vadd.f32 %v4292, %v4328
        %v4361 = vadd.f32 %v4293, %v4329
        %v4362 = vadd.f32 %v4294, %v4330
        %v4363 = vadd.f32 %v4295, %v4331
        %v4364 = vadd.f32 %v4296, %v4332
        %v4365 = vadd.f32 %v4297, %v4333
        %v4366 = vadd.f32 %v4298, %v4334
        %v4367 = vadd.f32 %v4299, %v4335
        %v4368 = vadd.f32 %v4300, %v4336
        %v4369 = vadd.f32 %v4301, %v4337
        %v4370 = vadd.f32 %v4302, %v4338
        %v4371 = vadd.f32 %v4303, %v4339
        %v4372 = vadd.f32 %v4304, %v4340
        %v4373 = vadd.f32 %v4305, %v4341
        %v4374 = vadd.f32 %v4306, %v4342
        %v4375 = vlaneseq
        %v4376 = vshrl.u32 %v4375, 7
        %v4377 = vsub.s32 1, %v4376
        %v4378 = vrot.slane %v3027, %v4377
        %v4379 = vmul.f32 %v3179, %v4378
        %v4380 = vmul.f32 %v3180, %v4378
        %v4381 = vmul.f32 %v3181, %v4378
        %v4382 = vmul.f32 %v3182, %v4378
        %v4383 = vmul.f32 %v3183, %v4378
        %v4384 = vmul.f32 %v3184, %v4378
        %v4385 = vmul.f32 %v3185, %v4378
        %v4386 = vmul.f32 %v3186, %v4378
        %v4387 = vmul.f32 %v3187, %v4378
        %v4388 = vmul.f32 %v3188, %v4378
        %v4389 = vmul.f32 %v3189, %v4378
        %v4390 = vmul.f32 %v3190, %v4378
        %v4391 = vmul.f32 %v3191, %v4378
        %v4392 = vmul.f32 %v3192, %v4378
        %v4393 = vmul.f32 %v3193, %v4378
        %v4394 = vmul.f32 %v3194, %v4378
        %v4395 = vmul.f32 %v3195, %v4378
        %v4396 = vmul.f32 %v3196, %v4378
        %v4397 = vmul.f32 %v3197, %v4378
        %v4398 = vmul.f32 %v3198, %v4378
        %v4399 = vmul.f32 %v3199, %v4378
        %v4400 = vmul.f32 %v3200, %v4378
        %v4401 = vmul.f32 %v3201, %v4378
        %v4402 = vmul.f32 %v3202, %v4378
        %v4403 = vmul.f32 %v3203, %v4378
        %v4404 = vmul.f32 %v3204, %v4378
        %v4405 = vmul.f32 %v3205, %v4378
        %v4406 = vmul.f32 %v3206, %v4378
        %v4407 = vmul.f32 %v3207, %v4378
        %v4408 = vmul.f32 %v3208, %v4378
        %v4409 = vmul.f32 %v3209, %v4378
        %v4410 = vmul.f32 %v3210, %v4378
        %v4411 = vmul.f32 %v3211, %v4378
        %v4412 = vmul.f32 %v3212, %v4378
        %v4413 = vmul.f32 %v3213, %v4378
        %v4414 = vmul.f32 %v3214, %v4378
        %v4415 = vmul.f32 %v3215, %v4378
        %v4416 = vmul.f32 %v3216, %v4378
        %v4417 = vmul.f32 %v3217, %v4378
        %v4418 = vmul.f32 %v3218, %v4378
        %v4419 = vmul.f32 %v3219, %v4378
        %v4420 = vmul.f32 %v3220, %v4378
        %v4421 = vmul.f32 %v3221, %v4378
        %v4422 = vmul.f32 %v3222, %v4378
        %v4423 = vmul.f32 %v3223, %v4378
        %v4424 = vmul.f32 %v3224, %v4378
        %v4425 = vmul.f32 %v3225, %v4378
        %v4426 = vmul.f32 %v3226, %v4378
        %v4475 = vrot.slane %v4379, 1
        %v4476 = vrot.slane %v4380, 1
        %v4477 = vsel %vm701, %v4475, %v4476
        %v4478 = vrot.slane %v4381, 1
        %v4479 = vsel %vm701, %v4476, %v4478
        %v4480 = vrot.slane %v4382, 1
        %v4481 = vrot.slane %v4383, 1
        %v4482 = vsel %vm701, %v4480, %v4481
        %v4483 = vrot.slane %v4384, 1
        %v4484 = vsel %vm701, %v4481, %v4483
        %v4485 = vrot.slane %v4385, 1
        %v4486 = vrot.slane %v4386, 1
        %v4487 = vsel %vm701, %v4485, %v4486
        %v4488 = vrot.slane %v4387, 1
        %v4489 = vsel %vm701, %v4486, %v4488
        %v4490 = vrot.slane %v4388, 1
        %v4491 = vrot.slane %v4389, 1
        %v4492 = vsel %vm701, %v4490, %v4491
        %v4493 = vrot.slane %v4390, 1
        %v4494 = vsel %vm701, %v4491, %v4493
        %v4495 = vrot.slane %v4391, 1
        %v4496 = vrot.slane %v4392, 1
        %v4497 = vsel %vm701, %v4495, %v4496
        %v4498 = vrot.slane %v4393, 1
        %v4499 = vsel %vm701, %v4496, %v4498
        %v4500 = vrot.slane %v4394, 1
        %v4501 = vrot.slane %v4395, 1
        %v4502 = vsel %vm701, %v4500, %v4501
        %v4503 = vrot.slane %v4396, 1
        %v4504 = vsel %vm701, %v4501, %v4503
        %v4505 = vrot.slane %v4397, 1
        %v4506 = vrot.slane %v4398, 1
        %v4507 = vsel %vm701, %v4505, %v4506
        %v4508 = vrot.slane %v4399, 1
        %v4509 = vsel %vm701, %v4506, %v4508
        %v4510 = vrot.slane %v4400, 1
        %v4511 = vrot.slane %v4401, 1
        %v4512 = vsel %vm701, %v4510, %v4511
        %v4513 = vrot.slane %v4402, 1
        %v4514 = vsel %vm701, %v4511, %v4513
        %v4515 = vrot.slane %v4403, 1
        %v4516 = vrot.slane %v4404, 1
        %v4517 = vsel %vm701, %v4515, %v4516
        %v4518 = vrot.slane %v4405, 1
        %v4519 = vsel %vm701, %v4516, %v4518
        %v4520 = vrot.slane %v4406, 1
        %v4521 = vrot.slane %v4407, 1
        %v4522 = vsel %vm701, %v4520, %v4521
        %v4523 = vrot.slane %v4408, 1
        %v4524 = vsel %vm701, %v4521, %v4523
        %v4525 = vrot.slane %v4409, 1
        %v4526 = vrot.slane %v4410, 1
        %v4527 = vsel %vm701, %v4525, %v4526
        %v4528 = vrot.slane %v4411, 1
        %v4529 = vsel %vm701, %v4526, %v4528
        %v4530 = vrot.slane %v4412, 1
        %v4531 = vrot.slane %v4413, 1
        %v4532 = vsel %vm701, %v4530, %v4531
        %v4533 = vrot.slane %v4414, 1
        %v4534 = vsel %vm701, %v4531, %v4533
        %v4535 = vrot.slane %v4415, 1
        %v4536 = vrot.slane %v4416, 1
        %v4537 = vsel %vm701, %v4535, %v4536
        %v4538 = vrot.slane %v4417, 1
        %v4539 = vsel %vm701, %v4536, %v4538
        %v4540 = vrot.slane %v4418, 1
        %v4541 = vrot.slane %v4419, 1
        %v4542 = vsel %vm701, %v4540, %v4541
        %v4543 = vrot.slane %v4420, 1
        %v4544 = vsel %vm701, %v4541, %v4543
        %v4545 = vrot.slane %v4421, 1
        %v4546 = vrot.slane %v4422, 1
        %v4547 = vsel %vm701, %v4545, %v4546
        %v4548 = vrot.slane %v4423, 1
        %v4549 = vsel %vm701, %v4546, %v4548
        %v4550 = vrot.slane %v4424, 1
        %v4551 = vrot.slane %v4425, 1
        %v4552 = vsel %vm701, %v4550, %v4551
        %v4553 = vrot.slane %v4426, 1
        %v4554 = vsel %vm701, %v4551, %v4553
        %v4587 = vadd.f32 %v4343, %v4477
        %v4588 = vadd.f32 %v4344, %v4479
        %v4589 = vadd.f32 %v4345, %v4482
        %v4590 = vadd.f32 %v4346, %v4484
        %v4591 = vadd.f32 %v4347, %v4487
        %v4592 = vadd.f32 %v4348, %v4489
        %v4593 = vadd.f32 %v4349, %v4492
        %v4594 = vadd.f32 %v4350, %v4494
        %v4595 = vadd.f32 %v4351, %v4497
        %v4596 = vadd.f32 %v4352, %v4499
        %v4597 = vadd.f32 %v4353, %v4502
        %v4598 = vadd.f32 %v4354, %v4504
        %v4599 = vadd.f32 %v4355, %v4507
        %v4600 = vadd.f32 %v4356, %v4509
        %v4601 = vadd.f32 %v4357, %v4512
        %v4602 = vadd.f32 %v4358, %v4514
        %v4603 = vadd.f32 %v4359, %v4517
        %v4604 = vadd.f32 %v4360, %v4519
        %v4605 = vadd.f32 %v4361, %v4522
        %v4606 = vadd.f32 %v4362, %v4524
        %v4607 = vadd.f32 %v4363, %v4527
        %v4608 = vadd.f32 %v4364, %v4529
        %v4609 = vadd.f32 %v4365, %v4532
        %v4610 = vadd.f32 %v4366, %v4534
        %v4611 = vadd.f32 %v4367, %v4537
        %v4612 = vadd.f32 %v4368, %v4539
        %v4613 = vadd.f32 %v4369, %v4542
        %v4614 = vadd.f32 %v4370, %v4544
        %v4615 = vadd.f32 %v4371, %v4547
        %v4616 = vadd.f32 %v4372, %v4549
        %v4617 = vadd.f32 %v4373, %v4552
        %v4618 = vadd.f32 %v4374, %v4554
        %v4619 = vlaneseq
        %v4620 = vshrl.u32 %v4619, 7
        %v4621 = vsub.s32 2, %v4620
        %v4622 = vrot.slane %v3027, %v4621
        %v4623 = vmul.f32 %v3179, %v4622
        %v4624 = vmul.f32 %v3180, %v4622
        %v4625 = vmul.f32 %v3181, %v4622
        %v4626 = vmul.f32 %v3182, %v4622
        %v4627 = vmul.f32 %v3183, %v4622
        %v4628 = vmul.f32 %v3184, %v4622
        %v4629 = vmul.f32 %v3185, %v4622
        %v4630 = vmul.f32 %v3186, %v4622
        %v4631 = vmul.f32 %v3187, %v4622
        %v4632 = vmul.f32 %v3188, %v4622
        %v4633 = vmul.f32 %v3189, %v4622
        %v4634 = vmul.f32 %v3190, %v4622
        %v4635 = vmul.f32 %v3191, %v4622
        %v4636 = vmul.f32 %v3192, %v4622
        %v4637 = vmul.f32 %v3193, %v4622
        %v4638 = vmul.f32 %v3194, %v4622
        %v4639 = vmul.f32 %v3195, %v4622
        %v4640 = vmul.f32 %v3196, %v4622
        %v4641 = vmul.f32 %v3197, %v4622
        %v4642 = vmul.f32 %v3198, %v4622
        %v4643 = vmul.f32 %v3199, %v4622
        %v4644 = vmul.f32 %v3200, %v4622
        %v4645 = vmul.f32 %v3201, %v4622
        %v4646 = vmul.f32 %v3202, %v4622
        %v4647 = vmul.f32 %v3203, %v4622
        %v4648 = vmul.f32 %v3204, %v4622
        %v4649 = vmul.f32 %v3205, %v4622
        %v4650 = vmul.f32 %v3206, %v4622
        %v4651 = vmul.f32 %v3207, %v4622
        %v4652 = vmul.f32 %v3208, %v4622
        %v4653 = vmul.f32 %v3209, %v4622
        %v4654 = vmul.f32 %v3210, %v4622
        %v4655 = vmul.f32 %v3211, %v4622
        %v4656 = vmul.f32 %v3212, %v4622
        %v4657 = vmul.f32 %v3213, %v4622
        %v4658 = vmul.f32 %v3214, %v4622
        %v4659 = vmul.f32 %v3215, %v4622
        %v4660 = vmul.f32 %v3216, %v4622
        %v4661 = vmul.f32 %v3217, %v4622
        %v4662 = vmul.f32 %v3218, %v4622
        %v4663 = vmul.f32 %v3219, %v4622
        %v4664 = vmul.f32 %v3220, %v4622
        %v4665 = vmul.f32 %v3221, %v4622
        %v4666 = vmul.f32 %v3222, %v4622
        %v4667 = vmul.f32 %v3223, %v4622
        %v4668 = vmul.f32 %v3224, %v4622
        %v4669 = vmul.f32 %v3225, %v4622
        %v4670 = vmul.f32 %v3226, %v4622
        %v4719 = vrot.slane %v4623, 2
        %v4720 = vrot.slane %v4624, 2
        %v4721 = vsel %vm946, %v4719, %v4720
        %v4722 = vrot.slane %v4625, 2
        %v4723 = vsel %vm946, %v4720, %v4722
        %v4724 = vrot.slane %v4626, 2
        %v4725 = vrot.slane %v4627, 2
        %v4726 = vsel %vm946, %v4724, %v4725
        %v4727 = vrot.slane %v4628, 2
        %v4728 = vsel %vm946, %v4725, %v4727
        %v4729 = vrot.slane %v4629, 2
        %v4730 = vrot.slane %v4630, 2
        %v4731 = vsel %vm946, %v4729, %v4730
        %v4732 = vrot.slane %v4631, 2
        %v4733 = vsel %vm946, %v4730, %v4732
        %v4734 = vrot.slane %v4632, 2
        %v4735 = vrot.slane %v4633, 2
        %v4736 = vsel %vm946, %v4734, %v4735
        %v4737 = vrot.slane %v4634, 2
        %v4738 = vsel %vm946, %v4735, %v4737
        %v4739 = vrot.slane %v4635, 2
        %v4740 = vrot.slane %v4636, 2
        %v4741 = vsel %vm946, %v4739, %v4740
        %v4742 = vrot.slane %v4637, 2
        %v4743 = vsel %vm946, %v4740, %v4742
        %v4744 = vrot.slane %v4638, 2
        %v4745 = vrot.slane %v4639, 2
        %v4746 = vsel %vm946, %v4744, %v4745
        %v4747 = vrot.slane %v4640, 2
        %v4748 = vsel %vm946, %v4745, %v4747
        %v4749 = vrot.slane %v4641, 2
        %v4750 = vrot.slane %v4642, 2
        %v4751 = vsel %vm946, %v4749, %v4750
        %v4752 = vrot.slane %v4643, 2
        %v4753 = vsel %vm946, %v4750, %v4752
        %v4754 = vrot.slane %v4644, 2
        %v4755 = vrot.slane %v4645, 2
        %v4756 = vsel %vm946, %v4754, %v4755
        %v4757 = vrot.slane %v4646, 2
        %v4758 = vsel %vm946, %v4755, %v4757
        %v4759 = vrot.slane %v4647, 2
        %v4760 = vrot.slane %v4648, 2
        %v4761 = vsel %vm946, %v4759, %v4760
        %v4762 = vrot.slane %v4649, 2
        %v4763 = vsel %vm946, %v4760, %v4762
        %v4764 = vrot.slane %v4650, 2
        %v4765 = vrot.slane %v4651, 2
        %v4766 = vsel %vm946, %v4764, %v4765
        %v4767 = vrot.slane %v4652, 2
        %v4768 = vsel %vm946, %v4765, %v4767
        %v4769 = vrot.slane %v4653, 2
        %v4770 = vrot.slane %v4654, 2
        %v4771 = vsel %vm946, %v4769, %v4770
        %v4772 = vrot.slane %v4655, 2
        %v4773 = vsel %vm946, %v4770, %v4772
        %v4774 = vrot.slane %v4656, 2
        %v4775 = vrot.slane %v4657, 2
        %v4776 = vsel %vm946, %v4774, %v4775
        %v4777 = vrot.slane %v4658, 2
        %v4778 = vsel %vm946, %v4775, %v4777
        %v4779 = vrot.slane %v4659, 2
        %v4780 = vrot.slane %v4660, 2
        %v4781 = vsel %vm946, %v4779, %v4780
        %v4782 = vrot.slane %v4661, 2
        %v4783 = vsel %vm946, %v4780, %v4782
        %v4784 = vrot.slane %v4662, 2
        %v4785 = vrot.slane %v4663, 2
        %v4786 = vsel %vm946, %v4784, %v4785
        %v4787 = vrot.slane %v4664, 2
        %v4788 = vsel %vm946, %v4785, %v4787
        %v4789 = vrot.slane %v4665, 2
        %v4790 = vrot.slane %v4666, 2
        %v4791 = vsel %vm946, %v4789, %v4790
        %v4792 = vrot.slane %v4667, 2
        %v4793 = vsel %vm946, %v4790, %v4792
        %v4794 = vrot.slane %v4668, 2
        %v4795 = vrot.slane %v4669, 2
        %v4796 = vsel %vm946, %v4794, %v4795
        %v4797 = vrot.slane %v4670, 2
        %v4798 = vsel %vm946, %v4795, %v4797
        %v4831 = vadd.f32 %v4587, %v4721
        %v4832 = vadd.f32 %v4588, %v4723
        %v4833 = vadd.f32 %v4589, %v4726
        %v4834 = vadd.f32 %v4590, %v4728
        %v4835 = vadd.f32 %v4591, %v4731
        %v4836 = vadd.f32 %v4592, %v4733
        %v4837 = vadd.f32 %v4593, %v4736
        %v4838 = vadd.f32 %v4594, %v4738
        %v4839 = vadd.f32 %v4595, %v4741
        %v4840 = vadd.f32 %v4596, %v4743
        %v4841 = vadd.f32 %v4597, %v4746
        %v4842 = vadd.f32 %v4598, %v4748
        %v4843 = vadd.f32 %v4599, %v4751
        %v4844 = vadd.f32 %v4600, %v4753
        %v4845 = vadd.f32 %v4601, %v4756
        %v4846 = vadd.f32 %v4602, %v4758
        %v4847 = vadd.f32 %v4603, %v4761
        %v4848 = vadd.f32 %v4604, %v4763
        %v4849 = vadd.f32 %v4605, %v4766
        %v4850 = vadd.f32 %v4606, %v4768
        %v4851 = vadd.f32 %v4607, %v4771
        %v4852 = vadd.f32 %v4608, %v4773
        %v4853 = vadd.f32 %v4609, %v4776
        %v4854 = vadd.f32 %v4610, %v4778
        %v4855 = vadd.f32 %v4611, %v4781
        %v4856 = vadd.f32 %v4612, %v4783
        %v4857 = vadd.f32 %v4613, %v4786
        %v4858 = vadd.f32 %v4614, %v4788
        %v4859 = vadd.f32 %v4615, %v4791
        %v4860 = vadd.f32 %v4616, %v4793
        %v4861 = vadd.f32 %v4617, %v4796
        %v4862 = vadd.f32 %v4618, %v4798
        %4864 = vset.pattern.permute.xlu0 0
        %4865 = vperm.xlu0 %4864, %v4831
        %v4866 = vpop.permute.xlu0 %4865
        %4869 = vset.pattern.permute.xlu0 0
        %4870 = vperm.xlu0 %4869, %v4832
        %v4871 = vpop.permute.xlu0 %4870
        %4874 = vset.pattern.permute.xlu0 0
        %4875 = vperm.xlu0 %4874, %v4833
        %v4876 = vpop.permute.xlu0 %4875
        %4879 = vset.pattern.permute.xlu0 0
        %4880 = vperm.xlu0 %4879, %v4834
        %v4881 = vpop.permute.xlu0 %4880
        %4884 = vset.pattern.permute.xlu0 0
        %4885 = vperm.xlu0 %4884, %v4835
        %v4886 = vpop.permute.xlu0 %4885
        %4889 = vset.pattern.permute.xlu0 0
        %4890 = vperm.xlu0 %4889, %v4836
        %v4891 = vpop.permute.xlu0 %4890
        %4894 = vset.pattern.permute.xlu0 0
        %4895 = vperm.xlu0 %4894, %v4837
        %v4896 = vpop.permute.xlu0 %4895
        %4899 = vset.pattern.permute.xlu0 0
        %4900 = vperm.xlu0 %4899, %v4838
        %v4901 = vpop.permute.xlu0 %4900
        %4904 = vset.pattern.permute.xlu0 0
        %4905 = vperm.xlu0 %4904, %v4839
        %v4906 = vpop.permute.xlu0 %4905
        %4909 = vset.pattern.permute.xlu0 0
        %4910 = vperm.xlu0 %4909, %v4840
        %v4911 = vpop.permute.xlu0 %4910
        %4914 = vset.pattern.permute.xlu0 0
        %4915 = vperm.xlu0 %4914, %v4841
        %v4916 = vpop.permute.xlu0 %4915
        %4919 = vset.pattern.permute.xlu0 0
        %4920 = vperm.xlu0 %4919, %v4842
        %v4921 = vpop.permute.xlu0 %4920
        %4924 = vset.pattern.permute.xlu0 0
        %4925 = vperm.xlu0 %4924, %v4843
        %v4926 = vpop.permute.xlu0 %4925
        %4929 = vset.pattern.permute.xlu0 0
        %4930 = vperm.xlu0 %4929, %v4844
        %v4931 = vpop.permute.xlu0 %4930
        %4934 = vset.pattern.permute.xlu0 0
        %4935 = vperm.xlu0 %4934, %v4845
        %v4936 = vpop.permute.xlu0 %4935
        %4939 = vset.pattern.permute.xlu0 0
        %4940 = vperm.xlu0 %4939, %v4846
        %v4941 = vpop.permute.xlu0 %4940
        %4944 = vset.pattern.permute.xlu0 0
        %4945 = vperm.xlu0 %4944, %v4847
        %v4946 = vpop.permute.xlu0 %4945
        %4949 = vset.pattern.permute.xlu0 0
        %4950 = vperm.xlu0 %4949, %v4848
        %v4951 = vpop.permute.xlu0 %4950
        %4954 = vset.pattern.permute.xlu0 0
        %4955 = vperm.xlu0 %4954, %v4849
        %v4956 = vpop.permute.xlu0 %4955
        %4959 = vset.pattern.permute.xlu0 0
        %4960 = vperm.xlu0 %4959, %v4850
        %v4961 = vpop.permute.xlu0 %4960
        %4964 = vset.pattern.permute.xlu0 0
        %4965 = vperm.xlu0 %4964, %v4851
        %v4966 = vpop.permute.xlu0 %4965
        %4969 = vset.pattern.permute.xlu0 0
        %4970 = vperm.xlu0 %4969, %v4852
        %v4971 = vpop.permute.xlu0 %4970
        %4974 = vset.pattern.permute.xlu0 0
        %4975 = vperm.xlu0 %4974, %v4853
        %v4976 = vpop.permute.xlu0 %4975
        %4979 = vset.pattern.permute.xlu0 0
        %4980 = vperm.xlu0 %4979, %v4854
        %v4981 = vpop.permute.xlu0 %4980
        %4984 = vset.pattern.permute.xlu0 0
        %4985 = vperm.xlu0 %4984, %v4855
        %v4986 = vpop.permute.xlu0 %4985
        %4989 = vset.pattern.permute.xlu0 0
        %4990 = vperm.xlu0 %4989, %v4856
        %v4991 = vpop.permute.xlu0 %4990
        %4994 = vset.pattern.permute.xlu0 0
        %4995 = vperm.xlu0 %4994, %v4857
        %v4996 = vpop.permute.xlu0 %4995
        %4999 = vset.pattern.permute.xlu0 0
        %5000 = vperm.xlu0 %4999, %v4858
        %v5001 = vpop.permute.xlu0 %5000
        %5004 = vset.pattern.permute.xlu0 0
        %5005 = vperm.xlu0 %5004, %v4859
        %v5006 = vpop.permute.xlu0 %5005
        %5009 = vset.pattern.permute.xlu0 0
        %5010 = vperm.xlu0 %5009, %v4860
        %v5011 = vpop.permute.xlu0 %5010
        %5014 = vset.pattern.permute.xlu0 0
        %5015 = vperm.xlu0 %5014, %v4861
        %v5016 = vpop.permute.xlu0 %5015
        %5019 = vset.pattern.permute.xlu0 0
        %5020 = vperm.xlu0 %5019, %v4862
        %v5021 = vpop.permute.xlu0 %5020
        %v5023 = vlaneseq
        %v5024 = vshrl.u32 %v5023, 7
        %v5025 = vsub.s32 0, %v5024
        %v5026 = vrot.slane %v3028, %v5025
        %v5027 = vmul.f32 %v4866, %v5026
        %v5028 = vmul.f32 %v4871, %v5026
        %v5029 = vmul.f32 %v4876, %v5026
        %v5030 = vmul.f32 %v4881, %v5026
        %v5031 = vmul.f32 %v4886, %v5026
        %v5032 = vmul.f32 %v4891, %v5026
        %v5033 = vmul.f32 %v4896, %v5026
        %v5034 = vmul.f32 %v4901, %v5026
        %v5035 = vmul.f32 %v4906, %v5026
        %v5036 = vmul.f32 %v4911, %v5026
        %v5037 = vmul.f32 %v4916, %v5026
        %v5038 = vmul.f32 %v4921, %v5026
        %v5039 = vmul.f32 %v4926, %v5026
        %v5040 = vmul.f32 %v4931, %v5026
        %v5041 = vmul.f32 %v4936, %v5026
        %v5042 = vmul.f32 %v4941, %v5026
        %v5043 = vmul.f32 %v4946, %v5026
        %v5044 = vmul.f32 %v4951, %v5026
        %v5045 = vmul.f32 %v4956, %v5026
        %v5046 = vmul.f32 %v4961, %v5026
        %v5047 = vmul.f32 %v4966, %v5026
        %v5048 = vmul.f32 %v4971, %v5026
        %v5049 = vmul.f32 %v4976, %v5026
        %v5050 = vmul.f32 %v4981, %v5026
        %v5051 = vmul.f32 %v4986, %v5026
        %v5052 = vmul.f32 %v4991, %v5026
        %v5053 = vmul.f32 %v4996, %v5026
        %v5054 = vmul.f32 %v5001, %v5026
        %v5055 = vmul.f32 %v5006, %v5026
        %v5056 = vmul.f32 %v5011, %v5026
        %v5057 = vmul.f32 %v5016, %v5026
        %v5058 = vmul.f32 %v5021, %v5026
        %5059 = vset.pattern.permute.xlu0 1
        %5060 = vperm.xlu0 %5059, %v4831
        %v5061 = vpop.permute.xlu0 %5060
        %5063 = vset.pattern.permute.xlu0 1
        %5064 = vperm.xlu0 %5063, %v4832
        %v5065 = vpop.permute.xlu0 %5064
        %5067 = vset.pattern.permute.xlu0 1
        %5068 = vperm.xlu0 %5067, %v4833
        %v5069 = vpop.permute.xlu0 %5068
        %5071 = vset.pattern.permute.xlu0 1
        %5072 = vperm.xlu0 %5071, %v4834
        %v5073 = vpop.permute.xlu0 %5072
        %5075 = vset.pattern.permute.xlu0 1
        %5076 = vperm.xlu0 %5075, %v4835
        %v5077 = vpop.permute.xlu0 %5076
        %5079 = vset.pattern.permute.xlu0 1
        %5080 = vperm.xlu0 %5079, %v4836
        %v5081 = vpop.permute.xlu0 %5080
        %5083 = vset.pattern.permute.xlu0 1
        %5084 = vperm.xlu0 %5083, %v4837
        %v5085 = vpop.permute.xlu0 %5084
        %5087 = vset.pattern.permute.xlu0 1
        %5088 = vperm.xlu0 %5087, %v4838
        %v5089 = vpop.permute.xlu0 %5088
        %5091 = vset.pattern.permute.xlu0 1
        %5092 = vperm.xlu0 %5091, %v4839
        %v5093 = vpop.permute.xlu0 %5092
        %5095 = vset.pattern.permute.xlu0 1
        %5096 = vperm.xlu0 %5095, %v4840
        %v5097 = vpop.permute.xlu0 %5096
        %5099 = vset.pattern.permute.xlu0 1
        %5100 = vperm.xlu0 %5099, %v4841
        %v5101 = vpop.permute.xlu0 %5100
        %5103 = vset.pattern.permute.xlu0 1
        %5104 = vperm.xlu0 %5103, %v4842
        %v5105 = vpop.permute.xlu0 %5104
        %5107 = vset.pattern.permute.xlu0 1
        %5108 = vperm.xlu0 %5107, %v4843
        %v5109 = vpop.permute.xlu0 %5108
        %5111 = vset.pattern.permute.xlu0 1
        %5112 = vperm.xlu0 %5111, %v4844
        %v5113 = vpop.permute.xlu0 %5112
        %5115 = vset.pattern.permute.xlu0 1
        %5116 = vperm.xlu0 %5115, %v4845
        %v5117 = vpop.permute.xlu0 %5116
        %5119 = vset.pattern.permute.xlu0 1
        %5120 = vperm.xlu0 %5119, %v4846
        %v5121 = vpop.permute.xlu0 %5120
        %5123 = vset.pattern.permute.xlu0 1
        %5124 = vperm.xlu0 %5123, %v4847
        %v5125 = vpop.permute.xlu0 %5124
        %5127 = vset.pattern.permute.xlu0 1
        %5128 = vperm.xlu0 %5127, %v4848
        %v5129 = vpop.permute.xlu0 %5128
        %5131 = vset.pattern.permute.xlu0 1
        %5132 = vperm.xlu0 %5131, %v4849
        %v5133 = vpop.permute.xlu0 %5132
        %5135 = vset.pattern.permute.xlu0 1
        %5136 = vperm.xlu0 %5135, %v4850
        %v5137 = vpop.permute.xlu0 %5136
        %5139 = vset.pattern.permute.xlu0 1
        %5140 = vperm.xlu0 %5139, %v4851
        %v5141 = vpop.permute.xlu0 %5140
        %5143 = vset.pattern.permute.xlu0 1
        %5144 = vperm.xlu0 %5143, %v4852
        %v5145 = vpop.permute.xlu0 %5144
        %5147 = vset.pattern.permute.xlu0 1
        %5148 = vperm.xlu0 %5147, %v4853
        %v5149 = vpop.permute.xlu0 %5148
        %5151 = vset.pattern.permute.xlu0 1
        %5152 = vperm.xlu0 %5151, %v4854
        %v5153 = vpop.permute.xlu0 %5152
        %5155 = vset.pattern.permute.xlu0 1
        %5156 = vperm.xlu0 %5155, %v4855
        %v5157 = vpop.permute.xlu0 %5156
        %5159 = vset.pattern.permute.xlu0 1
        %5160 = vperm.xlu0 %5159, %v4856
        %v5161 = vpop.permute.xlu0 %5160
        %5163 = vset.pattern.permute.xlu0 1
        %5164 = vperm.xlu0 %5163, %v4857
        %v5165 = vpop.permute.xlu0 %5164
        %5167 = vset.pattern.permute.xlu0 1
        %5168 = vperm.xlu0 %5167, %v4858
        %v5169 = vpop.permute.xlu0 %5168
        %5171 = vset.pattern.permute.xlu0 1
        %5172 = vperm.xlu0 %5171, %v4859
        %v5173 = vpop.permute.xlu0 %5172
        %5175 = vset.pattern.permute.xlu0 1
        %5176 = vperm.xlu0 %5175, %v4860
        %v5177 = vpop.permute.xlu0 %5176
        %5179 = vset.pattern.permute.xlu0 1
        %5180 = vperm.xlu0 %5179, %v4861
        %v5181 = vpop.permute.xlu0 %5180
        %5183 = vset.pattern.permute.xlu0 1
        %5184 = vperm.xlu0 %5183, %v4862
        %v5185 = vpop.permute.xlu0 %5184
        %v5187 = vlaneseq
        %v5188 = vshrl.u32 %v5187, 7
        %v5189 = vsub.s32 1, %v5188
        %v5190 = vrot.slane %v3028, %v5189
        %v5191 = vmul.f32 %v5061, %v5190
        %v5192 = vmul.f32 %v5065, %v5190
        %v5193 = vmul.f32 %v5069, %v5190
        %v5194 = vmul.f32 %v5073, %v5190
        %v5195 = vmul.f32 %v5077, %v5190
        %v5196 = vmul.f32 %v5081, %v5190
        %v5197 = vmul.f32 %v5085, %v5190
        %v5198 = vmul.f32 %v5089, %v5190
        %v5199 = vmul.f32 %v5093, %v5190
        %v5200 = vmul.f32 %v5097, %v5190
        %v5201 = vmul.f32 %v5101, %v5190
        %v5202 = vmul.f32 %v5105, %v5190
        %v5203 = vmul.f32 %v5109, %v5190
        %v5204 = vmul.f32 %v5113, %v5190
        %v5205 = vmul.f32 %v5117, %v5190
        %v5206 = vmul.f32 %v5121, %v5190
        %v5207 = vmul.f32 %v5125, %v5190
        %v5208 = vmul.f32 %v5129, %v5190
        %v5209 = vmul.f32 %v5133, %v5190
        %v5210 = vmul.f32 %v5137, %v5190
        %v5211 = vmul.f32 %v5141, %v5190
        %v5212 = vmul.f32 %v5145, %v5190
        %v5213 = vmul.f32 %v5149, %v5190
        %v5214 = vmul.f32 %v5153, %v5190
        %v5215 = vmul.f32 %v5157, %v5190
        %v5216 = vmul.f32 %v5161, %v5190
        %v5217 = vmul.f32 %v5165, %v5190
        %v5218 = vmul.f32 %v5169, %v5190
        %v5219 = vmul.f32 %v5173, %v5190
        %v5220 = vmul.f32 %v5177, %v5190
        %v5221 = vmul.f32 %v5181, %v5190
        %v5222 = vmul.f32 %v5185, %v5190
        %v5223 = vadd.f32 %v5027, %v5191
        %v5224 = vadd.f32 %v5028, %v5192
        %v5225 = vadd.f32 %v5029, %v5193
        %v5226 = vadd.f32 %v5030, %v5194
        %v5227 = vadd.f32 %v5031, %v5195
        %v5228 = vadd.f32 %v5032, %v5196
        %v5229 = vadd.f32 %v5033, %v5197
        %v5230 = vadd.f32 %v5034, %v5198
        %v5231 = vadd.f32 %v5035, %v5199
        %v5232 = vadd.f32 %v5036, %v5200
        %v5233 = vadd.f32 %v5037, %v5201
        %v5234 = vadd.f32 %v5038, %v5202
        %v5235 = vadd.f32 %v5039, %v5203
        %v5236 = vadd.f32 %v5040, %v5204
        %v5237 = vadd.f32 %v5041, %v5205
        %v5238 = vadd.f32 %v5042, %v5206
        %v5239 = vadd.f32 %v5043, %v5207
        %v5240 = vadd.f32 %v5044, %v5208
        %v5241 = vadd.f32 %v5045, %v5209
        %v5242 = vadd.f32 %v5046, %v5210
        %v5243 = vadd.f32 %v5047, %v5211
        %v5244 = vadd.f32 %v5048, %v5212
        %v5245 = vadd.f32 %v5049, %v5213
        %v5246 = vadd.f32 %v5050, %v5214
        %v5247 = vadd.f32 %v5051, %v5215
        %v5248 = vadd.f32 %v5052, %v5216
        %v5249 = vadd.f32 %v5053, %v5217
        %v5250 = vadd.f32 %v5054, %v5218
        %v5251 = vadd.f32 %v5055, %v5219
        %v5252 = vadd.f32 %v5056, %v5220
        %v5253 = vadd.f32 %v5057, %v5221
        %v5254 = vadd.f32 %v5058, %v5222
        %5255 = vset.pattern.permute.xlu0 2
        %5256 = vperm.xlu0 %5255, %v4831
        %v5257 = vpop.permute.xlu0 %5256
        %5259 = vset.pattern.permute.xlu0 2
        %5260 = vperm.xlu0 %5259, %v4832
        %v5261 = vpop.permute.xlu0 %5260
        %5263 = vset.pattern.permute.xlu0 2
        %5264 = vperm.xlu0 %5263, %v4833
        %v5265 = vpop.permute.xlu0 %5264
        %5267 = vset.pattern.permute.xlu0 2
        %5268 = vperm.xlu0 %5267, %v4834
        %v5269 = vpop.permute.xlu0 %5268
        %5271 = vset.pattern.permute.xlu0 2
        %5272 = vperm.xlu0 %5271, %v4835
        %v5273 = vpop.permute.xlu0 %5272
        %5275 = vset.pattern.permute.xlu0 2
        %5276 = vperm.xlu0 %5275, %v4836
        %v5277 = vpop.permute.xlu0 %5276
        %5279 = vset.pattern.permute.xlu0 2
        %5280 = vperm.xlu0 %5279, %v4837
        %v5281 = vpop.permute.xlu0 %5280
        %5283 = vset.pattern.permute.xlu0 2
        %5284 = vperm.xlu0 %5283, %v4838
        %v5285 = vpop.permute.xlu0 %5284
        %5287 = vset.pattern.permute.xlu0 2
        %5288 = vperm.xlu0 %5287, %v4839
        %v5289 = vpop.permute.xlu0 %5288
        %5291 = vset.pattern.permute.xlu0 2
        %5292 = vperm.xlu0 %5291, %v4840
        %v5293 = vpop.permute.xlu0 %5292
        %5295 = vset.pattern.permute.xlu0 2
        %5296 = vperm.xlu0 %5295, %v4841
        %v5297 = vpop.permute.xlu0 %5296
        %5299 = vset.pattern.permute.xlu0 2
        %5300 = vperm.xlu0 %5299, %v4842
        %v5301 = vpop.permute.xlu0 %5300
        %5303 = vset.pattern.permute.xlu0 2
        %5304 = vperm.xlu0 %5303, %v4843
        %v5305 = vpop.permute.xlu0 %5304
        %5307 = vset.pattern.permute.xlu0 2
        %5308 = vperm.xlu0 %5307, %v4844
        %v5309 = vpop.permute.xlu0 %5308
        %5311 = vset.pattern.permute.xlu0 2
        %5312 = vperm.xlu0 %5311, %v4845
        %v5313 = vpop.permute.xlu0 %5312
        %5315 = vset.pattern.permute.xlu0 2
        %5316 = vperm.xlu0 %5315, %v4846
        %v5317 = vpop.permute.xlu0 %5316
        %5319 = vset.pattern.permute.xlu0 2
        %5320 = vperm.xlu0 %5319, %v4847
        %v5321 = vpop.permute.xlu0 %5320
        %5323 = vset.pattern.permute.xlu0 2
        %5324 = vperm.xlu0 %5323, %v4848
        %v5325 = vpop.permute.xlu0 %5324
        %5327 = vset.pattern.permute.xlu0 2
        %5328 = vperm.xlu0 %5327, %v4849
        %v5329 = vpop.permute.xlu0 %5328
        %5331 = vset.pattern.permute.xlu0 2
        %5332 = vperm.xlu0 %5331, %v4850
        %v5333 = vpop.permute.xlu0 %5332
        %5335 = vset.pattern.permute.xlu0 2
        %5336 = vperm.xlu0 %5335, %v4851
        %v5337 = vpop.permute.xlu0 %5336
        %5339 = vset.pattern.permute.xlu0 2
        %5340 = vperm.xlu0 %5339, %v4852
        %v5341 = vpop.permute.xlu0 %5340
        %5343 = vset.pattern.permute.xlu0 2
        %5344 = vperm.xlu0 %5343, %v4853
        %v5345 = vpop.permute.xlu0 %5344
        %5347 = vset.pattern.permute.xlu0 2
        %5348 = vperm.xlu0 %5347, %v4854
        %v5349 = vpop.permute.xlu0 %5348
        %5351 = vset.pattern.permute.xlu0 2
        %5352 = vperm.xlu0 %5351, %v4855
        %v5353 = vpop.permute.xlu0 %5352
        %5355 = vset.pattern.permute.xlu0 2
        %5356 = vperm.xlu0 %5355, %v4856
        %v5357 = vpop.permute.xlu0 %5356
        %5359 = vset.pattern.permute.xlu0 2
        %5360 = vperm.xlu0 %5359, %v4857
        %v5361 = vpop.permute.xlu0 %5360
        %5363 = vset.pattern.permute.xlu0 2
        %5364 = vperm.xlu0 %5363, %v4858
        %v5365 = vpop.permute.xlu0 %5364
        %5367 = vset.pattern.permute.xlu0 2
        %5368 = vperm.xlu0 %5367, %v4859
        %v5369 = vpop.permute.xlu0 %5368
        %5371 = vset.pattern.permute.xlu0 2
        %5372 = vperm.xlu0 %5371, %v4860
        %v5373 = vpop.permute.xlu0 %5372
        %5375 = vset.pattern.permute.xlu0 2
        %5376 = vperm.xlu0 %5375, %v4861
        %v5377 = vpop.permute.xlu0 %5376
        %5379 = vset.pattern.permute.xlu0 2
        %5380 = vperm.xlu0 %5379, %v4862
        %v5381 = vpop.permute.xlu0 %5380
        %v5383 = vlaneseq
        %v5384 = vshrl.u32 %v5383, 7
        %v5385 = vsub.s32 2, %v5384
        %v5386 = vrot.slane %v3028, %v5385
        %v5387 = vmul.f32 %v5257, %v5386
        %v5388 = vmul.f32 %v5261, %v5386
        %v5389 = vmul.f32 %v5265, %v5386
        %v5390 = vmul.f32 %v5269, %v5386
        %v5391 = vmul.f32 %v5273, %v5386
        %v5392 = vmul.f32 %v5277, %v5386
        %v5393 = vmul.f32 %v5281, %v5386
        %v5394 = vmul.f32 %v5285, %v5386
        %v5395 = vmul.f32 %v5289, %v5386
        %v5396 = vmul.f32 %v5293, %v5386
        %v5397 = vmul.f32 %v5297, %v5386
        %v5398 = vmul.f32 %v5301, %v5386
        %v5399 = vmul.f32 %v5305, %v5386
        %v5400 = vmul.f32 %v5309, %v5386
        %v5401 = vmul.f32 %v5313, %v5386
        %v5402 = vmul.f32 %v5317, %v5386
        %v5403 = vmul.f32 %v5321, %v5386
        %v5404 = vmul.f32 %v5325, %v5386
        %v5405 = vmul.f32 %v5329, %v5386
        %v5406 = vmul.f32 %v5333, %v5386
        %v5407 = vmul.f32 %v5337, %v5386
        %v5408 = vmul.f32 %v5341, %v5386
        %v5409 = vmul.f32 %v5345, %v5386
        %v5410 = vmul.f32 %v5349, %v5386
        %v5411 = vmul.f32 %v5353, %v5386
        %v5412 = vmul.f32 %v5357, %v5386
        %v5413 = vmul.f32 %v5361, %v5386
        %v5414 = vmul.f32 %v5365, %v5386
        %v5415 = vmul.f32 %v5369, %v5386
        %v5416 = vmul.f32 %v5373, %v5386
        %v5417 = vmul.f32 %v5377, %v5386
        %v5418 = vmul.f32 %v5381, %v5386
        %v5419 = vadd.f32 %v5223, %v5387
        %v5420 = vadd.f32 %v5224, %v5388
        %v5421 = vadd.f32 %v5225, %v5389
        %v5422 = vadd.f32 %v5226, %v5390
        %v5423 = vadd.f32 %v5227, %v5391
        %v5424 = vadd.f32 %v5228, %v5392
        %v5425 = vadd.f32 %v5229, %v5393
        %v5426 = vadd.f32 %v5230, %v5394
        %v5427 = vadd.f32 %v5231, %v5395
        %v5428 = vadd.f32 %v5232, %v5396
        %v5429 = vadd.f32 %v5233, %v5397
        %v5430 = vadd.f32 %v5234, %v5398
        %v5431 = vadd.f32 %v5235, %v5399
        %v5432 = vadd.f32 %v5236, %v5400
        %v5433 = vadd.f32 %v5237, %v5401
        %v5434 = vadd.f32 %v5238, %v5402
        %v5435 = vadd.f32 %v5239, %v5403
        %v5436 = vadd.f32 %v5240, %v5404
        %v5437 = vadd.f32 %v5241, %v5405
        %v5438 = vadd.f32 %v5242, %v5406
        %v5439 = vadd.f32 %v5243, %v5407
        %v5440 = vadd.f32 %v5244, %v5408
        %v5441 = vadd.f32 %v5245, %v5409
        %v5442 = vadd.f32 %v5246, %v5410
        %v5443 = vadd.f32 %v5247, %v5411
        %v5444 = vadd.f32 %v5248, %v5412
        %v5445 = vadd.f32 %v5249, %v5413
        %v5446 = vadd.f32 %v5250, %v5414
        %v5447 = vadd.f32 %v5251, %v5415
        %v5448 = vadd.f32 %v5252, %v5416
        %v5449 = vadd.f32 %v5253, %v5417
        %v5450 = vadd.f32 %v5254, %v5418
        %5451 = vset.pattern.permute.xlu0 3
        %5452 = vperm.xlu0 %5451, %v4831
        %v5453 = vpop.permute.xlu0 %5452
        %5455 = vset.pattern.permute.xlu0 3
        %5456 = vperm.xlu0 %5455, %v4832
        %v5457 = vpop.permute.xlu0 %5456
        %5459 = vset.pattern.permute.xlu0 3
        %5460 = vperm.xlu0 %5459, %v4833
        %v5461 = vpop.permute.xlu0 %5460
        %5463 = vset.pattern.permute.xlu0 3
        %5464 = vperm.xlu0 %5463, %v4834
        %v5465 = vpop.permute.xlu0 %5464
        %5467 = vset.pattern.permute.xlu0 3
        %5468 = vperm.xlu0 %5467, %v4835
        %v5469 = vpop.permute.xlu0 %5468
        %5471 = vset.pattern.permute.xlu0 3
        %5472 = vperm.xlu0 %5471, %v4836
        %v5473 = vpop.permute.xlu0 %5472
        %5475 = vset.pattern.permute.xlu0 3
        %5476 = vperm.xlu0 %5475, %v4837
        %v5477 = vpop.permute.xlu0 %5476
        %5479 = vset.pattern.permute.xlu0 3
        %5480 = vperm.xlu0 %5479, %v4838
        %v5481 = vpop.permute.xlu0 %5480
        %5483 = vset.pattern.permute.xlu0 3
        %5484 = vperm.xlu0 %5483, %v4839
        %v5485 = vpop.permute.xlu0 %5484
        %5487 = vset.pattern.permute.xlu0 3
        %5488 = vperm.xlu0 %5487, %v4840
        %v5489 = vpop.permute.xlu0 %5488
        %5491 = vset.pattern.permute.xlu0 3
        %5492 = vperm.xlu0 %5491, %v4841
        %v5493 = vpop.permute.xlu0 %5492
        %5495 = vset.pattern.permute.xlu0 3
        %5496 = vperm.xlu0 %5495, %v4842
        %v5497 = vpop.permute.xlu0 %5496
        %5499 = vset.pattern.permute.xlu0 3
        %5500 = vperm.xlu0 %5499, %v4843
        %v5501 = vpop.permute.xlu0 %5500
        %5503 = vset.pattern.permute.xlu0 3
        %5504 = vperm.xlu0 %5503, %v4844
        %v5505 = vpop.permute.xlu0 %5504
        %5507 = vset.pattern.permute.xlu0 3
        %5508 = vperm.xlu0 %5507, %v4845
        %v5509 = vpop.permute.xlu0 %5508
        %5511 = vset.pattern.permute.xlu0 3
        %5512 = vperm.xlu0 %5511, %v4846
        %v5513 = vpop.permute.xlu0 %5512
        %5515 = vset.pattern.permute.xlu0 3
        %5516 = vperm.xlu0 %5515, %v4847
        %v5517 = vpop.permute.xlu0 %5516
        %5519 = vset.pattern.permute.xlu0 3
        %5520 = vperm.xlu0 %5519, %v4848
        %v5521 = vpop.permute.xlu0 %5520
        %5523 = vset.pattern.permute.xlu0 3
        %5524 = vperm.xlu0 %5523, %v4849
        %v5525 = vpop.permute.xlu0 %5524
        %5527 = vset.pattern.permute.xlu0 3
        %5528 = vperm.xlu0 %5527, %v4850
        %v5529 = vpop.permute.xlu0 %5528
        %5531 = vset.pattern.permute.xlu0 3
        %5532 = vperm.xlu0 %5531, %v4851
        %v5533 = vpop.permute.xlu0 %5532
        %5535 = vset.pattern.permute.xlu0 3
        %5536 = vperm.xlu0 %5535, %v4852
        %v5537 = vpop.permute.xlu0 %5536
        %5539 = vset.pattern.permute.xlu0 3
        %5540 = vperm.xlu0 %5539, %v4853
        %v5541 = vpop.permute.xlu0 %5540
        %5543 = vset.pattern.permute.xlu0 3
        %5544 = vperm.xlu0 %5543, %v4854
        %v5545 = vpop.permute.xlu0 %5544
        %5547 = vset.pattern.permute.xlu0 3
        %5548 = vperm.xlu0 %5547, %v4855
        %v5549 = vpop.permute.xlu0 %5548
        %5551 = vset.pattern.permute.xlu0 3
        %5552 = vperm.xlu0 %5551, %v4856
        %v5553 = vpop.permute.xlu0 %5552
        %5555 = vset.pattern.permute.xlu0 3
        %5556 = vperm.xlu0 %5555, %v4857
        %v5557 = vpop.permute.xlu0 %5556
        %5559 = vset.pattern.permute.xlu0 3
        %5560 = vperm.xlu0 %5559, %v4858
        %v5561 = vpop.permute.xlu0 %5560
        %5563 = vset.pattern.permute.xlu0 3
        %5564 = vperm.xlu0 %5563, %v4859
        %v5565 = vpop.permute.xlu0 %5564
        %5567 = vset.pattern.permute.xlu0 3
        %5568 = vperm.xlu0 %5567, %v4860
        %v5569 = vpop.permute.xlu0 %5568
        %5571 = vset.pattern.permute.xlu0 3
        %5572 = vperm.xlu0 %5571, %v4861
        %v5573 = vpop.permute.xlu0 %5572
        %5575 = vset.pattern.permute.xlu0 3
        %5576 = vperm.xlu0 %5575, %v4862
        %v5577 = vpop.permute.xlu0 %5576
        %v5579 = vlaneseq
        %v5580 = vshrl.u32 %v5579, 7
        %v5581 = vsub.s32 3, %v5580
        %v5582 = vrot.slane %v3028, %v5581
        %v5583 = vmul.f32 %v5453, %v5582
        %v5584 = vmul.f32 %v5457, %v5582
        %v5585 = vmul.f32 %v5461, %v5582
        %v5586 = vmul.f32 %v5465, %v5582
        %v5587 = vmul.f32 %v5469, %v5582
        %v5588 = vmul.f32 %v5473, %v5582
        %v5589 = vmul.f32 %v5477, %v5582
        %v5590 = vmul.f32 %v5481, %v5582
        %v5591 = vmul.f32 %v5485, %v5582
        %v5592 = vmul.f32 %v5489, %v5582
        %v5593 = vmul.f32 %v5493, %v5582
        %v5594 = vmul.f32 %v5497, %v5582
        %v5595 = vmul.f32 %v5501, %v5582
        %v5596 = vmul.f32 %v5505, %v5582
        %v5597 = vmul.f32 %v5509, %v5582
        %v5598 = vmul.f32 %v5513, %v5582
        %v5599 = vmul.f32 %v5517, %v5582
        %v5600 = vmul.f32 %v5521, %v5582
        %v5601 = vmul.f32 %v5525, %v5582
        %v5602 = vmul.f32 %v5529, %v5582
        %v5603 = vmul.f32 %v5533, %v5582
        %v5604 = vmul.f32 %v5537, %v5582
        %v5605 = vmul.f32 %v5541, %v5582
        %v5606 = vmul.f32 %v5545, %v5582
        %v5607 = vmul.f32 %v5549, %v5582
        %v5608 = vmul.f32 %v5553, %v5582
        %v5609 = vmul.f32 %v5557, %v5582
        %v5610 = vmul.f32 %v5561, %v5582
        %v5611 = vmul.f32 %v5565, %v5582
        %v5612 = vmul.f32 %v5569, %v5582
        %v5613 = vmul.f32 %v5573, %v5582
        %v5614 = vmul.f32 %v5577, %v5582
        %v5615 = vadd.f32 %v5419, %v5583
        %v5616 = vadd.f32 %v5420, %v5584
        %v5617 = vadd.f32 %v5421, %v5585
        %v5618 = vadd.f32 %v5422, %v5586
        %v5619 = vadd.f32 %v5423, %v5587
        %v5620 = vadd.f32 %v5424, %v5588
        %v5621 = vadd.f32 %v5425, %v5589
        %v5622 = vadd.f32 %v5426, %v5590
        %v5623 = vadd.f32 %v5427, %v5591
        %v5624 = vadd.f32 %v5428, %v5592
        %v5625 = vadd.f32 %v5429, %v5593
        %v5626 = vadd.f32 %v5430, %v5594
        %v5627 = vadd.f32 %v5431, %v5595
        %v5628 = vadd.f32 %v5432, %v5596
        %v5629 = vadd.f32 %v5433, %v5597
        %v5630 = vadd.f32 %v5434, %v5598
        %v5631 = vadd.f32 %v5435, %v5599
        %v5632 = vadd.f32 %v5436, %v5600
        %v5633 = vadd.f32 %v5437, %v5601
        %v5634 = vadd.f32 %v5438, %v5602
        %v5635 = vadd.f32 %v5439, %v5603
        %v5636 = vadd.f32 %v5440, %v5604
        %v5637 = vadd.f32 %v5441, %v5605
        %v5638 = vadd.f32 %v5442, %v5606
        %v5639 = vadd.f32 %v5443, %v5607
        %v5640 = vadd.f32 %v5444, %v5608
        %v5641 = vadd.f32 %v5445, %v5609
        %v5642 = vadd.f32 %v5446, %v5610
        %v5643 = vadd.f32 %v5447, %v5611
        %v5644 = vadd.f32 %v5448, %v5612
        %v5645 = vadd.f32 %v5449, %v5613
        %v5646 = vadd.f32 %v5450, %v5614
        %5647 = vset.pattern.permute.xlu0 4
        %5648 = vperm.xlu0 %5647, %v4831
        %v5649 = vpop.permute.xlu0 %5648
        %5651 = vset.pattern.permute.xlu0 4
        %5652 = vperm.xlu0 %5651, %v4832
        %v5653 = vpop.permute.xlu0 %5652
        %5655 = vset.pattern.permute.xlu0 4
        %5656 = vperm.xlu0 %5655, %v4833
        %v5657 = vpop.permute.xlu0 %5656
        %5659 = vset.pattern.permute.xlu0 4
        %5660 = vperm.xlu0 %5659, %v4834
        %v5661 = vpop.permute.xlu0 %5660
        %5663 = vset.pattern.permute.xlu0 4
        %5664 = vperm.xlu0 %5663, %v4835
        %v5665 = vpop.permute.xlu0 %5664
        %5667 = vset.pattern.permute.xlu0 4
        %5668 = vperm.xlu0 %5667, %v4836
        %v5669 = vpop.permute.xlu0 %5668
        %5671 = vset.pattern.permute.xlu0 4
        %5672 = vperm.xlu0 %5671, %v4837
        %v5673 = vpop.permute.xlu0 %5672
        %5675 = vset.pattern.permute.xlu0 4
        %5676 = vperm.xlu0 %5675, %v4838
        %v5677 = vpop.permute.xlu0 %5676
        %5679 = vset.pattern.permute.xlu0 4
        %5680 = vperm.xlu0 %5679, %v4839
        %v5681 = vpop.permute.xlu0 %5680
        %5683 = vset.pattern.permute.xlu0 4
        %5684 = vperm.xlu0 %5683, %v4840
        %v5685 = vpop.permute.xlu0 %5684
        %5687 = vset.pattern.permute.xlu0 4
        %5688 = vperm.xlu0 %5687, %v4841
        %v5689 = vpop.permute.xlu0 %5688
        %5691 = vset.pattern.permute.xlu0 4
        %5692 = vperm.xlu0 %5691, %v4842
        %v5693 = vpop.permute.xlu0 %5692
        %5695 = vset.pattern.permute.xlu0 4
        %5696 = vperm.xlu0 %5695, %v4843
        %v5697 = vpop.permute.xlu0 %5696
        %5699 = vset.pattern.permute.xlu0 4
        %5700 = vperm.xlu0 %5699, %v4844
        %v5701 = vpop.permute.xlu0 %5700
        %5703 = vset.pattern.permute.xlu0 4
        %5704 = vperm.xlu0 %5703, %v4845
        %v5705 = vpop.permute.xlu0 %5704
        %5707 = vset.pattern.permute.xlu0 4
        %5708 = vperm.xlu0 %5707, %v4846
        %v5709 = vpop.permute.xlu0 %5708
        %5711 = vset.pattern.permute.xlu0 4
        %5712 = vperm.xlu0 %5711, %v4847
        %v5713 = vpop.permute.xlu0 %5712
        %5715 = vset.pattern.permute.xlu0 4
        %5716 = vperm.xlu0 %5715, %v4848
        %v5717 = vpop.permute.xlu0 %5716
        %5719 = vset.pattern.permute.xlu0 4
        %5720 = vperm.xlu0 %5719, %v4849
        %v5721 = vpop.permute.xlu0 %5720
        %5723 = vset.pattern.permute.xlu0 4
        %5724 = vperm.xlu0 %5723, %v4850
        %v5725 = vpop.permute.xlu0 %5724
        %5727 = vset.pattern.permute.xlu0 4
        %5728 = vperm.xlu0 %5727, %v4851
        %v5729 = vpop.permute.xlu0 %5728
        %5731 = vset.pattern.permute.xlu0 4
        %5732 = vperm.xlu0 %5731, %v4852
        %v5733 = vpop.permute.xlu0 %5732
        %5735 = vset.pattern.permute.xlu0 4
        %5736 = vperm.xlu0 %5735, %v4853
        %v5737 = vpop.permute.xlu0 %5736
        %5739 = vset.pattern.permute.xlu0 4
        %5740 = vperm.xlu0 %5739, %v4854
        %v5741 = vpop.permute.xlu0 %5740
        %5743 = vset.pattern.permute.xlu0 4
        %5744 = vperm.xlu0 %5743, %v4855
        %v5745 = vpop.permute.xlu0 %5744
        %5747 = vset.pattern.permute.xlu0 4
        %5748 = vperm.xlu0 %5747, %v4856
        %v5749 = vpop.permute.xlu0 %5748
        %5751 = vset.pattern.permute.xlu0 4
        %5752 = vperm.xlu0 %5751, %v4857
        %v5753 = vpop.permute.xlu0 %5752
        %5755 = vset.pattern.permute.xlu0 4
        %5756 = vperm.xlu0 %5755, %v4858
        %v5757 = vpop.permute.xlu0 %5756
        %5759 = vset.pattern.permute.xlu0 4
        %5760 = vperm.xlu0 %5759, %v4859
        %v5761 = vpop.permute.xlu0 %5760
        %5763 = vset.pattern.permute.xlu0 4
        %5764 = vperm.xlu0 %5763, %v4860
        %v5765 = vpop.permute.xlu0 %5764
        %5767 = vset.pattern.permute.xlu0 4
        %5768 = vperm.xlu0 %5767, %v4861
        %v5769 = vpop.permute.xlu0 %5768
        %5771 = vset.pattern.permute.xlu0 4
        %5772 = vperm.xlu0 %5771, %v4862
        %v5773 = vpop.permute.xlu0 %5772
        %v5775 = vlaneseq
        %v5776 = vshrl.u32 %v5775, 7
        %v5777 = vsub.s32 4, %v5776
        %v5778 = vrot.slane %v3028, %v5777
        %v5779 = vmul.f32 %v5649, %v5778
        %v5780 = vmul.f32 %v5653, %v5778
        %v5781 = vmul.f32 %v5657, %v5778
        %v5782 = vmul.f32 %v5661, %v5778
        %v5783 = vmul.f32 %v5665, %v5778
        %v5784 = vmul.f32 %v5669, %v5778
        %v5785 = vmul.f32 %v5673, %v5778
        %v5786 = vmul.f32 %v5677, %v5778
        %v5787 = vmul.f32 %v5681, %v5778
        %v5788 = vmul.f32 %v5685, %v5778
        %v5789 = vmul.f32 %v5689, %v5778
        %v5790 = vmul.f32 %v5693, %v5778
        %v5791 = vmul.f32 %v5697, %v5778
        %v5792 = vmul.f32 %v5701, %v5778
        %v5793 = vmul.f32 %v5705, %v5778
        %v5794 = vmul.f32 %v5709, %v5778
        %v5795 = vmul.f32 %v5713, %v5778
        %v5796 = vmul.f32 %v5717, %v5778
        %v5797 = vmul.f32 %v5721, %v5778
        %v5798 = vmul.f32 %v5725, %v5778
        %v5799 = vmul.f32 %v5729, %v5778
        %v5800 = vmul.f32 %v5733, %v5778
        %v5801 = vmul.f32 %v5737, %v5778
        %v5802 = vmul.f32 %v5741, %v5778
        %v5803 = vmul.f32 %v5745, %v5778
        %v5804 = vmul.f32 %v5749, %v5778
        %v5805 = vmul.f32 %v5753, %v5778
        %v5806 = vmul.f32 %v5757, %v5778
        %v5807 = vmul.f32 %v5761, %v5778
        %v5808 = vmul.f32 %v5765, %v5778
        %v5809 = vmul.f32 %v5769, %v5778
        %v5810 = vmul.f32 %v5773, %v5778
        %v5811 = vadd.f32 %v5615, %v5779
        %v5812 = vadd.f32 %v5616, %v5780
        %v5813 = vadd.f32 %v5617, %v5781
        %v5814 = vadd.f32 %v5618, %v5782
        %v5815 = vadd.f32 %v5619, %v5783
        %v5816 = vadd.f32 %v5620, %v5784
        %v5817 = vadd.f32 %v5621, %v5785
        %v5818 = vadd.f32 %v5622, %v5786
        %v5819 = vadd.f32 %v5623, %v5787
        %v5820 = vadd.f32 %v5624, %v5788
        %v5821 = vadd.f32 %v5625, %v5789
        %v5822 = vadd.f32 %v5626, %v5790
        %v5823 = vadd.f32 %v5627, %v5791
        %v5824 = vadd.f32 %v5628, %v5792
        %v5825 = vadd.f32 %v5629, %v5793
        %v5826 = vadd.f32 %v5630, %v5794
        %v5827 = vadd.f32 %v5631, %v5795
        %v5828 = vadd.f32 %v5632, %v5796
        %v5829 = vadd.f32 %v5633, %v5797
        %v5830 = vadd.f32 %v5634, %v5798
        %v5831 = vadd.f32 %v5635, %v5799
        %v5832 = vadd.f32 %v5636, %v5800
        %v5833 = vadd.f32 %v5637, %v5801
        %v5834 = vadd.f32 %v5638, %v5802
        %v5835 = vadd.f32 %v5639, %v5803
        %v5836 = vadd.f32 %v5640, %v5804
        %v5837 = vadd.f32 %v5641, %v5805
        %v5838 = vadd.f32 %v5642, %v5806
        %v5839 = vadd.f32 %v5643, %v5807
        %v5840 = vadd.f32 %v5644, %v5808
        %v5841 = vadd.f32 %v5645, %v5809
        %v5842 = vadd.f32 %v5646, %v5810
        %5843 = vset.pattern.permute.xlu0 5
        %5844 = vperm.xlu0 %5843, %v4831
        %v5845 = vpop.permute.xlu0 %5844
        %5847 = vset.pattern.permute.xlu0 5
        %5848 = vperm.xlu0 %5847, %v4832
        %v5849 = vpop.permute.xlu0 %5848
        %5851 = vset.pattern.permute.xlu0 5
        %5852 = vperm.xlu0 %5851, %v4833
        %v5853 = vpop.permute.xlu0 %5852
        %5855 = vset.pattern.permute.xlu0 5
        %5856 = vperm.xlu0 %5855, %v4834
        %v5857 = vpop.permute.xlu0 %5856
        %5859 = vset.pattern.permute.xlu0 5
        %5860 = vperm.xlu0 %5859, %v4835
        %v5861 = vpop.permute.xlu0 %5860
        %5863 = vset.pattern.permute.xlu0 5
        %5864 = vperm.xlu0 %5863, %v4836
        %v5865 = vpop.permute.xlu0 %5864
        %5867 = vset.pattern.permute.xlu0 5
        %5868 = vperm.xlu0 %5867, %v4837
        %v5869 = vpop.permute.xlu0 %5868
        %5871 = vset.pattern.permute.xlu0 5
        %5872 = vperm.xlu0 %5871, %v4838
        %v5873 = vpop.permute.xlu0 %5872
        %5875 = vset.pattern.permute.xlu0 5
        %5876 = vperm.xlu0 %5875, %v4839
        %v5877 = vpop.permute.xlu0 %5876
        %5879 = vset.pattern.permute.xlu0 5
        %5880 = vperm.xlu0 %5879, %v4840
        %v5881 = vpop.permute.xlu0 %5880
        %5883 = vset.pattern.permute.xlu0 5
        %5884 = vperm.xlu0 %5883, %v4841
        %v5885 = vpop.permute.xlu0 %5884
        %5887 = vset.pattern.permute.xlu0 5
        %5888 = vperm.xlu0 %5887, %v4842
        %v5889 = vpop.permute.xlu0 %5888
        %5891 = vset.pattern.permute.xlu0 5
        %5892 = vperm.xlu0 %5891, %v4843
        %v5893 = vpop.permute.xlu0 %5892
        %5895 = vset.pattern.permute.xlu0 5
        %5896 = vperm.xlu0 %5895, %v4844
        %v5897 = vpop.permute.xlu0 %5896
        %5899 = vset.pattern.permute.xlu0 5
        %5900 = vperm.xlu0 %5899, %v4845
        %v5901 = vpop.permute.xlu0 %5900
        %5903 = vset.pattern.permute.xlu0 5
        %5904 = vperm.xlu0 %5903, %v4846
        %v5905 = vpop.permute.xlu0 %5904
        %5907 = vset.pattern.permute.xlu0 5
        %5908 = vperm.xlu0 %5907, %v4847
        %v5909 = vpop.permute.xlu0 %5908
        %5911 = vset.pattern.permute.xlu0 5
        %5912 = vperm.xlu0 %5911, %v4848
        %v5913 = vpop.permute.xlu0 %5912
        %5915 = vset.pattern.permute.xlu0 5
        %5916 = vperm.xlu0 %5915, %v4849
        %v5917 = vpop.permute.xlu0 %5916
        %5919 = vset.pattern.permute.xlu0 5
        %5920 = vperm.xlu0 %5919, %v4850
        %v5921 = vpop.permute.xlu0 %5920
        %5923 = vset.pattern.permute.xlu0 5
        %5924 = vperm.xlu0 %5923, %v4851
        %v5925 = vpop.permute.xlu0 %5924
        %5927 = vset.pattern.permute.xlu0 5
        %5928 = vperm.xlu0 %5927, %v4852
        %v5929 = vpop.permute.xlu0 %5928
        %5931 = vset.pattern.permute.xlu0 5
        %5932 = vperm.xlu0 %5931, %v4853
        %v5933 = vpop.permute.xlu0 %5932
        %5935 = vset.pattern.permute.xlu0 5
        %5936 = vperm.xlu0 %5935, %v4854
        %v5937 = vpop.permute.xlu0 %5936
        %5939 = vset.pattern.permute.xlu0 5
        %5940 = vperm.xlu0 %5939, %v4855
        %v5941 = vpop.permute.xlu0 %5940
        %5943 = vset.pattern.permute.xlu0 5
        %5944 = vperm.xlu0 %5943, %v4856
        %v5945 = vpop.permute.xlu0 %5944
        %5947 = vset.pattern.permute.xlu0 5
        %5948 = vperm.xlu0 %5947, %v4857
        %v5949 = vpop.permute.xlu0 %5948
        %5951 = vset.pattern.permute.xlu0 5
        %5952 = vperm.xlu0 %5951, %v4858
        %v5953 = vpop.permute.xlu0 %5952
        %5955 = vset.pattern.permute.xlu0 5
        %5956 = vperm.xlu0 %5955, %v4859
        %v5957 = vpop.permute.xlu0 %5956
        %5959 = vset.pattern.permute.xlu0 5
        %5960 = vperm.xlu0 %5959, %v4860
        %v5961 = vpop.permute.xlu0 %5960
        %5963 = vset.pattern.permute.xlu0 5
        %5964 = vperm.xlu0 %5963, %v4861
        %v5965 = vpop.permute.xlu0 %5964
        %5967 = vset.pattern.permute.xlu0 5
        %5968 = vperm.xlu0 %5967, %v4862
        %v5969 = vpop.permute.xlu0 %5968
        %v5971 = vlaneseq
        %v5972 = vshrl.u32 %v5971, 7
        %v5973 = vsub.s32 5, %v5972
        %v5974 = vrot.slane %v3028, %v5973
        %v5975 = vmul.f32 %v5845, %v5974
        %v5976 = vmul.f32 %v5849, %v5974
        %v5977 = vmul.f32 %v5853, %v5974
        %v5978 = vmul.f32 %v5857, %v5974
        %v5979 = vmul.f32 %v5861, %v5974
        %v5980 = vmul.f32 %v5865, %v5974
        %v5981 = vmul.f32 %v5869, %v5974
        %v5982 = vmul.f32 %v5873, %v5974
        %v5983 = vmul.f32 %v5877, %v5974
        %v5984 = vmul.f32 %v5881, %v5974
        %v5985 = vmul.f32 %v5885, %v5974
        %v5986 = vmul.f32 %v5889, %v5974
        %v5987 = vmul.f32 %v5893, %v5974
        %v5988 = vmul.f32 %v5897, %v5974
        %v5989 = vmul.f32 %v5901, %v5974
        %v5990 = vmul.f32 %v5905, %v5974
        %v5991 = vmul.f32 %v5909, %v5974
        %v5992 = vmul.f32 %v5913, %v5974
        %v5993 = vmul.f32 %v5917, %v5974
        %v5994 = vmul.f32 %v5921, %v5974
        %v5995 = vmul.f32 %v5925, %v5974
        %v5996 = vmul.f32 %v5929, %v5974
        %v5997 = vmul.f32 %v5933, %v5974
        %v5998 = vmul.f32 %v5937, %v5974
        %v5999 = vmul.f32 %v5941, %v5974
        %v6000 = vmul.f32 %v5945, %v5974
        %v6001 = vmul.f32 %v5949, %v5974
        %v6002 = vmul.f32 %v5953, %v5974
        %v6003 = vmul.f32 %v5957, %v5974
        %v6004 = vmul.f32 %v5961, %v5974
        %v6005 = vmul.f32 %v5965, %v5974
        %v6006 = vmul.f32 %v5969, %v5974
        %v6007 = vadd.f32 %v5811, %v5975
        %v6008 = vadd.f32 %v5812, %v5976
        %v6009 = vadd.f32 %v5813, %v5977
        %v6010 = vadd.f32 %v5814, %v5978
        %v6011 = vadd.f32 %v5815, %v5979
        %v6012 = vadd.f32 %v5816, %v5980
        %v6013 = vadd.f32 %v5817, %v5981
        %v6014 = vadd.f32 %v5818, %v5982
        %v6015 = vadd.f32 %v5819, %v5983
        %v6016 = vadd.f32 %v5820, %v5984
        %v6017 = vadd.f32 %v5821, %v5985
        %v6018 = vadd.f32 %v5822, %v5986
        %v6019 = vadd.f32 %v5823, %v5987
        %v6020 = vadd.f32 %v5824, %v5988
        %v6021 = vadd.f32 %v5825, %v5989
        %v6022 = vadd.f32 %v5826, %v5990
        %v6023 = vadd.f32 %v5827, %v5991
        %v6024 = vadd.f32 %v5828, %v5992
        %v6025 = vadd.f32 %v5829, %v5993
        %v6026 = vadd.f32 %v5830, %v5994
        %v6027 = vadd.f32 %v5831, %v5995
        %v6028 = vadd.f32 %v5832, %v5996
        %v6029 = vadd.f32 %v5833, %v5997
        %v6030 = vadd.f32 %v5834, %v5998
        %v6031 = vadd.f32 %v5835, %v5999
        %v6032 = vadd.f32 %v5836, %v6000
        %v6033 = vadd.f32 %v5837, %v6001
        %v6034 = vadd.f32 %v5838, %v6002
        %v6035 = vadd.f32 %v5839, %v6003
        %v6036 = vadd.f32 %v5840, %v6004
        %v6037 = vadd.f32 %v5841, %v6005
        %v6038 = vadd.f32 %v5842, %v6006
        %6039 = vset.pattern.permute.xlu0 6
        %6040 = vperm.xlu0 %6039, %v4831
        %v6041 = vpop.permute.xlu0 %6040
        %6043 = vset.pattern.permute.xlu0 6
        %6044 = vperm.xlu0 %6043, %v4832
        %v6045 = vpop.permute.xlu0 %6044
        %6047 = vset.pattern.permute.xlu0 6
        %6048 = vperm.xlu0 %6047, %v4833
        %v6049 = vpop.permute.xlu0 %6048
        %6051 = vset.pattern.permute.xlu0 6
        %6052 = vperm.xlu0 %6051, %v4834
        %v6053 = vpop.permute.xlu0 %6052
        %6055 = vset.pattern.permute.xlu0 6
        %6056 = vperm.xlu0 %6055, %v4835
        %v6057 = vpop.permute.xlu0 %6056
        %6059 = vset.pattern.permute.xlu0 6
        %6060 = vperm.xlu0 %6059, %v4836
        %v6061 = vpop.permute.xlu0 %6060
        %6063 = vset.pattern.permute.xlu0 6
        %6064 = vperm.xlu0 %6063, %v4837
        %v6065 = vpop.permute.xlu0 %6064
        %6067 = vset.pattern.permute.xlu0 6
        %6068 = vperm.xlu0 %6067, %v4838
        %v6069 = vpop.permute.xlu0 %6068
        %6071 = vset.pattern.permute.xlu0 6
        %6072 = vperm.xlu0 %6071, %v4839
        %v6073 = vpop.permute.xlu0 %6072
        %6075 = vset.pattern.permute.xlu0 6
        %6076 = vperm.xlu0 %6075, %v4840
        %v6077 = vpop.permute.xlu0 %6076
        %6079 = vset.pattern.permute.xlu0 6
        %6080 = vperm.xlu0 %6079, %v4841
        %v6081 = vpop.permute.xlu0 %6080
        %6083 = vset.pattern.permute.xlu0 6
        %6084 = vperm.xlu0 %6083, %v4842
        %v6085 = vpop.permute.xlu0 %6084
        %6087 = vset.pattern.permute.xlu0 6
        %6088 = vperm.xlu0 %6087, %v4843
        %v6089 = vpop.permute.xlu0 %6088
        %6091 = vset.pattern.permute.xlu0 6
        %6092 = vperm.xlu0 %6091, %v4844
        %v6093 = vpop.permute.xlu0 %6092
        %6095 = vset.pattern.permute.xlu0 6
        %6096 = vperm.xlu0 %6095, %v4845
        %v6097 = vpop.permute.xlu0 %6096
        %6099 = vset.pattern.permute.xlu0 6
        %6100 = vperm.xlu0 %6099, %v4846
        %v6101 = vpop.permute.xlu0 %6100
        %6103 = vset.pattern.permute.xlu0 6
        %6104 = vperm.xlu0 %6103, %v4847
        %v6105 = vpop.permute.xlu0 %6104
        %6107 = vset.pattern.permute.xlu0 6
        %6108 = vperm.xlu0 %6107, %v4848
        %v6109 = vpop.permute.xlu0 %6108
        %6111 = vset.pattern.permute.xlu0 6
        %6112 = vperm.xlu0 %6111, %v4849
        %v6113 = vpop.permute.xlu0 %6112
        %6115 = vset.pattern.permute.xlu0 6
        %6116 = vperm.xlu0 %6115, %v4850
        %v6117 = vpop.permute.xlu0 %6116
        %6119 = vset.pattern.permute.xlu0 6
        %6120 = vperm.xlu0 %6119, %v4851
        %v6121 = vpop.permute.xlu0 %6120
        %6123 = vset.pattern.permute.xlu0 6
        %6124 = vperm.xlu0 %6123, %v4852
        %v6125 = vpop.permute.xlu0 %6124
        %6127 = vset.pattern.permute.xlu0 6
        %6128 = vperm.xlu0 %6127, %v4853
        %v6129 = vpop.permute.xlu0 %6128
        %6131 = vset.pattern.permute.xlu0 6
        %6132 = vperm.xlu0 %6131, %v4854
        %v6133 = vpop.permute.xlu0 %6132
        %6135 = vset.pattern.permute.xlu0 6
        %6136 = vperm.xlu0 %6135, %v4855
        %v6137 = vpop.permute.xlu0 %6136
        %6139 = vset.pattern.permute.xlu0 6
        %6140 = vperm.xlu0 %6139, %v4856
        %v6141 = vpop.permute.xlu0 %6140
        %6143 = vset.pattern.permute.xlu0 6
        %6144 = vperm.xlu0 %6143, %v4857
        %v6145 = vpop.permute.xlu0 %6144
        %6147 = vset.pattern.permute.xlu0 6
        %6148 = vperm.xlu0 %6147, %v4858
        %v6149 = vpop.permute.xlu0 %6148
        %6151 = vset.pattern.permute.xlu0 6
        %6152 = vperm.xlu0 %6151, %v4859
        %v6153 = vpop.permute.xlu0 %6152
        %6155 = vset.pattern.permute.xlu0 6
        %6156 = vperm.xlu0 %6155, %v4860
        %v6157 = vpop.permute.xlu0 %6156
        %6159 = vset.pattern.permute.xlu0 6
        %6160 = vperm.xlu0 %6159, %v4861
        %v6161 = vpop.permute.xlu0 %6160
        %6163 = vset.pattern.permute.xlu0 6
        %6164 = vperm.xlu0 %6163, %v4862
        %v6165 = vpop.permute.xlu0 %6164
        %v6167 = vlaneseq
        %v6168 = vshrl.u32 %v6167, 7
        %v6169 = vsub.s32 6, %v6168
        %v6170 = vrot.slane %v3028, %v6169
        %v6171 = vmul.f32 %v6041, %v6170
        %v6172 = vmul.f32 %v6045, %v6170
        %v6173 = vmul.f32 %v6049, %v6170
        %v6174 = vmul.f32 %v6053, %v6170
        %v6175 = vmul.f32 %v6057, %v6170
        %v6176 = vmul.f32 %v6061, %v6170
        %v6177 = vmul.f32 %v6065, %v6170
        %v6178 = vmul.f32 %v6069, %v6170
        %v6179 = vmul.f32 %v6073, %v6170
        %v6180 = vmul.f32 %v6077, %v6170
        %v6181 = vmul.f32 %v6081, %v6170
        %v6182 = vmul.f32 %v6085, %v6170
        %v6183 = vmul.f32 %v6089, %v6170
        %v6184 = vmul.f32 %v6093, %v6170
        %v6185 = vmul.f32 %v6097, %v6170
        %v6186 = vmul.f32 %v6101, %v6170
        %v6187 = vmul.f32 %v6105, %v6170
        %v6188 = vmul.f32 %v6109, %v6170
        %v6189 = vmul.f32 %v6113, %v6170
        %v6190 = vmul.f32 %v6117, %v6170
        %v6191 = vmul.f32 %v6121, %v6170
        %v6192 = vmul.f32 %v6125, %v6170
        %v6193 = vmul.f32 %v6129, %v6170
        %v6194 = vmul.f32 %v6133, %v6170
        %v6195 = vmul.f32 %v6137, %v6170
        %v6196 = vmul.f32 %v6141, %v6170
        %v6197 = vmul.f32 %v6145, %v6170
        %v6198 = vmul.f32 %v6149, %v6170
        %v6199 = vmul.f32 %v6153, %v6170
        %v6200 = vmul.f32 %v6157, %v6170
        %v6201 = vmul.f32 %v6161, %v6170
        %v6202 = vmul.f32 %v6165, %v6170
        %v6203 = vadd.f32 %v6007, %v6171
        %v6204 = vadd.f32 %v6008, %v6172
        %v6205 = vadd.f32 %v6009, %v6173
        %v6206 = vadd.f32 %v6010, %v6174
        %v6207 = vadd.f32 %v6011, %v6175
        %v6208 = vadd.f32 %v6012, %v6176
        %v6209 = vadd.f32 %v6013, %v6177
        %v6210 = vadd.f32 %v6014, %v6178
        %v6211 = vadd.f32 %v6015, %v6179
        %v6212 = vadd.f32 %v6016, %v6180
        %v6213 = vadd.f32 %v6017, %v6181
        %v6214 = vadd.f32 %v6018, %v6182
        %v6215 = vadd.f32 %v6019, %v6183
        %v6216 = vadd.f32 %v6020, %v6184
        %v6217 = vadd.f32 %v6021, %v6185
        %v6218 = vadd.f32 %v6022, %v6186
        %v6219 = vadd.f32 %v6023, %v6187
        %v6220 = vadd.f32 %v6024, %v6188
        %v6221 = vadd.f32 %v6025, %v6189
        %v6222 = vadd.f32 %v6026, %v6190
        %v6223 = vadd.f32 %v6027, %v6191
        %v6224 = vadd.f32 %v6028, %v6192
        %v6225 = vadd.f32 %v6029, %v6193
        %v6226 = vadd.f32 %v6030, %v6194
        %v6227 = vadd.f32 %v6031, %v6195
        %v6228 = vadd.f32 %v6032, %v6196
        %v6229 = vadd.f32 %v6033, %v6197
        %v6230 = vadd.f32 %v6034, %v6198
        %v6231 = vadd.f32 %v6035, %v6199
        %v6232 = vadd.f32 %v6036, %v6200
        %v6233 = vadd.f32 %v6037, %v6201
        %v6234 = vadd.f32 %v6038, %v6202
        %6235 = vset.pattern.permute.xlu0 7
        %6236 = vperm.xlu0 %6235, %v4831
        %v6237 = vpop.permute.xlu0 %6236
        %6239 = vset.pattern.permute.xlu0 7
        %6240 = vperm.xlu0 %6239, %v4832
        %v6241 = vpop.permute.xlu0 %6240
        %6243 = vset.pattern.permute.xlu0 7
        %6244 = vperm.xlu0 %6243, %v4833
        %v6245 = vpop.permute.xlu0 %6244
        %6247 = vset.pattern.permute.xlu0 7
        %6248 = vperm.xlu0 %6247, %v4834
        %v6249 = vpop.permute.xlu0 %6248
        %6251 = vset.pattern.permute.xlu0 7
        %6252 = vperm.xlu0 %6251, %v4835
        %v6253 = vpop.permute.xlu0 %6252
        %6255 = vset.pattern.permute.xlu0 7
        %6256 = vperm.xlu0 %6255, %v4836
        %v6257 = vpop.permute.xlu0 %6256
        %6259 = vset.pattern.permute.xlu0 7
        %6260 = vperm.xlu0 %6259, %v4837
        %v6261 = vpop.permute.xlu0 %6260
        %6263 = vset.pattern.permute.xlu0 7
        %6264 = vperm.xlu0 %6263, %v4838
        %v6265 = vpop.permute.xlu0 %6264
        %6267 = vset.pattern.permute.xlu0 7
        %6268 = vperm.xlu0 %6267, %v4839
        %v6269 = vpop.permute.xlu0 %6268
        %6271 = vset.pattern.permute.xlu0 7
        %6272 = vperm.xlu0 %6271, %v4840
        %v6273 = vpop.permute.xlu0 %6272
        %6275 = vset.pattern.permute.xlu0 7
        %6276 = vperm.xlu0 %6275, %v4841
        %v6277 = vpop.permute.xlu0 %6276
        %6279 = vset.pattern.permute.xlu0 7
        %6280 = vperm.xlu0 %6279, %v4842
        %v6281 = vpop.permute.xlu0 %6280
        %6283 = vset.pattern.permute.xlu0 7
        %6284 = vperm.xlu0 %6283, %v4843
        %v6285 = vpop.permute.xlu0 %6284
        %6287 = vset.pattern.permute.xlu0 7
        %6288 = vperm.xlu0 %6287, %v4844
        %v6289 = vpop.permute.xlu0 %6288
        %6291 = vset.pattern.permute.xlu0 7
        %6292 = vperm.xlu0 %6291, %v4845
        %v6293 = vpop.permute.xlu0 %6292
        %6295 = vset.pattern.permute.xlu0 7
        %6296 = vperm.xlu0 %6295, %v4846
        %v6297 = vpop.permute.xlu0 %6296
        %6299 = vset.pattern.permute.xlu0 7
        %6300 = vperm.xlu0 %6299, %v4847
        %v6301 = vpop.permute.xlu0 %6300
        %6303 = vset.pattern.permute.xlu0 7
        %6304 = vperm.xlu0 %6303, %v4848
        %v6305 = vpop.permute.xlu0 %6304
        %6307 = vset.pattern.permute.xlu0 7
        %6308 = vperm.xlu0 %6307, %v4849
        %v6309 = vpop.permute.xlu0 %6308
        %6311 = vset.pattern.permute.xlu0 7
        %6312 = vperm.xlu0 %6311, %v4850
        %v6313 = vpop.permute.xlu0 %6312
        %6315 = vset.pattern.permute.xlu0 7
        %6316 = vperm.xlu0 %6315, %v4851
        %v6317 = vpop.permute.xlu0 %6316
        %6319 = vset.pattern.permute.xlu0 7
        %6320 = vperm.xlu0 %6319, %v4852
        %v6321 = vpop.permute.xlu0 %6320
        %6323 = vset.pattern.permute.xlu0 7
        %6324 = vperm.xlu0 %6323, %v4853
        %v6325 = vpop.permute.xlu0 %6324
        %6327 = vset.pattern.permute.xlu0 7
        %6328 = vperm.xlu0 %6327, %v4854
        %v6329 = vpop.permute.xlu0 %6328
        %6331 = vset.pattern.permute.xlu0 7
        %6332 = vperm.xlu0 %6331, %v4855
        %v6333 = vpop.permute.xlu0 %6332
        %6335 = vset.pattern.permute.xlu0 7
        %6336 = vperm.xlu0 %6335, %v4856
        %v6337 = vpop.permute.xlu0 %6336
        %6339 = vset.pattern.permute.xlu0 7
        %6340 = vperm.xlu0 %6339, %v4857
        %v6341 = vpop.permute.xlu0 %6340
        %6343 = vset.pattern.permute.xlu0 7
        %6344 = vperm.xlu0 %6343, %v4858
        %v6345 = vpop.permute.xlu0 %6344
        %6347 = vset.pattern.permute.xlu0 7
        %6348 = vperm.xlu0 %6347, %v4859
        %v6349 = vpop.permute.xlu0 %6348
        %6351 = vset.pattern.permute.xlu0 7
        %6352 = vperm.xlu0 %6351, %v4860
        %v6353 = vpop.permute.xlu0 %6352
        %6355 = vset.pattern.permute.xlu0 7
        %6356 = vperm.xlu0 %6355, %v4861
        %v6357 = vpop.permute.xlu0 %6356
        %6359 = vset.pattern.permute.xlu0 7
        %6360 = vperm.xlu0 %6359, %v4862
        %v6361 = vpop.permute.xlu0 %6360
        %v6363 = vlaneseq
        %v6364 = vshrl.u32 %v6363, 7
        %v6365 = vsub.s32 7, %v6364
        %v6366 = vrot.slane %v3028, %v6365
        %v6367 = vmul.f32 %v6237, %v6366
        %v6368 = vmul.f32 %v6241, %v6366
        %v6369 = vmul.f32 %v6245, %v6366
        %v6370 = vmul.f32 %v6249, %v6366
        %v6371 = vmul.f32 %v6253, %v6366
        %v6372 = vmul.f32 %v6257, %v6366
        %v6373 = vmul.f32 %v6261, %v6366
        %v6374 = vmul.f32 %v6265, %v6366
        %v6375 = vmul.f32 %v6269, %v6366
        %v6376 = vmul.f32 %v6273, %v6366
        %v6377 = vmul.f32 %v6277, %v6366
        %v6378 = vmul.f32 %v6281, %v6366
        %v6379 = vmul.f32 %v6285, %v6366
        %v6380 = vmul.f32 %v6289, %v6366
        %v6381 = vmul.f32 %v6293, %v6366
        %v6382 = vmul.f32 %v6297, %v6366
        %v6383 = vmul.f32 %v6301, %v6366
        %v6384 = vmul.f32 %v6305, %v6366
        %v6385 = vmul.f32 %v6309, %v6366
        %v6386 = vmul.f32 %v6313, %v6366
        %v6387 = vmul.f32 %v6317, %v6366
        %v6388 = vmul.f32 %v6321, %v6366
        %v6389 = vmul.f32 %v6325, %v6366
        %v6390 = vmul.f32 %v6329, %v6366
        %v6391 = vmul.f32 %v6333, %v6366
        %v6392 = vmul.f32 %v6337, %v6366
        %v6393 = vmul.f32 %v6341, %v6366
        %v6394 = vmul.f32 %v6345, %v6366
        %v6395 = vmul.f32 %v6349, %v6366
        %v6396 = vmul.f32 %v6353, %v6366
        %v6397 = vmul.f32 %v6357, %v6366
        %v6398 = vmul.f32 %v6361, %v6366
        %v6399 = vadd.f32 %v6203, %v6367
        %v6400 = vadd.f32 %v6204, %v6368
        %v6401 = vadd.f32 %v6205, %v6369
        %v6402 = vadd.f32 %v6206, %v6370
        %v6403 = vadd.f32 %v6207, %v6371
        %v6404 = vadd.f32 %v6208, %v6372
        %v6405 = vadd.f32 %v6209, %v6373
        %v6406 = vadd.f32 %v6210, %v6374
        %v6407 = vadd.f32 %v6211, %v6375
        %v6408 = vadd.f32 %v6212, %v6376
        %v6409 = vadd.f32 %v6213, %v6377
        %v6410 = vadd.f32 %v6214, %v6378
        %v6411 = vadd.f32 %v6215, %v6379
        %v6412 = vadd.f32 %v6216, %v6380
        %v6413 = vadd.f32 %v6217, %v6381
        %v6414 = vadd.f32 %v6218, %v6382
        %v6415 = vadd.f32 %v6219, %v6383
        %v6416 = vadd.f32 %v6220, %v6384
        %v6417 = vadd.f32 %v6221, %v6385
        %v6418 = vadd.f32 %v6222, %v6386
        %v6419 = vadd.f32 %v6223, %v6387
        %v6420 = vadd.f32 %v6224, %v6388
        %v6421 = vadd.f32 %v6225, %v6389
        %v6422 = vadd.f32 %v6226, %v6390
        %v6423 = vadd.f32 %v6227, %v6391
        %v6424 = vadd.f32 %v6228, %v6392
        %v6425 = vadd.f32 %v6229, %v6393
        %v6426 = vadd.f32 %v6230, %v6394
        %v6427 = vadd.f32 %v6231, %v6395
        %v6428 = vadd.f32 %v6232, %v6396
        %v6429 = vadd.f32 %v6233, %v6397
        %v6430 = vadd.f32 %v6234, %v6398
        %v6432 = vlaneseq
        %v6433 = vshrl.u32 %v6432, 7
        %v6434 = vsub.s32 0, %v6433
        %v6435 = vrot.slane %v3029, %v6434
        %v6437 = vadd.f32 %v6399, %v6435
        %v6438 = vadd.f32 %v6400, %v6435
        %v6439 = vadd.f32 %v6401, %v6435
        %v6440 = vadd.f32 %v6402, %v6435
        %v6441 = vadd.f32 %v6403, %v6435
        %v6442 = vadd.f32 %v6404, %v6435
        %v6443 = vadd.f32 %v6405, %v6435
        %v6444 = vadd.f32 %v6406, %v6435
        %v6445 = vadd.f32 %v6407, %v6435
        %v6446 = vadd.f32 %v6408, %v6435
        %v6447 = vadd.f32 %v6409, %v6435
        %v6448 = vadd.f32 %v6410, %v6435
        %v6449 = vadd.f32 %v6411, %v6435
        %v6450 = vadd.f32 %v6412, %v6435
        %v6451 = vadd.f32 %v6413, %v6435
        %v6452 = vadd.f32 %v6414, %v6435
        %v6453 = vadd.f32 %v6415, %v6435
        %v6454 = vadd.f32 %v6416, %v6435
        %v6455 = vadd.f32 %v6417, %v6435
        %v6456 = vadd.f32 %v6418, %v6435
        %v6457 = vadd.f32 %v6419, %v6435
        %v6458 = vadd.f32 %v6420, %v6435
        %v6459 = vadd.f32 %v6421, %v6435
        %v6460 = vadd.f32 %v6422, %v6435
        %v6461 = vadd.f32 %v6423, %v6435
        %v6462 = vadd.f32 %v6424, %v6435
        %v6463 = vadd.f32 %v6425, %v6435
        %v6464 = vadd.f32 %v6426, %v6435
        %v6465 = vadd.f32 %v6427, %v6435
        %v6466 = vadd.f32 %v6428, %v6435
        %v6467 = vadd.f32 %v6429, %v6435
        %v6468 = vadd.f32 %v6430, %v6435
        %6469 = vst.msk [vmem:[#allocation3] sm:$0xff] %vm3030, -inf
        %6470 = vst.msk [vmem:[#allocation3 + $0x8] sm:$0xff] %vm3030, -inf
        %6471 = vst.msk [vmem:[#allocation3 + $0x10] sm:$0x3] %vm3033, -inf
        %6472 = vst.msk [vmem:[#allocation3 + $0x18] sm:$0xff] %vm3030, -inf
        %6473 = vst.msk [vmem:[#allocation3 + $0x20] sm:$0xff] %vm3030, -inf
        %6474 = vst.msk [vmem:[#allocation3 + $0x28] sm:$0x3] %vm3033, -inf
        %6475 = vst.msk [vmem:[#allocation3 + $0x30] sm:$0xff] %vm3030, -inf
        %6476 = vst.msk [vmem:[#allocation3 + $0x38] sm:$0xff] %vm3030, -inf
        %6477 = vst.msk [vmem:[#allocation3 + $0x40] sm:$0x3] %vm3033, -inf
        %6478 = vst.msk [vmem:[#allocation3 + $0x48] sm:$0xff] %vm3030, -inf
        %6479 = vst.msk [vmem:[#allocation3 + $0x50] sm:$0xff] %vm3030, -inf
        %6480 = vst.msk [vmem:[#allocation3 + $0x58] sm:$0x3] %vm3033, -inf
        %6481 = vst.msk [vmem:[#allocation3 + $0x60] sm:$0xff] %vm3030, -inf
        %6482 = vst.msk [vmem:[#allocation3 + $0x68] sm:$0xff] %vm3030, -inf
        %6483 = vst.msk [vmem:[#allocation3 + $0x70] sm:$0x3] %vm3033, -inf
        %6484 = vst.msk [vmem:[#allocation3 + $0x78] sm:$0xff] %vm3030, -inf
        %6485 = vst.msk [vmem:[#allocation3 + $0x80] sm:$0xff] %vm3030, -inf
        %6486 = vst.msk [vmem:[#allocation3 + $0x88] sm:$0x3] %vm3033, -inf
        %6487 = vst.msk [vmem:[#allocation3 + $0x90] sm:$0xff] %vm3030, -inf
        %6488 = vst.msk [vmem:[#allocation3 + $0x98] sm:$0xff] %vm3030, -inf
        %6489 = vst.msk [vmem:[#allocation3 + $0xa0] sm:$0x3] %vm3033, -inf
        %6490 = vst.msk [vmem:[#allocation3 + $0xa8] sm:$0xff] %vm3030, -inf
        %6491 = vst.msk [vmem:[#allocation3 + $0xb0] sm:$0xff] %vm3030, -inf
        %6492 = vst.msk [vmem:[#allocation3 + $0xb8] sm:$0x3] %vm3033, -inf
        %6493 = vst.msk [vmem:[#allocation3 + $0xc0] sm:$0xff] %vm3030, -inf
        %6494 = vst.msk [vmem:[#allocation3 + $0xc8] sm:$0xff] %vm3030, -inf
        %6495 = vst.msk [vmem:[#allocation3 + $0xd0] sm:$0x3] %vm3033, -inf
        %6496 = vst.msk [vmem:[#allocation3 + $0xd8] sm:$0xff] %vm3030, -inf
        %6497 = vst.msk [vmem:[#allocation3 + $0xe0] sm:$0xff] %vm3030, -inf
        %6498 = vst.msk [vmem:[#allocation3 + $0xe8] sm:$0x3] %vm3033, -inf
        %6499 = vst.msk [vmem:[#allocation3 + $0xf0] sm:$0xff] %vm3030, -inf
        %6500 = vst.msk [vmem:[#allocation3 + $0xf8] sm:$0xff] %vm3030, -inf
        %6501 = vst.msk [vmem:[#allocation3 + $0x100] sm:$0x3] %vm3033, -inf
        %6502 = vst.msk [vmem:[#allocation3 + $0x108] sm:$0xff] %vm3030, -inf
        %6503 = vst.msk [vmem:[#allocation3 + $0x110] sm:$0xff] %vm3030, -inf
        %6504 = vst.msk [vmem:[#allocation3 + $0x118] sm:$0x3] %vm3033, -inf
        %6505 = vst.msk [vmem:[#allocation3 + $0x120] sm:$0xff] %vm3030, -inf
        %6506 = vst.msk [vmem:[#allocation3 + $0x128] sm:$0xff] %vm3030, -inf
        %6507 = vst.msk [vmem:[#allocation3 + $0x130] sm:$0x3] %vm3033, -inf
        %6508 = vst.msk [vmem:[#allocation3 + $0x138] sm:$0xff] %vm3030, -inf
        %6509 = vst.msk [vmem:[#allocation3 + $0x140] sm:$0xff] %vm3030, -inf
        %6510 = vst.msk [vmem:[#allocation3 + $0x148] sm:$0x3] %vm3033, -inf
        %6511 = vst.msk [vmem:[#allocation3 + $0x150] sm:$0xff] %vm3030, -inf
        %6512 = vst.msk [vmem:[#allocation3 + $0x158] sm:$0xff] %vm3030, -inf
        %6513 = vst.msk [vmem:[#allocation3 + $0x160] sm:$0x3] %vm3033, -inf
        %6514 = vst.msk [vmem:[#allocation3 + $0x168] sm:$0xff] %vm3030, -inf
        %6515 = vst.msk [vmem:[#allocation3 + $0x170] sm:$0xff] %vm3030, -inf
        %6516 = vst.msk [vmem:[#allocation3 + $0x178] sm:$0x3] %vm3033, -inf
        %6517 = vst.msk [vmem:[#allocation3 + $0x180] sm:$0xff] %vm3030, -inf
        %6518 = vst.msk [vmem:[#allocation3 + $0x188] sm:$0xff] %vm3030, -inf
        %6519 = vst.msk [vmem:[#allocation3 + $0x190] sm:$0x3] %vm3033, -inf
        %6520 = vst.msk [vmem:[#allocation3 + $0x198] sm:$0xff] %vm3030, -inf
        %6521 = vst.msk [vmem:[#allocation3 + $0x1a0] sm:$0xff] %vm3030, -inf
        %6522 = vst.msk [vmem:[#allocation3 + $0x1a8] sm:$0x3] %vm3033, -inf
        %6523 = vst.msk [vmem:[%s3086 + $0x1] sm:$0xff] %vm3030, %v6437
        %6524 = vst.msk [vmem:[%s3086 + $0x9] sm:$0xff] %vm3030, %v6438
        %6525 = vst.msk [vmem:[%s3086 + $0x19] sm:$0xff] %vm3030, %v6439
        %6526 = vst.msk [vmem:[%s3086 + $0x21] sm:$0xff] %vm3030, %v6440
        %6527 = vst.msk [vmem:[%s3086 + $0x31] sm:$0xff] %vm3030, %v6441
        %6528 = vst.msk [vmem:[%s3086 + $0x39] sm:$0xff] %vm3030, %v6442
        %6529 = vst.msk [vmem:[%s3086 + $0x49] sm:$0xff] %vm3030, %v6443
        %6530 = vst.msk [vmem:[%s3086 + $0x51] sm:$0xff] %vm3030, %v6444
        %6531 = vst.msk [vmem:[%s3086 + $0x61] sm:$0xff] %vm3030, %v6445
        %6532 = vst.msk [vmem:[%s3086 + $0x69] sm:$0xff] %vm3030, %v6446
        %6533 = vst.msk [vmem:[%s3086 + $0x79] sm:$0xff] %vm3030, %v6447
        %6534 = vst.msk [vmem:[%s3086 + $0x81] sm:$0xff] %vm3030, %v6448
        %6535 = vst.msk [vmem:[%s3086 + $0x91] sm:$0xff] %vm3030, %v6449
        %6536 = vst.msk [vmem:[%s3086 + $0x99] sm:$0xff] %vm3030, %v6450
        %6537 = vst.msk [vmem:[%s3086 + $0xa9] sm:$0xff] %vm3030, %v6451
        %6538 = vst.msk [vmem:[%s3086 + $0xb1] sm:$0xff] %vm3030, %v6452
        %6539 = vst.msk [vmem:[%s3086 + $0xc1] sm:$0xff] %vm3030, %v6453
        %6540 = vst.msk [vmem:[%s3086 + $0xc9] sm:$0xff] %vm3030, %v6454
        %6541 = vst.msk [vmem:[%s3086 + $0xd9] sm:$0xff] %vm3030, %v6455
        %6542 = vst.msk [vmem:[%s3086 + $0xe1] sm:$0xff] %vm3030, %v6456
        %6543 = vst.msk [vmem:[%s3086 + $0xf1] sm:$0xff] %vm3030, %v6457
        %6544 = vst.msk [vmem:[%s3086 + $0xf9] sm:$0xff] %vm3030, %v6458
        %6545 = vst.msk [vmem:[%s3086 + $0x109] sm:$0xff] %vm3030, %v6459
        %6546 = vst.msk [vmem:[%s3086 + $0x111] sm:$0xff] %vm3030, %v6460
        %6547 = vst.msk [vmem:[%s3086 + $0x121] sm:$0xff] %vm3030, %v6461
        %6548 = vst.msk [vmem:[%s3086 + $0x129] sm:$0xff] %vm3030, %v6462
        %6549 = vst.msk [vmem:[%s3086 + $0x139] sm:$0xff] %vm3030, %v6463
        %6550 = vst.msk [vmem:[%s3086 + $0x141] sm:$0xff] %vm3030, %v6464
        %6551 = vst.msk [vmem:[%s3086 + $0x151] sm:$0xff] %vm3030, %v6465
        %6552 = vst.msk [vmem:[%s3086 + $0x159] sm:$0xff] %vm3030, %v6466
        %6553 = vst.msk [vmem:[%s3086 + $0x169] sm:$0xff] %vm3030, %v6467
        %6554 = vst.msk [vmem:[%s3086 + $0x171] sm:$0xff] %vm3030, %v6468
        %v6555 = vld [vmem:[#allocation3] sm:$0xff]
        %v6556 = vld [vmem:[#allocation3 + $0x8] sm:$0xff]
        %v6557 = vld [vmem:[#allocation3 + $0x10] sm:$0x3]
        %v6558 = vld [vmem:[#allocation3 + $0x18] sm:$0xff]
        %v6559 = vld [vmem:[#allocation3 + $0x20] sm:$0xff]
        %v6560 = vld [vmem:[#allocation3 + $0x28] sm:$0x3]
        %v6561 = vld [vmem:[#allocation3 + $0x30] sm:$0xff]
        %v6562 = vld [vmem:[#allocation3 + $0x38] sm:$0xff]
        %v6563 = vld [vmem:[#allocation3 + $0x40] sm:$0x3]
        %v6564 = vld [vmem:[#allocation3 + $0x48] sm:$0xff]
        %v6565 = vld [vmem:[#allocation3 + $0x50] sm:$0xff]
        %v6566 = vld [vmem:[#allocation3 + $0x58] sm:$0x3]
        %v6567 = vld [vmem:[#allocation3 + $0x60] sm:$0xff]
        %v6568 = vld [vmem:[#allocation3 + $0x68] sm:$0xff]
        %v6569 = vld [vmem:[#allocation3 + $0x70] sm:$0x3]
        %v6570 = vld [vmem:[#allocation3 + $0x78] sm:$0xff]
        %v6571 = vld [vmem:[#allocation3 + $0x80] sm:$0xff]
        %v6572 = vld [vmem:[#allocation3 + $0x88] sm:$0x3]
        %v6573 = vld [vmem:[#allocation3 + $0x90] sm:$0xff]
        %v6574 = vld [vmem:[#allocation3 + $0x98] sm:$0xff]
        %v6575 = vld [vmem:[#allocation3 + $0xa0] sm:$0x3]
        %v6576 = vld [vmem:[#allocation3 + $0xa8] sm:$0xff]
        %v6577 = vld [vmem:[#allocation3 + $0xb0] sm:$0xff]
        %v6578 = vld [vmem:[#allocation3 + $0xb8] sm:$0x3]
        %v6579 = vld [vmem:[#allocation3 + $0xc0] sm:$0xff]
        %v6580 = vld [vmem:[#allocation3 + $0xc8] sm:$0xff]
        %v6581 = vld [vmem:[#allocation3 + $0xd0] sm:$0x3]
        %v6582 = vld [vmem:[#allocation3 + $0xd8] sm:$0xff]
        %v6583 = vld [vmem:[#allocation3 + $0xe0] sm:$0xff]
        %v6584 = vld [vmem:[#allocation3 + $0xe8] sm:$0x3]
        %v6585 = vld [vmem:[#allocation3 + $0xf0] sm:$0xff]
        %v6586 = vld [vmem:[#allocation3 + $0xf8] sm:$0xff]
        %v6587 = vld [vmem:[#allocation3 + $0x100] sm:$0x3]
        %v6588 = vld [vmem:[#allocation3 + $0x108] sm:$0xff]
        %v6589 = vld [vmem:[#allocation3 + $0x110] sm:$0xff]
        %v6590 = vld [vmem:[#allocation3 + $0x118] sm:$0x3]
        %v6591 = vld [vmem:[#allocation3 + $0x120] sm:$0xff]
        %v6592 = vld [vmem:[#allocation3 + $0x128] sm:$0xff]
        %v6593 = vld [vmem:[#allocation3 + $0x130] sm:$0x3]
        %v6594 = vld [vmem:[#allocation3 + $0x138] sm:$0xff]
        %v6595 = vld [vmem:[#allocation3 + $0x140] sm:$0xff]
        %v6596 = vld [vmem:[#allocation3 + $0x148] sm:$0x3]
        %v6597 = vld [vmem:[#allocation3 + $0x150] sm:$0xff]
        %v6598 = vld [vmem:[#allocation3 + $0x158] sm:$0xff]
        %v6599 = vld [vmem:[#allocation3 + $0x160] sm:$0x3]
        %v6600 = vld [vmem:[#allocation3 + $0x168] sm:$0xff]
        %v6601 = vld [vmem:[#allocation3 + $0x170] sm:$0xff]
        %v6602 = vld [vmem:[#allocation3 + $0x178] sm:$0x3]
        %v6603 = vld [vmem:[#allocation3 + $0x180] sm:$0xff]
        %v6604 = vld [vmem:[#allocation3 + $0x188] sm:$0xff]
        %v6605 = vld [vmem:[#allocation3 + $0x190] sm:$0x3]
        %v6640 = vcombine.high %v6555, %v6555
        %v6642 = vunpack.c.l.s4 1983009808
        %v6643 = vunpack.c.0.s8 %v6642
        %v6644 = vlaneseq
        %v6645 = vshrl.u32 %v6644, 7
        %v6646 = vsub.s32 %v6643, %v6645
        %v6647 = vrot.slane %v6555, %v6646
        %v6649 = vunpack.c.l.s4 1983009808
        %v6650 = vunpack.c.0.s8 %v6649
        %v6651 = vlaneseq
        %v6652 = vshrl.u32 %v6651, 7
        %v6653 = vsub.s32 %v6650, %v6652
        %v6654 = vrot.slane %v6640, %v6653
        %v6655 = vcombine.high %v6647, %v6647
        %v6656 = vcombine.high %v6654, %v6654
        %v6657 = vcombine.high %v6556, %v6556
        %v6659 = vunpack.c.l.s4 1983009808
        %v6660 = vunpack.c.0.s8 %v6659
        %v6661 = vlaneseq
        %v6662 = vshrl.u32 %v6661, 7
        %v6663 = vsub.s32 %v6660, %v6662
        %v6664 = vrot.slane %v6556, %v6663
        %v6666 = vunpack.c.l.s4 1983009808
        %v6667 = vunpack.c.0.s8 %v6666
        %v6668 = vlaneseq
        %v6669 = vshrl.u32 %v6668, 7
        %v6670 = vsub.s32 %v6667, %v6669
        %v6671 = vrot.slane %v6657, %v6670
        %v6672 = vcombine.high %v6664, %v6664
        %v6673 = vcombine.high %v6671, %v6671
        %v6674 = vcombine.high %v6558, %v6558
        %v6676 = vunpack.c.l.s4 1983009808
        %v6677 = vunpack.c.0.s8 %v6676
        %v6678 = vlaneseq
        %v6679 = vshrl.u32 %v6678, 7
        %v6680 = vsub.s32 %v6677, %v6679
        %v6681 = vrot.slane %v6558, %v6680
        %v6683 = vunpack.c.l.s4 1983009808
        %v6684 = vunpack.c.0.s8 %v6683
        %v6685 = vlaneseq
        %v6686 = vshrl.u32 %v6685, 7
        %v6687 = vsub.s32 %v6684, %v6686
        %v6688 = vrot.slane %v6674, %v6687
        %v6689 = vcombine.high %v6681, %v6681
        %v6690 = vcombine.high %v6688, %v6688
        %v6691 = vcombine.high %v6559, %v6559
        %v6693 = vunpack.c.l.s4 1983009808
        %v6694 = vunpack.c.0.s8 %v6693
        %v6695 = vlaneseq
        %v6696 = vshrl.u32 %v6695, 7
        %v6697 = vsub.s32 %v6694, %v6696
        %v6698 = vrot.slane %v6559, %v6697
        %v6700 = vunpack.c.l.s4 1983009808
        %v6701 = vunpack.c.0.s8 %v6700
        %v6702 = vlaneseq
        %v6703 = vshrl.u32 %v6702, 7
        %v6704 = vsub.s32 %v6701, %v6703
        %v6705 = vrot.slane %v6691, %v6704
        %v6706 = vcombine.high %v6698, %v6698
        %v6707 = vcombine.high %v6705, %v6705
        %v6708 = vcombine.high %v6561, %v6561
        %v6710 = vunpack.c.l.s4 1983009808
        %v6711 = vunpack.c.0.s8 %v6710
        %v6712 = vlaneseq
        %v6713 = vshrl.u32 %v6712, 7
        %v6714 = vsub.s32 %v6711, %v6713
        %v6715 = vrot.slane %v6561, %v6714
        %v6717 = vunpack.c.l.s4 1983009808
        %v6718 = vunpack.c.0.s8 %v6717
        %v6719 = vlaneseq
        %v6720 = vshrl.u32 %v6719, 7
        %v6721 = vsub.s32 %v6718, %v6720
        %v6722 = vrot.slane %v6708, %v6721
        %v6723 = vcombine.high %v6715, %v6715
        %v6724 = vcombine.high %v6722, %v6722
        %v6725 = vcombine.high %v6562, %v6562
        %v6727 = vunpack.c.l.s4 1983009808
        %v6728 = vunpack.c.0.s8 %v6727
        %v6729 = vlaneseq
        %v6730 = vshrl.u32 %v6729, 7
        %v6731 = vsub.s32 %v6728, %v6730
        %v6732 = vrot.slane %v6562, %v6731
        %v6734 = vunpack.c.l.s4 1983009808
        %v6735 = vunpack.c.0.s8 %v6734
        %v6736 = vlaneseq
        %v6737 = vshrl.u32 %v6736, 7
        %v6738 = vsub.s32 %v6735, %v6737
        %v6739 = vrot.slane %v6725, %v6738
        %v6740 = vcombine.high %v6732, %v6732
        %v6741 = vcombine.high %v6739, %v6739
        %v6742 = vcombine.high %v6564, %v6564
        %v6744 = vunpack.c.l.s4 1983009808
        %v6745 = vunpack.c.0.s8 %v6744
        %v6746 = vlaneseq
        %v6747 = vshrl.u32 %v6746, 7
        %v6748 = vsub.s32 %v6745, %v6747
        %v6749 = vrot.slane %v6564, %v6748
        %v6751 = vunpack.c.l.s4 1983009808
        %v6752 = vunpack.c.0.s8 %v6751
        %v6753 = vlaneseq
        %v6754 = vshrl.u32 %v6753, 7
        %v6755 = vsub.s32 %v6752, %v6754
        %v6756 = vrot.slane %v6742, %v6755
        %v6757 = vcombine.high %v6749, %v6749
        %v6758 = vcombine.high %v6756, %v6756
        %v6759 = vcombine.high %v6565, %v6565
        %v6761 = vunpack.c.l.s4 1983009808
        %v6762 = vunpack.c.0.s8 %v6761
        %v6763 = vlaneseq
        %v6764 = vshrl.u32 %v6763, 7
        %v6765 = vsub.s32 %v6762, %v6764
        %v6766 = vrot.slane %v6565, %v6765
        %v6768 = vunpack.c.l.s4 1983009808
        %v6769 = vunpack.c.0.s8 %v6768
        %v6770 = vlaneseq
        %v6771 = vshrl.u32 %v6770, 7
        %v6772 = vsub.s32 %v6769, %v6771
        %v6773 = vrot.slane %v6759, %v6772
        %v6774 = vcombine.high %v6766, %v6766
        %v6775 = vcombine.high %v6773, %v6773
        %v6776 = vcombine.high %v6567, %v6567
        %v6778 = vunpack.c.l.s4 1983009808
        %v6779 = vunpack.c.0.s8 %v6778
        %v6780 = vlaneseq
        %v6781 = vshrl.u32 %v6780, 7
        %v6782 = vsub.s32 %v6779, %v6781
        %v6783 = vrot.slane %v6567, %v6782
        %v6785 = vunpack.c.l.s4 1983009808
        %v6786 = vunpack.c.0.s8 %v6785
        %v6787 = vlaneseq
        %v6788 = vshrl.u32 %v6787, 7
        %v6789 = vsub.s32 %v6786, %v6788
        %v6790 = vrot.slane %v6776, %v6789
        %v6791 = vcombine.high %v6783, %v6783
        %v6792 = vcombine.high %v6790, %v6790
        %v6793 = vcombine.high %v6568, %v6568
        %v6795 = vunpack.c.l.s4 1983009808
        %v6796 = vunpack.c.0.s8 %v6795
        %v6797 = vlaneseq
        %v6798 = vshrl.u32 %v6797, 7
        %v6799 = vsub.s32 %v6796, %v6798
        %v6800 = vrot.slane %v6568, %v6799
        %v6802 = vunpack.c.l.s4 1983009808
        %v6803 = vunpack.c.0.s8 %v6802
        %v6804 = vlaneseq
        %v6805 = vshrl.u32 %v6804, 7
        %v6806 = vsub.s32 %v6803, %v6805
        %v6807 = vrot.slane %v6793, %v6806
        %v6808 = vcombine.high %v6800, %v6800
        %v6809 = vcombine.high %v6807, %v6807
        %v6810 = vcombine.high %v6570, %v6570
        %v6812 = vunpack.c.l.s4 1983009808
        %v6813 = vunpack.c.0.s8 %v6812
        %v6814 = vlaneseq
        %v6815 = vshrl.u32 %v6814, 7
        %v6816 = vsub.s32 %v6813, %v6815
        %v6817 = vrot.slane %v6570, %v6816
        %v6819 = vunpack.c.l.s4 1983009808
        %v6820 = vunpack.c.0.s8 %v6819
        %v6821 = vlaneseq
        %v6822 = vshrl.u32 %v6821, 7
        %v6823 = vsub.s32 %v6820, %v6822
        %v6824 = vrot.slane %v6810, %v6823
        %v6825 = vcombine.high %v6817, %v6817
        %v6826 = vcombine.high %v6824, %v6824
        %v6827 = vcombine.high %v6571, %v6571
        %v6829 = vunpack.c.l.s4 1983009808
        %v6830 = vunpack.c.0.s8 %v6829
        %v6831 = vlaneseq
        %v6832 = vshrl.u32 %v6831, 7
        %v6833 = vsub.s32 %v6830, %v6832
        %v6834 = vrot.slane %v6571, %v6833
        %v6836 = vunpack.c.l.s4 1983009808
        %v6837 = vunpack.c.0.s8 %v6836
        %v6838 = vlaneseq
        %v6839 = vshrl.u32 %v6838, 7
        %v6840 = vsub.s32 %v6837, %v6839
        %v6841 = vrot.slane %v6827, %v6840
        %v6842 = vcombine.high %v6834, %v6834
        %v6843 = vcombine.high %v6841, %v6841
        %v6844 = vcombine.high %v6573, %v6573
        %v6846 = vunpack.c.l.s4 1983009808
        %v6847 = vunpack.c.0.s8 %v6846
        %v6848 = vlaneseq
        %v6849 = vshrl.u32 %v6848, 7
        %v6850 = vsub.s32 %v6847, %v6849
        %v6851 = vrot.slane %v6573, %v6850
        %v6853 = vunpack.c.l.s4 1983009808
        %v6854 = vunpack.c.0.s8 %v6853
        %v6855 = vlaneseq
        %v6856 = vshrl.u32 %v6855, 7
        %v6857 = vsub.s32 %v6854, %v6856
        %v6858 = vrot.slane %v6844, %v6857
        %v6859 = vcombine.high %v6851, %v6851
        %v6860 = vcombine.high %v6858, %v6858
        %v6861 = vcombine.high %v6574, %v6574
        %v6863 = vunpack.c.l.s4 1983009808
        %v6864 = vunpack.c.0.s8 %v6863
        %v6865 = vlaneseq
        %v6866 = vshrl.u32 %v6865, 7
        %v6867 = vsub.s32 %v6864, %v6866
        %v6868 = vrot.slane %v6574, %v6867
        %v6870 = vunpack.c.l.s4 1983009808
        %v6871 = vunpack.c.0.s8 %v6870
        %v6872 = vlaneseq
        %v6873 = vshrl.u32 %v6872, 7
        %v6874 = vsub.s32 %v6871, %v6873
        %v6875 = vrot.slane %v6861, %v6874
        %v6876 = vcombine.high %v6868, %v6868
        %v6877 = vcombine.high %v6875, %v6875
        %v6878 = vcombine.high %v6576, %v6576
        %v6880 = vunpack.c.l.s4 1983009808
        %v6881 = vunpack.c.0.s8 %v6880
        %v6882 = vlaneseq
        %v6883 = vshrl.u32 %v6882, 7
        %v6884 = vsub.s32 %v6881, %v6883
        %v6885 = vrot.slane %v6576, %v6884
        %v6887 = vunpack.c.l.s4 1983009808
        %v6888 = vunpack.c.0.s8 %v6887
        %v6889 = vlaneseq
        %v6890 = vshrl.u32 %v6889, 7
        %v6891 = vsub.s32 %v6888, %v6890
        %v6892 = vrot.slane %v6878, %v6891
        %v6893 = vcombine.high %v6885, %v6885
        %v6894 = vcombine.high %v6892, %v6892
        %v6895 = vcombine.high %v6577, %v6577
        %v6897 = vunpack.c.l.s4 1983009808
        %v6898 = vunpack.c.0.s8 %v6897
        %v6899 = vlaneseq
        %v6900 = vshrl.u32 %v6899, 7
        %v6901 = vsub.s32 %v6898, %v6900
        %v6902 = vrot.slane %v6577, %v6901
        %v6904 = vunpack.c.l.s4 1983009808
        %v6905 = vunpack.c.0.s8 %v6904
        %v6906 = vlaneseq
        %v6907 = vshrl.u32 %v6906, 7
        %v6908 = vsub.s32 %v6905, %v6907
        %v6909 = vrot.slane %v6895, %v6908
        %v6910 = vcombine.high %v6902, %v6902
        %v6911 = vcombine.high %v6909, %v6909
        %v6912 = vcombine.high %v6579, %v6579
        %v6914 = vunpack.c.l.s4 1983009808
        %v6915 = vunpack.c.0.s8 %v6914
        %v6916 = vlaneseq
        %v6917 = vshrl.u32 %v6916, 7
        %v6918 = vsub.s32 %v6915, %v6917
        %v6919 = vrot.slane %v6579, %v6918
        %v6921 = vunpack.c.l.s4 1983009808
        %v6922 = vunpack.c.0.s8 %v6921
        %v6923 = vlaneseq
        %v6924 = vshrl.u32 %v6923, 7
        %v6925 = vsub.s32 %v6922, %v6924
        %v6926 = vrot.slane %v6912, %v6925
        %v6927 = vcombine.high %v6919, %v6919
        %v6928 = vcombine.high %v6926, %v6926
        %v6929 = vcombine.high %v6580, %v6580
        %v6931 = vunpack.c.l.s4 1983009808
        %v6932 = vunpack.c.0.s8 %v6931
        %v6933 = vlaneseq
        %v6934 = vshrl.u32 %v6933, 7
        %v6935 = vsub.s32 %v6932, %v6934
        %v6936 = vrot.slane %v6580, %v6935
        %v6938 = vunpack.c.l.s4 1983009808
        %v6939 = vunpack.c.0.s8 %v6938
        %v6940 = vlaneseq
        %v6941 = vshrl.u32 %v6940, 7
        %v6942 = vsub.s32 %v6939, %v6941
        %v6943 = vrot.slane %v6929, %v6942
        %v6944 = vcombine.high %v6936, %v6936
        %v6945 = vcombine.high %v6943, %v6943
        %v6946 = vcombine.high %v6582, %v6582
        %v6948 = vunpack.c.l.s4 1983009808
        %v6949 = vunpack.c.0.s8 %v6948
        %v6950 = vlaneseq
        %v6951 = vshrl.u32 %v6950, 7
        %v6952 = vsub.s32 %v6949, %v6951
        %v6953 = vrot.slane %v6582, %v6952
        %v6955 = vunpack.c.l.s4 1983009808
        %v6956 = vunpack.c.0.s8 %v6955
        %v6957 = vlaneseq
        %v6958 = vshrl.u32 %v6957, 7
        %v6959 = vsub.s32 %v6956, %v6958
        %v6960 = vrot.slane %v6946, %v6959
        %v6961 = vcombine.high %v6953, %v6953
        %v6962 = vcombine.high %v6960, %v6960
        %v6963 = vcombine.high %v6583, %v6583
        %v6965 = vunpack.c.l.s4 1983009808
        %v6966 = vunpack.c.0.s8 %v6965
        %v6967 = vlaneseq
        %v6968 = vshrl.u32 %v6967, 7
        %v6969 = vsub.s32 %v6966, %v6968
        %v6970 = vrot.slane %v6583, %v6969
        %v6972 = vunpack.c.l.s4 1983009808
        %v6973 = vunpack.c.0.s8 %v6972
        %v6974 = vlaneseq
        %v6975 = vshrl.u32 %v6974, 7
        %v6976 = vsub.s32 %v6973, %v6975
        %v6977 = vrot.slane %v6963, %v6976
        %v6978 = vcombine.high %v6970, %v6970
        %v6979 = vcombine.high %v6977, %v6977
        %v6980 = vcombine.high %v6585, %v6585
        %v6982 = vunpack.c.l.s4 1983009808
        %v6983 = vunpack.c.0.s8 %v6982
        %v6984 = vlaneseq
        %v6985 = vshrl.u32 %v6984, 7
        %v6986 = vsub.s32 %v6983, %v6985
        %v6987 = vrot.slane %v6585, %v6986
        %v6989 = vunpack.c.l.s4 1983009808
        %v6990 = vunpack.c.0.s8 %v6989
        %v6991 = vlaneseq
        %v6992 = vshrl.u32 %v6991, 7
        %v6993 = vsub.s32 %v6990, %v6992
        %v6994 = vrot.slane %v6980, %v6993
        %v6995 = vcombine.high %v6987, %v6987
        %v6996 = vcombine.high %v6994, %v6994
        %v6997 = vcombine.high %v6586, %v6586
        %v6999 = vunpack.c.l.s4 1983009808
        %v7000 = vunpack.c.0.s8 %v6999
        %v7001 = vlaneseq
        %v7002 = vshrl.u32 %v7001, 7
        %v7003 = vsub.s32 %v7000, %v7002
        %v7004 = vrot.slane %v6586, %v7003
        %v7006 = vunpack.c.l.s4 1983009808
        %v7007 = vunpack.c.0.s8 %v7006
        %v7008 = vlaneseq
        %v7009 = vshrl.u32 %v7008, 7
        %v7010 = vsub.s32 %v7007, %v7009
        %v7011 = vrot.slane %v6997, %v7010
        %v7012 = vcombine.high %v7004, %v7004
        %v7013 = vcombine.high %v7011, %v7011
        %v7014 = vcombine.high %v6588, %v6588
        %v7016 = vunpack.c.l.s4 1983009808
        %v7017 = vunpack.c.0.s8 %v7016
        %v7018 = vlaneseq
        %v7019 = vshrl.u32 %v7018, 7
        %v7020 = vsub.s32 %v7017, %v7019
        %v7021 = vrot.slane %v6588, %v7020
        %v7023 = vunpack.c.l.s4 1983009808
        %v7024 = vunpack.c.0.s8 %v7023
        %v7025 = vlaneseq
        %v7026 = vshrl.u32 %v7025, 7
        %v7027 = vsub.s32 %v7024, %v7026
        %v7028 = vrot.slane %v7014, %v7027
        %v7029 = vcombine.high %v7021, %v7021
        %v7030 = vcombine.high %v7028, %v7028
        %v7031 = vcombine.high %v6589, %v6589
        %v7033 = vunpack.c.l.s4 1983009808
        %v7034 = vunpack.c.0.s8 %v7033
        %v7035 = vlaneseq
        %v7036 = vshrl.u32 %v7035, 7
        %v7037 = vsub.s32 %v7034, %v7036
        %v7038 = vrot.slane %v6589, %v7037
        %v7040 = vunpack.c.l.s4 1983009808
        %v7041 = vunpack.c.0.s8 %v7040
        %v7042 = vlaneseq
        %v7043 = vshrl.u32 %v7042, 7
        %v7044 = vsub.s32 %v7041, %v7043
        %v7045 = vrot.slane %v7031, %v7044
        %v7046 = vcombine.high %v7038, %v7038
        %v7047 = vcombine.high %v7045, %v7045
        %v7048 = vcombine.high %v6591, %v6591
        %v7050 = vunpack.c.l.s4 1983009808
        %v7051 = vunpack.c.0.s8 %v7050
        %v7052 = vlaneseq
        %v7053 = vshrl.u32 %v7052, 7
        %v7054 = vsub.s32 %v7051, %v7053
        %v7055 = vrot.slane %v6591, %v7054
        %v7057 = vunpack.c.l.s4 1983009808
        %v7058 = vunpack.c.0.s8 %v7057
        %v7059 = vlaneseq
        %v7060 = vshrl.u32 %v7059, 7
        %v7061 = vsub.s32 %v7058, %v7060
        %v7062 = vrot.slane %v7048, %v7061
        %v7063 = vcombine.high %v7055, %v7055
        %v7064 = vcombine.high %v7062, %v7062
        %v7065 = vcombine.high %v6592, %v6592
        %v7067 = vunpack.c.l.s4 1983009808
        %v7068 = vunpack.c.0.s8 %v7067
        %v7069 = vlaneseq
        %v7070 = vshrl.u32 %v7069, 7
        %v7071 = vsub.s32 %v7068, %v7070
        %v7072 = vrot.slane %v6592, %v7071
        %v7074 = vunpack.c.l.s4 1983009808
        %v7075 = vunpack.c.0.s8 %v7074
        %v7076 = vlaneseq
        %v7077 = vshrl.u32 %v7076, 7
        %v7078 = vsub.s32 %v7075, %v7077
        %v7079 = vrot.slane %v7065, %v7078
        %v7080 = vcombine.high %v7072, %v7072
        %v7081 = vcombine.high %v7079, %v7079
        %v7082 = vcombine.high %v6594, %v6594
        %v7084 = vunpack.c.l.s4 1983009808
        %v7085 = vunpack.c.0.s8 %v7084
        %v7086 = vlaneseq
        %v7087 = vshrl.u32 %v7086, 7
        %v7088 = vsub.s32 %v7085, %v7087
        %v7089 = vrot.slane %v6594, %v7088
        %v7091 = vunpack.c.l.s4 1983009808
        %v7092 = vunpack.c.0.s8 %v7091
        %v7093 = vlaneseq
        %v7094 = vshrl.u32 %v7093, 7
        %v7095 = vsub.s32 %v7092, %v7094
        %v7096 = vrot.slane %v7082, %v7095
        %v7097 = vcombine.high %v7089, %v7089
        %v7098 = vcombine.high %v7096, %v7096
        %v7099 = vcombine.high %v6595, %v6595
        %v7101 = vunpack.c.l.s4 1983009808
        %v7102 = vunpack.c.0.s8 %v7101
        %v7103 = vlaneseq
        %v7104 = vshrl.u32 %v7103, 7
        %v7105 = vsub.s32 %v7102, %v7104
        %v7106 = vrot.slane %v6595, %v7105
        %v7108 = vunpack.c.l.s4 1983009808
        %v7109 = vunpack.c.0.s8 %v7108
        %v7110 = vlaneseq
        %v7111 = vshrl.u32 %v7110, 7
        %v7112 = vsub.s32 %v7109, %v7111
        %v7113 = vrot.slane %v7099, %v7112
        %v7114 = vcombine.high %v7106, %v7106
        %v7115 = vcombine.high %v7113, %v7113
        %v7116 = vcombine.high %v6597, %v6597
        %v7118 = vunpack.c.l.s4 1983009808
        %v7119 = vunpack.c.0.s8 %v7118
        %v7120 = vlaneseq
        %v7121 = vshrl.u32 %v7120, 7
        %v7122 = vsub.s32 %v7119, %v7121
        %v7123 = vrot.slane %v6597, %v7122
        %v7125 = vunpack.c.l.s4 1983009808
        %v7126 = vunpack.c.0.s8 %v7125
        %v7127 = vlaneseq
        %v7128 = vshrl.u32 %v7127, 7
        %v7129 = vsub.s32 %v7126, %v7128
        %v7130 = vrot.slane %v7116, %v7129
        %v7131 = vcombine.high %v7123, %v7123
        %v7132 = vcombine.high %v7130, %v7130
        %v7133 = vcombine.high %v6598, %v6598
        %v7135 = vunpack.c.l.s4 1983009808
        %v7136 = vunpack.c.0.s8 %v7135
        %v7137 = vlaneseq
        %v7138 = vshrl.u32 %v7137, 7
        %v7139 = vsub.s32 %v7136, %v7138
        %v7140 = vrot.slane %v6598, %v7139
        %v7142 = vunpack.c.l.s4 1983009808
        %v7143 = vunpack.c.0.s8 %v7142
        %v7144 = vlaneseq
        %v7145 = vshrl.u32 %v7144, 7
        %v7146 = vsub.s32 %v7143, %v7145
        %v7147 = vrot.slane %v7133, %v7146
        %v7148 = vcombine.high %v7140, %v7140
        %v7149 = vcombine.high %v7147, %v7147
        %v7150 = vcombine.high %v6600, %v6600
        %v7152 = vunpack.c.l.s4 1983009808
        %v7153 = vunpack.c.0.s8 %v7152
        %v7154 = vlaneseq
        %v7155 = vshrl.u32 %v7154, 7
        %v7156 = vsub.s32 %v7153, %v7155
        %v7157 = vrot.slane %v6600, %v7156
        %v7159 = vunpack.c.l.s4 1983009808
        %v7160 = vunpack.c.0.s8 %v7159
        %v7161 = vlaneseq
        %v7162 = vshrl.u32 %v7161, 7
        %v7163 = vsub.s32 %v7160, %v7162
        %v7164 = vrot.slane %v7150, %v7163
        %v7165 = vcombine.high %v7157, %v7157
        %v7166 = vcombine.high %v7164, %v7164
        %v7167 = vcombine.high %v6601, %v6601
        %v7169 = vunpack.c.l.s4 1983009808
        %v7170 = vunpack.c.0.s8 %v7169
        %v7171 = vlaneseq
        %v7172 = vshrl.u32 %v7171, 7
        %v7173 = vsub.s32 %v7170, %v7172
        %v7174 = vrot.slane %v6601, %v7173
        %v7176 = vunpack.c.l.s4 1983009808
        %v7177 = vunpack.c.0.s8 %v7176
        %v7178 = vlaneseq
        %v7179 = vshrl.u32 %v7178, 7
        %v7180 = vsub.s32 %v7177, %v7179
        %v7181 = vrot.slane %v7167, %v7180
        %v7182 = vcombine.high %v7174, %v7174
        %v7183 = vcombine.high %v7181, %v7181
        %v7184 = vcombine.high %v6603, %v6603
        %v7186 = vunpack.c.l.s4 1983009808
        %v7187 = vunpack.c.0.s8 %v7186
        %v7188 = vlaneseq
        %v7189 = vshrl.u32 %v7188, 7
        %v7190 = vsub.s32 %v7187, %v7189
        %v7191 = vrot.slane %v6603, %v7190
        %v7193 = vunpack.c.l.s4 1983009808
        %v7194 = vunpack.c.0.s8 %v7193
        %v7195 = vlaneseq
        %v7196 = vshrl.u32 %v7195, 7
        %v7197 = vsub.s32 %v7194, %v7196
        %v7198 = vrot.slane %v7184, %v7197
        %v7199 = vcombine.high %v7191, %v7191
        %v7200 = vcombine.high %v7198, %v7198
        %v7201 = vcombine.high %v6604, %v6604
        %v7203 = vunpack.c.l.s4 1983009808
        %v7204 = vunpack.c.0.s8 %v7203
        %v7205 = vlaneseq
        %v7206 = vshrl.u32 %v7205, 7
        %v7207 = vsub.s32 %v7204, %v7206
        %v7208 = vrot.slane %v6604, %v7207
        %v7210 = vunpack.c.l.s4 1983009808
        %v7211 = vunpack.c.0.s8 %v7210
        %v7212 = vlaneseq
        %v7213 = vshrl.u32 %v7212, 7
        %v7214 = vsub.s32 %v7211, %v7213
        %v7215 = vrot.slane %v7201, %v7214
        %v7216 = vcombine.high %v7208, %v7208
        %v7217 = vcombine.high %v7215, %v7215
        %v7372 = vunpack.c.l.s4 1983009808
        %v7373 = vunpack.c.0.s8 %v7372
        %v7374 = vlaneseq
        %v7375 = vshrl.u32 %v7374, 7
        %v7376 = vsub.s32 %v7373, %v7375
        %v7377 = vrot.slane %v6557, %v7376
        %v7379 = vunpack.c.l.s4 1983009808
        %v7380 = vunpack.c.0.s8 %v7379
        %v7381 = vlaneseq
        %v7382 = vshrl.u32 %v7381, 7
        %v7383 = vsub.s32 %v7380, %v7382
        %v7384 = vrot.slane %v6560, %v7383
        %v7386 = vunpack.c.l.s4 1983009808
        %v7387 = vunpack.c.0.s8 %v7386
        %v7388 = vlaneseq
        %v7389 = vshrl.u32 %v7388, 7
        %v7390 = vsub.s32 %v7387, %v7389
        %v7391 = vrot.slane %v6563, %v7390
        %v7393 = vunpack.c.l.s4 1983009808
        %v7394 = vunpack.c.0.s8 %v7393
        %v7395 = vlaneseq
        %v7396 = vshrl.u32 %v7395, 7
        %v7397 = vsub.s32 %v7394, %v7396
        %v7398 = vrot.slane %v6566, %v7397
        %v7400 = vunpack.c.l.s4 1983009808
        %v7401 = vunpack.c.0.s8 %v7400
        %v7402 = vlaneseq
        %v7403 = vshrl.u32 %v7402, 7
        %v7404 = vsub.s32 %v7401, %v7403
        %v7405 = vrot.slane %v6569, %v7404
        %v7407 = vunpack.c.l.s4 1983009808
        %v7408 = vunpack.c.0.s8 %v7407
        %v7409 = vlaneseq
        %v7410 = vshrl.u32 %v7409, 7
        %v7411 = vsub.s32 %v7408, %v7410
        %v7412 = vrot.slane %v6572, %v7411
        %v7414 = vunpack.c.l.s4 1983009808
        %v7415 = vunpack.c.0.s8 %v7414
        %v7416 = vlaneseq
        %v7417 = vshrl.u32 %v7416, 7
        %v7418 = vsub.s32 %v7415, %v7417
        %v7419 = vrot.slane %v6575, %v7418
        %v7421 = vunpack.c.l.s4 1983009808
        %v7422 = vunpack.c.0.s8 %v7421
        %v7423 = vlaneseq
        %v7424 = vshrl.u32 %v7423, 7
        %v7425 = vsub.s32 %v7422, %v7424
        %v7426 = vrot.slane %v6578, %v7425
        %v7428 = vunpack.c.l.s4 1983009808
        %v7429 = vunpack.c.0.s8 %v7428
        %v7430 = vlaneseq
        %v7431 = vshrl.u32 %v7430, 7
        %v7432 = vsub.s32 %v7429, %v7431
        %v7433 = vrot.slane %v6581, %v7432
        %v7435 = vunpack.c.l.s4 1983009808
        %v7436 = vunpack.c.0.s8 %v7435
        %v7437 = vlaneseq
        %v7438 = vshrl.u32 %v7437, 7
        %v7439 = vsub.s32 %v7436, %v7438
        %v7440 = vrot.slane %v6584, %v7439
        %v7442 = vunpack.c.l.s4 1983009808
        %v7443 = vunpack.c.0.s8 %v7442
        %v7444 = vlaneseq
        %v7445 = vshrl.u32 %v7444, 7
        %v7446 = vsub.s32 %v7443, %v7445
        %v7447 = vrot.slane %v6587, %v7446
        %v7449 = vunpack.c.l.s4 1983009808
        %v7450 = vunpack.c.0.s8 %v7449
        %v7451 = vlaneseq
        %v7452 = vshrl.u32 %v7451, 7
        %v7453 = vsub.s32 %v7450, %v7452
        %v7454 = vrot.slane %v6590, %v7453
        %v7456 = vunpack.c.l.s4 1983009808
        %v7457 = vunpack.c.0.s8 %v7456
        %v7458 = vlaneseq
        %v7459 = vshrl.u32 %v7458, 7
        %v7460 = vsub.s32 %v7457, %v7459
        %v7461 = vrot.slane %v6593, %v7460
        %v7463 = vunpack.c.l.s4 1983009808
        %v7464 = vunpack.c.0.s8 %v7463
        %v7465 = vlaneseq
        %v7466 = vshrl.u32 %v7465, 7
        %v7467 = vsub.s32 %v7464, %v7466
        %v7468 = vrot.slane %v6596, %v7467
        %v7470 = vunpack.c.l.s4 1983009808
        %v7471 = vunpack.c.0.s8 %v7470
        %v7472 = vlaneseq
        %v7473 = vshrl.u32 %v7472, 7
        %v7474 = vsub.s32 %v7471, %v7473
        %v7475 = vrot.slane %v6599, %v7474
        %v7477 = vunpack.c.l.s4 1983009808
        %v7478 = vunpack.c.0.s8 %v7477
        %v7479 = vlaneseq
        %v7480 = vshrl.u32 %v7479, 7
        %v7481 = vsub.s32 %v7478, %v7480
        %v7482 = vrot.slane %v6602, %v7481
        %v7484 = vunpack.c.l.s4 1983009808
        %v7485 = vunpack.c.0.s8 %v7484
        %v7486 = vlaneseq
        %v7487 = vshrl.u32 %v7486, 7
        %v7488 = vsub.s32 %v7485, %v7487
        %v7489 = vrot.slane %v6605, %v7488
        %v7507 = vrot.slane %v6647, 7
        %v7508 = vrot.slane %v7507, 2
        %v7509 = vrot.slane %v6655, 7
        %v7510 = vrot.slane %v7509, 2
        %v7511 = vrot.slane %v6654, 7
        %v7512 = vrot.slane %v7511, 2
        %v7513 = vrot.slane %v6656, 7
        %v7514 = vrot.slane %v7513, 2
        %v7515 = vrot.slane %v6664, 7
        %v7516 = vrot.slane %v7515, 2
        %v7517 = vrot.slane %v6672, 7
        %v7518 = vrot.slane %v7517, 2
        %v7519 = vrot.slane %v6671, 7
        %v7520 = vrot.slane %v7519, 2
        %v7521 = vrot.slane %v6673, 7
        %v7522 = vrot.slane %v7521, 2
        %v7523 = vrot.slane %v6681, 7
        %v7524 = vrot.slane %v7523, 2
        %v7525 = vrot.slane %v6689, 7
        %v7526 = vrot.slane %v7525, 2
        %v7527 = vrot.slane %v6688, 7
        %v7528 = vrot.slane %v7527, 2
        %v7529 = vrot.slane %v6690, 7
        %v7530 = vrot.slane %v7529, 2
        %v7531 = vrot.slane %v6698, 7
        %v7532 = vrot.slane %v7531, 2
        %v7533 = vrot.slane %v6706, 7
        %v7534 = vrot.slane %v7533, 2
        %v7535 = vrot.slane %v6705, 7
        %v7536 = vrot.slane %v7535, 2
        %v7537 = vrot.slane %v6707, 7
        %v7538 = vrot.slane %v7537, 2
        %v7539 = vrot.slane %v6715, 7
        %v7540 = vrot.slane %v7539, 2
        %v7541 = vrot.slane %v6723, 7
        %v7542 = vrot.slane %v7541, 2
        %v7543 = vrot.slane %v6722, 7
        %v7544 = vrot.slane %v7543, 2
        %v7545 = vrot.slane %v6724, 7
        %v7546 = vrot.slane %v7545, 2
        %v7547 = vrot.slane %v6732, 7
        %v7548 = vrot.slane %v7547, 2
        %v7549 = vrot.slane %v6740, 7
        %v7550 = vrot.slane %v7549, 2
        %v7551 = vrot.slane %v6739, 7
        %v7552 = vrot.slane %v7551, 2
        %v7553 = vrot.slane %v6741, 7
        %v7554 = vrot.slane %v7553, 2
        %v7555 = vrot.slane %v6749, 7
        %v7556 = vrot.slane %v7555, 2
        %v7557 = vrot.slane %v6757, 7
        %v7558 = vrot.slane %v7557, 2
        %v7559 = vrot.slane %v6756, 7
        %v7560 = vrot.slane %v7559, 2
        %v7561 = vrot.slane %v6758, 7
        %v7562 = vrot.slane %v7561, 2
        %v7563 = vrot.slane %v6766, 7
        %v7564 = vrot.slane %v7563, 2
        %v7565 = vrot.slane %v6774, 7
        %v7566 = vrot.slane %v7565, 2
        %v7567 = vrot.slane %v6773, 7
        %v7568 = vrot.slane %v7567, 2
        %v7569 = vrot.slane %v6775, 7
        %v7570 = vrot.slane %v7569, 2
        %v7571 = vrot.slane %v6783, 7
        %v7572 = vrot.slane %v7571, 2
        %v7573 = vrot.slane %v6791, 7
        %v7574 = vrot.slane %v7573, 2
        %v7575 = vrot.slane %v6790, 7
        %v7576 = vrot.slane %v7575, 2
        %v7577 = vrot.slane %v6792, 7
        %v7578 = vrot.slane %v7577, 2
        %v7579 = vrot.slane %v6800, 7
        %v7580 = vrot.slane %v7579, 2
        %v7581 = vrot.slane %v6808, 7
        %v7582 = vrot.slane %v7581, 2
        %v7583 = vrot.slane %v6807, 7
        %v7584 = vrot.slane %v7583, 2
        %v7585 = vrot.slane %v6809, 7
        %v7586 = vrot.slane %v7585, 2
        %v7587 = vrot.slane %v6817, 7
        %v7588 = vrot.slane %v7587, 2
        %v7589 = vrot.slane %v6825, 7
        %v7590 = vrot.slane %v7589, 2
        %v7591 = vrot.slane %v6824, 7
        %v7592 = vrot.slane %v7591, 2
        %v7593 = vrot.slane %v6826, 7
        %v7594 = vrot.slane %v7593, 2
        %v7595 = vrot.slane %v6834, 7
        %v7596 = vrot.slane %v7595, 2
        %v7597 = vrot.slane %v6842, 7
        %v7598 = vrot.slane %v7597, 2
        %v7599 = vrot.slane %v6841, 7
        %v7600 = vrot.slane %v7599, 2
        %v7601 = vrot.slane %v6843, 7
        %v7602 = vrot.slane %v7601, 2
        %v7603 = vrot.slane %v6851, 7
        %v7604 = vrot.slane %v7603, 2
        %v7605 = vrot.slane %v6859, 7
        %v7606 = vrot.slane %v7605, 2
        %v7607 = vrot.slane %v6858, 7
        %v7608 = vrot.slane %v7607, 2
        %v7609 = vrot.slane %v6860, 7
        %v7610 = vrot.slane %v7609, 2
        %v7611 = vrot.slane %v6868, 7
        %v7612 = vrot.slane %v7611, 2
        %v7613 = vrot.slane %v6876, 7
        %v7614 = vrot.slane %v7613, 2
        %v7615 = vrot.slane %v6875, 7
        %v7616 = vrot.slane %v7615, 2
        %v7617 = vrot.slane %v6877, 7
        %v7618 = vrot.slane %v7617, 2
        %v7619 = vrot.slane %v6885, 7
        %v7620 = vrot.slane %v7619, 2
        %v7621 = vrot.slane %v6893, 7
        %v7622 = vrot.slane %v7621, 2
        %v7623 = vrot.slane %v6892, 7
        %v7624 = vrot.slane %v7623, 2
        %v7625 = vrot.slane %v6894, 7
        %v7626 = vrot.slane %v7625, 2
        %v7627 = vrot.slane %v6902, 7
        %v7628 = vrot.slane %v7627, 2
        %v7629 = vrot.slane %v6910, 7
        %v7630 = vrot.slane %v7629, 2
        %v7631 = vrot.slane %v6909, 7
        %v7632 = vrot.slane %v7631, 2
        %v7633 = vrot.slane %v6911, 7
        %v7634 = vrot.slane %v7633, 2
        %v7635 = vrot.slane %v6919, 7
        %v7636 = vrot.slane %v7635, 2
        %v7637 = vrot.slane %v6927, 7
        %v7638 = vrot.slane %v7637, 2
        %v7639 = vrot.slane %v6926, 7
        %v7640 = vrot.slane %v7639, 2
        %v7641 = vrot.slane %v6928, 7
        %v7642 = vrot.slane %v7641, 2
        %v7643 = vrot.slane %v6936, 7
        %v7644 = vrot.slane %v7643, 2
        %v7645 = vrot.slane %v6944, 7
        %v7646 = vrot.slane %v7645, 2
        %v7647 = vrot.slane %v6943, 7
        %v7648 = vrot.slane %v7647, 2
        %v7649 = vrot.slane %v6945, 7
        %v7650 = vrot.slane %v7649, 2
        %v7651 = vrot.slane %v6953, 7
        %v7652 = vrot.slane %v7651, 2
        %v7653 = vrot.slane %v6961, 7
        %v7654 = vrot.slane %v7653, 2
        %v7655 = vrot.slane %v6960, 7
        %v7656 = vrot.slane %v7655, 2
        %v7657 = vrot.slane %v6962, 7
        %v7658 = vrot.slane %v7657, 2
        %v7659 = vrot.slane %v6970, 7
        %v7660 = vrot.slane %v7659, 2
        %v7661 = vrot.slane %v6978, 7
        %v7662 = vrot.slane %v7661, 2
        %v7663 = vrot.slane %v6977, 7
        %v7664 = vrot.slane %v7663, 2
        %v7665 = vrot.slane %v6979, 7
        %v7666 = vrot.slane %v7665, 2
        %v7667 = vrot.slane %v6987, 7
        %v7668 = vrot.slane %v7667, 2
        %v7669 = vrot.slane %v6995, 7
        %v7670 = vrot.slane %v7669, 2
        %v7671 = vrot.slane %v6994, 7
        %v7672 = vrot.slane %v7671, 2
        %v7673 = vrot.slane %v6996, 7
        %v7674 = vrot.slane %v7673, 2
        %v7675 = vrot.slane %v7004, 7
        %v7676 = vrot.slane %v7675, 2
        %v7677 = vrot.slane %v7012, 7
        %v7678 = vrot.slane %v7677, 2
        %v7679 = vrot.slane %v7011, 7
        %v7680 = vrot.slane %v7679, 2
        %v7681 = vrot.slane %v7013, 7
        %v7682 = vrot.slane %v7681, 2
        %v7683 = vrot.slane %v7021, 7
        %v7684 = vrot.slane %v7683, 2
        %v7685 = vrot.slane %v7029, 7
        %v7686 = vrot.slane %v7685, 2
        %v7687 = vrot.slane %v7028, 7
        %v7688 = vrot.slane %v7687, 2
        %v7689 = vrot.slane %v7030, 7
        %v7690 = vrot.slane %v7689, 2
        %v7691 = vrot.slane %v7038, 7
        %v7692 = vrot.slane %v7691, 2
        %v7693 = vrot.slane %v7046, 7
        %v7694 = vrot.slane %v7693, 2
        %v7695 = vrot.slane %v7045, 7
        %v7696 = vrot.slane %v7695, 2
        %v7697 = vrot.slane %v7047, 7
        %v7698 = vrot.slane %v7697, 2
        %v7699 = vrot.slane %v7055, 7
        %v7700 = vrot.slane %v7699, 2
        %v7701 = vrot.slane %v7063, 7
        %v7702 = vrot.slane %v7701, 2
        %v7703 = vrot.slane %v7062, 7
        %v7704 = vrot.slane %v7703, 2
        %v7705 = vrot.slane %v7064, 7
        %v7706 = vrot.slane %v7705, 2
        %v7707 = vrot.slane %v7072, 7
        %v7708 = vrot.slane %v7707, 2
        %v7709 = vrot.slane %v7080, 7
        %v7710 = vrot.slane %v7709, 2
        %v7711 = vrot.slane %v7079, 7
        %v7712 = vrot.slane %v7711, 2
        %v7713 = vrot.slane %v7081, 7
        %v7714 = vrot.slane %v7713, 2
        %v7715 = vrot.slane %v7089, 7
        %v7716 = vrot.slane %v7715, 2
        %v7717 = vrot.slane %v7097, 7
        %v7718 = vrot.slane %v7717, 2
        %v7719 = vrot.slane %v7096, 7
        %v7720 = vrot.slane %v7719, 2
        %v7721 = vrot.slane %v7098, 7
        %v7722 = vrot.slane %v7721, 2
        %v7723 = vrot.slane %v7106, 7
        %v7724 = vrot.slane %v7723, 2
        %v7725 = vrot.slane %v7114, 7
        %v7726 = vrot.slane %v7725, 2
        %v7727 = vrot.slane %v7113, 7
        %v7728 = vrot.slane %v7727, 2
        %v7729 = vrot.slane %v7115, 7
        %v7730 = vrot.slane %v7729, 2
        %v7731 = vrot.slane %v7123, 7
        %v7732 = vrot.slane %v7731, 2
        %v7733 = vrot.slane %v7131, 7
        %v7734 = vrot.slane %v7733, 2
        %v7735 = vrot.slane %v7130, 7
        %v7736 = vrot.slane %v7735, 2
        %v7737 = vrot.slane %v7132, 7
        %v7738 = vrot.slane %v7737, 2
        %v7739 = vrot.slane %v7140, 7
        %v7740 = vrot.slane %v7739, 2
        %v7741 = vrot.slane %v7148, 7
        %v7742 = vrot.slane %v7741, 2
        %v7743 = vrot.slane %v7147, 7
        %v7744 = vrot.slane %v7743, 2
        %v7745 = vrot.slane %v7149, 7
        %v7746 = vrot.slane %v7745, 2
        %v7747 = vrot.slane %v7157, 7
        %v7748 = vrot.slane %v7747, 2
        %v7749 = vrot.slane %v7165, 7
        %v7750 = vrot.slane %v7749, 2
        %v7751 = vrot.slane %v7164, 7
        %v7752 = vrot.slane %v7751, 2
        %v7753 = vrot.slane %v7166, 7
        %v7754 = vrot.slane %v7753, 2
        %v7755 = vrot.slane %v7174, 7
        %v7756 = vrot.slane %v7755, 2
        %v7757 = vrot.slane %v7182, 7
        %v7758 = vrot.slane %v7757, 2
        %v7759 = vrot.slane %v7181, 7
        %v7760 = vrot.slane %v7759, 2
        %v7761 = vrot.slane %v7183, 7
        %v7762 = vrot.slane %v7761, 2
        %v7763 = vrot.slane %v7191, 7
        %v7764 = vrot.slane %v7763, 2
        %v7765 = vrot.slane %v7199, 7
        %v7766 = vrot.slane %v7765, 2
        %v7767 = vrot.slane %v7198, 7
        %v7768 = vrot.slane %v7767, 2
        %v7769 = vrot.slane %v7200, 7
        %v7770 = vrot.slane %v7769, 2
        %v7771 = vrot.slane %v7208, 7
        %v7772 = vrot.slane %v7771, 2
        %v7773 = vrot.slane %v7216, 7
        %v7774 = vrot.slane %v7773, 2
        %v7775 = vrot.slane %v7215, 7
        %v7776 = vrot.slane %v7775, 2
        %v7777 = vrot.slane %v7217, 7
        %v7778 = vrot.slane %v7777, 2
        %v7915 = vmax.f32 %v6647, %v7508
        %v7916 = vmax.f32 %v6655, %v7510
        %v7917 = vmax.f32 %v6654, %v7512
        %v7918 = vmax.f32 %v6656, %v7514
        %v7919 = vmax.f32 %v6664, %v7516
        %v7920 = vmax.f32 %v6672, %v7518
        %v7921 = vmax.f32 %v6671, %v7520
        %v7922 = vmax.f32 %v6673, %v7522
        %v7923 = vmax.f32 %v6681, %v7524
        %v7924 = vmax.f32 %v6689, %v7526
        %v7925 = vmax.f32 %v6688, %v7528
        %v7926 = vmax.f32 %v6690, %v7530
        %v7927 = vmax.f32 %v6698, %v7532
        %v7928 = vmax.f32 %v6706, %v7534
        %v7929 = vmax.f32 %v6705, %v7536
        %v7930 = vmax.f32 %v6707, %v7538
        %v7931 = vmax.f32 %v6715, %v7540
        %v7932 = vmax.f32 %v6723, %v7542
        %v7933 = vmax.f32 %v6722, %v7544
        %v7934 = vmax.f32 %v6724, %v7546
        %v7935 = vmax.f32 %v6732, %v7548
        %v7936 = vmax.f32 %v6740, %v7550
        %v7937 = vmax.f32 %v6739, %v7552
        %v7938 = vmax.f32 %v6741, %v7554
        %v7939 = vmax.f32 %v6749, %v7556
        %v7940 = vmax.f32 %v6757, %v7558
        %v7941 = vmax.f32 %v6756, %v7560
        %v7942 = vmax.f32 %v6758, %v7562
        %v7943 = vmax.f32 %v6766, %v7564
        %v7944 = vmax.f32 %v6774, %v7566
        %v7945 = vmax.f32 %v6773, %v7568
        %v7946 = vmax.f32 %v6775, %v7570
        %v7947 = vmax.f32 %v6783, %v7572
        %v7948 = vmax.f32 %v6791, %v7574
        %v7949 = vmax.f32 %v6790, %v7576
        %v7950 = vmax.f32 %v6792, %v7578
        %v7951 = vmax.f32 %v6800, %v7580
        %v7952 = vmax.f32 %v6808, %v7582
        %v7953 = vmax.f32 %v6807, %v7584
        %v7954 = vmax.f32 %v6809, %v7586
        %v7955 = vmax.f32 %v6817, %v7588
        %v7956 = vmax.f32 %v6825, %v7590
        %v7957 = vmax.f32 %v6824, %v7592
        %v7958 = vmax.f32 %v6826, %v7594
        %v7959 = vmax.f32 %v6834, %v7596
        %v7960 = vmax.f32 %v6842, %v7598
        %v7961 = vmax.f32 %v6841, %v7600
        %v7962 = vmax.f32 %v6843, %v7602
        %v7963 = vmax.f32 %v6851, %v7604
        %v7964 = vmax.f32 %v6859, %v7606
        %v7965 = vmax.f32 %v6858, %v7608
        %v7966 = vmax.f32 %v6860, %v7610
        %v7967 = vmax.f32 %v6868, %v7612
        %v7968 = vmax.f32 %v6876, %v7614
        %v7969 = vmax.f32 %v6875, %v7616
        %v7970 = vmax.f32 %v6877, %v7618
        %v7971 = vmax.f32 %v6885, %v7620
        %v7972 = vmax.f32 %v6893, %v7622
        %v7973 = vmax.f32 %v6892, %v7624
        %v7974 = vmax.f32 %v6894, %v7626
        %v7975 = vmax.f32 %v6902, %v7628
        %v7976 = vmax.f32 %v6910, %v7630
        %v7977 = vmax.f32 %v6909, %v7632
        %v7978 = vmax.f32 %v6911, %v7634
        %v7979 = vmax.f32 %v6919, %v7636
        %v7980 = vmax.f32 %v6927, %v7638
        %v7981 = vmax.f32 %v6926, %v7640
        %v7982 = vmax.f32 %v6928, %v7642
        %v7983 = vmax.f32 %v6936, %v7644
        %v7984 = vmax.f32 %v6944, %v7646
        %v7985 = vmax.f32 %v6943, %v7648
        %v7986 = vmax.f32 %v6945, %v7650
        %v7987 = vmax.f32 %v6953, %v7652
        %v7988 = vmax.f32 %v6961, %v7654
        %v7989 = vmax.f32 %v6960, %v7656
        %v7990 = vmax.f32 %v6962, %v7658
        %v7991 = vmax.f32 %v6970, %v7660
        %v7992 = vmax.f32 %v6978, %v7662
        %v7993 = vmax.f32 %v6977, %v7664
        %v7994 = vmax.f32 %v6979, %v7666
        %v7995 = vmax.f32 %v6987, %v7668
        %v7996 = vmax.f32 %v6995, %v7670
        %v7997 = vmax.f32 %v6994, %v7672
        %v7998 = vmax.f32 %v6996, %v7674
        %v7999 = vmax.f32 %v7004, %v7676
        %v8000 = vmax.f32 %v7012, %v7678
        %v8001 = vmax.f32 %v7011, %v7680
        %v8002 = vmax.f32 %v7013, %v7682
        %v8003 = vmax.f32 %v7021, %v7684
        %v8004 = vmax.f32 %v7029, %v7686
        %v8005 = vmax.f32 %v7028, %v7688
        %v8006 = vmax.f32 %v7030, %v7690
        %v8007 = vmax.f32 %v7038, %v7692
        %v8008 = vmax.f32 %v7046, %v7694
        %v8009 = vmax.f32 %v7045, %v7696
        %v8010 = vmax.f32 %v7047, %v7698
        %v8011 = vmax.f32 %v7055, %v7700
        %v8012 = vmax.f32 %v7063, %v7702
        %v8013 = vmax.f32 %v7062, %v7704
        %v8014 = vmax.f32 %v7064, %v7706
        %v8015 = vmax.f32 %v7072, %v7708
        %v8016 = vmax.f32 %v7080, %v7710
        %v8017 = vmax.f32 %v7079, %v7712
        %v8018 = vmax.f32 %v7081, %v7714
        %v8019 = vmax.f32 %v7089, %v7716
        %v8020 = vmax.f32 %v7097, %v7718
        %v8021 = vmax.f32 %v7096, %v7720
        %v8022 = vmax.f32 %v7098, %v7722
        %v8023 = vmax.f32 %v7106, %v7724
        %v8024 = vmax.f32 %v7114, %v7726
        %v8025 = vmax.f32 %v7113, %v7728
        %v8026 = vmax.f32 %v7115, %v7730
        %v8027 = vmax.f32 %v7123, %v7732
        %v8028 = vmax.f32 %v7131, %v7734
        %v8029 = vmax.f32 %v7130, %v7736
        %v8030 = vmax.f32 %v7132, %v7738
        %v8031 = vmax.f32 %v7140, %v7740
        %v8032 = vmax.f32 %v7148, %v7742
        %v8033 = vmax.f32 %v7147, %v7744
        %v8034 = vmax.f32 %v7149, %v7746
        %v8035 = vmax.f32 %v7157, %v7748
        %v8036 = vmax.f32 %v7165, %v7750
        %v8037 = vmax.f32 %v7164, %v7752
        %v8038 = vmax.f32 %v7166, %v7754
        %v8039 = vmax.f32 %v7174, %v7756
        %v8040 = vmax.f32 %v7182, %v7758
        %v8041 = vmax.f32 %v7181, %v7760
        %v8042 = vmax.f32 %v7183, %v7762
        %v8043 = vmax.f32 %v7191, %v7764
        %v8044 = vmax.f32 %v7199, %v7766
        %v8045 = vmax.f32 %v7198, %v7768
        %v8046 = vmax.f32 %v7200, %v7770
        %v8047 = vmax.f32 %v7208, %v7772
        %v8048 = vmax.f32 %v7216, %v7774
        %v8049 = vmax.f32 %v7215, %v7776
        %v8050 = vmax.f32 %v7217, %v7778
        %v8051 = vmax.f32 %v7915, %v6655
        %v8052 = vmax.f32 %v7916, %v6654
        %v8053 = vmax.f32 %v7917, %v6656
        %v8054 = vmax.f32 %v7918, %v6664
        %v8055 = vmax.f32 %v7919, %v6672
        %v8056 = vmax.f32 %v7920, %v6671
        %v8057 = vmax.f32 %v7921, %v6673
        %v8058 = vmax.f32 %v7922, %v7377
        %v8059 = vmax.f32 %v7923, %v6689
        %v8060 = vmax.f32 %v7924, %v6688
        %v8061 = vmax.f32 %v7925, %v6690
        %v8062 = vmax.f32 %v7926, %v6698
        %v8063 = vmax.f32 %v7927, %v6706
        %v8064 = vmax.f32 %v7928, %v6705
        %v8065 = vmax.f32 %v7929, %v6707
        %v8066 = vmax.f32 %v7930, %v7384
        %v8067 = vmax.f32 %v7931, %v6723
        %v8068 = vmax.f32 %v7932, %v6722
        %v8069 = vmax.f32 %v7933, %v6724
        %v8070 = vmax.f32 %v7934, %v6732
        %v8071 = vmax.f32 %v7935, %v6740
        %v8072 = vmax.f32 %v7936, %v6739
        %v8073 = vmax.f32 %v7937, %v6741
        %v8074 = vmax.f32 %v7938, %v7391
        %v8075 = vmax.f32 %v7939, %v6757
        %v8076 = vmax.f32 %v7940, %v6756
        %v8077 = vmax.f32 %v7941, %v6758
        %v8078 = vmax.f32 %v7942, %v6766
        %v8079 = vmax.f32 %v7943, %v6774
        %v8080 = vmax.f32 %v7944, %v6773
        %v8081 = vmax.f32 %v7945, %v6775
        %v8082 = vmax.f32 %v7946, %v7398
        %v8083 = vmax.f32 %v7947, %v6791
        %v8084 = vmax.f32 %v7948, %v6790
        %v8085 = vmax.f32 %v7949, %v6792
        %v8086 = vmax.f32 %v7950, %v6800
        %v8087 = vmax.f32 %v7951, %v6808
        %v8088 = vmax.f32 %v7952, %v6807
        %v8089 = vmax.f32 %v7953, %v6809
        %v8090 = vmax.f32 %v7954, %v7405
        %v8091 = vmax.f32 %v7955, %v6825
        %v8092 = vmax.f32 %v7956, %v6824
        %v8093 = vmax.f32 %v7957, %v6826
        %v8094 = vmax.f32 %v7958, %v6834
        %v8095 = vmax.f32 %v7959, %v6842
        %v8096 = vmax.f32 %v7960, %v6841
        %v8097 = vmax.f32 %v7961, %v6843
        %v8098 = vmax.f32 %v7962, %v7412
        %v8099 = vmax.f32 %v7963, %v6859
        %v8100 = vmax.f32 %v7964, %v6858
        %v8101 = vmax.f32 %v7965, %v6860
        %v8102 = vmax.f32 %v7966, %v6868
        %v8103 = vmax.f32 %v7967, %v6876
        %v8104 = vmax.f32 %v7968, %v6875
        %v8105 = vmax.f32 %v7969, %v6877
        %v8106 = vmax.f32 %v7970, %v7419
        %v8107 = vmax.f32 %v7971, %v6893
        %v8108 = vmax.f32 %v7972, %v6892
        %v8109 = vmax.f32 %v7973, %v6894
        %v8110 = vmax.f32 %v7974, %v6902
        %v8111 = vmax.f32 %v7975, %v6910
        %v8112 = vmax.f32 %v7976, %v6909
        %v8113 = vmax.f32 %v7977, %v6911
        %v8114 = vmax.f32 %v7978, %v7426
        %v8115 = vmax.f32 %v7979, %v6927
        %v8116 = vmax.f32 %v7980, %v6926
        %v8117 = vmax.f32 %v7981, %v6928
        %v8118 = vmax.f32 %v7982, %v6936
        %v8119 = vmax.f32 %v7983, %v6944
        %v8120 = vmax.f32 %v7984, %v6943
        %v8121 = vmax.f32 %v7985, %v6945
        %v8122 = vmax.f32 %v7986, %v7433
        %v8123 = vmax.f32 %v7987, %v6961
        %v8124 = vmax.f32 %v7988, %v6960
        %v8125 = vmax.f32 %v7989, %v6962
        %v8126 = vmax.f32 %v7990, %v6970
        %v8127 = vmax.f32 %v7991, %v6978
        %v8128 = vmax.f32 %v7992, %v6977
        %v8129 = vmax.f32 %v7993, %v6979
        %v8130 = vmax.f32 %v7994, %v7440
        %v8131 = vmax.f32 %v7995, %v6995
        %v8132 = vmax.f32 %v7996, %v6994
        %v8133 = vmax.f32 %v7997, %v6996
        %v8134 = vmax.f32 %v7998, %v7004
        %v8135 = vmax.f32 %v7999, %v7012
        %v8136 = vmax.f32 %v8000, %v7011
        %v8137 = vmax.f32 %v8001, %v7013
        %v8138 = vmax.f32 %v8002, %v7447
        %v8139 = vmax.f32 %v8003, %v7029
        %v8140 = vmax.f32 %v8004, %v7028
        %v8141 = vmax.f32 %v8005, %v7030
        %v8142 = vmax.f32 %v8006, %v7038
        %v8143 = vmax.f32 %v8007, %v7046
        %v8144 = vmax.f32 %v8008, %v7045
        %v8145 = vmax.f32 %v8009, %v7047
        %v8146 = vmax.f32 %v8010, %v7454
        %v8147 = vmax.f32 %v8011, %v7063
        %v8148 = vmax.f32 %v8012, %v7062
        %v8149 = vmax.f32 %v8013, %v7064
        %v8150 = vmax.f32 %v8014, %v7072
        %v8151 = vmax.f32 %v8015, %v7080
        %v8152 = vmax.f32 %v8016, %v7079
        %v8153 = vmax.f32 %v8017, %v7081
        %v8154 = vmax.f32 %v8018, %v7461
        %v8155 = vmax.f32 %v8019, %v7097
        %v8156 = vmax.f32 %v8020, %v7096
        %v8157 = vmax.f32 %v8021, %v7098
        %v8158 = vmax.f32 %v8022, %v7106
        %v8159 = vmax.f32 %v8023, %v7114
        %v8160 = vmax.f32 %v8024, %v7113
        %v8161 = vmax.f32 %v8025, %v7115
        %v8162 = vmax.f32 %v8026, %v7468
        %v8163 = vmax.f32 %v8027, %v7131
        %v8164 = vmax.f32 %v8028, %v7130
        %v8165 = vmax.f32 %v8029, %v7132
        %v8166 = vmax.f32 %v8030, %v7140
        %v8167 = vmax.f32 %v8031, %v7148
        %v8168 = vmax.f32 %v8032, %v7147
        %v8169 = vmax.f32 %v8033, %v7149
        %v8170 = vmax.f32 %v8034, %v7475
        %v8171 = vmax.f32 %v8035, %v7165
        %v8172 = vmax.f32 %v8036, %v7164
        %v8173 = vmax.f32 %v8037, %v7166
        %v8174 = vmax.f32 %v8038, %v7174
        %v8175 = vmax.f32 %v8039, %v7182
        %v8176 = vmax.f32 %v8040, %v7181
        %v8177 = vmax.f32 %v8041, %v7183
        %v8178 = vmax.f32 %v8042, %v7482
        %v8179 = vmax.f32 %v8043, %v7199
        %v8180 = vmax.f32 %v8044, %v7198
        %v8181 = vmax.f32 %v8045, %v7200
        %v8182 = vmax.f32 %v8046, %v7208
        %v8183 = vmax.f32 %v8047, %v7216
        %v8184 = vmax.f32 %v8048, %v7215
        %v8185 = vmax.f32 %v8049, %v7217
        %v8186 = vmax.f32 %v8050, %v7489
        %v8187 = vmax.f32 %v8051, %v8059
        %v8188 = vmax.f32 %v8052, %v8060
        %v8189 = vmax.f32 %v8053, %v8061
        %v8190 = vmax.f32 %v8054, %v8062
        %v8191 = vmax.f32 %v8055, %v8063
        %v8192 = vmax.f32 %v8056, %v8064
        %v8193 = vmax.f32 %v8057, %v8065
        %v8194 = vmax.f32 %v8058, %v8066
        %v8195 = vmax.f32 %v8067, %v8075
        %v8196 = vmax.f32 %v8068, %v8076
        %v8197 = vmax.f32 %v8069, %v8077
        %v8198 = vmax.f32 %v8070, %v8078
        %v8199 = vmax.f32 %v8071, %v8079
        %v8200 = vmax.f32 %v8072, %v8080
        %v8201 = vmax.f32 %v8073, %v8081
        %v8202 = vmax.f32 %v8074, %v8082
        %v8203 = vmax.f32 %v8083, %v8091
        %v8204 = vmax.f32 %v8084, %v8092
        %v8205 = vmax.f32 %v8085, %v8093
        %v8206 = vmax.f32 %v8086, %v8094
        %v8207 = vmax.f32 %v8087, %v8095
        %v8208 = vmax.f32 %v8088, %v8096
        %v8209 = vmax.f32 %v8089, %v8097
        %v8210 = vmax.f32 %v8090, %v8098
        %v8211 = vmax.f32 %v8099, %v8107
        %v8212 = vmax.f32 %v8100, %v8108
        %v8213 = vmax.f32 %v8101, %v8109
        %v8214 = vmax.f32 %v8102, %v8110
        %v8215 = vmax.f32 %v8103, %v8111
        %v8216 = vmax.f32 %v8104, %v8112
        %v8217 = vmax.f32 %v8105, %v8113
        %v8218 = vmax.f32 %v8106, %v8114
        %v8219 = vmax.f32 %v8115, %v8123
        %v8220 = vmax.f32 %v8116, %v8124
        %v8221 = vmax.f32 %v8117, %v8125
        %v8222 = vmax.f32 %v8118, %v8126
        %v8223 = vmax.f32 %v8119, %v8127
        %v8224 = vmax.f32 %v8120, %v8128
        %v8225 = vmax.f32 %v8121, %v8129
        %v8226 = vmax.f32 %v8122, %v8130
        %v8227 = vmax.f32 %v8131, %v8139
        %v8228 = vmax.f32 %v8132, %v8140
        %v8229 = vmax.f32 %v8133, %v8141
        %v8230 = vmax.f32 %v8134, %v8142
        %v8231 = vmax.f32 %v8135, %v8143
        %v8232 = vmax.f32 %v8136, %v8144
        %v8233 = vmax.f32 %v8137, %v8145
        %v8234 = vmax.f32 %v8138, %v8146
        %v8235 = vmax.f32 %v8147, %v8155
        %v8236 = vmax.f32 %v8148, %v8156
        %v8237 = vmax.f32 %v8149, %v8157
        %v8238 = vmax.f32 %v8150, %v8158
        %v8239 = vmax.f32 %v8151, %v8159
        %v8240 = vmax.f32 %v8152, %v8160
        %v8241 = vmax.f32 %v8153, %v8161
        %v8242 = vmax.f32 %v8154, %v8162
        %v8243 = vmax.f32 %v8163, %v8171
        %v8244 = vmax.f32 %v8164, %v8172
        %v8245 = vmax.f32 %v8165, %v8173
        %v8246 = vmax.f32 %v8166, %v8174
        %v8247 = vmax.f32 %v8167, %v8175
        %v8248 = vmax.f32 %v8168, %v8176
        %v8249 = vmax.f32 %v8169, %v8177
        %v8250 = vmax.f32 %v8170, %v8178
        %v8251 = vmax.f32 %v8187, %v8067
        %v8252 = vmax.f32 %v8188, %v8068
        %v8253 = vmax.f32 %v8189, %v8069
        %v8254 = vmax.f32 %v8190, %v8070
        %v8255 = vmax.f32 %v8191, %v8071
        %v8256 = vmax.f32 %v8192, %v8072
        %v8257 = vmax.f32 %v8193, %v8073
        %v8258 = vmax.f32 %v8194, %v8074
        %v8259 = vmax.f32 %v8195, %v8083
        %v8260 = vmax.f32 %v8196, %v8084
        %v8261 = vmax.f32 %v8197, %v8085
        %v8262 = vmax.f32 %v8198, %v8086
        %v8263 = vmax.f32 %v8199, %v8087
        %v8264 = vmax.f32 %v8200, %v8088
        %v8265 = vmax.f32 %v8201, %v8089
        %v8266 = vmax.f32 %v8202, %v8090
        %v8267 = vmax.f32 %v8203, %v8099
        %v8268 = vmax.f32 %v8204, %v8100
        %v8269 = vmax.f32 %v8205, %v8101
        %v8270 = vmax.f32 %v8206, %v8102
        %v8271 = vmax.f32 %v8207, %v8103
        %v8272 = vmax.f32 %v8208, %v8104
        %v8273 = vmax.f32 %v8209, %v8105
        %v8274 = vmax.f32 %v8210, %v8106
        %v8275 = vmax.f32 %v8211, %v8115
        %v8276 = vmax.f32 %v8212, %v8116
        %v8277 = vmax.f32 %v8213, %v8117
        %v8278 = vmax.f32 %v8214, %v8118
        %v8279 = vmax.f32 %v8215, %v8119
        %v8280 = vmax.f32 %v8216, %v8120
        %v8281 = vmax.f32 %v8217, %v8121
        %v8282 = vmax.f32 %v8218, %v8122
        %v8283 = vmax.f32 %v8219, %v8131
        %v8284 = vmax.f32 %v8220, %v8132
        %v8285 = vmax.f32 %v8221, %v8133
        %v8286 = vmax.f32 %v8222, %v8134
        %v8287 = vmax.f32 %v8223, %v8135
        %v8288 = vmax.f32 %v8224, %v8136
        %v8289 = vmax.f32 %v8225, %v8137
        %v8290 = vmax.f32 %v8226, %v8138
        %v8291 = vmax.f32 %v8227, %v8147
        %v8292 = vmax.f32 %v8228, %v8148
        %v8293 = vmax.f32 %v8229, %v8149
        %v8294 = vmax.f32 %v8230, %v8150
        %v8295 = vmax.f32 %v8231, %v8151
        %v8296 = vmax.f32 %v8232, %v8152
        %v8297 = vmax.f32 %v8233, %v8153
        %v8298 = vmax.f32 %v8234, %v8154
        %v8299 = vmax.f32 %v8235, %v8163
        %v8300 = vmax.f32 %v8236, %v8164
        %v8301 = vmax.f32 %v8237, %v8165
        %v8302 = vmax.f32 %v8238, %v8166
        %v8303 = vmax.f32 %v8239, %v8167
        %v8304 = vmax.f32 %v8240, %v8168
        %v8305 = vmax.f32 %v8241, %v8169
        %v8306 = vmax.f32 %v8242, %v8170
        %v8307 = vmax.f32 %v8243, %v8179
        %v8308 = vmax.f32 %v8244, %v8180
        %v8309 = vmax.f32 %v8245, %v8181
        %v8310 = vmax.f32 %v8246, %v8182
        %v8311 = vmax.f32 %v8247, %v8183
        %v8312 = vmax.f32 %v8248, %v8184
        %v8313 = vmax.f32 %v8249, %v8185
        %v8314 = vmax.f32 %v8250, %v8186
        %v8331 = vcombine.high %v331, %v331
        %v8333 = vunpack.c.l.s4 1983009808
        %v8334 = vunpack.c.0.s8 %v8333
        %v8335 = vlaneseq
        %v8336 = vshrl.u32 %v8335, 7
        %v8337 = vsub.s32 %v8334, %v8336
        %v8338 = vrot.slane %v331, %v8337
        %v8340 = vunpack.c.l.s4 1983009808
        %v8341 = vunpack.c.0.s8 %v8340
        %v8342 = vlaneseq
        %v8343 = vshrl.u32 %v8342, 7
        %v8344 = vsub.s32 %v8341, %v8343
        %v8345 = vrot.slane %v8331, %v8344
        %v8346 = vcombine.high %v8338, %v8338
        %v8347 = vcombine.high %v8345, %v8345
        %v8348 = vcombine.high %v332, %v332
        %v8350 = vunpack.c.l.s4 1983009808
        %v8351 = vunpack.c.0.s8 %v8350
        %v8352 = vlaneseq
        %v8353 = vshrl.u32 %v8352, 7
        %v8354 = vsub.s32 %v8351, %v8353
        %v8355 = vrot.slane %v332, %v8354
        %v8357 = vunpack.c.l.s4 1983009808
        %v8358 = vunpack.c.0.s8 %v8357
        %v8359 = vlaneseq
        %v8360 = vshrl.u32 %v8359, 7
        %v8361 = vsub.s32 %v8358, %v8360
        %v8362 = vrot.slane %v8348, %v8361
        %v8363 = vcombine.high %v8355, %v8355
        %v8364 = vcombine.high %v8362, %v8362
        %v8365 = vcombine.high %v335, %v335
        %v8367 = vunpack.c.l.s4 1983009808
        %v8368 = vunpack.c.0.s8 %v8367
        %v8369 = vlaneseq
        %v8370 = vshrl.u32 %v8369, 7
        %v8371 = vsub.s32 %v8368, %v8370
        %v8372 = vrot.slane %v335, %v8371
        %v8374 = vunpack.c.l.s4 1983009808
        %v8375 = vunpack.c.0.s8 %v8374
        %v8376 = vlaneseq
        %v8377 = vshrl.u32 %v8376, 7
        %v8378 = vsub.s32 %v8375, %v8377
        %v8379 = vrot.slane %v8365, %v8378
        %v8380 = vcombine.high %v8372, %v8372
        %v8381 = vcombine.high %v8379, %v8379
        %v8382 = vcombine.high %v336, %v336
        %v8384 = vunpack.c.l.s4 1983009808
        %v8385 = vunpack.c.0.s8 %v8384
        %v8386 = vlaneseq
        %v8387 = vshrl.u32 %v8386, 7
        %v8388 = vsub.s32 %v8385, %v8387
        %v8389 = vrot.slane %v336, %v8388
        %v8391 = vunpack.c.l.s4 1983009808
        %v8392 = vunpack.c.0.s8 %v8391
        %v8393 = vlaneseq
        %v8394 = vshrl.u32 %v8393, 7
        %v8395 = vsub.s32 %v8392, %v8394
        %v8396 = vrot.slane %v8382, %v8395
        %v8397 = vcombine.high %v8389, %v8389
        %v8398 = vcombine.high %v8396, %v8396
        %v8399 = vcombine.high %v339, %v339
        %v8401 = vunpack.c.l.s4 1983009808
        %v8402 = vunpack.c.0.s8 %v8401
        %v8403 = vlaneseq
        %v8404 = vshrl.u32 %v8403, 7
        %v8405 = vsub.s32 %v8402, %v8404
        %v8406 = vrot.slane %v339, %v8405
        %v8408 = vunpack.c.l.s4 1983009808
        %v8409 = vunpack.c.0.s8 %v8408
        %v8410 = vlaneseq
        %v8411 = vshrl.u32 %v8410, 7
        %v8412 = vsub.s32 %v8409, %v8411
        %v8413 = vrot.slane %v8399, %v8412
        %v8414 = vcombine.high %v8406, %v8406
        %v8415 = vcombine.high %v8413, %v8413
        %v8416 = vcombine.high %v340, %v340
        %v8418 = vunpack.c.l.s4 1983009808
        %v8419 = vunpack.c.0.s8 %v8418
        %v8420 = vlaneseq
        %v8421 = vshrl.u32 %v8420, 7
        %v8422 = vsub.s32 %v8419, %v8421
        %v8423 = vrot.slane %v340, %v8422
        %v8425 = vunpack.c.l.s4 1983009808
        %v8426 = vunpack.c.0.s8 %v8425
        %v8427 = vlaneseq
        %v8428 = vshrl.u32 %v8427, 7
        %v8429 = vsub.s32 %v8426, %v8428
        %v8430 = vrot.slane %v8416, %v8429
        %v8431 = vcombine.high %v8423, %v8423
        %v8432 = vcombine.high %v8430, %v8430
        %v8433 = vcombine.high %v343, %v343
        %v8435 = vunpack.c.l.s4 1983009808
        %v8436 = vunpack.c.0.s8 %v8435
        %v8437 = vlaneseq
        %v8438 = vshrl.u32 %v8437, 7
        %v8439 = vsub.s32 %v8436, %v8438
        %v8440 = vrot.slane %v343, %v8439
        %v8442 = vunpack.c.l.s4 1983009808
        %v8443 = vunpack.c.0.s8 %v8442
        %v8444 = vlaneseq
        %v8445 = vshrl.u32 %v8444, 7
        %v8446 = vsub.s32 %v8443, %v8445
        %v8447 = vrot.slane %v8433, %v8446
        %v8448 = vcombine.high %v8440, %v8440
        %v8449 = vcombine.high %v8447, %v8447
        %v8450 = vcombine.high %v344, %v344
        %v8452 = vunpack.c.l.s4 1983009808
        %v8453 = vunpack.c.0.s8 %v8452
        %v8454 = vlaneseq
        %v8455 = vshrl.u32 %v8454, 7
        %v8456 = vsub.s32 %v8453, %v8455
        %v8457 = vrot.slane %v344, %v8456
        %v8459 = vunpack.c.l.s4 1983009808
        %v8460 = vunpack.c.0.s8 %v8459
        %v8461 = vlaneseq
        %v8462 = vshrl.u32 %v8461, 7
        %v8463 = vsub.s32 %v8460, %v8462
        %v8464 = vrot.slane %v8450, %v8463
        %v8465 = vcombine.high %v8457, %v8457
        %v8466 = vcombine.high %v8464, %v8464
        %v8467 = vcombine.high %v347, %v347
        %v8469 = vunpack.c.l.s4 1983009808
        %v8470 = vunpack.c.0.s8 %v8469
        %v8471 = vlaneseq
        %v8472 = vshrl.u32 %v8471, 7
        %v8473 = vsub.s32 %v8470, %v8472
        %v8474 = vrot.slane %v347, %v8473
        %v8476 = vunpack.c.l.s4 1983009808
        %v8477 = vunpack.c.0.s8 %v8476
        %v8478 = vlaneseq
        %v8479 = vshrl.u32 %v8478, 7
        %v8480 = vsub.s32 %v8477, %v8479
        %v8481 = vrot.slane %v8467, %v8480
        %v8482 = vcombine.high %v8474, %v8474
        %v8483 = vcombine.high %v8481, %v8481
        %v8484 = vcombine.high %v348, %v348
        %v8486 = vunpack.c.l.s4 1983009808
        %v8487 = vunpack.c.0.s8 %v8486
        %v8488 = vlaneseq
        %v8489 = vshrl.u32 %v8488, 7
        %v8490 = vsub.s32 %v8487, %v8489
        %v8491 = vrot.slane %v348, %v8490
        %v8493 = vunpack.c.l.s4 1983009808
        %v8494 = vunpack.c.0.s8 %v8493
        %v8495 = vlaneseq
        %v8496 = vshrl.u32 %v8495, 7
        %v8497 = vsub.s32 %v8494, %v8496
        %v8498 = vrot.slane %v8484, %v8497
        %v8499 = vcombine.high %v8491, %v8491
        %v8500 = vcombine.high %v8498, %v8498
        %v8501 = vcombine.high %v351, %v351
        %v8503 = vunpack.c.l.s4 1983009808
        %v8504 = vunpack.c.0.s8 %v8503
        %v8505 = vlaneseq
        %v8506 = vshrl.u32 %v8505, 7
        %v8507 = vsub.s32 %v8504, %v8506
        %v8508 = vrot.slane %v351, %v8507
        %v8510 = vunpack.c.l.s4 1983009808
        %v8511 = vunpack.c.0.s8 %v8510
        %v8512 = vlaneseq
        %v8513 = vshrl.u32 %v8512, 7
        %v8514 = vsub.s32 %v8511, %v8513
        %v8515 = vrot.slane %v8501, %v8514
        %v8516 = vcombine.high %v8508, %v8508
        %v8517 = vcombine.high %v8515, %v8515
        %v8518 = vcombine.high %v352, %v352
        %v8520 = vunpack.c.l.s4 1983009808
        %v8521 = vunpack.c.0.s8 %v8520
        %v8522 = vlaneseq
        %v8523 = vshrl.u32 %v8522, 7
        %v8524 = vsub.s32 %v8521, %v8523
        %v8525 = vrot.slane %v352, %v8524
        %v8527 = vunpack.c.l.s4 1983009808
        %v8528 = vunpack.c.0.s8 %v8527
        %v8529 = vlaneseq
        %v8530 = vshrl.u32 %v8529, 7
        %v8531 = vsub.s32 %v8528, %v8530
        %v8532 = vrot.slane %v8518, %v8531
        %v8533 = vcombine.high %v8525, %v8525
        %v8534 = vcombine.high %v8532, %v8532
        %v8535 = vcombine.high %v355, %v355
        %v8537 = vunpack.c.l.s4 1983009808
        %v8538 = vunpack.c.0.s8 %v8537
        %v8539 = vlaneseq
        %v8540 = vshrl.u32 %v8539, 7
        %v8541 = vsub.s32 %v8538, %v8540
        %v8542 = vrot.slane %v355, %v8541
        %v8544 = vunpack.c.l.s4 1983009808
        %v8545 = vunpack.c.0.s8 %v8544
        %v8546 = vlaneseq
        %v8547 = vshrl.u32 %v8546, 7
        %v8548 = vsub.s32 %v8545, %v8547
        %v8549 = vrot.slane %v8535, %v8548
        %v8550 = vcombine.high %v8542, %v8542
        %v8551 = vcombine.high %v8549, %v8549
        %v8552 = vcombine.high %v356, %v356
        %v8554 = vunpack.c.l.s4 1983009808
        %v8555 = vunpack.c.0.s8 %v8554
        %v8556 = vlaneseq
        %v8557 = vshrl.u32 %v8556, 7
        %v8558 = vsub.s32 %v8555, %v8557
        %v8559 = vrot.slane %v356, %v8558
        %v8561 = vunpack.c.l.s4 1983009808
        %v8562 = vunpack.c.0.s8 %v8561
        %v8563 = vlaneseq
        %v8564 = vshrl.u32 %v8563, 7
        %v8565 = vsub.s32 %v8562, %v8564
        %v8566 = vrot.slane %v8552, %v8565
        %v8567 = vcombine.high %v8559, %v8559
        %v8568 = vcombine.high %v8566, %v8566
        %v8569 = vcombine.high %v359, %v359
        %v8571 = vunpack.c.l.s4 1983009808
        %v8572 = vunpack.c.0.s8 %v8571
        %v8573 = vlaneseq
        %v8574 = vshrl.u32 %v8573, 7
        %v8575 = vsub.s32 %v8572, %v8574
        %v8576 = vrot.slane %v359, %v8575
        %v8578 = vunpack.c.l.s4 1983009808
        %v8579 = vunpack.c.0.s8 %v8578
        %v8580 = vlaneseq
        %v8581 = vshrl.u32 %v8580, 7
        %v8582 = vsub.s32 %v8579, %v8581
        %v8583 = vrot.slane %v8569, %v8582
        %v8584 = vcombine.high %v8576, %v8576
        %v8585 = vcombine.high %v8583, %v8583
        %v8586 = vcombine.high %v360, %v360
        %v8588 = vunpack.c.l.s4 1983009808
        %v8589 = vunpack.c.0.s8 %v8588
        %v8590 = vlaneseq
        %v8591 = vshrl.u32 %v8590, 7
        %v8592 = vsub.s32 %v8589, %v8591
        %v8593 = vrot.slane %v360, %v8592
        %v8595 = vunpack.c.l.s4 1983009808
        %v8596 = vunpack.c.0.s8 %v8595
        %v8597 = vlaneseq
        %v8598 = vshrl.u32 %v8597, 7
        %v8599 = vsub.s32 %v8596, %v8598
        %v8600 = vrot.slane %v8586, %v8599
        %v8601 = vcombine.high %v8593, %v8593
        %v8602 = vcombine.high %v8600, %v8600
        %v8603 = vld [vmem:[%s7] sm:$0xf]
        %8604 = vset.pattern.permute.xlu0 0
        %8605 = vperm.xlu0 %8604, %v8338
        %v8606 = vpop.permute.xlu0 %8605
        %v8609 = vunpack.c.l.s4 269488144
        %v8610 = vunpack.c.0.s8 %v8609
        %v8611 = vlaneseq
        %v8612 = vshrl.u32 %v8611, 7
        %v8613 = vsub.s32 %v8610, %v8612
        %v8614 = vrot.slane %v8606, %v8613
        %8615 = vset.pattern.permute.xlu0 0
        %8616 = vperm.xlu0 %8615, %v8346
        %v8617 = vpop.permute.xlu0 %8616
        %v8620 = vunpack.c.l.s4 269488144
        %v8621 = vunpack.c.0.s8 %v8620
        %v8622 = vlaneseq
        %v8623 = vshrl.u32 %v8622, 7
        %v8624 = vsub.s32 %v8621, %v8623
        %v8625 = vrot.slane %v8617, %v8624
        %8626 = vset.pattern.permute.xlu0 0
        %8627 = vperm.xlu0 %8626, %v8345
        %v8628 = vpop.permute.xlu0 %8627
        %v8631 = vunpack.c.l.s4 269488144
        %v8632 = vunpack.c.0.s8 %v8631
        %v8633 = vlaneseq
        %v8634 = vshrl.u32 %v8633, 7
        %v8635 = vsub.s32 %v8632, %v8634
        %v8636 = vrot.slane %v8628, %v8635
        %8637 = vset.pattern.permute.xlu0 0
        %8638 = vperm.xlu0 %8637, %v8347
        %v8639 = vpop.permute.xlu0 %8638
        %v8642 = vunpack.c.l.s4 269488144
        %v8643 = vunpack.c.0.s8 %v8642
        %v8644 = vlaneseq
        %v8645 = vshrl.u32 %v8644, 7
        %v8646 = vsub.s32 %v8643, %v8645
        %v8647 = vrot.slane %v8639, %v8646
        %8648 = vset.pattern.permute.xlu0 0
        %8649 = vperm.xlu0 %8648, %v8355
        %v8650 = vpop.permute.xlu0 %8649
        %v8653 = vunpack.c.l.s4 269488144
        %v8654 = vunpack.c.0.s8 %v8653
        %v8655 = vlaneseq
        %v8656 = vshrl.u32 %v8655, 7
        %v8657 = vsub.s32 %v8654, %v8656
        %v8658 = vrot.slane %v8650, %v8657
        %8659 = vset.pattern.permute.xlu0 0
        %8660 = vperm.xlu0 %8659, %v8363
        %v8661 = vpop.permute.xlu0 %8660
        %v8664 = vunpack.c.l.s4 269488144
        %v8665 = vunpack.c.0.s8 %v8664
        %v8666 = vlaneseq
        %v8667 = vshrl.u32 %v8666, 7
        %v8668 = vsub.s32 %v8665, %v8667
        %v8669 = vrot.slane %v8661, %v8668
        %8670 = vset.pattern.permute.xlu0 0
        %8671 = vperm.xlu0 %8670, %v8362
        %v8672 = vpop.permute.xlu0 %8671
        %v8675 = vunpack.c.l.s4 269488144
        %v8676 = vunpack.c.0.s8 %v8675
        %v8677 = vlaneseq
        %v8678 = vshrl.u32 %v8677, 7
        %v8679 = vsub.s32 %v8676, %v8678
        %v8680 = vrot.slane %v8672, %v8679
        %8681 = vset.pattern.permute.xlu0 0
        %8682 = vperm.xlu0 %8681, %v8364
        %v8683 = vpop.permute.xlu0 %8682
        %v8686 = vunpack.c.l.s4 269488144
        %v8687 = vunpack.c.0.s8 %v8686
        %v8688 = vlaneseq
        %v8689 = vshrl.u32 %v8688, 7
        %v8690 = vsub.s32 %v8687, %v8689
        %v8691 = vrot.slane %v8683, %v8690
        %8692 = vset.pattern.permute.xlu0 0
        %8693 = vperm.xlu0 %8692, %v8372
        %v8694 = vpop.permute.xlu0 %8693
        %v8697 = vunpack.c.l.s4 269488144
        %v8698 = vunpack.c.0.s8 %v8697
        %v8699 = vlaneseq
        %v8700 = vshrl.u32 %v8699, 7
        %v8701 = vsub.s32 %v8698, %v8700
        %v8702 = vrot.slane %v8694, %v8701
        %8703 = vset.pattern.permute.xlu0 0
        %8704 = vperm.xlu0 %8703, %v8380
        %v8705 = vpop.permute.xlu0 %8704
        %v8708 = vunpack.c.l.s4 269488144
        %v8709 = vunpack.c.0.s8 %v8708
        %v8710 = vlaneseq
        %v8711 = vshrl.u32 %v8710, 7
        %v8712 = vsub.s32 %v8709, %v8711
        %v8713 = vrot.slane %v8705, %v8712
        %8714 = vset.pattern.permute.xlu0 0
        %8715 = vperm.xlu0 %8714, %v8379
        %v8716 = vpop.permute.xlu0 %8715
        %v8719 = vunpack.c.l.s4 269488144
        %v8720 = vunpack.c.0.s8 %v8719
        %v8721 = vlaneseq
        %v8722 = vshrl.u32 %v8721, 7
        %v8723 = vsub.s32 %v8720, %v8722
        %v8724 = vrot.slane %v8716, %v8723
        %8725 = vset.pattern.permute.xlu0 0
        %8726 = vperm.xlu0 %8725, %v8381
        %v8727 = vpop.permute.xlu0 %8726
        %v8730 = vunpack.c.l.s4 269488144
        %v8731 = vunpack.c.0.s8 %v8730
        %v8732 = vlaneseq
        %v8733 = vshrl.u32 %v8732, 7
        %v8734 = vsub.s32 %v8731, %v8733
        %v8735 = vrot.slane %v8727, %v8734
        %8736 = vset.pattern.permute.xlu0 0
        %8737 = vperm.xlu0 %8736, %v8389
        %v8738 = vpop.permute.xlu0 %8737
        %v8741 = vunpack.c.l.s4 269488144
        %v8742 = vunpack.c.0.s8 %v8741
        %v8743 = vlaneseq
        %v8744 = vshrl.u32 %v8743, 7
        %v8745 = vsub.s32 %v8742, %v8744
        %v8746 = vrot.slane %v8738, %v8745
        %8747 = vset.pattern.permute.xlu0 0
        %8748 = vperm.xlu0 %8747, %v8397
        %v8749 = vpop.permute.xlu0 %8748
        %v8752 = vunpack.c.l.s4 269488144
        %v8753 = vunpack.c.0.s8 %v8752
        %v8754 = vlaneseq
        %v8755 = vshrl.u32 %v8754, 7
        %v8756 = vsub.s32 %v8753, %v8755
        %v8757 = vrot.slane %v8749, %v8756
        %8758 = vset.pattern.permute.xlu0 0
        %8759 = vperm.xlu0 %8758, %v8396
        %v8760 = vpop.permute.xlu0 %8759
        %v8763 = vunpack.c.l.s4 269488144
        %v8764 = vunpack.c.0.s8 %v8763
        %v8765 = vlaneseq
        %v8766 = vshrl.u32 %v8765, 7
        %v8767 = vsub.s32 %v8764, %v8766
        %v8768 = vrot.slane %v8760, %v8767
        %8769 = vset.pattern.permute.xlu0 0
        %8770 = vperm.xlu0 %8769, %v8398
        %v8771 = vpop.permute.xlu0 %8770
        %v8774 = vunpack.c.l.s4 269488144
        %v8775 = vunpack.c.0.s8 %v8774
        %v8776 = vlaneseq
        %v8777 = vshrl.u32 %v8776, 7
        %v8778 = vsub.s32 %v8775, %v8777
        %v8779 = vrot.slane %v8771, %v8778
        %8780 = vset.pattern.permute.xlu0 0
        %8781 = vperm.xlu0 %8780, %v8406
        %v8782 = vpop.permute.xlu0 %8781
        %v8785 = vunpack.c.l.s4 269488144
        %v8786 = vunpack.c.0.s8 %v8785
        %v8787 = vlaneseq
        %v8788 = vshrl.u32 %v8787, 7
        %v8789 = vsub.s32 %v8786, %v8788
        %v8790 = vrot.slane %v8782, %v8789
        %8791 = vset.pattern.permute.xlu0 0
        %8792 = vperm.xlu0 %8791, %v8414
        %v8793 = vpop.permute.xlu0 %8792
        %v8796 = vunpack.c.l.s4 269488144
        %v8797 = vunpack.c.0.s8 %v8796
        %v8798 = vlaneseq
        %v8799 = vshrl.u32 %v8798, 7
        %v8800 = vsub.s32 %v8797, %v8799
        %v8801 = vrot.slane %v8793, %v8800
        %8802 = vset.pattern.permute.xlu0 0
        %8803 = vperm.xlu0 %8802, %v8413
        %v8804 = vpop.permute.xlu0 %8803
        %v8807 = vunpack.c.l.s4 269488144
        %v8808 = vunpack.c.0.s8 %v8807
        %v8809 = vlaneseq
        %v8810 = vshrl.u32 %v8809, 7
        %v8811 = vsub.s32 %v8808, %v8810
        %v8812 = vrot.slane %v8804, %v8811
        %8813 = vset.pattern.permute.xlu0 0
        %8814 = vperm.xlu0 %8813, %v8415
        %v8815 = vpop.permute.xlu0 %8814
        %v8818 = vunpack.c.l.s4 269488144
        %v8819 = vunpack.c.0.s8 %v8818
        %v8820 = vlaneseq
        %v8821 = vshrl.u32 %v8820, 7
        %v8822 = vsub.s32 %v8819, %v8821
        %v8823 = vrot.slane %v8815, %v8822
        %8824 = vset.pattern.permute.xlu0 0
        %8825 = vperm.xlu0 %8824, %v8423
        %v8826 = vpop.permute.xlu0 %8825
        %v8829 = vunpack.c.l.s4 269488144
        %v8830 = vunpack.c.0.s8 %v8829
        %v8831 = vlaneseq
        %v8832 = vshrl.u32 %v8831, 7
        %v8833 = vsub.s32 %v8830, %v8832
        %v8834 = vrot.slane %v8826, %v8833
        %8835 = vset.pattern.permute.xlu0 0
        %8836 = vperm.xlu0 %8835, %v8431
        %v8837 = vpop.permute.xlu0 %8836
        %v8840 = vunpack.c.l.s4 269488144
        %v8841 = vunpack.c.0.s8 %v8840
        %v8842 = vlaneseq
        %v8843 = vshrl.u32 %v8842, 7
        %v8844 = vsub.s32 %v8841, %v8843
        %v8845 = vrot.slane %v8837, %v8844
        %8846 = vset.pattern.permute.xlu0 0
        %8847 = vperm.xlu0 %8846, %v8430
        %v8848 = vpop.permute.xlu0 %8847
        %v8851 = vunpack.c.l.s4 269488144
        %v8852 = vunpack.c.0.s8 %v8851
        %v8853 = vlaneseq
        %v8854 = vshrl.u32 %v8853, 7
        %v8855 = vsub.s32 %v8852, %v8854
        %v8856 = vrot.slane %v8848, %v8855
        %8857 = vset.pattern.permute.xlu0 0
        %8858 = vperm.xlu0 %8857, %v8432
        %v8859 = vpop.permute.xlu0 %8858
        %v8862 = vunpack.c.l.s4 269488144
        %v8863 = vunpack.c.0.s8 %v8862
        %v8864 = vlaneseq
        %v8865 = vshrl.u32 %v8864, 7
        %v8866 = vsub.s32 %v8863, %v8865
        %v8867 = vrot.slane %v8859, %v8866
        %8868 = vset.pattern.permute.xlu0 0
        %8869 = vperm.xlu0 %8868, %v8440
        %v8870 = vpop.permute.xlu0 %8869
        %v8873 = vunpack.c.l.s4 269488144
        %v8874 = vunpack.c.0.s8 %v8873
        %v8875 = vlaneseq
        %v8876 = vshrl.u32 %v8875, 7
        %v8877 = vsub.s32 %v8874, %v8876
        %v8878 = vrot.slane %v8870, %v8877
        %8879 = vset.pattern.permute.xlu0 0
        %8880 = vperm.xlu0 %8879, %v8448
        %v8881 = vpop.permute.xlu0 %8880
        %v8884 = vunpack.c.l.s4 269488144
        %v8885 = vunpack.c.0.s8 %v8884
        %v8886 = vlaneseq
        %v8887 = vshrl.u32 %v8886, 7
        %v8888 = vsub.s32 %v8885, %v8887
        %v8889 = vrot.slane %v8881, %v8888
        %8890 = vset.pattern.permute.xlu0 0
        %8891 = vperm.xlu0 %8890, %v8447
        %v8892 = vpop.permute.xlu0 %8891
        %v8895 = vunpack.c.l.s4 269488144
        %v8896 = vunpack.c.0.s8 %v8895
        %v8897 = vlaneseq
        %v8898 = vshrl.u32 %v8897, 7
        %v8899 = vsub.s32 %v8896, %v8898
        %v8900 = vrot.slane %v8892, %v8899
        %8901 = vset.pattern.permute.xlu0 0
        %8902 = vperm.xlu0 %8901, %v8449
        %v8903 = vpop.permute.xlu0 %8902
        %v8906 = vunpack.c.l.s4 269488144
        %v8907 = vunpack.c.0.s8 %v8906
        %v8908 = vlaneseq
        %v8909 = vshrl.u32 %v8908, 7
        %v8910 = vsub.s32 %v8907, %v8909
        %v8911 = vrot.slane %v8903, %v8910
        %8912 = vset.pattern.permute.xlu0 0
        %8913 = vperm.xlu0 %8912, %v8457
        %v8914 = vpop.permute.xlu0 %8913
        %v8917 = vunpack.c.l.s4 269488144
        %v8918 = vunpack.c.0.s8 %v8917
        %v8919 = vlaneseq
        %v8920 = vshrl.u32 %v8919, 7
        %v8921 = vsub.s32 %v8918, %v8920
        %v8922 = vrot.slane %v8914, %v8921
        %8923 = vset.pattern.permute.xlu0 0
        %8924 = vperm.xlu0 %8923, %v8465
        %v8925 = vpop.permute.xlu0 %8924
        %v8928 = vunpack.c.l.s4 269488144
        %v8929 = vunpack.c.0.s8 %v8928
        %v8930 = vlaneseq
        %v8931 = vshrl.u32 %v8930, 7
        %v8932 = vsub.s32 %v8929, %v8931
        %v8933 = vrot.slane %v8925, %v8932
        %8934 = vset.pattern.permute.xlu0 0
        %8935 = vperm.xlu0 %8934, %v8464
        %v8936 = vpop.permute.xlu0 %8935
        %v8939 = vunpack.c.l.s4 269488144
        %v8940 = vunpack.c.0.s8 %v8939
        %v8941 = vlaneseq
        %v8942 = vshrl.u32 %v8941, 7
        %v8943 = vsub.s32 %v8940, %v8942
        %v8944 = vrot.slane %v8936, %v8943
        %8945 = vset.pattern.permute.xlu0 0
        %8946 = vperm.xlu0 %8945, %v8466
        %v8947 = vpop.permute.xlu0 %8946
        %v8950 = vunpack.c.l.s4 269488144
        %v8951 = vunpack.c.0.s8 %v8950
        %v8952 = vlaneseq
        %v8953 = vshrl.u32 %v8952, 7
        %v8954 = vsub.s32 %v8951, %v8953
        %v8955 = vrot.slane %v8947, %v8954
        %8956 = vset.pattern.permute.xlu0 0
        %8957 = vperm.xlu0 %8956, %v8474
        %v8958 = vpop.permute.xlu0 %8957
        %v8961 = vunpack.c.l.s4 269488144
        %v8962 = vunpack.c.0.s8 %v8961
        %v8963 = vlaneseq
        %v8964 = vshrl.u32 %v8963, 7
        %v8965 = vsub.s32 %v8962, %v8964
        %v8966 = vrot.slane %v8958, %v8965
        %8967 = vset.pattern.permute.xlu0 0
        %8968 = vperm.xlu0 %8967, %v8482
        %v8969 = vpop.permute.xlu0 %8968
        %v8972 = vunpack.c.l.s4 269488144
        %v8973 = vunpack.c.0.s8 %v8972
        %v8974 = vlaneseq
        %v8975 = vshrl.u32 %v8974, 7
        %v8976 = vsub.s32 %v8973, %v8975
        %v8977 = vrot.slane %v8969, %v8976
        %8978 = vset.pattern.permute.xlu0 0
        %8979 = vperm.xlu0 %8978, %v8481
        %v8980 = vpop.permute.xlu0 %8979
        %v8983 = vunpack.c.l.s4 269488144
        %v8984 = vunpack.c.0.s8 %v8983
        %v8985 = vlaneseq
        %v8986 = vshrl.u32 %v8985, 7
        %v8987 = vsub.s32 %v8984, %v8986
        %v8988 = vrot.slane %v8980, %v8987
        %8989 = vset.pattern.permute.xlu0 0
        %8990 = vperm.xlu0 %8989, %v8483
        %v8991 = vpop.permute.xlu0 %8990
        %v8994 = vunpack.c.l.s4 269488144
        %v8995 = vunpack.c.0.s8 %v8994
        %v8996 = vlaneseq
        %v8997 = vshrl.u32 %v8996, 7
        %v8998 = vsub.s32 %v8995, %v8997
        %v8999 = vrot.slane %v8991, %v8998
        %9000 = vset.pattern.permute.xlu0 0
        %9001 = vperm.xlu0 %9000, %v8491
        %v9002 = vpop.permute.xlu0 %9001
        %v9005 = vunpack.c.l.s4 269488144
        %v9006 = vunpack.c.0.s8 %v9005
        %v9007 = vlaneseq
        %v9008 = vshrl.u32 %v9007, 7
        %v9009 = vsub.s32 %v9006, %v9008
        %v9010 = vrot.slane %v9002, %v9009
        %9011 = vset.pattern.permute.xlu0 0
        %9012 = vperm.xlu0 %9011, %v8499
        %v9013 = vpop.permute.xlu0 %9012
        %v9016 = vunpack.c.l.s4 269488144
        %v9017 = vunpack.c.0.s8 %v9016
        %v9018 = vlaneseq
        %v9019 = vshrl.u32 %v9018, 7
        %v9020 = vsub.s32 %v9017, %v9019
        %v9021 = vrot.slane %v9013, %v9020
        %9022 = vset.pattern.permute.xlu0 0
        %9023 = vperm.xlu0 %9022, %v8498
        %v9024 = vpop.permute.xlu0 %9023
        %v9027 = vunpack.c.l.s4 269488144
        %v9028 = vunpack.c.0.s8 %v9027
        %v9029 = vlaneseq
        %v9030 = vshrl.u32 %v9029, 7
        %v9031 = vsub.s32 %v9028, %v9030
        %v9032 = vrot.slane %v9024, %v9031
        %9033 = vset.pattern.permute.xlu0 0
        %9034 = vperm.xlu0 %9033, %v8500
        %v9035 = vpop.permute.xlu0 %9034
        %v9038 = vunpack.c.l.s4 269488144
        %v9039 = vunpack.c.0.s8 %v9038
        %v9040 = vlaneseq
        %v9041 = vshrl.u32 %v9040, 7
        %v9042 = vsub.s32 %v9039, %v9041
        %v9043 = vrot.slane %v9035, %v9042
        %9044 = vset.pattern.permute.xlu0 0
        %9045 = vperm.xlu0 %9044, %v8508
        %v9046 = vpop.permute.xlu0 %9045
        %v9049 = vunpack.c.l.s4 269488144
        %v9050 = vunpack.c.0.s8 %v9049
        %v9051 = vlaneseq
        %v9052 = vshrl.u32 %v9051, 7
        %v9053 = vsub.s32 %v9050, %v9052
        %v9054 = vrot.slane %v9046, %v9053
        %9055 = vset.pattern.permute.xlu0 0
        %9056 = vperm.xlu0 %9055, %v8516
        %v9057 = vpop.permute.xlu0 %9056
        %v9060 = vunpack.c.l.s4 269488144
        %v9061 = vunpack.c.0.s8 %v9060
        %v9062 = vlaneseq
        %v9063 = vshrl.u32 %v9062, 7
        %v9064 = vsub.s32 %v9061, %v9063
        %v9065 = vrot.slane %v9057, %v9064
        %9066 = vset.pattern.permute.xlu0 0
        %9067 = vperm.xlu0 %9066, %v8515
        %v9068 = vpop.permute.xlu0 %9067
        %v9071 = vunpack.c.l.s4 269488144
        %v9072 = vunpack.c.0.s8 %v9071
        %v9073 = vlaneseq
        %v9074 = vshrl.u32 %v9073, 7
        %v9075 = vsub.s32 %v9072, %v9074
        %v9076 = vrot.slane %v9068, %v9075
        %9077 = vset.pattern.permute.xlu0 0
        %9078 = vperm.xlu0 %9077, %v8517
        %v9079 = vpop.permute.xlu0 %9078
        %v9082 = vunpack.c.l.s4 269488144
        %v9083 = vunpack.c.0.s8 %v9082
        %v9084 = vlaneseq
        %v9085 = vshrl.u32 %v9084, 7
        %v9086 = vsub.s32 %v9083, %v9085
        %v9087 = vrot.slane %v9079, %v9086
        %9088 = vset.pattern.permute.xlu0 0
        %9089 = vperm.xlu0 %9088, %v8525
        %v9090 = vpop.permute.xlu0 %9089
        %v9093 = vunpack.c.l.s4 269488144
        %v9094 = vunpack.c.0.s8 %v9093
        %v9095 = vlaneseq
        %v9096 = vshrl.u32 %v9095, 7
        %v9097 = vsub.s32 %v9094, %v9096
        %v9098 = vrot.slane %v9090, %v9097
        %9099 = vset.pattern.permute.xlu0 0
        %9100 = vperm.xlu0 %9099, %v8533
        %v9101 = vpop.permute.xlu0 %9100
        %v9104 = vunpack.c.l.s4 269488144
        %v9105 = vunpack.c.0.s8 %v9104
        %v9106 = vlaneseq
        %v9107 = vshrl.u32 %v9106, 7
        %v9108 = vsub.s32 %v9105, %v9107
        %v9109 = vrot.slane %v9101, %v9108
        %9110 = vset.pattern.permute.xlu0 0
        %9111 = vperm.xlu0 %9110, %v8532
        %v9112 = vpop.permute.xlu0 %9111
        %v9115 = vunpack.c.l.s4 269488144
        %v9116 = vunpack.c.0.s8 %v9115
        %v9117 = vlaneseq
        %v9118 = vshrl.u32 %v9117, 7
        %v9119 = vsub.s32 %v9116, %v9118
        %v9120 = vrot.slane %v9112, %v9119
        %9121 = vset.pattern.permute.xlu0 0
        %9122 = vperm.xlu0 %9121, %v8534
        %v9123 = vpop.permute.xlu0 %9122
        %v9126 = vunpack.c.l.s4 269488144
        %v9127 = vunpack.c.0.s8 %v9126
        %v9128 = vlaneseq
        %v9129 = vshrl.u32 %v9128, 7
        %v9130 = vsub.s32 %v9127, %v9129
        %v9131 = vrot.slane %v9123, %v9130
        %9132 = vset.pattern.permute.xlu0 0
        %9133 = vperm.xlu0 %9132, %v8542
        %v9134 = vpop.permute.xlu0 %9133
        %v9137 = vunpack.c.l.s4 269488144
        %v9138 = vunpack.c.0.s8 %v9137
        %v9139 = vlaneseq
        %v9140 = vshrl.u32 %v9139, 7
        %v9141 = vsub.s32 %v9138, %v9140
        %v9142 = vrot.slane %v9134, %v9141
        %9143 = vset.pattern.permute.xlu0 0
        %9144 = vperm.xlu0 %9143, %v8550
        %v9145 = vpop.permute.xlu0 %9144
        %v9148 = vunpack.c.l.s4 269488144
        %v9149 = vunpack.c.0.s8 %v9148
        %v9150 = vlaneseq
        %v9151 = vshrl.u32 %v9150, 7
        %v9152 = vsub.s32 %v9149, %v9151
        %v9153 = vrot.slane %v9145, %v9152
        %9154 = vset.pattern.permute.xlu0 0
        %9155 = vperm.xlu0 %9154, %v8549
        %v9156 = vpop.permute.xlu0 %9155
        %v9159 = vunpack.c.l.s4 269488144
        %v9160 = vunpack.c.0.s8 %v9159
        %v9161 = vlaneseq
        %v9162 = vshrl.u32 %v9161, 7
        %v9163 = vsub.s32 %v9160, %v9162
        %v9164 = vrot.slane %v9156, %v9163
        %9165 = vset.pattern.permute.xlu0 0
        %9166 = vperm.xlu0 %9165, %v8551
        %v9167 = vpop.permute.xlu0 %9166
        %v9170 = vunpack.c.l.s4 269488144
        %v9171 = vunpack.c.0.s8 %v9170
        %v9172 = vlaneseq
        %v9173 = vshrl.u32 %v9172, 7
        %v9174 = vsub.s32 %v9171, %v9173
        %v9175 = vrot.slane %v9167, %v9174
        %9176 = vset.pattern.permute.xlu0 0
        %9177 = vperm.xlu0 %9176, %v8559
        %v9178 = vpop.permute.xlu0 %9177
        %v9181 = vunpack.c.l.s4 269488144
        %v9182 = vunpack.c.0.s8 %v9181
        %v9183 = vlaneseq
        %v9184 = vshrl.u32 %v9183, 7
        %v9185 = vsub.s32 %v9182, %v9184
        %v9186 = vrot.slane %v9178, %v9185
        %9187 = vset.pattern.permute.xlu0 0
        %9188 = vperm.xlu0 %9187, %v8567
        %v9189 = vpop.permute.xlu0 %9188
        %v9192 = vunpack.c.l.s4 269488144
        %v9193 = vunpack.c.0.s8 %v9192
        %v9194 = vlaneseq
        %v9195 = vshrl.u32 %v9194, 7
        %v9196 = vsub.s32 %v9193, %v9195
        %v9197 = vrot.slane %v9189, %v9196
        %9198 = vset.pattern.permute.xlu0 0
        %9199 = vperm.xlu0 %9198, %v8566
        %v9200 = vpop.permute.xlu0 %9199
        %v9203 = vunpack.c.l.s4 269488144
        %v9204 = vunpack.c.0.s8 %v9203
        %v9205 = vlaneseq
        %v9206 = vshrl.u32 %v9205, 7
        %v9207 = vsub.s32 %v9204, %v9206
        %v9208 = vrot.slane %v9200, %v9207
        %9209 = vset.pattern.permute.xlu0 0
        %9210 = vperm.xlu0 %9209, %v8568
        %v9211 = vpop.permute.xlu0 %9210
        %v9214 = vunpack.c.l.s4 269488144
        %v9215 = vunpack.c.0.s8 %v9214
        %v9216 = vlaneseq
        %v9217 = vshrl.u32 %v9216, 7
        %v9218 = vsub.s32 %v9215, %v9217
        %v9219 = vrot.slane %v9211, %v9218
        %9220 = vset.pattern.permute.xlu0 0
        %9221 = vperm.xlu0 %9220, %v8576
        %v9222 = vpop.permute.xlu0 %9221
        %v9225 = vunpack.c.l.s4 269488144
        %v9226 = vunpack.c.0.s8 %v9225
        %v9227 = vlaneseq
        %v9228 = vshrl.u32 %v9227, 7
        %v9229 = vsub.s32 %v9226, %v9228
        %v9230 = vrot.slane %v9222, %v9229
        %9231 = vset.pattern.permute.xlu0 0
        %9232 = vperm.xlu0 %9231, %v8584
        %v9233 = vpop.permute.xlu0 %9232
        %v9236 = vunpack.c.l.s4 269488144
        %v9237 = vunpack.c.0.s8 %v9236
        %v9238 = vlaneseq
        %v9239 = vshrl.u32 %v9238, 7
        %v9240 = vsub.s32 %v9237, %v9239
        %v9241 = vrot.slane %v9233, %v9240
        %9242 = vset.pattern.permute.xlu0 0
        %9243 = vperm.xlu0 %9242, %v8583
        %v9244 = vpop.permute.xlu0 %9243
        %v9247 = vunpack.c.l.s4 269488144
        %v9248 = vunpack.c.0.s8 %v9247
        %v9249 = vlaneseq
        %v9250 = vshrl.u32 %v9249, 7
        %v9251 = vsub.s32 %v9248, %v9250
        %v9252 = vrot.slane %v9244, %v9251
        %9253 = vset.pattern.permute.xlu0 0
        %9254 = vperm.xlu0 %9253, %v8585
        %v9255 = vpop.permute.xlu0 %9254
        %v9258 = vunpack.c.l.s4 269488144
        %v9259 = vunpack.c.0.s8 %v9258
        %v9260 = vlaneseq
        %v9261 = vshrl.u32 %v9260, 7
        %v9262 = vsub.s32 %v9259, %v9261
        %v9263 = vrot.slane %v9255, %v9262
        %9264 = vset.pattern.permute.xlu0 0
        %9265 = vperm.xlu0 %9264, %v8593
        %v9266 = vpop.permute.xlu0 %9265
        %v9269 = vunpack.c.l.s4 269488144
        %v9270 = vunpack.c.0.s8 %v9269
        %v9271 = vlaneseq
        %v9272 = vshrl.u32 %v9271, 7
        %v9273 = vsub.s32 %v9270, %v9272
        %v9274 = vrot.slane %v9266, %v9273
        %9275 = vset.pattern.permute.xlu0 0
        %9276 = vperm.xlu0 %9275, %v8601
        %v9277 = vpop.permute.xlu0 %9276
        %v9280 = vunpack.c.l.s4 269488144
        %v9281 = vunpack.c.0.s8 %v9280
        %v9282 = vlaneseq
        %v9283 = vshrl.u32 %v9282, 7
        %v9284 = vsub.s32 %v9281, %v9283
        %v9285 = vrot.slane %v9277, %v9284
        %9286 = vset.pattern.permute.xlu0 0
        %9287 = vperm.xlu0 %9286, %v8600
        %v9288 = vpop.permute.xlu0 %9287
        %v9291 = vunpack.c.l.s4 269488144
        %v9292 = vunpack.c.0.s8 %v9291
        %v9293 = vlaneseq
        %v9294 = vshrl.u32 %v9293, 7
        %v9295 = vsub.s32 %v9292, %v9294
        %v9296 = vrot.slane %v9288, %v9295
        %9297 = vset.pattern.permute.xlu0 0
        %9298 = vperm.xlu0 %9297, %v8602
        %v9299 = vpop.permute.xlu0 %9298
        %v9302 = vunpack.c.l.s4 269488144
        %v9303 = vunpack.c.0.s8 %v9302
        %v9304 = vlaneseq
        %v9305 = vshrl.u32 %v9304, 7
        %v9306 = vsub.s32 %v9303, %v9305
        %v9307 = vrot.slane %v9299, %v9306
        %v9308 = vlaneseq
        %v9309 = vshrl.u32 %v9308, 7
        %v9310 = vsub.s32 0, %v9309
        %v9311 = vrot.slane %v8603, %v9310
        %v9313 = vcombine.high %v9311, %v9311
        %v9315 = vunpack.c.l.s4 1983009808
        %v9316 = vunpack.c.0.s8 %v9315
        %v9317 = vlaneseq
        %v9318 = vshrl.u32 %v9317, 7
        %v9319 = vsub.s32 %v9316, %v9318
        %v9320 = vrot.slane %v9311, %v9319
        %v9322 = vunpack.c.l.s4 1983009808
        %v9323 = vunpack.c.0.s8 %v9322
        %v9324 = vlaneseq
        %v9325 = vshrl.u32 %v9324, 7
        %v9326 = vsub.s32 %v9323, %v9325
        %v9327 = vrot.slane %v9313, %v9326
        %v9328 = vcombine.high %v9320, %v9320
        %v9329 = vcombine.high %v9327, %v9327
        %v9330 = vrot.slane %v9320, 1
        %v9331 = vrot.slane %v9328, 1
        %v9332 = vrot.slane %v9327, 1
        %v9333 = vrot.slane %v9329, 1
        %v9342 = vmul.f32 %v8614, %v9320
        %v9343 = vmul.f32 %v8625, %v9330
        %v9344 = vmul.f32 %v8636, %v9328
        %v9345 = vmul.f32 %v8647, %v9331
        %v9346 = vmul.f32 %v8658, %v9327
        %v9347 = vmul.f32 %v8669, %v9332
        %v9348 = vmul.f32 %v8680, %v9329
        %v9349 = vmul.f32 %v8691, %v9333
        %v9350 = vmul.f32 %v8702, %v9320
        %v9351 = vmul.f32 %v8713, %v9330
        %v9352 = vmul.f32 %v8724, %v9328
        %v9353 = vmul.f32 %v8735, %v9331
        %v9354 = vmul.f32 %v8746, %v9327
        %v9355 = vmul.f32 %v8757, %v9332
        %v9356 = vmul.f32 %v8768, %v9329
        %v9357 = vmul.f32 %v8779, %v9333
        %v9358 = vmul.f32 %v8790, %v9320
        %v9359 = vmul.f32 %v8801, %v9330
        %v9360 = vmul.f32 %v8812, %v9328
        %v9361 = vmul.f32 %v8823, %v9331
        %v9362 = vmul.f32 %v8834, %v9327
        %v9363 = vmul.f32 %v8845, %v9332
        %v9364 = vmul.f32 %v8856, %v9329
        %v9365 = vmul.f32 %v8867, %v9333
        %v9366 = vmul.f32 %v8878, %v9320
        %v9367 = vmul.f32 %v8889, %v9330
        %v9368 = vmul.f32 %v8900, %v9328
        %v9369 = vmul.f32 %v8911, %v9331
        %v9370 = vmul.f32 %v8922, %v9327
        %v9371 = vmul.f32 %v8933, %v9332
        %v9372 = vmul.f32 %v8944, %v9329
        %v9373 = vmul.f32 %v8955, %v9333
        %v9374 = vmul.f32 %v8966, %v9320
        %v9375 = vmul.f32 %v8977, %v9330
        %v9376 = vmul.f32 %v8988, %v9328
        %v9377 = vmul.f32 %v8999, %v9331
        %v9378 = vmul.f32 %v9010, %v9327
        %v9379 = vmul.f32 %v9021, %v9332
        %v9380 = vmul.f32 %v9032, %v9329
        %v9381 = vmul.f32 %v9043, %v9333
        %v9382 = vmul.f32 %v9054, %v9320
        %v9383 = vmul.f32 %v9065, %v9330
        %v9384 = vmul.f32 %v9076, %v9328
        %v9385 = vmul.f32 %v9087, %v9331
        %v9386 = vmul.f32 %v9098, %v9327
        %v9387 = vmul.f32 %v9109, %v9332
        %v9388 = vmul.f32 %v9120, %v9329
        %v9389 = vmul.f32 %v9131, %v9333
        %v9390 = vmul.f32 %v9142, %v9320
        %v9391 = vmul.f32 %v9153, %v9330
        %v9392 = vmul.f32 %v9164, %v9328
        %v9393 = vmul.f32 %v9175, %v9331
        %v9394 = vmul.f32 %v9186, %v9327
        %v9395 = vmul.f32 %v9197, %v9332
        %v9396 = vmul.f32 %v9208, %v9329
        %v9397 = vmul.f32 %v9219, %v9333
        %v9398 = vmul.f32 %v9230, %v9320
        %v9399 = vmul.f32 %v9241, %v9330
        %v9400 = vmul.f32 %v9252, %v9328
        %v9401 = vmul.f32 %v9263, %v9331
        %v9402 = vmul.f32 %v9274, %v9327
        %v9403 = vmul.f32 %v9285, %v9332
        %v9404 = vmul.f32 %v9296, %v9329
        %v9405 = vmul.f32 %v9307, %v9333
        %9406 = vset.pattern.permute.xlu0 1
        %9407 = vperm.xlu0 %9406, %v8338
        %v9408 = vpop.permute.xlu0 %9407
        %v9411 = vunpack.c.l.s4 269488144
        %v9412 = vunpack.c.0.s8 %v9411
        %v9413 = vlaneseq
        %v9414 = vshrl.u32 %v9413, 7
        %v9415 = vsub.s32 %v9412, %v9414
        %v9416 = vrot.slane %v9408, %v9415
        %9417 = vset.pattern.permute.xlu0 1
        %9418 = vperm.xlu0 %9417, %v8346
        %v9419 = vpop.permute.xlu0 %9418
        %v9422 = vunpack.c.l.s4 269488144
        %v9423 = vunpack.c.0.s8 %v9422
        %v9424 = vlaneseq
        %v9425 = vshrl.u32 %v9424, 7
        %v9426 = vsub.s32 %v9423, %v9425
        %v9427 = vrot.slane %v9419, %v9426
        %9428 = vset.pattern.permute.xlu0 1
        %9429 = vperm.xlu0 %9428, %v8345
        %v9430 = vpop.permute.xlu0 %9429
        %v9433 = vunpack.c.l.s4 269488144
        %v9434 = vunpack.c.0.s8 %v9433
        %v9435 = vlaneseq
        %v9436 = vshrl.u32 %v9435, 7
        %v9437 = vsub.s32 %v9434, %v9436
        %v9438 = vrot.slane %v9430, %v9437
        %9439 = vset.pattern.permute.xlu0 1
        %9440 = vperm.xlu0 %9439, %v8347
        %v9441 = vpop.permute.xlu0 %9440
        %v9444 = vunpack.c.l.s4 269488144
        %v9445 = vunpack.c.0.s8 %v9444
        %v9446 = vlaneseq
        %v9447 = vshrl.u32 %v9446, 7
        %v9448 = vsub.s32 %v9445, %v9447
        %v9449 = vrot.slane %v9441, %v9448
        %9450 = vset.pattern.permute.xlu0 1
        %9451 = vperm.xlu0 %9450, %v8355
        %v9452 = vpop.permute.xlu0 %9451
        %v9455 = vunpack.c.l.s4 269488144
        %v9456 = vunpack.c.0.s8 %v9455
        %v9457 = vlaneseq
        %v9458 = vshrl.u32 %v9457, 7
        %v9459 = vsub.s32 %v9456, %v9458
        %v9460 = vrot.slane %v9452, %v9459
        %9461 = vset.pattern.permute.xlu0 1
        %9462 = vperm.xlu0 %9461, %v8363
        %v9463 = vpop.permute.xlu0 %9462
        %v9466 = vunpack.c.l.s4 269488144
        %v9467 = vunpack.c.0.s8 %v9466
        %v9468 = vlaneseq
        %v9469 = vshrl.u32 %v9468, 7
        %v9470 = vsub.s32 %v9467, %v9469
        %v9471 = vrot.slane %v9463, %v9470
        %9472 = vset.pattern.permute.xlu0 1
        %9473 = vperm.xlu0 %9472, %v8362
        %v9474 = vpop.permute.xlu0 %9473
        %v9477 = vunpack.c.l.s4 269488144
        %v9478 = vunpack.c.0.s8 %v9477
        %v9479 = vlaneseq
        %v9480 = vshrl.u32 %v9479, 7
        %v9481 = vsub.s32 %v9478, %v9480
        %v9482 = vrot.slane %v9474, %v9481
        %9483 = vset.pattern.permute.xlu0 1
        %9484 = vperm.xlu0 %9483, %v8364
        %v9485 = vpop.permute.xlu0 %9484
        %v9488 = vunpack.c.l.s4 269488144
        %v9489 = vunpack.c.0.s8 %v9488
        %v9490 = vlaneseq
        %v9491 = vshrl.u32 %v9490, 7
        %v9492 = vsub.s32 %v9489, %v9491
        %v9493 = vrot.slane %v9485, %v9492
        %9494 = vset.pattern.permute.xlu0 1
        %9495 = vperm.xlu0 %9494, %v8372
        %v9496 = vpop.permute.xlu0 %9495
        %v9499 = vunpack.c.l.s4 269488144
        %v9500 = vunpack.c.0.s8 %v9499
        %v9501 = vlaneseq
        %v9502 = vshrl.u32 %v9501, 7
        %v9503 = vsub.s32 %v9500, %v9502
        %v9504 = vrot.slane %v9496, %v9503
        %9505 = vset.pattern.permute.xlu0 1
        %9506 = vperm.xlu0 %9505, %v8380
        %v9507 = vpop.permute.xlu0 %9506
        %v9510 = vunpack.c.l.s4 269488144
        %v9511 = vunpack.c.0.s8 %v9510
        %v9512 = vlaneseq
        %v9513 = vshrl.u32 %v9512, 7
        %v9514 = vsub.s32 %v9511, %v9513
        %v9515 = vrot.slane %v9507, %v9514
        %9516 = vset.pattern.permute.xlu0 1
        %9517 = vperm.xlu0 %9516, %v8379
        %v9518 = vpop.permute.xlu0 %9517
        %v9521 = vunpack.c.l.s4 269488144
        %v9522 = vunpack.c.0.s8 %v9521
        %v9523 = vlaneseq
        %v9524 = vshrl.u32 %v9523, 7
        %v9525 = vsub.s32 %v9522, %v9524
        %v9526 = vrot.slane %v9518, %v9525
        %9527 = vset.pattern.permute.xlu0 1
        %9528 = vperm.xlu0 %9527, %v8381
        %v9529 = vpop.permute.xlu0 %9528
        %v9532 = vunpack.c.l.s4 269488144
        %v9533 = vunpack.c.0.s8 %v9532
        %v9534 = vlaneseq
        %v9535 = vshrl.u32 %v9534, 7
        %v9536 = vsub.s32 %v9533, %v9535
        %v9537 = vrot.slane %v9529, %v9536
        %9538 = vset.pattern.permute.xlu0 1
        %9539 = vperm.xlu0 %9538, %v8389
        %v9540 = vpop.permute.xlu0 %9539
        %v9543 = vunpack.c.l.s4 269488144
        %v9544 = vunpack.c.0.s8 %v9543
        %v9545 = vlaneseq
        %v9546 = vshrl.u32 %v9545, 7
        %v9547 = vsub.s32 %v9544, %v9546
        %v9548 = vrot.slane %v9540, %v9547
        %9549 = vset.pattern.permute.xlu0 1
        %9550 = vperm.xlu0 %9549, %v8397
        %v9551 = vpop.permute.xlu0 %9550
        %v9554 = vunpack.c.l.s4 269488144
        %v9555 = vunpack.c.0.s8 %v9554
        %v9556 = vlaneseq
        %v9557 = vshrl.u32 %v9556, 7
        %v9558 = vsub.s32 %v9555, %v9557
        %v9559 = vrot.slane %v9551, %v9558
        %9560 = vset.pattern.permute.xlu0 1
        %9561 = vperm.xlu0 %9560, %v8396
        %v9562 = vpop.permute.xlu0 %9561
        %v9565 = vunpack.c.l.s4 269488144
        %v9566 = vunpack.c.0.s8 %v9565
        %v9567 = vlaneseq
        %v9568 = vshrl.u32 %v9567, 7
        %v9569 = vsub.s32 %v9566, %v9568
        %v9570 = vrot.slane %v9562, %v9569
        %9571 = vset.pattern.permute.xlu0 1
        %9572 = vperm.xlu0 %9571, %v8398
        %v9573 = vpop.permute.xlu0 %9572
        %v9576 = vunpack.c.l.s4 269488144
        %v9577 = vunpack.c.0.s8 %v9576
        %v9578 = vlaneseq
        %v9579 = vshrl.u32 %v9578, 7
        %v9580 = vsub.s32 %v9577, %v9579
        %v9581 = vrot.slane %v9573, %v9580
        %9582 = vset.pattern.permute.xlu0 1
        %9583 = vperm.xlu0 %9582, %v8406
        %v9584 = vpop.permute.xlu0 %9583
        %v9587 = vunpack.c.l.s4 269488144
        %v9588 = vunpack.c.0.s8 %v9587
        %v9589 = vlaneseq
        %v9590 = vshrl.u32 %v9589, 7
        %v9591 = vsub.s32 %v9588, %v9590
        %v9592 = vrot.slane %v9584, %v9591
        %9593 = vset.pattern.permute.xlu0 1
        %9594 = vperm.xlu0 %9593, %v8414
        %v9595 = vpop.permute.xlu0 %9594
        %v9598 = vunpack.c.l.s4 269488144
        %v9599 = vunpack.c.0.s8 %v9598
        %v9600 = vlaneseq
        %v9601 = vshrl.u32 %v9600, 7
        %v9602 = vsub.s32 %v9599, %v9601
        %v9603 = vrot.slane %v9595, %v9602
        %9604 = vset.pattern.permute.xlu0 1
        %9605 = vperm.xlu0 %9604, %v8413
        %v9606 = vpop.permute.xlu0 %9605
        %v9609 = vunpack.c.l.s4 269488144
        %v9610 = vunpack.c.0.s8 %v9609
        %v9611 = vlaneseq
        %v9612 = vshrl.u32 %v9611, 7
        %v9613 = vsub.s32 %v9610, %v9612
        %v9614 = vrot.slane %v9606, %v9613
        %9615 = vset.pattern.permute.xlu0 1
        %9616 = vperm.xlu0 %9615, %v8415
        %v9617 = vpop.permute.xlu0 %9616
        %v9620 = vunpack.c.l.s4 269488144
        %v9621 = vunpack.c.0.s8 %v9620
        %v9622 = vlaneseq
        %v9623 = vshrl.u32 %v9622, 7
        %v9624 = vsub.s32 %v9621, %v9623
        %v9625 = vrot.slane %v9617, %v9624
        %9626 = vset.pattern.permute.xlu0 1
        %9627 = vperm.xlu0 %9626, %v8423
        %v9628 = vpop.permute.xlu0 %9627
        %v9631 = vunpack.c.l.s4 269488144
        %v9632 = vunpack.c.0.s8 %v9631
        %v9633 = vlaneseq
        %v9634 = vshrl.u32 %v9633, 7
        %v9635 = vsub.s32 %v9632, %v9634
        %v9636 = vrot.slane %v9628, %v9635
        %9637 = vset.pattern.permute.xlu0 1
        %9638 = vperm.xlu0 %9637, %v8431
        %v9639 = vpop.permute.xlu0 %9638
        %v9642 = vunpack.c.l.s4 269488144
        %v9643 = vunpack.c.0.s8 %v9642
        %v9644 = vlaneseq
        %v9645 = vshrl.u32 %v9644, 7
        %v9646 = vsub.s32 %v9643, %v9645
        %v9647 = vrot.slane %v9639, %v9646
        %9648 = vset.pattern.permute.xlu0 1
        %9649 = vperm.xlu0 %9648, %v8430
        %v9650 = vpop.permute.xlu0 %9649
        %v9653 = vunpack.c.l.s4 269488144
        %v9654 = vunpack.c.0.s8 %v9653
        %v9655 = vlaneseq
        %v9656 = vshrl.u32 %v9655, 7
        %v9657 = vsub.s32 %v9654, %v9656
        %v9658 = vrot.slane %v9650, %v9657
        %9659 = vset.pattern.permute.xlu0 1
        %9660 = vperm.xlu0 %9659, %v8432
        %v9661 = vpop.permute.xlu0 %9660
        %v9664 = vunpack.c.l.s4 269488144
        %v9665 = vunpack.c.0.s8 %v9664
        %v9666 = vlaneseq
        %v9667 = vshrl.u32 %v9666, 7
        %v9668 = vsub.s32 %v9665, %v9667
        %v9669 = vrot.slane %v9661, %v9668
        %9670 = vset.pattern.permute.xlu0 1
        %9671 = vperm.xlu0 %9670, %v8440
        %v9672 = vpop.permute.xlu0 %9671
        %v9675 = vunpack.c.l.s4 269488144
        %v9676 = vunpack.c.0.s8 %v9675
        %v9677 = vlaneseq
        %v9678 = vshrl.u32 %v9677, 7
        %v9679 = vsub.s32 %v9676, %v9678
        %v9680 = vrot.slane %v9672, %v9679
        %9681 = vset.pattern.permute.xlu0 1
        %9682 = vperm.xlu0 %9681, %v8448
        %v9683 = vpop.permute.xlu0 %9682
        %v9686 = vunpack.c.l.s4 269488144
        %v9687 = vunpack.c.0.s8 %v9686
        %v9688 = vlaneseq
        %v9689 = vshrl.u32 %v9688, 7
        %v9690 = vsub.s32 %v9687, %v9689
        %v9691 = vrot.slane %v9683, %v9690
        %9692 = vset.pattern.permute.xlu0 1
        %9693 = vperm.xlu0 %9692, %v8447
        %v9694 = vpop.permute.xlu0 %9693
        %v9697 = vunpack.c.l.s4 269488144
        %v9698 = vunpack.c.0.s8 %v9697
        %v9699 = vlaneseq
        %v9700 = vshrl.u32 %v9699, 7
        %v9701 = vsub.s32 %v9698, %v9700
        %v9702 = vrot.slane %v9694, %v9701
        %9703 = vset.pattern.permute.xlu0 1
        %9704 = vperm.xlu0 %9703, %v8449
        %v9705 = vpop.permute.xlu0 %9704
        %v9708 = vunpack.c.l.s4 269488144
        %v9709 = vunpack.c.0.s8 %v9708
        %v9710 = vlaneseq
        %v9711 = vshrl.u32 %v9710, 7
        %v9712 = vsub.s32 %v9709, %v9711
        %v9713 = vrot.slane %v9705, %v9712
        %9714 = vset.pattern.permute.xlu0 1
        %9715 = vperm.xlu0 %9714, %v8457
        %v9716 = vpop.permute.xlu0 %9715
        %v9719 = vunpack.c.l.s4 269488144
        %v9720 = vunpack.c.0.s8 %v9719
        %v9721 = vlaneseq
        %v9722 = vshrl.u32 %v9721, 7
        %v9723 = vsub.s32 %v9720, %v9722
        %v9724 = vrot.slane %v9716, %v9723
        %9725 = vset.pattern.permute.xlu0 1
        %9726 = vperm.xlu0 %9725, %v8465
        %v9727 = vpop.permute.xlu0 %9726
        %v9730 = vunpack.c.l.s4 269488144
        %v9731 = vunpack.c.0.s8 %v9730
        %v9732 = vlaneseq
        %v9733 = vshrl.u32 %v9732, 7
        %v9734 = vsub.s32 %v9731, %v9733
        %v9735 = vrot.slane %v9727, %v9734
        %9736 = vset.pattern.permute.xlu0 1
        %9737 = vperm.xlu0 %9736, %v8464
        %v9738 = vpop.permute.xlu0 %9737
        %v9741 = vunpack.c.l.s4 269488144
        %v9742 = vunpack.c.0.s8 %v9741
        %v9743 = vlaneseq
        %v9744 = vshrl.u32 %v9743, 7
        %v9745 = vsub.s32 %v9742, %v9744
        %v9746 = vrot.slane %v9738, %v9745
        %9747 = vset.pattern.permute.xlu0 1
        %9748 = vperm.xlu0 %9747, %v8466
        %v9749 = vpop.permute.xlu0 %9748
        %v9752 = vunpack.c.l.s4 269488144
        %v9753 = vunpack.c.0.s8 %v9752
        %v9754 = vlaneseq
        %v9755 = vshrl.u32 %v9754, 7
        %v9756 = vsub.s32 %v9753, %v9755
        %v9757 = vrot.slane %v9749, %v9756
        %9758 = vset.pattern.permute.xlu0 1
        %9759 = vperm.xlu0 %9758, %v8474
        %v9760 = vpop.permute.xlu0 %9759
        %v9763 = vunpack.c.l.s4 269488144
        %v9764 = vunpack.c.0.s8 %v9763
        %v9765 = vlaneseq
        %v9766 = vshrl.u32 %v9765, 7
        %v9767 = vsub.s32 %v9764, %v9766
        %v9768 = vrot.slane %v9760, %v9767
        %9769 = vset.pattern.permute.xlu0 1
        %9770 = vperm.xlu0 %9769, %v8482
        %v9771 = vpop.permute.xlu0 %9770
        %v9774 = vunpack.c.l.s4 269488144
        %v9775 = vunpack.c.0.s8 %v9774
        %v9776 = vlaneseq
        %v9777 = vshrl.u32 %v9776, 7
        %v9778 = vsub.s32 %v9775, %v9777
        %v9779 = vrot.slane %v9771, %v9778
        %9780 = vset.pattern.permute.xlu0 1
        %9781 = vperm.xlu0 %9780, %v8481
        %v9782 = vpop.permute.xlu0 %9781
        %v9785 = vunpack.c.l.s4 269488144
        %v9786 = vunpack.c.0.s8 %v9785
        %v9787 = vlaneseq
        %v9788 = vshrl.u32 %v9787, 7
        %v9789 = vsub.s32 %v9786, %v9788
        %v9790 = vrot.slane %v9782, %v9789
        %9791 = vset.pattern.permute.xlu0 1
        %9792 = vperm.xlu0 %9791, %v8483
        %v9793 = vpop.permute.xlu0 %9792
        %v9796 = vunpack.c.l.s4 269488144
        %v9797 = vunpack.c.0.s8 %v9796
        %v9798 = vlaneseq
        %v9799 = vshrl.u32 %v9798, 7
        %v9800 = vsub.s32 %v9797, %v9799
        %v9801 = vrot.slane %v9793, %v9800
        %9802 = vset.pattern.permute.xlu0 1
        %9803 = vperm.xlu0 %9802, %v8491
        %v9804 = vpop.permute.xlu0 %9803
        %v9807 = vunpack.c.l.s4 269488144
        %v9808 = vunpack.c.0.s8 %v9807
        %v9809 = vlaneseq
        %v9810 = vshrl.u32 %v9809, 7
        %v9811 = vsub.s32 %v9808, %v9810
        %v9812 = vrot.slane %v9804, %v9811
        %9813 = vset.pattern.permute.xlu0 1
        %9814 = vperm.xlu0 %9813, %v8499
        %v9815 = vpop.permute.xlu0 %9814
        %v9818 = vunpack.c.l.s4 269488144
        %v9819 = vunpack.c.0.s8 %v9818
        %v9820 = vlaneseq
        %v9821 = vshrl.u32 %v9820, 7
        %v9822 = vsub.s32 %v9819, %v9821
        %v9823 = vrot.slane %v9815, %v9822
        %9824 = vset.pattern.permute.xlu0 1
        %9825 = vperm.xlu0 %9824, %v8498
        %v9826 = vpop.permute.xlu0 %9825
        %v9829 = vunpack.c.l.s4 269488144
        %v9830 = vunpack.c.0.s8 %v9829
        %v9831 = vlaneseq
        %v9832 = vshrl.u32 %v9831, 7
        %v9833 = vsub.s32 %v9830, %v9832
        %v9834 = vrot.slane %v9826, %v9833
        %9835 = vset.pattern.permute.xlu0 1
        %9836 = vperm.xlu0 %9835, %v8500
        %v9837 = vpop.permute.xlu0 %9836
        %v9840 = vunpack.c.l.s4 269488144
        %v9841 = vunpack.c.0.s8 %v9840
        %v9842 = vlaneseq
        %v9843 = vshrl.u32 %v9842, 7
        %v9844 = vsub.s32 %v9841, %v9843
        %v9845 = vrot.slane %v9837, %v9844
        %9846 = vset.pattern.permute.xlu0 1
        %9847 = vperm.xlu0 %9846, %v8508
        %v9848 = vpop.permute.xlu0 %9847
        %v9851 = vunpack.c.l.s4 269488144
        %v9852 = vunpack.c.0.s8 %v9851
        %v9853 = vlaneseq
        %v9854 = vshrl.u32 %v9853, 7
        %v9855 = vsub.s32 %v9852, %v9854
        %v9856 = vrot.slane %v9848, %v9855
        %9857 = vset.pattern.permute.xlu0 1
        %9858 = vperm.xlu0 %9857, %v8516
        %v9859 = vpop.permute.xlu0 %9858
        %v9862 = vunpack.c.l.s4 269488144
        %v9863 = vunpack.c.0.s8 %v9862
        %v9864 = vlaneseq
        %v9865 = vshrl.u32 %v9864, 7
        %v9866 = vsub.s32 %v9863, %v9865
        %v9867 = vrot.slane %v9859, %v9866
        %9868 = vset.pattern.permute.xlu0 1
        %9869 = vperm.xlu0 %9868, %v8515
        %v9870 = vpop.permute.xlu0 %9869
        %v9873 = vunpack.c.l.s4 269488144
        %v9874 = vunpack.c.0.s8 %v9873
        %v9875 = vlaneseq
        %v9876 = vshrl.u32 %v9875, 7
        %v9877 = vsub.s32 %v9874, %v9876
        %v9878 = vrot.slane %v9870, %v9877
        %9879 = vset.pattern.permute.xlu0 1
        %9880 = vperm.xlu0 %9879, %v8517
        %v9881 = vpop.permute.xlu0 %9880
        %v9884 = vunpack.c.l.s4 269488144
        %v9885 = vunpack.c.0.s8 %v9884
        %v9886 = vlaneseq
        %v9887 = vshrl.u32 %v9886, 7
        %v9888 = vsub.s32 %v9885, %v9887
        %v9889 = vrot.slane %v9881, %v9888
        %9890 = vset.pattern.permute.xlu0 1
        %9891 = vperm.xlu0 %9890, %v8525
        %v9892 = vpop.permute.xlu0 %9891
        %v9895 = vunpack.c.l.s4 269488144
        %v9896 = vunpack.c.0.s8 %v9895
        %v9897 = vlaneseq
        %v9898 = vshrl.u32 %v9897, 7
        %v9899 = vsub.s32 %v9896, %v9898
        %v9900 = vrot.slane %v9892, %v9899
        %9901 = vset.pattern.permute.xlu0 1
        %9902 = vperm.xlu0 %9901, %v8533
        %v9903 = vpop.permute.xlu0 %9902
        %v9906 = vunpack.c.l.s4 269488144
        %v9907 = vunpack.c.0.s8 %v9906
        %v9908 = vlaneseq
        %v9909 = vshrl.u32 %v9908, 7
        %v9910 = vsub.s32 %v9907, %v9909
        %v9911 = vrot.slane %v9903, %v9910
        %9912 = vset.pattern.permute.xlu0 1
        %9913 = vperm.xlu0 %9912, %v8532
        %v9914 = vpop.permute.xlu0 %9913
        %v9917 = vunpack.c.l.s4 269488144
        %v9918 = vunpack.c.0.s8 %v9917
        %v9919 = vlaneseq
        %v9920 = vshrl.u32 %v9919, 7
        %v9921 = vsub.s32 %v9918, %v9920
        %v9922 = vrot.slane %v9914, %v9921
        %9923 = vset.pattern.permute.xlu0 1
        %9924 = vperm.xlu0 %9923, %v8534
        %v9925 = vpop.permute.xlu0 %9924
        %v9928 = vunpack.c.l.s4 269488144
        %v9929 = vunpack.c.0.s8 %v9928
        %v9930 = vlaneseq
        %v9931 = vshrl.u32 %v9930, 7
        %v9932 = vsub.s32 %v9929, %v9931
        %v9933 = vrot.slane %v9925, %v9932
        %9934 = vset.pattern.permute.xlu0 1
        %9935 = vperm.xlu0 %9934, %v8542
        %v9936 = vpop.permute.xlu0 %9935
        %v9939 = vunpack.c.l.s4 269488144
        %v9940 = vunpack.c.0.s8 %v9939
        %v9941 = vlaneseq
        %v9942 = vshrl.u32 %v9941, 7
        %v9943 = vsub.s32 %v9940, %v9942
        %v9944 = vrot.slane %v9936, %v9943
        %9945 = vset.pattern.permute.xlu0 1
        %9946 = vperm.xlu0 %9945, %v8550
        %v9947 = vpop.permute.xlu0 %9946
        %v9950 = vunpack.c.l.s4 269488144
        %v9951 = vunpack.c.0.s8 %v9950
        %v9952 = vlaneseq
        %v9953 = vshrl.u32 %v9952, 7
        %v9954 = vsub.s32 %v9951, %v9953
        %v9955 = vrot.slane %v9947, %v9954
        %9956 = vset.pattern.permute.xlu0 1
        %9957 = vperm.xlu0 %9956, %v8549
        %v9958 = vpop.permute.xlu0 %9957
        %v9961 = vunpack.c.l.s4 269488144
        %v9962 = vunpack.c.0.s8 %v9961
        %v9963 = vlaneseq
        %v9964 = vshrl.u32 %v9963, 7
        %v9965 = vsub.s32 %v9962, %v9964
        %v9966 = vrot.slane %v9958, %v9965
        %9967 = vset.pattern.permute.xlu0 1
        %9968 = vperm.xlu0 %9967, %v8551
        %v9969 = vpop.permute.xlu0 %9968
        %v9972 = vunpack.c.l.s4 269488144
        %v9973 = vunpack.c.0.s8 %v9972
        %v9974 = vlaneseq
        %v9975 = vshrl.u32 %v9974, 7
        %v9976 = vsub.s32 %v9973, %v9975
        %v9977 = vrot.slane %v9969, %v9976
        %9978 = vset.pattern.permute.xlu0 1
        %9979 = vperm.xlu0 %9978, %v8559
        %v9980 = vpop.permute.xlu0 %9979
        %v9983 = vunpack.c.l.s4 269488144
        %v9984 = vunpack.c.0.s8 %v9983
        %v9985 = vlaneseq
        %v9986 = vshrl.u32 %v9985, 7
        %v9987 = vsub.s32 %v9984, %v9986
        %v9988 = vrot.slane %v9980, %v9987
        %9989 = vset.pattern.permute.xlu0 1
        %9990 = vperm.xlu0 %9989, %v8567
        %v9991 = vpop.permute.xlu0 %9990
        %v9994 = vunpack.c.l.s4 269488144
        %v9995 = vunpack.c.0.s8 %v9994
        %v9996 = vlaneseq
        %v9997 = vshrl.u32 %v9996, 7
        %v9998 = vsub.s32 %v9995, %v9997
        %v9999 = vrot.slane %v9991, %v9998
        %10000 = vset.pattern.permute.xlu0 1
        %10001 = vperm.xlu0 %10000, %v8566
        %v10002 = vpop.permute.xlu0 %10001
        %v10005 = vunpack.c.l.s4 269488144
        %v10006 = vunpack.c.0.s8 %v10005
        %v10007 = vlaneseq
        %v10008 = vshrl.u32 %v10007, 7
        %v10009 = vsub.s32 %v10006, %v10008
        %v10010 = vrot.slane %v10002, %v10009
        %10011 = vset.pattern.permute.xlu0 1
        %10012 = vperm.xlu0 %10011, %v8568
        %v10013 = vpop.permute.xlu0 %10012
        %v10016 = vunpack.c.l.s4 269488144
        %v10017 = vunpack.c.0.s8 %v10016
        %v10018 = vlaneseq
        %v10019 = vshrl.u32 %v10018, 7
        %v10020 = vsub.s32 %v10017, %v10019
        %v10021 = vrot.slane %v10013, %v10020
        %10022 = vset.pattern.permute.xlu0 1
        %10023 = vperm.xlu0 %10022, %v8576
        %v10024 = vpop.permute.xlu0 %10023
        %v10027 = vunpack.c.l.s4 269488144
        %v10028 = vunpack.c.0.s8 %v10027
        %v10029 = vlaneseq
        %v10030 = vshrl.u32 %v10029, 7
        %v10031 = vsub.s32 %v10028, %v10030
        %v10032 = vrot.slane %v10024, %v10031
        %10033 = vset.pattern.permute.xlu0 1
        %10034 = vperm.xlu0 %10033, %v8584
        %v10035 = vpop.permute.xlu0 %10034
        %v10038 = vunpack.c.l.s4 269488144
        %v10039 = vunpack.c.0.s8 %v10038
        %v10040 = vlaneseq
        %v10041 = vshrl.u32 %v10040, 7
        %v10042 = vsub.s32 %v10039, %v10041
        %v10043 = vrot.slane %v10035, %v10042
        %10044 = vset.pattern.permute.xlu0 1
        %10045 = vperm.xlu0 %10044, %v8583
        %v10046 = vpop.permute.xlu0 %10045
        %v10049 = vunpack.c.l.s4 269488144
        %v10050 = vunpack.c.0.s8 %v10049
        %v10051 = vlaneseq
        %v10052 = vshrl.u32 %v10051, 7
        %v10053 = vsub.s32 %v10050, %v10052
        %v10054 = vrot.slane %v10046, %v10053
        %10055 = vset.pattern.permute.xlu0 1
        %10056 = vperm.xlu0 %10055, %v8585
        %v10057 = vpop.permute.xlu0 %10056
        %v10060 = vunpack.c.l.s4 269488144
        %v10061 = vunpack.c.0.s8 %v10060
        %v10062 = vlaneseq
        %v10063 = vshrl.u32 %v10062, 7
        %v10064 = vsub.s32 %v10061, %v10063
        %v10065 = vrot.slane %v10057, %v10064
        %10066 = vset.pattern.permute.xlu0 1
        %10067 = vperm.xlu0 %10066, %v8593
        %v10068 = vpop.permute.xlu0 %10067
        %v10071 = vunpack.c.l.s4 269488144
        %v10072 = vunpack.c.0.s8 %v10071
        %v10073 = vlaneseq
        %v10074 = vshrl.u32 %v10073, 7
        %v10075 = vsub.s32 %v10072, %v10074
        %v10076 = vrot.slane %v10068, %v10075
        %10077 = vset.pattern.permute.xlu0 1
        %10078 = vperm.xlu0 %10077, %v8601
        %v10079 = vpop.permute.xlu0 %10078
        %v10082 = vunpack.c.l.s4 269488144
        %v10083 = vunpack.c.0.s8 %v10082
        %v10084 = vlaneseq
        %v10085 = vshrl.u32 %v10084, 7
        %v10086 = vsub.s32 %v10083, %v10085
        %v10087 = vrot.slane %v10079, %v10086
        %10088 = vset.pattern.permute.xlu0 1
        %10089 = vperm.xlu0 %10088, %v8600
        %v10090 = vpop.permute.xlu0 %10089
        %v10093 = vunpack.c.l.s4 269488144
        %v10094 = vunpack.c.0.s8 %v10093
        %v10095 = vlaneseq
        %v10096 = vshrl.u32 %v10095, 7
        %v10097 = vsub.s32 %v10094, %v10096
        %v10098 = vrot.slane %v10090, %v10097
        %10099 = vset.pattern.permute.xlu0 1
        %10100 = vperm.xlu0 %10099, %v8602
        %v10101 = vpop.permute.xlu0 %10100
        %v10104 = vunpack.c.l.s4 269488144
        %v10105 = vunpack.c.0.s8 %v10104
        %v10106 = vlaneseq
        %v10107 = vshrl.u32 %v10106, 7
        %v10108 = vsub.s32 %v10105, %v10107
        %v10109 = vrot.slane %v10101, %v10108
        %v10110 = vlaneseq
        %v10111 = vshrl.u32 %v10110, 7
        %v10112 = vsub.s32 1, %v10111
        %v10113 = vrot.slane %v8603, %v10112
        %v10115 = vcombine.high %v10113, %v10113
        %v10117 = vunpack.c.l.s4 1983009808
        %v10118 = vunpack.c.0.s8 %v10117
        %v10119 = vlaneseq
        %v10120 = vshrl.u32 %v10119, 7
        %v10121 = vsub.s32 %v10118, %v10120
        %v10122 = vrot.slane %v10113, %v10121
        %v10124 = vunpack.c.l.s4 1983009808
        %v10125 = vunpack.c.0.s8 %v10124
        %v10126 = vlaneseq
        %v10127 = vshrl.u32 %v10126, 7
        %v10128 = vsub.s32 %v10125, %v10127
        %v10129 = vrot.slane %v10115, %v10128
        %v10130 = vcombine.high %v10122, %v10122
        %v10131 = vcombine.high %v10129, %v10129
        %v10132 = vrot.slane %v10122, 1
        %v10133 = vrot.slane %v10130, 1
        %v10134 = vrot.slane %v10129, 1
        %v10135 = vrot.slane %v10131, 1
        %v10144 = vmul.f32 %v9416, %v10122
        %v10145 = vmul.f32 %v9427, %v10132
        %v10146 = vmul.f32 %v9438, %v10130
        %v10147 = vmul.f32 %v9449, %v10133
        %v10148 = vmul.f32 %v9460, %v10129
        %v10149 = vmul.f32 %v9471, %v10134
        %v10150 = vmul.f32 %v9482, %v10131
        %v10151 = vmul.f32 %v9493, %v10135
        %v10152 = vmul.f32 %v9504, %v10122
        %v10153 = vmul.f32 %v9515, %v10132
        %v10154 = vmul.f32 %v9526, %v10130
        %v10155 = vmul.f32 %v9537, %v10133
        %v10156 = vmul.f32 %v9548, %v10129
        %v10157 = vmul.f32 %v9559, %v10134
        %v10158 = vmul.f32 %v9570, %v10131
        %v10159 = vmul.f32 %v9581, %v10135
        %v10160 = vmul.f32 %v9592, %v10122
        %v10161 = vmul.f32 %v9603, %v10132
        %v10162 = vmul.f32 %v9614, %v10130
        %v10163 = vmul.f32 %v9625, %v10133
        %v10164 = vmul.f32 %v9636, %v10129
        %v10165 = vmul.f32 %v9647, %v10134
        %v10166 = vmul.f32 %v9658, %v10131
        %v10167 = vmul.f32 %v9669, %v10135
        %v10168 = vmul.f32 %v9680, %v10122
        %v10169 = vmul.f32 %v9691, %v10132
        %v10170 = vmul.f32 %v9702, %v10130
        %v10171 = vmul.f32 %v9713, %v10133
        %v10172 = vmul.f32 %v9724, %v10129
        %v10173 = vmul.f32 %v9735, %v10134
        %v10174 = vmul.f32 %v9746, %v10131
        %v10175 = vmul.f32 %v9757, %v10135
        %v10176 = vmul.f32 %v9768, %v10122
        %v10177 = vmul.f32 %v9779, %v10132
        %v10178 = vmul.f32 %v9790, %v10130
        %v10179 = vmul.f32 %v9801, %v10133
        %v10180 = vmul.f32 %v9812, %v10129
        %v10181 = vmul.f32 %v9823, %v10134
        %v10182 = vmul.f32 %v9834, %v10131
        %v10183 = vmul.f32 %v9845, %v10135
        %v10184 = vmul.f32 %v9856, %v10122
        %v10185 = vmul.f32 %v9867, %v10132
        %v10186 = vmul.f32 %v9878, %v10130
        %v10187 = vmul.f32 %v9889, %v10133
        %v10188 = vmul.f32 %v9900, %v10129
        %v10189 = vmul.f32 %v9911, %v10134
        %v10190 = vmul.f32 %v9922, %v10131
        %v10191 = vmul.f32 %v9933, %v10135
        %v10192 = vmul.f32 %v9944, %v10122
        %v10193 = vmul.f32 %v9955, %v10132
        %v10194 = vmul.f32 %v9966, %v10130
        %v10195 = vmul.f32 %v9977, %v10133
        %v10196 = vmul.f32 %v9988, %v10129
        %v10197 = vmul.f32 %v9999, %v10134
        %v10198 = vmul.f32 %v10010, %v10131
        %v10199 = vmul.f32 %v10021, %v10135
        %v10200 = vmul.f32 %v10032, %v10122
        %v10201 = vmul.f32 %v10043, %v10132
        %v10202 = vmul.f32 %v10054, %v10130
        %v10203 = vmul.f32 %v10065, %v10133
        %v10204 = vmul.f32 %v10076, %v10129
        %v10205 = vmul.f32 %v10087, %v10134
        %v10206 = vmul.f32 %v10098, %v10131
        %v10207 = vmul.f32 %v10109, %v10135
        %v10208 = vadd.f32 %v9342, %v10144
        %v10209 = vadd.f32 %v9343, %v10145
        %v10210 = vadd.f32 %v9344, %v10146
        %v10211 = vadd.f32 %v9345, %v10147
        %v10212 = vadd.f32 %v9346, %v10148
        %v10213 = vadd.f32 %v9347, %v10149
        %v10214 = vadd.f32 %v9348, %v10150
        %v10215 = vadd.f32 %v9349, %v10151
        %v10216 = vadd.f32 %v9350, %v10152
        %v10217 = vadd.f32 %v9351, %v10153
        %v10218 = vadd.f32 %v9352, %v10154
        %v10219 = vadd.f32 %v9353, %v10155
        %v10220 = vadd.f32 %v9354, %v10156
        %v10221 = vadd.f32 %v9355, %v10157
        %v10222 = vadd.f32 %v9356, %v10158
        %v10223 = vadd.f32 %v9357, %v10159
        %v10224 = vadd.f32 %v9358, %v10160
        %v10225 = vadd.f32 %v9359, %v10161
        %v10226 = vadd.f32 %v9360, %v10162
        %v10227 = vadd.f32 %v9361, %v10163
        %v10228 = vadd.f32 %v9362, %v10164
        %v10229 = vadd.f32 %v9363, %v10165
        %v10230 = vadd.f32 %v9364, %v10166
        %v10231 = vadd.f32 %v9365, %v10167
        %v10232 = vadd.f32 %v9366, %v10168
        %v10233 = vadd.f32 %v9367, %v10169
        %v10234 = vadd.f32 %v9368, %v10170
        %v10235 = vadd.f32 %v9369, %v10171
        %v10236 = vadd.f32 %v9370, %v10172
        %v10237 = vadd.f32 %v9371, %v10173
        %v10238 = vadd.f32 %v9372, %v10174
        %v10239 = vadd.f32 %v9373, %v10175
        %v10240 = vadd.f32 %v9374, %v10176
        %v10241 = vadd.f32 %v9375, %v10177
        %v10242 = vadd.f32 %v9376, %v10178
        %v10243 = vadd.f32 %v9377, %v10179
        %v10244 = vadd.f32 %v9378, %v10180
        %v10245 = vadd.f32 %v9379, %v10181
        %v10246 = vadd.f32 %v9380, %v10182
        %v10247 = vadd.f32 %v9381, %v10183
        %v10248 = vadd.f32 %v9382, %v10184
        %v10249 = vadd.f32 %v9383, %v10185
        %v10250 = vadd.f32 %v9384, %v10186
        %v10251 = vadd.f32 %v9385, %v10187
        %v10252 = vadd.f32 %v9386, %v10188
        %v10253 = vadd.f32 %v9387, %v10189
        %v10254 = vadd.f32 %v9388, %v10190
        %v10255 = vadd.f32 %v9389, %v10191
        %v10256 = vadd.f32 %v9390, %v10192
        %v10257 = vadd.f32 %v9391, %v10193
        %v10258 = vadd.f32 %v9392, %v10194
        %v10259 = vadd.f32 %v9393, %v10195
        %v10260 = vadd.f32 %v9394, %v10196
        %v10261 = vadd.f32 %v9395, %v10197
        %v10262 = vadd.f32 %v9396, %v10198
        %v10263 = vadd.f32 %v9397, %v10199
        %v10264 = vadd.f32 %v9398, %v10200
        %v10265 = vadd.f32 %v9399, %v10201
        %v10266 = vadd.f32 %v9400, %v10202
        %v10267 = vadd.f32 %v9401, %v10203
        %v10268 = vadd.f32 %v9402, %v10204
        %v10269 = vadd.f32 %v9403, %v10205
        %v10270 = vadd.f32 %v9404, %v10206
        %v10271 = vadd.f32 %v9405, %v10207
        %10272 = vset.pattern.permute.xlu0 2
        %10273 = vperm.xlu0 %10272, %v8338
        %v10274 = vpop.permute.xlu0 %10273
        %v10277 = vunpack.c.l.s4 269488144
        %v10278 = vunpack.c.0.s8 %v10277
        %v10279 = vlaneseq
        %v10280 = vshrl.u32 %v10279, 7
        %v10281 = vsub.s32 %v10278, %v10280
        %v10282 = vrot.slane %v10274, %v10281
        %10283 = vset.pattern.permute.xlu0 2
        %10284 = vperm.xlu0 %10283, %v8346
        %v10285 = vpop.permute.xlu0 %10284
        %v10288 = vunpack.c.l.s4 269488144
        %v10289 = vunpack.c.0.s8 %v10288
        %v10290 = vlaneseq
        %v10291 = vshrl.u32 %v10290, 7
        %v10292 = vsub.s32 %v10289, %v10291
        %v10293 = vrot.slane %v10285, %v10292
        %10294 = vset.pattern.permute.xlu0 2
        %10295 = vperm.xlu0 %10294, %v8345
        %v10296 = vpop.permute.xlu0 %10295
        %v10299 = vunpack.c.l.s4 269488144
        %v10300 = vunpack.c.0.s8 %v10299
        %v10301 = vlaneseq
        %v10302 = vshrl.u32 %v10301, 7
        %v10303 = vsub.s32 %v10300, %v10302
        %v10304 = vrot.slane %v10296, %v10303
        %10305 = vset.pattern.permute.xlu0 2
        %10306 = vperm.xlu0 %10305, %v8347
        %v10307 = vpop.permute.xlu0 %10306
        %v10310 = vunpack.c.l.s4 269488144
        %v10311 = vunpack.c.0.s8 %v10310
        %v10312 = vlaneseq
        %v10313 = vshrl.u32 %v10312, 7
        %v10314 = vsub.s32 %v10311, %v10313
        %v10315 = vrot.slane %v10307, %v10314
        %10316 = vset.pattern.permute.xlu0 2
        %10317 = vperm.xlu0 %10316, %v8355
        %v10318 = vpop.permute.xlu0 %10317
        %v10321 = vunpack.c.l.s4 269488144
        %v10322 = vunpack.c.0.s8 %v10321
        %v10323 = vlaneseq
        %v10324 = vshrl.u32 %v10323, 7
        %v10325 = vsub.s32 %v10322, %v10324
        %v10326 = vrot.slane %v10318, %v10325
        %10327 = vset.pattern.permute.xlu0 2
        %10328 = vperm.xlu0 %10327, %v8363
        %v10329 = vpop.permute.xlu0 %10328
        %v10332 = vunpack.c.l.s4 269488144
        %v10333 = vunpack.c.0.s8 %v10332
        %v10334 = vlaneseq
        %v10335 = vshrl.u32 %v10334, 7
        %v10336 = vsub.s32 %v10333, %v10335
        %v10337 = vrot.slane %v10329, %v10336
        %10338 = vset.pattern.permute.xlu0 2
        %10339 = vperm.xlu0 %10338, %v8362
        %v10340 = vpop.permute.xlu0 %10339
        %v10343 = vunpack.c.l.s4 269488144
        %v10344 = vunpack.c.0.s8 %v10343
        %v10345 = vlaneseq
        %v10346 = vshrl.u32 %v10345, 7
        %v10347 = vsub.s32 %v10344, %v10346
        %v10348 = vrot.slane %v10340, %v10347
        %10349 = vset.pattern.permute.xlu0 2
        %10350 = vperm.xlu0 %10349, %v8364
        %v10351 = vpop.permute.xlu0 %10350
        %v10354 = vunpack.c.l.s4 269488144
        %v10355 = vunpack.c.0.s8 %v10354
        %v10356 = vlaneseq
        %v10357 = vshrl.u32 %v10356, 7
        %v10358 = vsub.s32 %v10355, %v10357
        %v10359 = vrot.slane %v10351, %v10358
        %10360 = vset.pattern.permute.xlu0 2
        %10361 = vperm.xlu0 %10360, %v8372
        %v10362 = vpop.permute.xlu0 %10361
        %v10365 = vunpack.c.l.s4 269488144
        %v10366 = vunpack.c.0.s8 %v10365
        %v10367 = vlaneseq
        %v10368 = vshrl.u32 %v10367, 7
        %v10369 = vsub.s32 %v10366, %v10368
        %v10370 = vrot.slane %v10362, %v10369
        %10371 = vset.pattern.permute.xlu0 2
        %10372 = vperm.xlu0 %10371, %v8380
        %v10373 = vpop.permute.xlu0 %10372
        %v10376 = vunpack.c.l.s4 269488144
        %v10377 = vunpack.c.0.s8 %v10376
        %v10378 = vlaneseq
        %v10379 = vshrl.u32 %v10378, 7
        %v10380 = vsub.s32 %v10377, %v10379
        %v10381 = vrot.slane %v10373, %v10380
        %10382 = vset.pattern.permute.xlu0 2
        %10383 = vperm.xlu0 %10382, %v8379
        %v10384 = vpop.permute.xlu0 %10383
        %v10387 = vunpack.c.l.s4 269488144
        %v10388 = vunpack.c.0.s8 %v10387
        %v10389 = vlaneseq
        %v10390 = vshrl.u32 %v10389, 7
        %v10391 = vsub.s32 %v10388, %v10390
        %v10392 = vrot.slane %v10384, %v10391
        %10393 = vset.pattern.permute.xlu0 2
        %10394 = vperm.xlu0 %10393, %v8381
        %v10395 = vpop.permute.xlu0 %10394
        %v10398 = vunpack.c.l.s4 269488144
        %v10399 = vunpack.c.0.s8 %v10398
        %v10400 = vlaneseq
        %v10401 = vshrl.u32 %v10400, 7
        %v10402 = vsub.s32 %v10399, %v10401
        %v10403 = vrot.slane %v10395, %v10402
        %10404 = vset.pattern.permute.xlu0 2
        %10405 = vperm.xlu0 %10404, %v8389
        %v10406 = vpop.permute.xlu0 %10405
        %v10409 = vunpack.c.l.s4 269488144
        %v10410 = vunpack.c.0.s8 %v10409
        %v10411 = vlaneseq
        %v10412 = vshrl.u32 %v10411, 7
        %v10413 = vsub.s32 %v10410, %v10412
        %v10414 = vrot.slane %v10406, %v10413
        %10415 = vset.pattern.permute.xlu0 2
        %10416 = vperm.xlu0 %10415, %v8397
        %v10417 = vpop.permute.xlu0 %10416
        %v10420 = vunpack.c.l.s4 269488144
        %v10421 = vunpack.c.0.s8 %v10420
        %v10422 = vlaneseq
        %v10423 = vshrl.u32 %v10422, 7
        %v10424 = vsub.s32 %v10421, %v10423
        %v10425 = vrot.slane %v10417, %v10424
        %10426 = vset.pattern.permute.xlu0 2
        %10427 = vperm.xlu0 %10426, %v8396
        %v10428 = vpop.permute.xlu0 %10427
        %v10431 = vunpack.c.l.s4 269488144
        %v10432 = vunpack.c.0.s8 %v10431
        %v10433 = vlaneseq
        %v10434 = vshrl.u32 %v10433, 7
        %v10435 = vsub.s32 %v10432, %v10434
        %v10436 = vrot.slane %v10428, %v10435
        %10437 = vset.pattern.permute.xlu0 2
        %10438 = vperm.xlu0 %10437, %v8398
        %v10439 = vpop.permute.xlu0 %10438
        %v10442 = vunpack.c.l.s4 269488144
        %v10443 = vunpack.c.0.s8 %v10442
        %v10444 = vlaneseq
        %v10445 = vshrl.u32 %v10444, 7
        %v10446 = vsub.s32 %v10443, %v10445
        %v10447 = vrot.slane %v10439, %v10446
        %10448 = vset.pattern.permute.xlu0 2
        %10449 = vperm.xlu0 %10448, %v8406
        %v10450 = vpop.permute.xlu0 %10449
        %v10453 = vunpack.c.l.s4 269488144
        %v10454 = vunpack.c.0.s8 %v10453
        %v10455 = vlaneseq
        %v10456 = vshrl.u32 %v10455, 7
        %v10457 = vsub.s32 %v10454, %v10456
        %v10458 = vrot.slane %v10450, %v10457
        %10459 = vset.pattern.permute.xlu0 2
        %10460 = vperm.xlu0 %10459, %v8414
        %v10461 = vpop.permute.xlu0 %10460
        %v10464 = vunpack.c.l.s4 269488144
        %v10465 = vunpack.c.0.s8 %v10464
        %v10466 = vlaneseq
        %v10467 = vshrl.u32 %v10466, 7
        %v10468 = vsub.s32 %v10465, %v10467
        %v10469 = vrot.slane %v10461, %v10468
        %10470 = vset.pattern.permute.xlu0 2
        %10471 = vperm.xlu0 %10470, %v8413
        %v10472 = vpop.permute.xlu0 %10471
        %v10475 = vunpack.c.l.s4 269488144
        %v10476 = vunpack.c.0.s8 %v10475
        %v10477 = vlaneseq
        %v10478 = vshrl.u32 %v10477, 7
        %v10479 = vsub.s32 %v10476, %v10478
        %v10480 = vrot.slane %v10472, %v10479
        %10481 = vset.pattern.permute.xlu0 2
        %10482 = vperm.xlu0 %10481, %v8415
        %v10483 = vpop.permute.xlu0 %10482
        %v10486 = vunpack.c.l.s4 269488144
        %v10487 = vunpack.c.0.s8 %v10486
        %v10488 = vlaneseq
        %v10489 = vshrl.u32 %v10488, 7
        %v10490 = vsub.s32 %v10487, %v10489
        %v10491 = vrot.slane %v10483, %v10490
        %10492 = vset.pattern.permute.xlu0 2
        %10493 = vperm.xlu0 %10492, %v8423
        %v10494 = vpop.permute.xlu0 %10493
        %v10497 = vunpack.c.l.s4 269488144
        %v10498 = vunpack.c.0.s8 %v10497
        %v10499 = vlaneseq
        %v10500 = vshrl.u32 %v10499, 7
        %v10501 = vsub.s32 %v10498, %v10500
        %v10502 = vrot.slane %v10494, %v10501
        %10503 = vset.pattern.permute.xlu0 2
        %10504 = vperm.xlu0 %10503, %v8431
        %v10505 = vpop.permute.xlu0 %10504
        %v10508 = vunpack.c.l.s4 269488144
        %v10509 = vunpack.c.0.s8 %v10508
        %v10510 = vlaneseq
        %v10511 = vshrl.u32 %v10510, 7
        %v10512 = vsub.s32 %v10509, %v10511
        %v10513 = vrot.slane %v10505, %v10512
        %10514 = vset.pattern.permute.xlu0 2
        %10515 = vperm.xlu0 %10514, %v8430
        %v10516 = vpop.permute.xlu0 %10515
        %v10519 = vunpack.c.l.s4 269488144
        %v10520 = vunpack.c.0.s8 %v10519
        %v10521 = vlaneseq
        %v10522 = vshrl.u32 %v10521, 7
        %v10523 = vsub.s32 %v10520, %v10522
        %v10524 = vrot.slane %v10516, %v10523
        %10525 = vset.pattern.permute.xlu0 2
        %10526 = vperm.xlu0 %10525, %v8432
        %v10527 = vpop.permute.xlu0 %10526
        %v10530 = vunpack.c.l.s4 269488144
        %v10531 = vunpack.c.0.s8 %v10530
        %v10532 = vlaneseq
        %v10533 = vshrl.u32 %v10532, 7
        %v10534 = vsub.s32 %v10531, %v10533
        %v10535 = vrot.slane %v10527, %v10534
        %10536 = vset.pattern.permute.xlu0 2
        %10537 = vperm.xlu0 %10536, %v8440
        %v10538 = vpop.permute.xlu0 %10537
        %v10541 = vunpack.c.l.s4 269488144
        %v10542 = vunpack.c.0.s8 %v10541
        %v10543 = vlaneseq
        %v10544 = vshrl.u32 %v10543, 7
        %v10545 = vsub.s32 %v10542, %v10544
        %v10546 = vrot.slane %v10538, %v10545
        %10547 = vset.pattern.permute.xlu0 2
        %10548 = vperm.xlu0 %10547, %v8448
        %v10549 = vpop.permute.xlu0 %10548
        %v10552 = vunpack.c.l.s4 269488144
        %v10553 = vunpack.c.0.s8 %v10552
        %v10554 = vlaneseq
        %v10555 = vshrl.u32 %v10554, 7
        %v10556 = vsub.s32 %v10553, %v10555
        %v10557 = vrot.slane %v10549, %v10556
        %10558 = vset.pattern.permute.xlu0 2
        %10559 = vperm.xlu0 %10558, %v8447
        %v10560 = vpop.permute.xlu0 %10559
        %v10563 = vunpack.c.l.s4 269488144
        %v10564 = vunpack.c.0.s8 %v10563
        %v10565 = vlaneseq
        %v10566 = vshrl.u32 %v10565, 7
        %v10567 = vsub.s32 %v10564, %v10566
        %v10568 = vrot.slane %v10560, %v10567
        %10569 = vset.pattern.permute.xlu0 2
        %10570 = vperm.xlu0 %10569, %v8449
        %v10571 = vpop.permute.xlu0 %10570
        %v10574 = vunpack.c.l.s4 269488144
        %v10575 = vunpack.c.0.s8 %v10574
        %v10576 = vlaneseq
        %v10577 = vshrl.u32 %v10576, 7
        %v10578 = vsub.s32 %v10575, %v10577
        %v10579 = vrot.slane %v10571, %v10578
        %10580 = vset.pattern.permute.xlu0 2
        %10581 = vperm.xlu0 %10580, %v8457
        %v10582 = vpop.permute.xlu0 %10581
        %v10585 = vunpack.c.l.s4 269488144
        %v10586 = vunpack.c.0.s8 %v10585
        %v10587 = vlaneseq
        %v10588 = vshrl.u32 %v10587, 7
        %v10589 = vsub.s32 %v10586, %v10588
        %v10590 = vrot.slane %v10582, %v10589
        %10591 = vset.pattern.permute.xlu0 2
        %10592 = vperm.xlu0 %10591, %v8465
        %v10593 = vpop.permute.xlu0 %10592
        %v10596 = vunpack.c.l.s4 269488144
        %v10597 = vunpack.c.0.s8 %v10596
        %v10598 = vlaneseq
        %v10599 = vshrl.u32 %v10598, 7
        %v10600 = vsub.s32 %v10597, %v10599
        %v10601 = vrot.slane %v10593, %v10600
        %10602 = vset.pattern.permute.xlu0 2
        %10603 = vperm.xlu0 %10602, %v8464
        %v10604 = vpop.permute.xlu0 %10603
        %v10607 = vunpack.c.l.s4 269488144
        %v10608 = vunpack.c.0.s8 %v10607
        %v10609 = vlaneseq
        %v10610 = vshrl.u32 %v10609, 7
        %v10611 = vsub.s32 %v10608, %v10610
        %v10612 = vrot.slane %v10604, %v10611
        %10613 = vset.pattern.permute.xlu0 2
        %10614 = vperm.xlu0 %10613, %v8466
        %v10615 = vpop.permute.xlu0 %10614
        %v10618 = vunpack.c.l.s4 269488144
        %v10619 = vunpack.c.0.s8 %v10618
        %v10620 = vlaneseq
        %v10621 = vshrl.u32 %v10620, 7
        %v10622 = vsub.s32 %v10619, %v10621
        %v10623 = vrot.slane %v10615, %v10622
        %10624 = vset.pattern.permute.xlu0 2
        %10625 = vperm.xlu0 %10624, %v8474
        %v10626 = vpop.permute.xlu0 %10625
        %v10629 = vunpack.c.l.s4 269488144
        %v10630 = vunpack.c.0.s8 %v10629
        %v10631 = vlaneseq
        %v10632 = vshrl.u32 %v10631, 7
        %v10633 = vsub.s32 %v10630, %v10632
        %v10634 = vrot.slane %v10626, %v10633
        %10635 = vset.pattern.permute.xlu0 2
        %10636 = vperm.xlu0 %10635, %v8482
        %v10637 = vpop.permute.xlu0 %10636
        %v10640 = vunpack.c.l.s4 269488144
        %v10641 = vunpack.c.0.s8 %v10640
        %v10642 = vlaneseq
        %v10643 = vshrl.u32 %v10642, 7
        %v10644 = vsub.s32 %v10641, %v10643
        %v10645 = vrot.slane %v10637, %v10644
        %10646 = vset.pattern.permute.xlu0 2
        %10647 = vperm.xlu0 %10646, %v8481
        %v10648 = vpop.permute.xlu0 %10647
        %v10651 = vunpack.c.l.s4 269488144
        %v10652 = vunpack.c.0.s8 %v10651
        %v10653 = vlaneseq
        %v10654 = vshrl.u32 %v10653, 7
        %v10655 = vsub.s32 %v10652, %v10654
        %v10656 = vrot.slane %v10648, %v10655
        %10657 = vset.pattern.permute.xlu0 2
        %10658 = vperm.xlu0 %10657, %v8483
        %v10659 = vpop.permute.xlu0 %10658
        %v10662 = vunpack.c.l.s4 269488144
        %v10663 = vunpack.c.0.s8 %v10662
        %v10664 = vlaneseq
        %v10665 = vshrl.u32 %v10664, 7
        %v10666 = vsub.s32 %v10663, %v10665
        %v10667 = vrot.slane %v10659, %v10666
        %10668 = vset.pattern.permute.xlu0 2
        %10669 = vperm.xlu0 %10668, %v8491
        %v10670 = vpop.permute.xlu0 %10669
        %v10673 = vunpack.c.l.s4 269488144
        %v10674 = vunpack.c.0.s8 %v10673
        %v10675 = vlaneseq
        %v10676 = vshrl.u32 %v10675, 7
        %v10677 = vsub.s32 %v10674, %v10676
        %v10678 = vrot.slane %v10670, %v10677
        %10679 = vset.pattern.permute.xlu0 2
        %10680 = vperm.xlu0 %10679, %v8499
        %v10681 = vpop.permute.xlu0 %10680
        %v10684 = vunpack.c.l.s4 269488144
        %v10685 = vunpack.c.0.s8 %v10684
        %v10686 = vlaneseq
        %v10687 = vshrl.u32 %v10686, 7
        %v10688 = vsub.s32 %v10685, %v10687
        %v10689 = vrot.slane %v10681, %v10688
        %10690 = vset.pattern.permute.xlu0 2
        %10691 = vperm.xlu0 %10690, %v8498
        %v10692 = vpop.permute.xlu0 %10691
        %v10695 = vunpack.c.l.s4 269488144
        %v10696 = vunpack.c.0.s8 %v10695
        %v10697 = vlaneseq
        %v10698 = vshrl.u32 %v10697, 7
        %v10699 = vsub.s32 %v10696, %v10698
        %v10700 = vrot.slane %v10692, %v10699
        %10701 = vset.pattern.permute.xlu0 2
        %10702 = vperm.xlu0 %10701, %v8500
        %v10703 = vpop.permute.xlu0 %10702
        %v10706 = vunpack.c.l.s4 269488144
        %v10707 = vunpack.c.0.s8 %v10706
        %v10708 = vlaneseq
        %v10709 = vshrl.u32 %v10708, 7
        %v10710 = vsub.s32 %v10707, %v10709
        %v10711 = vrot.slane %v10703, %v10710
        %10712 = vset.pattern.permute.xlu0 2
        %10713 = vperm.xlu0 %10712, %v8508
        %v10714 = vpop.permute.xlu0 %10713
        %v10717 = vunpack.c.l.s4 269488144
        %v10718 = vunpack.c.0.s8 %v10717
        %v10719 = vlaneseq
        %v10720 = vshrl.u32 %v10719, 7
        %v10721 = vsub.s32 %v10718, %v10720
        %v10722 = vrot.slane %v10714, %v10721
        %10723 = vset.pattern.permute.xlu0 2
        %10724 = vperm.xlu0 %10723, %v8516
        %v10725 = vpop.permute.xlu0 %10724
        %v10728 = vunpack.c.l.s4 269488144
        %v10729 = vunpack.c.0.s8 %v10728
        %v10730 = vlaneseq
        %v10731 = vshrl.u32 %v10730, 7
        %v10732 = vsub.s32 %v10729, %v10731
        %v10733 = vrot.slane %v10725, %v10732
        %10734 = vset.pattern.permute.xlu0 2
        %10735 = vperm.xlu0 %10734, %v8515
        %v10736 = vpop.permute.xlu0 %10735
        %v10739 = vunpack.c.l.s4 269488144
        %v10740 = vunpack.c.0.s8 %v10739
        %v10741 = vlaneseq
        %v10742 = vshrl.u32 %v10741, 7
        %v10743 = vsub.s32 %v10740, %v10742
        %v10744 = vrot.slane %v10736, %v10743
        %10745 = vset.pattern.permute.xlu0 2
        %10746 = vperm.xlu0 %10745, %v8517
        %v10747 = vpop.permute.xlu0 %10746
        %v10750 = vunpack.c.l.s4 269488144
        %v10751 = vunpack.c.0.s8 %v10750
        %v10752 = vlaneseq
        %v10753 = vshrl.u32 %v10752, 7
        %v10754 = vsub.s32 %v10751, %v10753
        %v10755 = vrot.slane %v10747, %v10754
        %10756 = vset.pattern.permute.xlu0 2
        %10757 = vperm.xlu0 %10756, %v8525
        %v10758 = vpop.permute.xlu0 %10757
        %v10761 = vunpack.c.l.s4 269488144
        %v10762 = vunpack.c.0.s8 %v10761
        %v10763 = vlaneseq
        %v10764 = vshrl.u32 %v10763, 7
        %v10765 = vsub.s32 %v10762, %v10764
        %v10766 = vrot.slane %v10758, %v10765
        %10767 = vset.pattern.permute.xlu0 2
        %10768 = vperm.xlu0 %10767, %v8533
        %v10769 = vpop.permute.xlu0 %10768
        %v10772 = vunpack.c.l.s4 269488144
        %v10773 = vunpack.c.0.s8 %v10772
        %v10774 = vlaneseq
        %v10775 = vshrl.u32 %v10774, 7
        %v10776 = vsub.s32 %v10773, %v10775
        %v10777 = vrot.slane %v10769, %v10776
        %10778 = vset.pattern.permute.xlu0 2
        %10779 = vperm.xlu0 %10778, %v8532
        %v10780 = vpop.permute.xlu0 %10779
        %v10783 = vunpack.c.l.s4 269488144
        %v10784 = vunpack.c.0.s8 %v10783
        %v10785 = vlaneseq
        %v10786 = vshrl.u32 %v10785, 7
        %v10787 = vsub.s32 %v10784, %v10786
        %v10788 = vrot.slane %v10780, %v10787
        %10789 = vset.pattern.permute.xlu0 2
        %10790 = vperm.xlu0 %10789, %v8534
        %v10791 = vpop.permute.xlu0 %10790
        %v10794 = vunpack.c.l.s4 269488144
        %v10795 = vunpack.c.0.s8 %v10794
        %v10796 = vlaneseq
        %v10797 = vshrl.u32 %v10796, 7
        %v10798 = vsub.s32 %v10795, %v10797
        %v10799 = vrot.slane %v10791, %v10798
        %10800 = vset.pattern.permute.xlu0 2
        %10801 = vperm.xlu0 %10800, %v8542
        %v10802 = vpop.permute.xlu0 %10801
        %v10805 = vunpack.c.l.s4 269488144
        %v10806 = vunpack.c.0.s8 %v10805
        %v10807 = vlaneseq
        %v10808 = vshrl.u32 %v10807, 7
        %v10809 = vsub.s32 %v10806, %v10808
        %v10810 = vrot.slane %v10802, %v10809
        %10811 = vset.pattern.permute.xlu0 2
        %10812 = vperm.xlu0 %10811, %v8550
        %v10813 = vpop.permute.xlu0 %10812
        %v10816 = vunpack.c.l.s4 269488144
        %v10817 = vunpack.c.0.s8 %v10816
        %v10818 = vlaneseq
        %v10819 = vshrl.u32 %v10818, 7
        %v10820 = vsub.s32 %v10817, %v10819
        %v10821 = vrot.slane %v10813, %v10820
        %10822 = vset.pattern.permute.xlu0 2
        %10823 = vperm.xlu0 %10822, %v8549
        %v10824 = vpop.permute.xlu0 %10823
        %v10827 = vunpack.c.l.s4 269488144
        %v10828 = vunpack.c.0.s8 %v10827
        %v10829 = vlaneseq
        %v10830 = vshrl.u32 %v10829, 7
        %v10831 = vsub.s32 %v10828, %v10830
        %v10832 = vrot.slane %v10824, %v10831
        %10833 = vset.pattern.permute.xlu0 2
        %10834 = vperm.xlu0 %10833, %v8551
        %v10835 = vpop.permute.xlu0 %10834
        %v10838 = vunpack.c.l.s4 269488144
        %v10839 = vunpack.c.0.s8 %v10838
        %v10840 = vlaneseq
        %v10841 = vshrl.u32 %v10840, 7
        %v10842 = vsub.s32 %v10839, %v10841
        %v10843 = vrot.slane %v10835, %v10842
        %10844 = vset.pattern.permute.xlu0 2
        %10845 = vperm.xlu0 %10844, %v8559
        %v10846 = vpop.permute.xlu0 %10845
        %v10849 = vunpack.c.l.s4 269488144
        %v10850 = vunpack.c.0.s8 %v10849
        %v10851 = vlaneseq
        %v10852 = vshrl.u32 %v10851, 7
        %v10853 = vsub.s32 %v10850, %v10852
        %v10854 = vrot.slane %v10846, %v10853
        %10855 = vset.pattern.permute.xlu0 2
        %10856 = vperm.xlu0 %10855, %v8567
        %v10857 = vpop.permute.xlu0 %10856
        %v10860 = vunpack.c.l.s4 269488144
        %v10861 = vunpack.c.0.s8 %v10860
        %v10862 = vlaneseq
        %v10863 = vshrl.u32 %v10862, 7
        %v10864 = vsub.s32 %v10861, %v10863
        %v10865 = vrot.slane %v10857, %v10864
        %10866 = vset.pattern.permute.xlu0 2
        %10867 = vperm.xlu0 %10866, %v8566
        %v10868 = vpop.permute.xlu0 %10867
        %v10871 = vunpack.c.l.s4 269488144
        %v10872 = vunpack.c.0.s8 %v10871
        %v10873 = vlaneseq
        %v10874 = vshrl.u32 %v10873, 7
        %v10875 = vsub.s32 %v10872, %v10874
        %v10876 = vrot.slane %v10868, %v10875
        %10877 = vset.pattern.permute.xlu0 2
        %10878 = vperm.xlu0 %10877, %v8568
        %v10879 = vpop.permute.xlu0 %10878
        %v10882 = vunpack.c.l.s4 269488144
        %v10883 = vunpack.c.0.s8 %v10882
        %v10884 = vlaneseq
        %v10885 = vshrl.u32 %v10884, 7
        %v10886 = vsub.s32 %v10883, %v10885
        %v10887 = vrot.slane %v10879, %v10886
        %10888 = vset.pattern.permute.xlu0 2
        %10889 = vperm.xlu0 %10888, %v8576
        %v10890 = vpop.permute.xlu0 %10889
        %v10893 = vunpack.c.l.s4 269488144
        %v10894 = vunpack.c.0.s8 %v10893
        %v10895 = vlaneseq
        %v10896 = vshrl.u32 %v10895, 7
        %v10897 = vsub.s32 %v10894, %v10896
        %v10898 = vrot.slane %v10890, %v10897
        %10899 = vset.pattern.permute.xlu0 2
        %10900 = vperm.xlu0 %10899, %v8584
        %v10901 = vpop.permute.xlu0 %10900
        %v10904 = vunpack.c.l.s4 269488144
        %v10905 = vunpack.c.0.s8 %v10904
        %v10906 = vlaneseq
        %v10907 = vshrl.u32 %v10906, 7
        %v10908 = vsub.s32 %v10905, %v10907
        %v10909 = vrot.slane %v10901, %v10908
        %10910 = vset.pattern.permute.xlu0 2
        %10911 = vperm.xlu0 %10910, %v8583
        %v10912 = vpop.permute.xlu0 %10911
        %v10915 = vunpack.c.l.s4 269488144
        %v10916 = vunpack.c.0.s8 %v10915
        %v10917 = vlaneseq
        %v10918 = vshrl.u32 %v10917, 7
        %v10919 = vsub.s32 %v10916, %v10918
        %v10920 = vrot.slane %v10912, %v10919
        %10921 = vset.pattern.permute.xlu0 2
        %10922 = vperm.xlu0 %10921, %v8585
        %v10923 = vpop.permute.xlu0 %10922
        %v10926 = vunpack.c.l.s4 269488144
        %v10927 = vunpack.c.0.s8 %v10926
        %v10928 = vlaneseq
        %v10929 = vshrl.u32 %v10928, 7
        %v10930 = vsub.s32 %v10927, %v10929
        %v10931 = vrot.slane %v10923, %v10930
        %10932 = vset.pattern.permute.xlu0 2
        %10933 = vperm.xlu0 %10932, %v8593
        %v10934 = vpop.permute.xlu0 %10933
        %v10937 = vunpack.c.l.s4 269488144
        %v10938 = vunpack.c.0.s8 %v10937
        %v10939 = vlaneseq
        %v10940 = vshrl.u32 %v10939, 7
        %v10941 = vsub.s32 %v10938, %v10940
        %v10942 = vrot.slane %v10934, %v10941
        %10943 = vset.pattern.permute.xlu0 2
        %10944 = vperm.xlu0 %10943, %v8601
        %v10945 = vpop.permute.xlu0 %10944
        %v10948 = vunpack.c.l.s4 269488144
        %v10949 = vunpack.c.0.s8 %v10948
        %v10950 = vlaneseq
        %v10951 = vshrl.u32 %v10950, 7
        %v10952 = vsub.s32 %v10949, %v10951
        %v10953 = vrot.slane %v10945, %v10952
        %10954 = vset.pattern.permute.xlu0 2
        %10955 = vperm.xlu0 %10954, %v8600
        %v10956 = vpop.permute.xlu0 %10955
        %v10959 = vunpack.c.l.s4 269488144
        %v10960 = vunpack.c.0.s8 %v10959
        %v10961 = vlaneseq
        %v10962 = vshrl.u32 %v10961, 7
        %v10963 = vsub.s32 %v10960, %v10962
        %v10964 = vrot.slane %v10956, %v10963
        %10965 = vset.pattern.permute.xlu0 2
        %10966 = vperm.xlu0 %10965, %v8602
        %v10967 = vpop.permute.xlu0 %10966
        %v10970 = vunpack.c.l.s4 269488144
        %v10971 = vunpack.c.0.s8 %v10970
        %v10972 = vlaneseq
        %v10973 = vshrl.u32 %v10972, 7
        %v10974 = vsub.s32 %v10971, %v10973
        %v10975 = vrot.slane %v10967, %v10974
        %v10976 = vlaneseq
        %v10977 = vshrl.u32 %v10976, 7
        %v10978 = vsub.s32 2, %v10977
        %v10979 = vrot.slane %v8603, %v10978
        %v10981 = vcombine.high %v10979, %v10979
        %v10983 = vunpack.c.l.s4 1983009808
        %v10984 = vunpack.c.0.s8 %v10983
        %v10985 = vlaneseq
        %v10986 = vshrl.u32 %v10985, 7
        %v10987 = vsub.s32 %v10984, %v10986
        %v10988 = vrot.slane %v10979, %v10987
        %v10990 = vunpack.c.l.s4 1983009808
        %v10991 = vunpack.c.0.s8 %v10990
        %v10992 = vlaneseq
        %v10993 = vshrl.u32 %v10992, 7
        %v10994 = vsub.s32 %v10991, %v10993
        %v10995 = vrot.slane %v10981, %v10994
        %v10996 = vcombine.high %v10988, %v10988
        %v10997 = vcombine.high %v10995, %v10995
        %v10998 = vrot.slane %v10988, 1
        %v10999 = vrot.slane %v10996, 1
        %v11000 = vrot.slane %v10995, 1
        %v11001 = vrot.slane %v10997, 1
        %v11010 = vmul.f32 %v10282, %v10988
        %v11011 = vmul.f32 %v10293, %v10998
        %v11012 = vmul.f32 %v10304, %v10996
        %v11013 = vmul.f32 %v10315, %v10999
        %v11014 = vmul.f32 %v10326, %v10995
        %v11015 = vmul.f32 %v10337, %v11000
        %v11016 = vmul.f32 %v10348, %v10997
        %v11017 = vmul.f32 %v10359, %v11001
        %v11018 = vmul.f32 %v10370, %v10988
        %v11019 = vmul.f32 %v10381, %v10998
        %v11020 = vmul.f32 %v10392, %v10996
        %v11021 = vmul.f32 %v10403, %v10999
        %v11022 = vmul.f32 %v10414, %v10995
        %v11023 = vmul.f32 %v10425, %v11000
        %v11024 = vmul.f32 %v10436, %v10997
        %v11025 = vmul.f32 %v10447, %v11001
        %v11026 = vmul.f32 %v10458, %v10988
        %v11027 = vmul.f32 %v10469, %v10998
        %v11028 = vmul.f32 %v10480, %v10996
        %v11029 = vmul.f32 %v10491, %v10999
        %v11030 = vmul.f32 %v10502, %v10995
        %v11031 = vmul.f32 %v10513, %v11000
        %v11032 = vmul.f32 %v10524, %v10997
        %v11033 = vmul.f32 %v10535, %v11001
        %v11034 = vmul.f32 %v10546, %v10988
        %v11035 = vmul.f32 %v10557, %v10998
        %v11036 = vmul.f32 %v10568, %v10996
        %v11037 = vmul.f32 %v10579, %v10999
        %v11038 = vmul.f32 %v10590, %v10995
        %v11039 = vmul.f32 %v10601, %v11000
        %v11040 = vmul.f32 %v10612, %v10997
        %v11041 = vmul.f32 %v10623, %v11001
        %v11042 = vmul.f32 %v10634, %v10988
        %v11043 = vmul.f32 %v10645, %v10998
        %v11044 = vmul.f32 %v10656, %v10996
        %v11045 = vmul.f32 %v10667, %v10999
        %v11046 = vmul.f32 %v10678, %v10995
        %v11047 = vmul.f32 %v10689, %v11000
        %v11048 = vmul.f32 %v10700, %v10997
        %v11049 = vmul.f32 %v10711, %v11001
        %v11050 = vmul.f32 %v10722, %v10988
        %v11051 = vmul.f32 %v10733, %v10998
        %v11052 = vmul.f32 %v10744, %v10996
        %v11053 = vmul.f32 %v10755, %v10999
        %v11054 = vmul.f32 %v10766, %v10995
        %v11055 = vmul.f32 %v10777, %v11000
        %v11056 = vmul.f32 %v10788, %v10997
        %v11057 = vmul.f32 %v10799, %v11001
        %v11058 = vmul.f32 %v10810, %v10988
        %v11059 = vmul.f32 %v10821, %v10998
        %v11060 = vmul.f32 %v10832, %v10996
        %v11061 = vmul.f32 %v10843, %v10999
        %v11062 = vmul.f32 %v10854, %v10995
        %v11063 = vmul.f32 %v10865, %v11000
        %v11064 = vmul.f32 %v10876, %v10997
        %v11065 = vmul.f32 %v10887, %v11001
        %v11066 = vmul.f32 %v10898, %v10988
        %v11067 = vmul.f32 %v10909, %v10998
        %v11068 = vmul.f32 %v10920, %v10996
        %v11069 = vmul.f32 %v10931, %v10999
        %v11070 = vmul.f32 %v10942, %v10995
        %v11071 = vmul.f32 %v10953, %v11000
        %v11072 = vmul.f32 %v10964, %v10997
        %v11073 = vmul.f32 %v10975, %v11001
        %v11074 = vadd.f32 %v10208, %v11010
        %v11075 = vadd.f32 %v10209, %v11011
        %v11076 = vadd.f32 %v10210, %v11012
        %v11077 = vadd.f32 %v10211, %v11013
        %v11078 = vadd.f32 %v10212, %v11014
        %v11079 = vadd.f32 %v10213, %v11015
        %v11080 = vadd.f32 %v10214, %v11016
        %v11081 = vadd.f32 %v10215, %v11017
        %v11082 = vadd.f32 %v10216, %v11018
        %v11083 = vadd.f32 %v10217, %v11019
        %v11084 = vadd.f32 %v10218, %v11020
        %v11085 = vadd.f32 %v10219, %v11021
        %v11086 = vadd.f32 %v10220, %v11022
        %v11087 = vadd.f32 %v10221, %v11023
        %v11088 = vadd.f32 %v10222, %v11024
        %v11089 = vadd.f32 %v10223, %v11025
        %v11090 = vadd.f32 %v10224, %v11026
        %v11091 = vadd.f32 %v10225, %v11027
        %v11092 = vadd.f32 %v10226, %v11028
        %v11093 = vadd.f32 %v10227, %v11029
        %v11094 = vadd.f32 %v10228, %v11030
        %v11095 = vadd.f32 %v10229, %v11031
        %v11096 = vadd.f32 %v10230, %v11032
        %v11097 = vadd.f32 %v10231, %v11033
        %v11098 = vadd.f32 %v10232, %v11034
        %v11099 = vadd.f32 %v10233, %v11035
        %v11100 = vadd.f32 %v10234, %v11036
        %v11101 = vadd.f32 %v10235, %v11037
        %v11102 = vadd.f32 %v10236, %v11038
        %v11103 = vadd.f32 %v10237, %v11039
        %v11104 = vadd.f32 %v10238, %v11040
        %v11105 = vadd.f32 %v10239, %v11041
        %v11106 = vadd.f32 %v10240, %v11042
        %v11107 = vadd.f32 %v10241, %v11043
        %v11108 = vadd.f32 %v10242, %v11044
        %v11109 = vadd.f32 %v10243, %v11045
        %v11110 = vadd.f32 %v10244, %v11046
        %v11111 = vadd.f32 %v10245, %v11047
        %v11112 = vadd.f32 %v10246, %v11048
        %v11113 = vadd.f32 %v10247, %v11049
        %v11114 = vadd.f32 %v10248, %v11050
        %v11115 = vadd.f32 %v10249, %v11051
        %v11116 = vadd.f32 %v10250, %v11052
        %v11117 = vadd.f32 %v10251, %v11053
        %v11118 = vadd.f32 %v10252, %v11054
        %v11119 = vadd.f32 %v10253, %v11055
        %v11120 = vadd.f32 %v10254, %v11056
        %v11121 = vadd.f32 %v10255, %v11057
        %v11122 = vadd.f32 %v10256, %v11058
        %v11123 = vadd.f32 %v10257, %v11059
        %v11124 = vadd.f32 %v10258, %v11060
        %v11125 = vadd.f32 %v10259, %v11061
        %v11126 = vadd.f32 %v10260, %v11062
        %v11127 = vadd.f32 %v10261, %v11063
        %v11128 = vadd.f32 %v10262, %v11064
        %v11129 = vadd.f32 %v10263, %v11065
        %v11130 = vadd.f32 %v10264, %v11066
        %v11131 = vadd.f32 %v10265, %v11067
        %v11132 = vadd.f32 %v10266, %v11068
        %v11133 = vadd.f32 %v10267, %v11069
        %v11134 = vadd.f32 %v10268, %v11070
        %v11135 = vadd.f32 %v10269, %v11071
        %v11136 = vadd.f32 %v10270, %v11072
        %v11137 = vadd.f32 %v10271, %v11073
        %11138 = vset.pattern.permute.xlu0 3
        %11139 = vperm.xlu0 %11138, %v8338
        %v11140 = vpop.permute.xlu0 %11139
        %v11143 = vunpack.c.l.s4 269488144
        %v11144 = vunpack.c.0.s8 %v11143
        %v11145 = vlaneseq
        %v11146 = vshrl.u32 %v11145, 7
        %v11147 = vsub.s32 %v11144, %v11146
        %v11148 = vrot.slane %v11140, %v11147
        %11149 = vset.pattern.permute.xlu0 3
        %11150 = vperm.xlu0 %11149, %v8346
        %v11151 = vpop.permute.xlu0 %11150
        %v11154 = vunpack.c.l.s4 269488144
        %v11155 = vunpack.c.0.s8 %v11154
        %v11156 = vlaneseq
        %v11157 = vshrl.u32 %v11156, 7
        %v11158 = vsub.s32 %v11155, %v11157
        %v11159 = vrot.slane %v11151, %v11158
        %11160 = vset.pattern.permute.xlu0 3
        %11161 = vperm.xlu0 %11160, %v8345
        %v11162 = vpop.permute.xlu0 %11161
        %v11165 = vunpack.c.l.s4 269488144
        %v11166 = vunpack.c.0.s8 %v11165
        %v11167 = vlaneseq
        %v11168 = vshrl.u32 %v11167, 7
        %v11169 = vsub.s32 %v11166, %v11168
        %v11170 = vrot.slane %v11162, %v11169
        %11171 = vset.pattern.permute.xlu0 3
        %11172 = vperm.xlu0 %11171, %v8347
        %v11173 = vpop.permute.xlu0 %11172
        %v11176 = vunpack.c.l.s4 269488144
        %v11177 = vunpack.c.0.s8 %v11176
        %v11178 = vlaneseq
        %v11179 = vshrl.u32 %v11178, 7
        %v11180 = vsub.s32 %v11177, %v11179
        %v11181 = vrot.slane %v11173, %v11180
        %11182 = vset.pattern.permute.xlu0 3
        %11183 = vperm.xlu0 %11182, %v8355
        %v11184 = vpop.permute.xlu0 %11183
        %v11187 = vunpack.c.l.s4 269488144
        %v11188 = vunpack.c.0.s8 %v11187
        %v11189 = vlaneseq
        %v11190 = vshrl.u32 %v11189, 7
        %v11191 = vsub.s32 %v11188, %v11190
        %v11192 = vrot.slane %v11184, %v11191
        %11193 = vset.pattern.permute.xlu0 3
        %11194 = vperm.xlu0 %11193, %v8363
        %v11195 = vpop.permute.xlu0 %11194
        %v11198 = vunpack.c.l.s4 269488144
        %v11199 = vunpack.c.0.s8 %v11198
        %v11200 = vlaneseq
        %v11201 = vshrl.u32 %v11200, 7
        %v11202 = vsub.s32 %v11199, %v11201
        %v11203 = vrot.slane %v11195, %v11202
        %11204 = vset.pattern.permute.xlu0 3
        %11205 = vperm.xlu0 %11204, %v8362
        %v11206 = vpop.permute.xlu0 %11205
        %v11209 = vunpack.c.l.s4 269488144
        %v11210 = vunpack.c.0.s8 %v11209
        %v11211 = vlaneseq
        %v11212 = vshrl.u32 %v11211, 7
        %v11213 = vsub.s32 %v11210, %v11212
        %v11214 = vrot.slane %v11206, %v11213
        %11215 = vset.pattern.permute.xlu0 3
        %11216 = vperm.xlu0 %11215, %v8364
        %v11217 = vpop.permute.xlu0 %11216
        %v11220 = vunpack.c.l.s4 269488144
        %v11221 = vunpack.c.0.s8 %v11220
        %v11222 = vlaneseq
        %v11223 = vshrl.u32 %v11222, 7
        %v11224 = vsub.s32 %v11221, %v11223
        %v11225 = vrot.slane %v11217, %v11224
        %11226 = vset.pattern.permute.xlu0 3
        %11227 = vperm.xlu0 %11226, %v8372
        %v11228 = vpop.permute.xlu0 %11227
        %v11231 = vunpack.c.l.s4 269488144
        %v11232 = vunpack.c.0.s8 %v11231
        %v11233 = vlaneseq
        %v11234 = vshrl.u32 %v11233, 7
        %v11235 = vsub.s32 %v11232, %v11234
        %v11236 = vrot.slane %v11228, %v11235
        %11237 = vset.pattern.permute.xlu0 3
        %11238 = vperm.xlu0 %11237, %v8380
        %v11239 = vpop.permute.xlu0 %11238
        %v11242 = vunpack.c.l.s4 269488144
        %v11243 = vunpack.c.0.s8 %v11242
        %v11244 = vlaneseq
        %v11245 = vshrl.u32 %v11244, 7
        %v11246 = vsub.s32 %v11243, %v11245
        %v11247 = vrot.slane %v11239, %v11246
        %11248 = vset.pattern.permute.xlu0 3
        %11249 = vperm.xlu0 %11248, %v8379
        %v11250 = vpop.permute.xlu0 %11249
        %v11253 = vunpack.c.l.s4 269488144
        %v11254 = vunpack.c.0.s8 %v11253
        %v11255 = vlaneseq
        %v11256 = vshrl.u32 %v11255, 7
        %v11257 = vsub.s32 %v11254, %v11256
        %v11258 = vrot.slane %v11250, %v11257
        %11259 = vset.pattern.permute.xlu0 3
        %11260 = vperm.xlu0 %11259, %v8381
        %v11261 = vpop.permute.xlu0 %11260
        %v11264 = vunpack.c.l.s4 269488144
        %v11265 = vunpack.c.0.s8 %v11264
        %v11266 = vlaneseq
        %v11267 = vshrl.u32 %v11266, 7
        %v11268 = vsub.s32 %v11265, %v11267
        %v11269 = vrot.slane %v11261, %v11268
        %11270 = vset.pattern.permute.xlu0 3
        %11271 = vperm.xlu0 %11270, %v8389
        %v11272 = vpop.permute.xlu0 %11271
        %v11275 = vunpack.c.l.s4 269488144
        %v11276 = vunpack.c.0.s8 %v11275
        %v11277 = vlaneseq
        %v11278 = vshrl.u32 %v11277, 7
        %v11279 = vsub.s32 %v11276, %v11278
        %v11280 = vrot.slane %v11272, %v11279
        %11281 = vset.pattern.permute.xlu0 3
        %11282 = vperm.xlu0 %11281, %v8397
        %v11283 = vpop.permute.xlu0 %11282
        %v11286 = vunpack.c.l.s4 269488144
        %v11287 = vunpack.c.0.s8 %v11286
        %v11288 = vlaneseq
        %v11289 = vshrl.u32 %v11288, 7
        %v11290 = vsub.s32 %v11287, %v11289
        %v11291 = vrot.slane %v11283, %v11290
        %11292 = vset.pattern.permute.xlu0 3
        %11293 = vperm.xlu0 %11292, %v8396
        %v11294 = vpop.permute.xlu0 %11293
        %v11297 = vunpack.c.l.s4 269488144
        %v11298 = vunpack.c.0.s8 %v11297
        %v11299 = vlaneseq
        %v11300 = vshrl.u32 %v11299, 7
        %v11301 = vsub.s32 %v11298, %v11300
        %v11302 = vrot.slane %v11294, %v11301
        %11303 = vset.pattern.permute.xlu0 3
        %11304 = vperm.xlu0 %11303, %v8398
        %v11305 = vpop.permute.xlu0 %11304
        %v11308 = vunpack.c.l.s4 269488144
        %v11309 = vunpack.c.0.s8 %v11308
        %v11310 = vlaneseq
        %v11311 = vshrl.u32 %v11310, 7
        %v11312 = vsub.s32 %v11309, %v11311
        %v11313 = vrot.slane %v11305, %v11312
        %11314 = vset.pattern.permute.xlu0 3
        %11315 = vperm.xlu0 %11314, %v8406
        %v11316 = vpop.permute.xlu0 %11315
        %v11319 = vunpack.c.l.s4 269488144
        %v11320 = vunpack.c.0.s8 %v11319
        %v11321 = vlaneseq
        %v11322 = vshrl.u32 %v11321, 7
        %v11323 = vsub.s32 %v11320, %v11322
        %v11324 = vrot.slane %v11316, %v11323
        %11325 = vset.pattern.permute.xlu0 3
        %11326 = vperm.xlu0 %11325, %v8414
        %v11327 = vpop.permute.xlu0 %11326
        %v11330 = vunpack.c.l.s4 269488144
        %v11331 = vunpack.c.0.s8 %v11330
        %v11332 = vlaneseq
        %v11333 = vshrl.u32 %v11332, 7
        %v11334 = vsub.s32 %v11331, %v11333
        %v11335 = vrot.slane %v11327, %v11334
        %11336 = vset.pattern.permute.xlu0 3
        %11337 = vperm.xlu0 %11336, %v8413
        %v11338 = vpop.permute.xlu0 %11337
        %v11341 = vunpack.c.l.s4 269488144
        %v11342 = vunpack.c.0.s8 %v11341
        %v11343 = vlaneseq
        %v11344 = vshrl.u32 %v11343, 7
        %v11345 = vsub.s32 %v11342, %v11344
        %v11346 = vrot.slane %v11338, %v11345
        %11347 = vset.pattern.permute.xlu0 3
        %11348 = vperm.xlu0 %11347, %v8415
        %v11349 = vpop.permute.xlu0 %11348
        %v11352 = vunpack.c.l.s4 269488144
        %v11353 = vunpack.c.0.s8 %v11352
        %v11354 = vlaneseq
        %v11355 = vshrl.u32 %v11354, 7
        %v11356 = vsub.s32 %v11353, %v11355
        %v11357 = vrot.slane %v11349, %v11356
        %11358 = vset.pattern.permute.xlu0 3
        %11359 = vperm.xlu0 %11358, %v8423
        %v11360 = vpop.permute.xlu0 %11359
        %v11363 = vunpack.c.l.s4 269488144
        %v11364 = vunpack.c.0.s8 %v11363
        %v11365 = vlaneseq
        %v11366 = vshrl.u32 %v11365, 7
        %v11367 = vsub.s32 %v11364, %v11366
        %v11368 = vrot.slane %v11360, %v11367
        %11369 = vset.pattern.permute.xlu0 3
        %11370 = vperm.xlu0 %11369, %v8431
        %v11371 = vpop.permute.xlu0 %11370
        %v11374 = vunpack.c.l.s4 269488144
        %v11375 = vunpack.c.0.s8 %v11374
        %v11376 = vlaneseq
        %v11377 = vshrl.u32 %v11376, 7
        %v11378 = vsub.s32 %v11375, %v11377
        %v11379 = vrot.slane %v11371, %v11378
        %11380 = vset.pattern.permute.xlu0 3
        %11381 = vperm.xlu0 %11380, %v8430
        %v11382 = vpop.permute.xlu0 %11381
        %v11385 = vunpack.c.l.s4 269488144
        %v11386 = vunpack.c.0.s8 %v11385
        %v11387 = vlaneseq
        %v11388 = vshrl.u32 %v11387, 7
        %v11389 = vsub.s32 %v11386, %v11388
        %v11390 = vrot.slane %v11382, %v11389
        %11391 = vset.pattern.permute.xlu0 3
        %11392 = vperm.xlu0 %11391, %v8432
        %v11393 = vpop.permute.xlu0 %11392
        %v11396 = vunpack.c.l.s4 269488144
        %v11397 = vunpack.c.0.s8 %v11396
        %v11398 = vlaneseq
        %v11399 = vshrl.u32 %v11398, 7
        %v11400 = vsub.s32 %v11397, %v11399
        %v11401 = vrot.slane %v11393, %v11400
        %11402 = vset.pattern.permute.xlu0 3
        %11403 = vperm.xlu0 %11402, %v8440
        %v11404 = vpop.permute.xlu0 %11403
        %v11407 = vunpack.c.l.s4 269488144
        %v11408 = vunpack.c.0.s8 %v11407
        %v11409 = vlaneseq
        %v11410 = vshrl.u32 %v11409, 7
        %v11411 = vsub.s32 %v11408, %v11410
        %v11412 = vrot.slane %v11404, %v11411
        %11413 = vset.pattern.permute.xlu0 3
        %11414 = vperm.xlu0 %11413, %v8448
        %v11415 = vpop.permute.xlu0 %11414
        %v11418 = vunpack.c.l.s4 269488144
        %v11419 = vunpack.c.0.s8 %v11418
        %v11420 = vlaneseq
        %v11421 = vshrl.u32 %v11420, 7
        %v11422 = vsub.s32 %v11419, %v11421
        %v11423 = vrot.slane %v11415, %v11422
        %11424 = vset.pattern.permute.xlu0 3
        %11425 = vperm.xlu0 %11424, %v8447
        %v11426 = vpop.permute.xlu0 %11425
        %v11429 = vunpack.c.l.s4 269488144
        %v11430 = vunpack.c.0.s8 %v11429
        %v11431 = vlaneseq
        %v11432 = vshrl.u32 %v11431, 7
        %v11433 = vsub.s32 %v11430, %v11432
        %v11434 = vrot.slane %v11426, %v11433
        %11435 = vset.pattern.permute.xlu0 3
        %11436 = vperm.xlu0 %11435, %v8449
        %v11437 = vpop.permute.xlu0 %11436
        %v11440 = vunpack.c.l.s4 269488144
        %v11441 = vunpack.c.0.s8 %v11440
        %v11442 = vlaneseq
        %v11443 = vshrl.u32 %v11442, 7
        %v11444 = vsub.s32 %v11441, %v11443
        %v11445 = vrot.slane %v11437, %v11444
        %11446 = vset.pattern.permute.xlu0 3
        %11447 = vperm.xlu0 %11446, %v8457
        %v11448 = vpop.permute.xlu0 %11447
        %v11451 = vunpack.c.l.s4 269488144
        %v11452 = vunpack.c.0.s8 %v11451
        %v11453 = vlaneseq
        %v11454 = vshrl.u32 %v11453, 7
        %v11455 = vsub.s32 %v11452, %v11454
        %v11456 = vrot.slane %v11448, %v11455
        %11457 = vset.pattern.permute.xlu0 3
        %11458 = vperm.xlu0 %11457, %v8465
        %v11459 = vpop.permute.xlu0 %11458
        %v11462 = vunpack.c.l.s4 269488144
        %v11463 = vunpack.c.0.s8 %v11462
        %v11464 = vlaneseq
        %v11465 = vshrl.u32 %v11464, 7
        %v11466 = vsub.s32 %v11463, %v11465
        %v11467 = vrot.slane %v11459, %v11466
        %11468 = vset.pattern.permute.xlu0 3
        %11469 = vperm.xlu0 %11468, %v8464
        %v11470 = vpop.permute.xlu0 %11469
        %v11473 = vunpack.c.l.s4 269488144
        %v11474 = vunpack.c.0.s8 %v11473
        %v11475 = vlaneseq
        %v11476 = vshrl.u32 %v11475, 7
        %v11477 = vsub.s32 %v11474, %v11476
        %v11478 = vrot.slane %v11470, %v11477
        %11479 = vset.pattern.permute.xlu0 3
        %11480 = vperm.xlu0 %11479, %v8466
        %v11481 = vpop.permute.xlu0 %11480
        %v11484 = vunpack.c.l.s4 269488144
        %v11485 = vunpack.c.0.s8 %v11484
        %v11486 = vlaneseq
        %v11487 = vshrl.u32 %v11486, 7
        %v11488 = vsub.s32 %v11485, %v11487
        %v11489 = vrot.slane %v11481, %v11488
        %11490 = vset.pattern.permute.xlu0 3
        %11491 = vperm.xlu0 %11490, %v8474
        %v11492 = vpop.permute.xlu0 %11491
        %v11495 = vunpack.c.l.s4 269488144
        %v11496 = vunpack.c.0.s8 %v11495
        %v11497 = vlaneseq
        %v11498 = vshrl.u32 %v11497, 7
        %v11499 = vsub.s32 %v11496, %v11498
        %v11500 = vrot.slane %v11492, %v11499
        %11501 = vset.pattern.permute.xlu0 3
        %11502 = vperm.xlu0 %11501, %v8482
        %v11503 = vpop.permute.xlu0 %11502
        %v11506 = vunpack.c.l.s4 269488144
        %v11507 = vunpack.c.0.s8 %v11506
        %v11508 = vlaneseq
        %v11509 = vshrl.u32 %v11508, 7
        %v11510 = vsub.s32 %v11507, %v11509
        %v11511 = vrot.slane %v11503, %v11510
        %11512 = vset.pattern.permute.xlu0 3
        %11513 = vperm.xlu0 %11512, %v8481
        %v11514 = vpop.permute.xlu0 %11513
        %v11517 = vunpack.c.l.s4 269488144
        %v11518 = vunpack.c.0.s8 %v11517
        %v11519 = vlaneseq
        %v11520 = vshrl.u32 %v11519, 7
        %v11521 = vsub.s32 %v11518, %v11520
        %v11522 = vrot.slane %v11514, %v11521
        %11523 = vset.pattern.permute.xlu0 3
        %11524 = vperm.xlu0 %11523, %v8483
        %v11525 = vpop.permute.xlu0 %11524
        %v11528 = vunpack.c.l.s4 269488144
        %v11529 = vunpack.c.0.s8 %v11528
        %v11530 = vlaneseq
        %v11531 = vshrl.u32 %v11530, 7
        %v11532 = vsub.s32 %v11529, %v11531
        %v11533 = vrot.slane %v11525, %v11532
        %11534 = vset.pattern.permute.xlu0 3
        %11535 = vperm.xlu0 %11534, %v8491
        %v11536 = vpop.permute.xlu0 %11535
        %v11539 = vunpack.c.l.s4 269488144
        %v11540 = vunpack.c.0.s8 %v11539
        %v11541 = vlaneseq
        %v11542 = vshrl.u32 %v11541, 7
        %v11543 = vsub.s32 %v11540, %v11542
        %v11544 = vrot.slane %v11536, %v11543
        %11545 = vset.pattern.permute.xlu0 3
        %11546 = vperm.xlu0 %11545, %v8499
        %v11547 = vpop.permute.xlu0 %11546
        %v11550 = vunpack.c.l.s4 269488144
        %v11551 = vunpack.c.0.s8 %v11550
        %v11552 = vlaneseq
        %v11553 = vshrl.u32 %v11552, 7
        %v11554 = vsub.s32 %v11551, %v11553
        %v11555 = vrot.slane %v11547, %v11554
        %11556 = vset.pattern.permute.xlu0 3
        %11557 = vperm.xlu0 %11556, %v8498
        %v11558 = vpop.permute.xlu0 %11557
        %v11561 = vunpack.c.l.s4 269488144
        %v11562 = vunpack.c.0.s8 %v11561
        %v11563 = vlaneseq
        %v11564 = vshrl.u32 %v11563, 7
        %v11565 = vsub.s32 %v11562, %v11564
        %v11566 = vrot.slane %v11558, %v11565
        %11567 = vset.pattern.permute.xlu0 3
        %11568 = vperm.xlu0 %11567, %v8500
        %v11569 = vpop.permute.xlu0 %11568
        %v11572 = vunpack.c.l.s4 269488144
        %v11573 = vunpack.c.0.s8 %v11572
        %v11574 = vlaneseq
        %v11575 = vshrl.u32 %v11574, 7
        %v11576 = vsub.s32 %v11573, %v11575
        %v11577 = vrot.slane %v11569, %v11576
        %11578 = vset.pattern.permute.xlu0 3
        %11579 = vperm.xlu0 %11578, %v8508
        %v11580 = vpop.permute.xlu0 %11579
        %v11583 = vunpack.c.l.s4 269488144
        %v11584 = vunpack.c.0.s8 %v11583
        %v11585 = vlaneseq
        %v11586 = vshrl.u32 %v11585, 7
        %v11587 = vsub.s32 %v11584, %v11586
        %v11588 = vrot.slane %v11580, %v11587
        %11589 = vset.pattern.permute.xlu0 3
        %11590 = vperm.xlu0 %11589, %v8516
        %v11591 = vpop.permute.xlu0 %11590
        %v11594 = vunpack.c.l.s4 269488144
        %v11595 = vunpack.c.0.s8 %v11594
        %v11596 = vlaneseq
        %v11597 = vshrl.u32 %v11596, 7
        %v11598 = vsub.s32 %v11595, %v11597
        %v11599 = vrot.slane %v11591, %v11598
        %11600 = vset.pattern.permute.xlu0 3
        %11601 = vperm.xlu0 %11600, %v8515
        %v11602 = vpop.permute.xlu0 %11601
        %v11605 = vunpack.c.l.s4 269488144
        %v11606 = vunpack.c.0.s8 %v11605
        %v11607 = vlaneseq
        %v11608 = vshrl.u32 %v11607, 7
        %v11609 = vsub.s32 %v11606, %v11608
        %v11610 = vrot.slane %v11602, %v11609
        %11611 = vset.pattern.permute.xlu0 3
        %11612 = vperm.xlu0 %11611, %v8517
        %v11613 = vpop.permute.xlu0 %11612
        %v11616 = vunpack.c.l.s4 269488144
        %v11617 = vunpack.c.0.s8 %v11616
        %v11618 = vlaneseq
        %v11619 = vshrl.u32 %v11618, 7
        %v11620 = vsub.s32 %v11617, %v11619
        %v11621 = vrot.slane %v11613, %v11620
        %11622 = vset.pattern.permute.xlu0 3
        %11623 = vperm.xlu0 %11622, %v8525
        %v11624 = vpop.permute.xlu0 %11623
        %v11627 = vunpack.c.l.s4 269488144
        %v11628 = vunpack.c.0.s8 %v11627
        %v11629 = vlaneseq
        %v11630 = vshrl.u32 %v11629, 7
        %v11631 = vsub.s32 %v11628, %v11630
        %v11632 = vrot.slane %v11624, %v11631
        %11633 = vset.pattern.permute.xlu0 3
        %11634 = vperm.xlu0 %11633, %v8533
        %v11635 = vpop.permute.xlu0 %11634
        %v11638 = vunpack.c.l.s4 269488144
        %v11639 = vunpack.c.0.s8 %v11638
        %v11640 = vlaneseq
        %v11641 = vshrl.u32 %v11640, 7
        %v11642 = vsub.s32 %v11639, %v11641
        %v11643 = vrot.slane %v11635, %v11642
        %11644 = vset.pattern.permute.xlu0 3
        %11645 = vperm.xlu0 %11644, %v8532
        %v11646 = vpop.permute.xlu0 %11645
        %v11649 = vunpack.c.l.s4 269488144
        %v11650 = vunpack.c.0.s8 %v11649
        %v11651 = vlaneseq
        %v11652 = vshrl.u32 %v11651, 7
        %v11653 = vsub.s32 %v11650, %v11652
        %v11654 = vrot.slane %v11646, %v11653
        %11655 = vset.pattern.permute.xlu0 3
        %11656 = vperm.xlu0 %11655, %v8534
        %v11657 = vpop.permute.xlu0 %11656
        %v11660 = vunpack.c.l.s4 269488144
        %v11661 = vunpack.c.0.s8 %v11660
        %v11662 = vlaneseq
        %v11663 = vshrl.u32 %v11662, 7
        %v11664 = vsub.s32 %v11661, %v11663
        %v11665 = vrot.slane %v11657, %v11664
        %11666 = vset.pattern.permute.xlu0 3
        %11667 = vperm.xlu0 %11666, %v8542
        %v11668 = vpop.permute.xlu0 %11667
        %v11671 = vunpack.c.l.s4 269488144
        %v11672 = vunpack.c.0.s8 %v11671
        %v11673 = vlaneseq
        %v11674 = vshrl.u32 %v11673, 7
        %v11675 = vsub.s32 %v11672, %v11674
        %v11676 = vrot.slane %v11668, %v11675
        %11677 = vset.pattern.permute.xlu0 3
        %11678 = vperm.xlu0 %11677, %v8550
        %v11679 = vpop.permute.xlu0 %11678
        %v11682 = vunpack.c.l.s4 269488144
        %v11683 = vunpack.c.0.s8 %v11682
        %v11684 = vlaneseq
        %v11685 = vshrl.u32 %v11684, 7
        %v11686 = vsub.s32 %v11683, %v11685
        %v11687 = vrot.slane %v11679, %v11686
        %11688 = vset.pattern.permute.xlu0 3
        %11689 = vperm.xlu0 %11688, %v8549
        %v11690 = vpop.permute.xlu0 %11689
        %v11693 = vunpack.c.l.s4 269488144
        %v11694 = vunpack.c.0.s8 %v11693
        %v11695 = vlaneseq
        %v11696 = vshrl.u32 %v11695, 7
        %v11697 = vsub.s32 %v11694, %v11696
        %v11698 = vrot.slane %v11690, %v11697
        %11699 = vset.pattern.permute.xlu0 3
        %11700 = vperm.xlu0 %11699, %v8551
        %v11701 = vpop.permute.xlu0 %11700
        %v11704 = vunpack.c.l.s4 269488144
        %v11705 = vunpack.c.0.s8 %v11704
        %v11706 = vlaneseq
        %v11707 = vshrl.u32 %v11706, 7
        %v11708 = vsub.s32 %v11705, %v11707
        %v11709 = vrot.slane %v11701, %v11708
        %11710 = vset.pattern.permute.xlu0 3
        %11711 = vperm.xlu0 %11710, %v8559
        %v11712 = vpop.permute.xlu0 %11711
        %v11715 = vunpack.c.l.s4 269488144
        %v11716 = vunpack.c.0.s8 %v11715
        %v11717 = vlaneseq
        %v11718 = vshrl.u32 %v11717, 7
        %v11719 = vsub.s32 %v11716, %v11718
        %v11720 = vrot.slane %v11712, %v11719
        %11721 = vset.pattern.permute.xlu0 3
        %11722 = vperm.xlu0 %11721, %v8567
        %v11723 = vpop.permute.xlu0 %11722
        %v11726 = vunpack.c.l.s4 269488144
        %v11727 = vunpack.c.0.s8 %v11726
        %v11728 = vlaneseq
        %v11729 = vshrl.u32 %v11728, 7
        %v11730 = vsub.s32 %v11727, %v11729
        %v11731 = vrot.slane %v11723, %v11730
        %11732 = vset.pattern.permute.xlu0 3
        %11733 = vperm.xlu0 %11732, %v8566
        %v11734 = vpop.permute.xlu0 %11733
        %v11737 = vunpack.c.l.s4 269488144
        %v11738 = vunpack.c.0.s8 %v11737
        %v11739 = vlaneseq
        %v11740 = vshrl.u32 %v11739, 7
        %v11741 = vsub.s32 %v11738, %v11740
        %v11742 = vrot.slane %v11734, %v11741
        %11743 = vset.pattern.permute.xlu0 3
        %11744 = vperm.xlu0 %11743, %v8568
        %v11745 = vpop.permute.xlu0 %11744
        %v11748 = vunpack.c.l.s4 269488144
        %v11749 = vunpack.c.0.s8 %v11748
        %v11750 = vlaneseq
        %v11751 = vshrl.u32 %v11750, 7
        %v11752 = vsub.s32 %v11749, %v11751
        %v11753 = vrot.slane %v11745, %v11752
        %11754 = vset.pattern.permute.xlu0 3
        %11755 = vperm.xlu0 %11754, %v8576
        %v11756 = vpop.permute.xlu0 %11755
        %v11759 = vunpack.c.l.s4 269488144
        %v11760 = vunpack.c.0.s8 %v11759
        %v11761 = vlaneseq
        %v11762 = vshrl.u32 %v11761, 7
        %v11763 = vsub.s32 %v11760, %v11762
        %v11764 = vrot.slane %v11756, %v11763
        %11765 = vset.pattern.permute.xlu0 3
        %11766 = vperm.xlu0 %11765, %v8584
        %v11767 = vpop.permute.xlu0 %11766
        %v11770 = vunpack.c.l.s4 269488144
        %v11771 = vunpack.c.0.s8 %v11770
        %v11772 = vlaneseq
        %v11773 = vshrl.u32 %v11772, 7
        %v11774 = vsub.s32 %v11771, %v11773
        %v11775 = vrot.slane %v11767, %v11774
        %11776 = vset.pattern.permute.xlu0 3
        %11777 = vperm.xlu0 %11776, %v8583
        %v11778 = vpop.permute.xlu0 %11777
        %v11781 = vunpack.c.l.s4 269488144
        %v11782 = vunpack.c.0.s8 %v11781
        %v11783 = vlaneseq
        %v11784 = vshrl.u32 %v11783, 7
        %v11785 = vsub.s32 %v11782, %v11784
        %v11786 = vrot.slane %v11778, %v11785
        %11787 = vset.pattern.permute.xlu0 3
        %11788 = vperm.xlu0 %11787, %v8585
        %v11789 = vpop.permute.xlu0 %11788
        %v11792 = vunpack.c.l.s4 269488144
        %v11793 = vunpack.c.0.s8 %v11792
        %v11794 = vlaneseq
        %v11795 = vshrl.u32 %v11794, 7
        %v11796 = vsub.s32 %v11793, %v11795
        %v11797 = vrot.slane %v11789, %v11796
        %11798 = vset.pattern.permute.xlu0 3
        %11799 = vperm.xlu0 %11798, %v8593
        %v11800 = vpop.permute.xlu0 %11799
        %v11803 = vunpack.c.l.s4 269488144
        %v11804 = vunpack.c.0.s8 %v11803
        %v11805 = vlaneseq
        %v11806 = vshrl.u32 %v11805, 7
        %v11807 = vsub.s32 %v11804, %v11806
        %v11808 = vrot.slane %v11800, %v11807
        %11809 = vset.pattern.permute.xlu0 3
        %11810 = vperm.xlu0 %11809, %v8601
        %v11811 = vpop.permute.xlu0 %11810
        %v11814 = vunpack.c.l.s4 269488144
        %v11815 = vunpack.c.0.s8 %v11814
        %v11816 = vlaneseq
        %v11817 = vshrl.u32 %v11816, 7
        %v11818 = vsub.s32 %v11815, %v11817
        %v11819 = vrot.slane %v11811, %v11818
        %11820 = vset.pattern.permute.xlu0 3
        %11821 = vperm.xlu0 %11820, %v8600
        %v11822 = vpop.permute.xlu0 %11821
        %v11825 = vunpack.c.l.s4 269488144
        %v11826 = vunpack.c.0.s8 %v11825
        %v11827 = vlaneseq
        %v11828 = vshrl.u32 %v11827, 7
        %v11829 = vsub.s32 %v11826, %v11828
        %v11830 = vrot.slane %v11822, %v11829
        %11831 = vset.pattern.permute.xlu0 3
        %11832 = vperm.xlu0 %11831, %v8602
        %v11833 = vpop.permute.xlu0 %11832
        %v11836 = vunpack.c.l.s4 269488144
        %v11837 = vunpack.c.0.s8 %v11836
        %v11838 = vlaneseq
        %v11839 = vshrl.u32 %v11838, 7
        %v11840 = vsub.s32 %v11837, %v11839
        %v11841 = vrot.slane %v11833, %v11840
        %v11842 = vlaneseq
        %v11843 = vshrl.u32 %v11842, 7
        %v11844 = vsub.s32 3, %v11843
        %v11845 = vrot.slane %v8603, %v11844
        %v11847 = vcombine.high %v11845, %v11845
        %v11849 = vunpack.c.l.s4 1983009808
        %v11850 = vunpack.c.0.s8 %v11849
        %v11851 = vlaneseq
        %v11852 = vshrl.u32 %v11851, 7
        %v11853 = vsub.s32 %v11850, %v11852
        %v11854 = vrot.slane %v11845, %v11853
        %v11856 = vunpack.c.l.s4 1983009808
        %v11857 = vunpack.c.0.s8 %v11856
        %v11858 = vlaneseq
        %v11859 = vshrl.u32 %v11858, 7
        %v11860 = vsub.s32 %v11857, %v11859
        %v11861 = vrot.slane %v11847, %v11860
        %v11862 = vcombine.high %v11854, %v11854
        %v11863 = vcombine.high %v11861, %v11861
        %v11864 = vrot.slane %v11854, 1
        %v11865 = vrot.slane %v11862, 1
        %v11866 = vrot.slane %v11861, 1
        %v11867 = vrot.slane %v11863, 1
        %v11876 = vmul.f32 %v11148, %v11854
        %v11877 = vmul.f32 %v11159, %v11864
        %v11878 = vmul.f32 %v11170, %v11862
        %v11879 = vmul.f32 %v11181, %v11865
        %v11880 = vmul.f32 %v11192, %v11861
        %v11881 = vmul.f32 %v11203, %v11866
        %v11882 = vmul.f32 %v11214, %v11863
        %v11883 = vmul.f32 %v11225, %v11867
        %v11884 = vmul.f32 %v11236, %v11854
        %v11885 = vmul.f32 %v11247, %v11864
        %v11886 = vmul.f32 %v11258, %v11862
        %v11887 = vmul.f32 %v11269, %v11865
        %v11888 = vmul.f32 %v11280, %v11861
        %v11889 = vmul.f32 %v11291, %v11866
        %v11890 = vmul.f32 %v11302, %v11863
        %v11891 = vmul.f32 %v11313, %v11867
        %v11892 = vmul.f32 %v11324, %v11854
        %v11893 = vmul.f32 %v11335, %v11864
        %v11894 = vmul.f32 %v11346, %v11862
        %v11895 = vmul.f32 %v11357, %v11865
        %v11896 = vmul.f32 %v11368, %v11861
        %v11897 = vmul.f32 %v11379, %v11866
        %v11898 = vmul.f32 %v11390, %v11863
        %v11899 = vmul.f32 %v11401, %v11867
        %v11900 = vmul.f32 %v11412, %v11854
        %v11901 = vmul.f32 %v11423, %v11864
        %v11902 = vmul.f32 %v11434, %v11862
        %v11903 = vmul.f32 %v11445, %v11865
        %v11904 = vmul.f32 %v11456, %v11861
        %v11905 = vmul.f32 %v11467, %v11866
        %v11906 = vmul.f32 %v11478, %v11863
        %v11907 = vmul.f32 %v11489, %v11867
        %v11908 = vmul.f32 %v11500, %v11854
        %v11909 = vmul.f32 %v11511, %v11864
        %v11910 = vmul.f32 %v11522, %v11862
        %v11911 = vmul.f32 %v11533, %v11865
        %v11912 = vmul.f32 %v11544, %v11861
        %v11913 = vmul.f32 %v11555, %v11866
        %v11914 = vmul.f32 %v11566, %v11863
        %v11915 = vmul.f32 %v11577, %v11867
        %v11916 = vmul.f32 %v11588, %v11854
        %v11917 = vmul.f32 %v11599, %v11864
        %v11918 = vmul.f32 %v11610, %v11862
        %v11919 = vmul.f32 %v11621, %v11865
        %v11920 = vmul.f32 %v11632, %v11861
        %v11921 = vmul.f32 %v11643, %v11866
        %v11922 = vmul.f32 %v11654, %v11863
        %v11923 = vmul.f32 %v11665, %v11867
        %v11924 = vmul.f32 %v11676, %v11854
        %v11925 = vmul.f32 %v11687, %v11864
        %v11926 = vmul.f32 %v11698, %v11862
        %v11927 = vmul.f32 %v11709, %v11865
        %v11928 = vmul.f32 %v11720, %v11861
        %v11929 = vmul.f32 %v11731, %v11866
        %v11930 = vmul.f32 %v11742, %v11863
        %v11931 = vmul.f32 %v11753, %v11867
        %v11932 = vmul.f32 %v11764, %v11854
        %v11933 = vmul.f32 %v11775, %v11864
        %v11934 = vmul.f32 %v11786, %v11862
        %v11935 = vmul.f32 %v11797, %v11865
        %v11936 = vmul.f32 %v11808, %v11861
        %v11937 = vmul.f32 %v11819, %v11866
        %v11938 = vmul.f32 %v11830, %v11863
        %v11939 = vmul.f32 %v11841, %v11867
        %v11940 = vadd.f32 %v11074, %v11876
        %v11941 = vadd.f32 %v11075, %v11877
        %v11942 = vadd.f32 %v11076, %v11878
        %v11943 = vadd.f32 %v11077, %v11879
        %v11944 = vadd.f32 %v11078, %v11880
        %v11945 = vadd.f32 %v11079, %v11881
        %v11946 = vadd.f32 %v11080, %v11882
        %v11947 = vadd.f32 %v11081, %v11883
        %v11948 = vadd.f32 %v11082, %v11884
        %v11949 = vadd.f32 %v11083, %v11885
        %v11950 = vadd.f32 %v11084, %v11886
        %v11951 = vadd.f32 %v11085, %v11887
        %v11952 = vadd.f32 %v11086, %v11888
        %v11953 = vadd.f32 %v11087, %v11889
        %v11954 = vadd.f32 %v11088, %v11890
        %v11955 = vadd.f32 %v11089, %v11891
        %v11956 = vadd.f32 %v11090, %v11892
        %v11957 = vadd.f32 %v11091, %v11893
        %v11958 = vadd.f32 %v11092, %v11894
        %v11959 = vadd.f32 %v11093, %v11895
        %v11960 = vadd.f32 %v11094, %v11896
        %v11961 = vadd.f32 %v11095, %v11897
        %v11962 = vadd.f32 %v11096, %v11898
        %v11963 = vadd.f32 %v11097, %v11899
        %v11964 = vadd.f32 %v11098, %v11900
        %v11965 = vadd.f32 %v11099, %v11901
        %v11966 = vadd.f32 %v11100, %v11902
        %v11967 = vadd.f32 %v11101, %v11903
        %v11968 = vadd.f32 %v11102, %v11904
        %v11969 = vadd.f32 %v11103, %v11905
        %v11970 = vadd.f32 %v11104, %v11906
        %v11971 = vadd.f32 %v11105, %v11907
        %v11972 = vadd.f32 %v11106, %v11908
        %v11973 = vadd.f32 %v11107, %v11909
        %v11974 = vadd.f32 %v11108, %v11910
        %v11975 = vadd.f32 %v11109, %v11911
        %v11976 = vadd.f32 %v11110, %v11912
        %v11977 = vadd.f32 %v11111, %v11913
        %v11978 = vadd.f32 %v11112, %v11914
        %v11979 = vadd.f32 %v11113, %v11915
        %v11980 = vadd.f32 %v11114, %v11916
        %v11981 = vadd.f32 %v11115, %v11917
        %v11982 = vadd.f32 %v11116, %v11918
        %v11983 = vadd.f32 %v11117, %v11919
        %v11984 = vadd.f32 %v11118, %v11920
        %v11985 = vadd.f32 %v11119, %v11921
        %v11986 = vadd.f32 %v11120, %v11922
        %v11987 = vadd.f32 %v11121, %v11923
        %v11988 = vadd.f32 %v11122, %v11924
        %v11989 = vadd.f32 %v11123, %v11925
        %v11990 = vadd.f32 %v11124, %v11926
        %v11991 = vadd.f32 %v11125, %v11927
        %v11992 = vadd.f32 %v11126, %v11928
        %v11993 = vadd.f32 %v11127, %v11929
        %v11994 = vadd.f32 %v11128, %v11930
        %v11995 = vadd.f32 %v11129, %v11931
        %v11996 = vadd.f32 %v11130, %v11932
        %v11997 = vadd.f32 %v11131, %v11933
        %v11998 = vadd.f32 %v11132, %v11934
        %v11999 = vadd.f32 %v11133, %v11935
        %v12000 = vadd.f32 %v11134, %v11936
        %v12001 = vadd.f32 %v11135, %v11937
        %v12002 = vadd.f32 %v11136, %v11938
        %v12003 = vadd.f32 %v11137, %v11939
        %v12004 = vld [vmem:[%s8] sm:$0x1]
        %v12006 = vlaneseq
        %v12007 = vshrl.u32 %v12006, 7
        %v12008 = vsub.s32 0, %v12007
        %v12009 = vrot.slane %v12004, %v12008
        %v12010 = vcombine.high %v12009, %v12009
        %v12012 = vunpack.c.l.s4 1983009808
        %v12013 = vunpack.c.0.s8 %v12012
        %v12014 = vlaneseq
        %v12015 = vshrl.u32 %v12014, 7
        %v12016 = vsub.s32 %v12013, %v12015
        %v12017 = vrot.slane %v12009, %v12016
        %v12019 = vunpack.c.l.s4 1983009808
        %v12020 = vunpack.c.0.s8 %v12019
        %v12021 = vlaneseq
        %v12022 = vshrl.u32 %v12021, 7
        %v12023 = vsub.s32 %v12020, %v12022
        %v12024 = vrot.slane %v12010, %v12023
        %v12025 = vcombine.high %v12017, %v12017
        %v12026 = vcombine.high %v12024, %v12024
        %v12027 = vrot.slane %v12017, 1
        %v12028 = vrot.slane %v12025, 1
        %v12029 = vrot.slane %v12024, 1
        %v12030 = vrot.slane %v12026, 1
        %v12039 = vadd.f32 %v11940, %v12017
        %v12040 = vadd.f32 %v11941, %v12027
        %v12041 = vadd.f32 %v11942, %v12025
        %v12042 = vadd.f32 %v11943, %v12028
        %v12043 = vadd.f32 %v11944, %v12024
        %v12044 = vadd.f32 %v11945, %v12029
        %v12045 = vadd.f32 %v11946, %v12026
        %v12046 = vadd.f32 %v11947, %v12030
        %v12047 = vadd.f32 %v11948, %v12017
        %v12048 = vadd.f32 %v11949, %v12027
        %v12049 = vadd.f32 %v11950, %v12025
        %v12050 = vadd.f32 %v11951, %v12028
        %v12051 = vadd.f32 %v11952, %v12024
        %v12052 = vadd.f32 %v11953, %v12029
        %v12053 = vadd.f32 %v11954, %v12026
        %v12054 = vadd.f32 %v11955, %v12030
        %v12055 = vadd.f32 %v11956, %v12017
        %v12056 = vadd.f32 %v11957, %v12027
        %v12057 = vadd.f32 %v11958, %v12025
        %v12058 = vadd.f32 %v11959, %v12028
        %v12059 = vadd.f32 %v11960, %v12024
        %v12060 = vadd.f32 %v11961, %v12029
        %v12061 = vadd.f32 %v11962, %v12026
        %v12062 = vadd.f32 %v11963, %v12030
        %v12063 = vadd.f32 %v11964, %v12017
        %v12064 = vadd.f32 %v11965, %v12027
        %v12065 = vadd.f32 %v11966, %v12025
        %v12066 = vadd.f32 %v11967, %v12028
        %v12067 = vadd.f32 %v11968, %v12024
        %v12068 = vadd.f32 %v11969, %v12029
        %v12069 = vadd.f32 %v11970, %v12026
        %v12070 = vadd.f32 %v11971, %v12030
        %v12071 = vadd.f32 %v11972, %v12017
        %v12072 = vadd.f32 %v11973, %v12027
        %v12073 = vadd.f32 %v11974, %v12025
        %v12074 = vadd.f32 %v11975, %v12028
        %v12075 = vadd.f32 %v11976, %v12024
        %v12076 = vadd.f32 %v11977, %v12029
        %v12077 = vadd.f32 %v11978, %v12026
        %v12078 = vadd.f32 %v11979, %v12030
        %v12079 = vadd.f32 %v11980, %v12017
        %v12080 = vadd.f32 %v11981, %v12027
        %v12081 = vadd.f32 %v11982, %v12025
        %v12082 = vadd.f32 %v11983, %v12028
        %v12083 = vadd.f32 %v11984, %v12024
        %v12084 = vadd.f32 %v11985, %v12029
        %v12085 = vadd.f32 %v11986, %v12026
        %v12086 = vadd.f32 %v11987, %v12030
        %v12087 = vadd.f32 %v11988, %v12017
        %v12088 = vadd.f32 %v11989, %v12027
        %v12089 = vadd.f32 %v11990, %v12025
        %v12090 = vadd.f32 %v11991, %v12028
        %v12091 = vadd.f32 %v11992, %v12024
        %v12092 = vadd.f32 %v11993, %v12029
        %v12093 = vadd.f32 %v11994, %v12026
        %v12094 = vadd.f32 %v11995, %v12030
        %v12095 = vadd.f32 %v11996, %v12017
        %v12096 = vadd.f32 %v11997, %v12027
        %v12097 = vadd.f32 %v11998, %v12025
        %v12098 = vadd.f32 %v11999, %v12028
        %v12099 = vadd.f32 %v12000, %v12024
        %v12100 = vadd.f32 %v12001, %v12029
        %v12101 = vadd.f32 %v12002, %v12026
        %v12102 = vadd.f32 %v12003, %v12030
        %v12103 = vadd.f32 %v8251, %v12039
        %v12104 = vadd.f32 %v8252, %v12040
        %v12105 = vadd.f32 %v8253, %v12041
        %v12106 = vadd.f32 %v8254, %v12042
        %v12107 = vadd.f32 %v8255, %v12043
        %v12108 = vadd.f32 %v8256, %v12044
        %v12109 = vadd.f32 %v8257, %v12045
        %v12110 = vadd.f32 %v8258, %v12046
        %v12111 = vadd.f32 %v8259, %v12047
        %v12112 = vadd.f32 %v8260, %v12048
        %v12113 = vadd.f32 %v8261, %v12049
        %v12114 = vadd.f32 %v8262, %v12050
        %v12115 = vadd.f32 %v8263, %v12051
        %v12116 = vadd.f32 %v8264, %v12052
        %v12117 = vadd.f32 %v8265, %v12053
        %v12118 = vadd.f32 %v8266, %v12054
        %v12119 = vadd.f32 %v8267, %v12055
        %v12120 = vadd.f32 %v8268, %v12056
        %v12121 = vadd.f32 %v8269, %v12057
        %v12122 = vadd.f32 %v8270, %v12058
        %v12123 = vadd.f32 %v8271, %v12059
        %v12124 = vadd.f32 %v8272, %v12060
        %v12125 = vadd.f32 %v8273, %v12061
        %v12126 = vadd.f32 %v8274, %v12062
        %v12127 = vadd.f32 %v8275, %v12063
        %v12128 = vadd.f32 %v8276, %v12064
        %v12129 = vadd.f32 %v8277, %v12065
        %v12130 = vadd.f32 %v8278, %v12066
        %v12131 = vadd.f32 %v8279, %v12067
        %v12132 = vadd.f32 %v8280, %v12068
        %v12133 = vadd.f32 %v8281, %v12069
        %v12134 = vadd.f32 %v8282, %v12070
        %v12135 = vadd.f32 %v8283, %v12071
        %v12136 = vadd.f32 %v8284, %v12072
        %v12137 = vadd.f32 %v8285, %v12073
        %v12138 = vadd.f32 %v8286, %v12074
        %v12139 = vadd.f32 %v8287, %v12075
        %v12140 = vadd.f32 %v8288, %v12076
        %v12141 = vadd.f32 %v8289, %v12077
        %v12142 = vadd.f32 %v8290, %v12078
        %v12143 = vadd.f32 %v8291, %v12079
        %v12144 = vadd.f32 %v8292, %v12080
        %v12145 = vadd.f32 %v8293, %v12081
        %v12146 = vadd.f32 %v8294, %v12082
        %v12147 = vadd.f32 %v8295, %v12083
        %v12148 = vadd.f32 %v8296, %v12084
        %v12149 = vadd.f32 %v8297, %v12085
        %v12150 = vadd.f32 %v8298, %v12086
        %v12151 = vadd.f32 %v8299, %v12087
        %v12152 = vadd.f32 %v8300, %v12088
        %v12153 = vadd.f32 %v8301, %v12089
        %v12154 = vadd.f32 %v8302, %v12090
        %v12155 = vadd.f32 %v8303, %v12091
        %v12156 = vadd.f32 %v8304, %v12092
        %v12157 = vadd.f32 %v8305, %v12093
        %v12158 = vadd.f32 %v8306, %v12094
        %v12159 = vadd.f32 %v8307, %v12095
        %v12160 = vadd.f32 %v8308, %v12096
        %v12161 = vadd.f32 %v8309, %v12097
        %v12162 = vadd.f32 %v8310, %v12098
        %v12163 = vadd.f32 %v8311, %v12099
        %v12164 = vadd.f32 %v8312, %v12100
        %v12165 = vadd.f32 %v8313, %v12101
        %v12166 = vadd.f32 %v8314, %v12102
        %v12231 = vlaneseq
        %v12232 = vshrl.u32 %v12231, 7
        %v12233 = vsub.s32 0, %v12232
        %v12234 = vrot.slane %v12103, %v12233
        %v12235 = vlaneseq
        %v12236 = vshrl.u32 %v12235, 7
        %v12237 = vsub.s32 0, %v12236
        %v12238 = vrot.slane %v12104, %v12237
        %v12239 = vlaneseq
        %v12240 = vshrl.u32 %v12239, 7
        %v12241 = vsub.s32 0, %v12240
        %v12242 = vrot.slane %v12105, %v12241
        %v12243 = vlaneseq
        %v12244 = vshrl.u32 %v12243, 7
        %v12245 = vsub.s32 0, %v12244
        %v12246 = vrot.slane %v12106, %v12245
        %v12247 = vlaneseq
        %v12248 = vshrl.u32 %v12247, 7
        %v12249 = vsub.s32 0, %v12248
        %v12250 = vrot.slane %v12107, %v12249
        %v12251 = vlaneseq
        %v12252 = vshrl.u32 %v12251, 7
        %v12253 = vsub.s32 0, %v12252
        %v12254 = vrot.slane %v12108, %v12253
        %v12255 = vlaneseq
        %v12256 = vshrl.u32 %v12255, 7
        %v12257 = vsub.s32 0, %v12256
        %v12258 = vrot.slane %v12109, %v12257
        %v12259 = vlaneseq
        %v12260 = vshrl.u32 %v12259, 7
        %v12261 = vsub.s32 0, %v12260
        %v12262 = vrot.slane %v12110, %v12261
        %v12263 = vlaneseq
        %v12264 = vshrl.u32 %v12263, 7
        %v12265 = vsub.s32 0, %v12264
        %v12266 = vrot.slane %v12111, %v12265
        %v12267 = vlaneseq
        %v12268 = vshrl.u32 %v12267, 7
        %v12269 = vsub.s32 0, %v12268
        %v12270 = vrot.slane %v12112, %v12269
        %v12271 = vlaneseq
        %v12272 = vshrl.u32 %v12271, 7
        %v12273 = vsub.s32 0, %v12272
        %v12274 = vrot.slane %v12113, %v12273
        %v12275 = vlaneseq
        %v12276 = vshrl.u32 %v12275, 7
        %v12277 = vsub.s32 0, %v12276
        %v12278 = vrot.slane %v12114, %v12277
        %v12279 = vlaneseq
        %v12280 = vshrl.u32 %v12279, 7
        %v12281 = vsub.s32 0, %v12280
        %v12282 = vrot.slane %v12115, %v12281
        %v12283 = vlaneseq
        %v12284 = vshrl.u32 %v12283, 7
        %v12285 = vsub.s32 0, %v12284
        %v12286 = vrot.slane %v12116, %v12285
        %v12287 = vlaneseq
        %v12288 = vshrl.u32 %v12287, 7
        %v12289 = vsub.s32 0, %v12288
        %v12290 = vrot.slane %v12117, %v12289
        %v12291 = vlaneseq
        %v12292 = vshrl.u32 %v12291, 7
        %v12293 = vsub.s32 0, %v12292
        %v12294 = vrot.slane %v12118, %v12293
        %v12295 = vlaneseq
        %v12296 = vshrl.u32 %v12295, 7
        %v12297 = vsub.s32 0, %v12296
        %v12298 = vrot.slane %v12119, %v12297
        %v12299 = vlaneseq
        %v12300 = vshrl.u32 %v12299, 7
        %v12301 = vsub.s32 0, %v12300
        %v12302 = vrot.slane %v12120, %v12301
        %v12303 = vlaneseq
        %v12304 = vshrl.u32 %v12303, 7
        %v12305 = vsub.s32 0, %v12304
        %v12306 = vrot.slane %v12121, %v12305
        %v12307 = vlaneseq
        %v12308 = vshrl.u32 %v12307, 7
        %v12309 = vsub.s32 0, %v12308
        %v12310 = vrot.slane %v12122, %v12309
        %v12311 = vlaneseq
        %v12312 = vshrl.u32 %v12311, 7
        %v12313 = vsub.s32 0, %v12312
        %v12314 = vrot.slane %v12123, %v12313
        %v12315 = vlaneseq
        %v12316 = vshrl.u32 %v12315, 7
        %v12317 = vsub.s32 0, %v12316
        %v12318 = vrot.slane %v12124, %v12317
        %v12319 = vlaneseq
        %v12320 = vshrl.u32 %v12319, 7
        %v12321 = vsub.s32 0, %v12320
        %v12322 = vrot.slane %v12125, %v12321
        %v12323 = vlaneseq
        %v12324 = vshrl.u32 %v12323, 7
        %v12325 = vsub.s32 0, %v12324
        %v12326 = vrot.slane %v12126, %v12325
        %v12327 = vlaneseq
        %v12328 = vshrl.u32 %v12327, 7
        %v12329 = vsub.s32 0, %v12328
        %v12330 = vrot.slane %v12127, %v12329
        %v12331 = vlaneseq
        %v12332 = vshrl.u32 %v12331, 7
        %v12333 = vsub.s32 0, %v12332
        %v12334 = vrot.slane %v12128, %v12333
        %v12335 = vlaneseq
        %v12336 = vshrl.u32 %v12335, 7
        %v12337 = vsub.s32 0, %v12336
        %v12338 = vrot.slane %v12129, %v12337
        %v12339 = vlaneseq
        %v12340 = vshrl.u32 %v12339, 7
        %v12341 = vsub.s32 0, %v12340
        %v12342 = vrot.slane %v12130, %v12341
        %v12343 = vlaneseq
        %v12344 = vshrl.u32 %v12343, 7
        %v12345 = vsub.s32 0, %v12344
        %v12346 = vrot.slane %v12131, %v12345
        %v12347 = vlaneseq
        %v12348 = vshrl.u32 %v12347, 7
        %v12349 = vsub.s32 0, %v12348
        %v12350 = vrot.slane %v12132, %v12349
        %v12351 = vlaneseq
        %v12352 = vshrl.u32 %v12351, 7
        %v12353 = vsub.s32 0, %v12352
        %v12354 = vrot.slane %v12133, %v12353
        %v12355 = vlaneseq
        %v12356 = vshrl.u32 %v12355, 7
        %v12357 = vsub.s32 0, %v12356
        %v12358 = vrot.slane %v12134, %v12357
        %v12359 = vlaneseq
        %v12360 = vshrl.u32 %v12359, 7
        %v12361 = vsub.s32 0, %v12360
        %v12362 = vrot.slane %v12135, %v12361
        %v12363 = vlaneseq
        %v12364 = vshrl.u32 %v12363, 7
        %v12365 = vsub.s32 0, %v12364
        %v12366 = vrot.slane %v12136, %v12365
        %v12367 = vlaneseq
        %v12368 = vshrl.u32 %v12367, 7
        %v12369 = vsub.s32 0, %v12368
        %v12370 = vrot.slane %v12137, %v12369
        %v12371 = vlaneseq
        %v12372 = vshrl.u32 %v12371, 7
        %v12373 = vsub.s32 0, %v12372
        %v12374 = vrot.slane %v12138, %v12373
        %v12375 = vlaneseq
        %v12376 = vshrl.u32 %v12375, 7
        %v12377 = vsub.s32 0, %v12376
        %v12378 = vrot.slane %v12139, %v12377
        %v12379 = vlaneseq
        %v12380 = vshrl.u32 %v12379, 7
        %v12381 = vsub.s32 0, %v12380
        %v12382 = vrot.slane %v12140, %v12381
        %v12383 = vlaneseq
        %v12384 = vshrl.u32 %v12383, 7
        %v12385 = vsub.s32 0, %v12384
        %v12386 = vrot.slane %v12141, %v12385
        %v12387 = vlaneseq
        %v12388 = vshrl.u32 %v12387, 7
        %v12389 = vsub.s32 0, %v12388
        %v12390 = vrot.slane %v12142, %v12389
        %v12391 = vlaneseq
        %v12392 = vshrl.u32 %v12391, 7
        %v12393 = vsub.s32 0, %v12392
        %v12394 = vrot.slane %v12143, %v12393
        %v12395 = vlaneseq
        %v12396 = vshrl.u32 %v12395, 7
        %v12397 = vsub.s32 0, %v12396
        %v12398 = vrot.slane %v12144, %v12397
        %v12399 = vlaneseq
        %v12400 = vshrl.u32 %v12399, 7
        %v12401 = vsub.s32 0, %v12400
        %v12402 = vrot.slane %v12145, %v12401
        %v12403 = vlaneseq
        %v12404 = vshrl.u32 %v12403, 7
        %v12405 = vsub.s32 0, %v12404
        %v12406 = vrot.slane %v12146, %v12405
        %v12407 = vlaneseq
        %v12408 = vshrl.u32 %v12407, 7
        %v12409 = vsub.s32 0, %v12408
        %v12410 = vrot.slane %v12147, %v12409
        %v12411 = vlaneseq
        %v12412 = vshrl.u32 %v12411, 7
        %v12413 = vsub.s32 0, %v12412
        %v12414 = vrot.slane %v12148, %v12413
        %v12415 = vlaneseq
        %v12416 = vshrl.u32 %v12415, 7
        %v12417 = vsub.s32 0, %v12416
        %v12418 = vrot.slane %v12149, %v12417
        %v12419 = vlaneseq
        %v12420 = vshrl.u32 %v12419, 7
        %v12421 = vsub.s32 0, %v12420
        %v12422 = vrot.slane %v12150, %v12421
        %v12423 = vlaneseq
        %v12424 = vshrl.u32 %v12423, 7
        %v12425 = vsub.s32 0, %v12424
        %v12426 = vrot.slane %v12151, %v12425
        %v12427 = vlaneseq
        %v12428 = vshrl.u32 %v12427, 7
        %v12429 = vsub.s32 0, %v12428
        %v12430 = vrot.slane %v12152, %v12429
        %v12431 = vlaneseq
        %v12432 = vshrl.u32 %v12431, 7
        %v12433 = vsub.s32 0, %v12432
        %v12434 = vrot.slane %v12153, %v12433
        %v12435 = vlaneseq
        %v12436 = vshrl.u32 %v12435, 7
        %v12437 = vsub.s32 0, %v12436
        %v12438 = vrot.slane %v12154, %v12437
        %v12439 = vlaneseq
        %v12440 = vshrl.u32 %v12439, 7
        %v12441 = vsub.s32 0, %v12440
        %v12442 = vrot.slane %v12155, %v12441
        %v12443 = vlaneseq
        %v12444 = vshrl.u32 %v12443, 7
        %v12445 = vsub.s32 0, %v12444
        %v12446 = vrot.slane %v12156, %v12445
        %v12447 = vlaneseq
        %v12448 = vshrl.u32 %v12447, 7
        %v12449 = vsub.s32 0, %v12448
        %v12450 = vrot.slane %v12157, %v12449
        %v12451 = vlaneseq
        %v12452 = vshrl.u32 %v12451, 7
        %v12453 = vsub.s32 0, %v12452
        %v12454 = vrot.slane %v12158, %v12453
        %v12455 = vlaneseq
        %v12456 = vshrl.u32 %v12455, 7
        %v12457 = vsub.s32 0, %v12456
        %v12458 = vrot.slane %v12159, %v12457
        %v12459 = vlaneseq
        %v12460 = vshrl.u32 %v12459, 7
        %v12461 = vsub.s32 0, %v12460
        %v12462 = vrot.slane %v12160, %v12461
        %v12463 = vlaneseq
        %v12464 = vshrl.u32 %v12463, 7
        %v12465 = vsub.s32 0, %v12464
        %v12466 = vrot.slane %v12161, %v12465
        %v12467 = vlaneseq
        %v12468 = vshrl.u32 %v12467, 7
        %v12469 = vsub.s32 0, %v12468
        %v12470 = vrot.slane %v12162, %v12469
        %v12471 = vlaneseq
        %v12472 = vshrl.u32 %v12471, 7
        %v12473 = vsub.s32 0, %v12472
        %v12474 = vrot.slane %v12163, %v12473
        %v12475 = vlaneseq
        %v12476 = vshrl.u32 %v12475, 7
        %v12477 = vsub.s32 0, %v12476
        %v12478 = vrot.slane %v12164, %v12477
        %v12479 = vlaneseq
        %v12480 = vshrl.u32 %v12479, 7
        %v12481 = vsub.s32 0, %v12480
        %v12482 = vrot.slane %v12165, %v12481
        %v12483 = vlaneseq
        %v12484 = vshrl.u32 %v12483, 7
        %v12485 = vsub.s32 0, %v12484
        %v12486 = vrot.slane %v12166, %v12485
        %vm12487 = vcmask 1041409
        %v12488 = vsel %vm12487, %v12238, %v12234
        %vm12489 = vcmask 1042434
        %v12490 = vsel %vm12489, %v12242, %v12488
        %vm12491 = vcmask 1043459
        %v12492 = vsel %vm12491, %v12246, %v12490
        %vm12493 = vcmask 1044484
        %v12494 = vsel %vm12493, %v12250, %v12492
        %vm12495 = vcmask 1045509
        %v12496 = vsel %vm12495, %v12254, %v12494
        %vm12497 = vcmask 1046534
        %v12498 = vsel %vm12497, %v12258, %v12496
        %vm12499 = vcmask 1047559
        %v12500 = vsel %vm12499, %v12262, %v12498
        %v12501 = vsel %vm12487, %v12270, %v12266
        %v12502 = vsel %vm12489, %v12274, %v12501
        %v12503 = vsel %vm12491, %v12278, %v12502
        %v12504 = vsel %vm12493, %v12282, %v12503
        %v12505 = vsel %vm12495, %v12286, %v12504
        %v12506 = vsel %vm12497, %v12290, %v12505
        %v12507 = vsel %vm12499, %v12294, %v12506
        %v12508 = vsel %vm12487, %v12302, %v12298
        %v12509 = vsel %vm12489, %v12306, %v12508
        %v12510 = vsel %vm12491, %v12310, %v12509
        %v12511 = vsel %vm12493, %v12314, %v12510
        %v12512 = vsel %vm12495, %v12318, %v12511
        %v12513 = vsel %vm12497, %v12322, %v12512
        %v12514 = vsel %vm12499, %v12326, %v12513
        %v12515 = vsel %vm12487, %v12334, %v12330
        %v12516 = vsel %vm12489, %v12338, %v12515
        %v12517 = vsel %vm12491, %v12342, %v12516
        %v12518 = vsel %vm12493, %v12346, %v12517
        %v12519 = vsel %vm12495, %v12350, %v12518
        %v12520 = vsel %vm12497, %v12354, %v12519
        %v12521 = vsel %vm12499, %v12358, %v12520
        %v12522 = vsel %vm12487, %v12366, %v12362
        %v12523 = vsel %vm12489, %v12370, %v12522
        %v12524 = vsel %vm12491, %v12374, %v12523
        %v12525 = vsel %vm12493, %v12378, %v12524
        %v12526 = vsel %vm12495, %v12382, %v12525
        %v12527 = vsel %vm12497, %v12386, %v12526
        %v12528 = vsel %vm12499, %v12390, %v12527
        %v12529 = vsel %vm12487, %v12398, %v12394
        %v12530 = vsel %vm12489, %v12402, %v12529
        %v12531 = vsel %vm12491, %v12406, %v12530
        %v12532 = vsel %vm12493, %v12410, %v12531
        %v12533 = vsel %vm12495, %v12414, %v12532
        %v12534 = vsel %vm12497, %v12418, %v12533
        %v12535 = vsel %vm12499, %v12422, %v12534
        %v12536 = vsel %vm12487, %v12430, %v12426
        %v12537 = vsel %vm12489, %v12434, %v12536
        %v12538 = vsel %vm12491, %v12438, %v12537
        %v12539 = vsel %vm12493, %v12442, %v12538
        %v12540 = vsel %vm12495, %v12446, %v12539
        %v12541 = vsel %vm12497, %v12450, %v12540
        %v12542 = vsel %vm12499, %v12454, %v12541
        %v12543 = vsel %vm12487, %v12462, %v12458
        %v12544 = vsel %vm12489, %v12466, %v12543
        %v12545 = vsel %vm12491, %v12470, %v12544
        %v12546 = vsel %vm12493, %v12474, %v12545
        %v12547 = vsel %vm12495, %v12478, %v12546
        %v12548 = vsel %vm12497, %v12482, %v12547
        %v12549 = vsel %vm12499, %v12486, %v12548
        %12558 = vst.msk [vmem:[%s325] sm:$0xff] %vm3030, %v12500
        %12559 = vst.msk [vmem:[%s325 + $0x8] sm:$0xff] %vm3030, %v12507
        %12560 = vst.msk [vmem:[%s325 + $0x10] sm:$0xff] %vm3030, %v12514
        %12561 = vst.msk [vmem:[%s325 + $0x18] sm:$0xff] %vm3030, %v12521
        %12562 = vst.msk [vmem:[%s325 + $0x20] sm:$0xff] %vm3030, %v12528
        %12563 = vst.msk [vmem:[%s325 + $0x28] sm:$0xff] %vm3030, %v12535
        %12564 = vst.msk [vmem:[%s325 + $0x30] sm:$0xff] %vm3030, %v12542
        %12565 = vst.msk [vmem:[%s325 + $0x38] sm:$0xff] %vm3030, %v12549
        %s12566 = sand.u32 %s225, 1
        %s12567 = scalar_lea.sflag [#allocation5], %s12566
        %s12568 = sand.u32 %s225, 1
        %s12569 = smul.addr %s12568, 64
        %s12570 = scalar_lea.vmem [#allocation4], %s12569
        // Predicated region
        $region57: #{block_forward_fused.1} parent=55 // pred_check
          %p12571 = pneg %p235
        $region58: #{block_forward_fused.1} parent=55 // pred_check_branch
          %12573 = sbr.rel (%p12571) target = $region60
        $region59: #{block_forward_fused.1} parent=55 // pred_region
          %s12575 = ssub.s32 1024, 1024
          %12576 = vsyncadd %s12567, %s12575
          %s12577 = smul.addr %s23, 8
          %s12578 = smul.addr %s12577, 128
          %s12579 = scalar_lea.hbm %s9, %s12578
          %s12580 = sshll.u32 %s12570, 4
          %s12581 = int_to_ptr.vmem [resolvable:$true] %s12580
          %12586 = dma.vmem_to_hbm [thread:$0]  %s12581, 1024, %s12579, %s12567, 128, 128, 8
        $region60: #{block_forward_fused.1} parent=55 // pred_fallthru
          _
      $region56: #{block_forward_fused.1} parent=5 // pred_fallthru
        _
      %p12587 = scmp.le.s32.totalorder 2, %s18
      // Predicated region
      $region61: #{block_forward_fused.1} parent=5 // pred_check
        %p12588 = pneg %p12587
      $region62: #{block_forward_fused.1} parent=5 // pred_check_branch
        %12590 = sbr.rel (%p12588) target = $region64
      $region63: #{block_forward_fused.1} parent=5 // pred_region
        %s12591 = ssub.s32 %s18, 2
        // Predicated region
        $region65: #{block_forward_fused.1} parent=63 // pred_check
          %p12592 = pneg %p241
        $region66: #{block_forward_fused.1} parent=63 // pred_check_branch
          %12594 = sbr.rel (%p12592) target = $region68
        $region67: #{block_forward_fused.1} parent=63 // pred_region
          %s12595 = sand.u32 %s226, 1
          %s12596 = scalar_lea.sflag [#allocation5], %s12595
          %s12597 = sand.u32 %s226, 1
          %s12598 = smul.addr %s12597, 64
          %s12599 = scalar_lea.vmem [#allocation4], %s12598
          %12600 = dma.done %s12596, 1024
        $region68: #{block_forward_fused.1} parent=63 // pred_fallthru
          _
      $region64: #{block_forward_fused.1} parent=5 // pred_fallthru
        _
    $region6: #{block_forward_fused.1} parent=1 // loop_footer
      %s22 = sadd.s32 1, %s18
    $region7: #{block_forward_fused.1} parent=1 // loop_footer_branch
      %17 = sbr.rel target = $region3
    $region8: #{block_forward_fused.1} parent=1 // loop_exit
      _
    %12601 = vsyncpa [#allocation5], 1
    %s12602 = scalar_lea.sflag [#allocation5], 1
    %12603 = vsyncpa %s12602, 1

</llo_original>
